<compile_context>
chip_gen: v6e
topology: v6e:2x2x1
jax: 0.10.0
libtpu: 0.0.40
codegen_flags: <defaults>
</compile_context>

<pallas_src>
import functools

import numpy as np
import jax
import jax.numpy as jnp
from jax import lax
from jax.experimental import pallas as pl
from jax.experimental.pallas import tpu as pltpu

_BN_EPS = 1e-5
_INV_SQRT2 = 0.7071067811865476


def _erf(z):
    # Abramowitz & Stegun 7.1.26; mul/add/select/exp only, divide -> EUP slot.
    a1, a2, a3, a4, a5 = (0.254829592, -0.284496736, 1.421413741,
                          -1.453152027, 1.061405429)
    p = 0.3275911
    s = jnp.where(z >= 0.0, 1.0, -1.0)
    az = jnp.abs(z)
    t = pl.reciprocal(1.0 + p * az, approx=True)
    poly = ((((a5 * t + a4) * t + a3) * t + a2) * t + a1) * t
    return s * (1.0 - poly * jnp.exp(-az * az))


def _gelu(z):
    # exact (erf-based) GELU, matching torch.nn.GELU() default
    return 0.5 * z * (1.0 + _erf(z * _INV_SQRT2))


def _unet_up_kernel(lhs_ref, btw_ref, btb_ref, bcw_ref, gamma_ref, beta_ref,
                    sel_ref, selt_ref, out_ref, apad_ref, *, n, h, cout):
    wc = out_ref.shape[1]
    w = wc // cout
    hp = h + 2                      # per-image slab height in the flat scratch
    m_out = n * hp - 2              # flattened conv-output rows (incl. junk)
    inv_m = 1.0 / float(n * h * w)  # BN sample count per channel

    # ---- zero only the halo rows (top/bottom of each image slab) ----------
    zrow = jnp.zeros((1, wc), jnp.bfloat16)
    for img in range(n):
        apad_ref[pl.ds(img * hp, 1), :] = zrow
        apad_ref[pl.ds(img * hp + h + 1, 1), :] = zrow

    # ---- ConvTranspose2d(k=2, s=2): ONE GEMM --------------------------------
    # The ky row-parity expansion is prebuilt into the host lhs, so the result
    # is already (N*H, W*C) row- and lane-dense: no in-kernel relayout.
    up = jnp.dot(lhs_ref[...], btw_ref[...], preferred_element_type=jnp.float32)
    act0 = up + btb_ref[...]        # ConvTranspose bias kept (NOT cancelled by BN)
    for img in range(n):
        apad_ref[pl.ds(img * hp + 1, h), :] = \
            act0[img * h:(img + 1) * h, :].astype(jnp.bfloat16)

    # 0/1 row mask over the flattened padded rows: drops the 2 junk rows per
    # image boundary from the BatchNorm statistics.
    rid = lax.broadcasted_iota(jnp.int32, (m_out, wc), 0)
    mask = jnp.where(rid % hp < h, 1.0, 0.0).astype(jnp.float32)

    for k in range(4):              # 4x (Conv3x3 -> BN(train) -> GELU)
        # -- 3x3 conv as ONE GEMM: dx taps + channel mixing are baked into the
        #    banded weight, the 3 dy taps are fused into K via an im2col of
        #    three shifted bf16 views of the flat padded scratch.
        #    Conv bias omitted: exactly cancelled by the BN mean subtraction.
        lhs3 = jnp.concatenate(
            [apad_ref[pl.ds(dy, m_out), :] for dy in range(3)], axis=1)
        y = jnp.dot(lhs3, bcw_ref[k], preferred_element_type=jnp.float32)

        # -- BatchNorm2d (training stats), single masked pass ---------------
        ym = y * mask
        stats_l = jnp.concatenate(
            [jnp.sum(ym, axis=0, keepdims=True),
             jnp.sum(ym * ym, axis=0, keepdims=True)], axis=0)       # (2, W*C)
        stats_c = jnp.dot(stats_l, sel_ref[...],
                          preferred_element_type=jnp.float32,
                          precision=lax.Precision.HIGHEST)           # (2, C)
        mean_c = stats_c[0:1, :] * inv_m
        var_c = jnp.maximum(stats_c[1:2, :] * inv_m - mean_c * mean_c, 0.0)
        a_c = gamma_ref[k] * lax.rsqrt(var_c + _BN_EPS)              # (1, C)
        b_c = beta_ref[k] - mean_c * a_c                             # (1, C)
        # channel -> lane expansion on the (otherwise idle) MXU, not jnp.tile
        ab_l = jnp.dot(jnp.concatenate([a_c, b_c], axis=0), selt_ref[...],
                       preferred_element_type=jnp.float32,
                       precision=lax.Precision.HIGHEST)              # (2, W*C)
        act = _gelu(y * ab_l[0:1, :] + ab_l[1:2, :])                 # (m_out, W*C)

        if k < 3:
            # restage only the valid rows; single bf16 cast per element
            for img in range(n):
                apad_ref[pl.ds(img * hp + 1, h), :] = \
                    act[img * hp:img * hp + h, :].astype(jnp.bfloat16)
        else:
            for img in range(n):
                out_ref[pl.ds(img * h, h), :] = act[img * hp:img * hp + h, :]


# ----------------------- host-side weight preprocessing -----------------------

def _convt_banded_weight(wt, w0):
    """torch ConvTranspose2d weight (Cin, Cout, 2, 2) -> GEMM RHS
    (2*W0*Cin, W*Cout); K ordered [ky][j*Cin+ci], lanes [(2j+kx)*Cout+co]."""
    wt = np.asarray(wt, np.float32)
    cin, cout = wt.shape[0], wt.shape[1]
    w = 2 * w0
    b = np.zeros((2 * w0 * cin, w * cout), np.float32)
    for ky in range(2):
        for j in range(w0):
            for kx in range(2):
                col = (2 * j + kx) * cout
                b[ky * w0 * cin + j * cin:ky * w0 * cin + (j + 1) * cin,
                  col:col + cout] = wt[:, :, ky, kx]
    return b


def _conv3x3_banded_weight(wk, w):
    """torch Conv2d weight (Cout, Cin, 3, 3) -> (3*W*Cin, W*Cout): dy folded
    into K (outermost), dx taps + channel mixing folded into the band
    (zero-pad in W handled by dropping out-of-range taps)."""
    wk = np.asarray(wk, np.float32)
    cout, cin = wk.shape[0], wk.shape[1]
    b = np.zeros((3, w * cin, w * cout), np.float32)
    for dy in range(3):
        for wq in range(w):
            for dx in range(3):
                wi = wq - 1 + dx
                if 0 <= wi < w:
                    b[dy, wi * cin:(wi + 1) * cin,
                      wq * cout:(wq + 1) * cout] = wk[:, :, dy, dx].T
    return b.reshape(3 * w * cin, w * cout)


def unet_up_forward(x_nchw, skip_nchw, params):
    """UnetUp forward. x, skip: (N, C, H0, W0) -> (N, Cout, 2*H0, 2*W0)."""
    n, cx, h0, w0 = x_nchw.shape
    cin = cx + skip_nchw.shape[1]
    cout = params["wt"].shape[1]
    h, w = 2 * h0, 2 * w0
    wc = w * cout
    m_out = n * (h + 2) - 2

    # glue: channel concat, NCHW -> (N, H0, W0*Cin), then the ky row-parity
    # expansion so the ConvTranspose GEMM output is already (N*H, W*C)
    # row/lane dense. bf16 on the host -> half the activation DMA.
    xc = jnp.concatenate([x_nchw, skip_nchw], axis=1)
    xcf = jnp.transpose(xc, (0, 2, 3, 1)).reshape(n, h0, w0 * cin)
    zz = jnp.zeros_like(xcf)
    lhs = jnp.stack([jnp.concatenate([xcf, zz], axis=-1),
                     jnp.concatenate([zz, xcf], axis=-1)], axis=2)
    lhs = lhs.reshape(n * h, 2 * w0 * cin).astype(jnp.bfloat16)

    # parameter preprocessing (host side): convs -> banded GEMM operands so
    # every conv output is produced directly lane-dense (bf16 RHS, f32 acc).
    btw = jnp.asarray(_convt_banded_weight(params["wt"], w0), jnp.bfloat16)
    btb = jnp.asarray(np.tile(np.asarray(params["bt"], np.float32), w)
                      ).reshape(1, wc)
    bcw = jnp.asarray(np.stack([_conv3x3_banded_weight(params["w"][k], w)
                                for k in range(4)]), jnp.bfloat16)
    gam = jnp.stack([jnp.asarray(params["gamma"][k], jnp.float32
                                 ).reshape(1, cout) for k in range(4)])
    bet = jnp.stack([jnp.asarray(params["beta"][k], jnp.float32
                                 ).reshape(1, cout) for k in range(4)])
    sel = jnp.asarray(np.tile(np.eye(cout, dtype=np.float32), (w, 1)))   # (W*C, C)
    selt = jnp.asarray(np.tile(np.eye(cout, dtype=np.float32), (1, w)))  # (C, W*C)
    # NOTE: conv biases b1..b4 are intentionally not passed to the kernel —
    # training-mode BatchNorm subtracts the batch mean, cancelling them exactly.

    args = (lhs, btw, btb, bcw, gam, bet, sel, selt)

    # CostEstimate reports the MXU work actually issued (the banded conv GEMM
    # does ~W/3x more MACs than the logical 9*C-tap conv; see TODO above).
    flops = (2 * (n * h) * (2 * w0 * cin) * wc        # ConvTranspose GEMM
             + 4 * 2 * m_out * (3 * wc) * wc          # 4x dy-fused banded conv GEMM
             + 4 * 40 * m_out * wc)                   # BN + GELU elementwise
    bytes_accessed = int(sum(int(a.size) * a.dtype.itemsize for a in args)
                         + n * h * wc * 4)
    cost = pl.CostEstimate(flops=int(flops),
                           transcendentals=int(4 * m_out * wc),
                           bytes_accessed=bytes_accessed)

    kern = functools.partial(_unet_up_kernel, n=n, h=h, cout=cout)
    out2d = pl.pallas_call(
        kern,
        out_shape=jax.ShapeDtypeStruct((n * h, wc), jnp.float32),
        in_specs=[pl.BlockSpec(memory_space=pltpu.MemorySpace.VMEM)
                  for _ in args],
        out_specs=pl.BlockSpec(memory_space=pltpu.MemorySpace.VMEM),
        scratch_shapes=[pltpu.VMEM((n * (h + 2), wc), jnp.bfloat16)],
        compiler_params=pltpu.CompilerParams(
            vmem_limit_bytes=32 * 1024 * 1024),
        cost_estimate=cost,
    )(*args)

    # glue: lane-dense (N*H, W*Cout) -> NCHW
    return jnp.transpose(out2d.reshape(n, h, w, cout), (0, 3, 1, 2))


# --------------------------- pure-JAX reference ---------------------------

def _ref_forward(x, skip, params):
    """Mirrors the PyTorch UnetUp graph exactly (f32, HIGHEST precision)."""
    xc = jnp.concatenate([x, skip], axis=1)
    n, _, h0, w0 = xc.shape
    cout = params["wt"].shape[1]

    # ConvTranspose2d(k=2, s=2): each input pixel stamps the 2x2 kernel.
    y = jnp.einsum("ncij,cdkl->ndikjl", xc, params["wt"],
                   precision=lax.Precision.HIGHEST)
    y = y.reshape(n, cout, 2 * h0, 2 * w0) + params["bt"][None, :, None, None]

    def block(z, wgt, b, g, be):
        z = lax.conv_general_dilated(z, wgt, (1, 1), ((1, 1), (1, 1)),
                                     dimension_numbers=("NCHW", "OIHW", "NCHW"),
                                     precision=lax.Precision.HIGHEST)
        z = z + b[None, :, None, None]
        mean = jnp.mean(z, axis=(0, 2, 3), keepdims=True)
        var = jnp.mean((z - mean) ** 2, axis=(0, 2, 3), keepdims=True)
        z = (z - mean) / jnp.sqrt(var + _BN_EPS) * g[None, :, None, None] \
            + be[None, :, None, None]
        return jax.nn.gelu(z, approximate=False)

    for k in range(4):                    # 2 ResidualConvBlocks (is_res=False)
        y = block(y, params["w"][k], params["b"][k],
                  params["gamma"][k], params["beta"][k])
    return y


if __name__ == "__main__":
    N, CX, CS, H0, W0 = 2, 4, 4, 8, 8     # x/skip at 8x8, output at 16x16
    CIN, COUT = CX + CS, 8                # ConvTranspose2d(CIN, COUT, 2, 2)
    ks = jax.random.split(jax.random.PRNGKey(0), 20)

    params = {
        "wt": 0.2 * jax.random.normal(ks[0], (CIN, COUT, 2, 2), jnp.float32),
        "bt": 0.1 * jax.random.normal(ks[1], (COUT,), jnp.float32),
        "w": [0.2 * jax.random.normal(ks[2 + k], (COUT, COUT, 3, 3),
                                      jnp.float32) for k in range(4)],
        "b": [0.1 * jax.random.normal(ks[6 + k], (COUT,), jnp.float32)
              for k in range(4)],
        "gamma": [1.0 + 0.1 * jax.random.normal(ks[10 + k], (COUT,),
                                                jnp.float32) for k in range(4)],
        "beta": [0.1 * jax.random.normal(ks[14 + k], (COUT,), jnp.float32)
                 for k in range(4)],
    }
    x = jax.random.normal(ks[18], (N, CX, H0, W0), jnp.float32)
    skip = jax.random.normal(ks[19], (N, CS, H0, W0), jnp.float32)

    out = jax.block_until_ready(unet_up_forward(x, skip, params))
    ref = jax.block_until_ready(_ref_forward(x, skip, params))
    assert out.shape == (N, COUT, 2 * H0, 2 * W0), out.shape
    # tolerance sized for bf16 MXU weights/activations (f32 accumulation)
    # through 5 stacked conv layers vs. an f32 HIGHEST-precision reference
    np.testing.assert_allclose(np.asarray(out), np.asarray(ref),
                               atol=7.5e-2, rtol=7.5e-2)
    print("KERNEL_OK")
</pallas_src>

<mosaic_0001>
module attributes {stable_mosaic.version = 11 : i64} {
  func.func @_unet_up_kernel(%arg0: memref<32x128xbf16, #tpu.memory_space<vmem>>, %arg1: memref<128x128xbf16, #tpu.memory_space<vmem>>, %arg2: memref<1x128xf32, #tpu.memory_space<vmem>>, %arg3: memref<4x384x128xbf16, #tpu.memory_space<vmem>>, %arg4: memref<4x1x8xf32, #tpu.memory_space<vmem>>, %arg5: memref<4x1x8xf32, #tpu.memory_space<vmem>>, %arg6: memref<128x8xf32, #tpu.memory_space<vmem>>, %arg7: memref<8x128xf32, #tpu.memory_space<vmem>>, %arg8: memref<32x128xf32, #tpu.memory_space<vmem>>, %arg9: memref<36x128xbf16, #tpu.memory_space<vmem>>) attributes {dimension_semantics = [], scalar_prefetch = 0 : i64, scratch_operands = 1 : i64, tpu.core_type = #tpu.core_type<tc>} {
    %cst = arith.constant 0.000000e+00 : bf16
    %0 = vector.broadcast %cst : bf16 to vector<1x128xbf16>
    %c0 = arith.constant 0 : index
    %c0_0 = arith.constant 0 : index
    %1 = vector.load %arg9[%c0, %c0_0] : memref<36x128xbf16, #tpu.memory_space<vmem>>, vector<1x128xbf16>
    tpu.vector_store %arg9[%c0, %c0_0], %0 {strides = array<i32>} : memref<36x128xbf16, #tpu.memory_space<vmem>>, vector<1x128xbf16>,
    %c17 = arith.constant 17 : index
    %c0_1 = arith.constant 0 : index
    %2 = vector.load %arg9[%c17, %c0_1] : memref<36x128xbf16, #tpu.memory_space<vmem>>, vector<1x128xbf16>
    tpu.vector_store %arg9[%c17, %c0_1], %0 {strides = array<i32>} : memref<36x128xbf16, #tpu.memory_space<vmem>>, vector<1x128xbf16>,
    %c18 = arith.constant 18 : index
    %c0_2 = arith.constant 0 : index
    %3 = vector.load %arg9[%c18, %c0_2] : memref<36x128xbf16, #tpu.memory_space<vmem>>, vector<1x128xbf16>
    tpu.vector_store %arg9[%c18, %c0_2], %0 {strides = array<i32>} : memref<36x128xbf16, #tpu.memory_space<vmem>>, vector<1x128xbf16>,
    %c35 = arith.constant 35 : index
    %c0_3 = arith.constant 0 : index
    %4 = vector.load %arg9[%c35, %c0_3] : memref<36x128xbf16, #tpu.memory_space<vmem>>, vector<1x128xbf16>
    tpu.vector_store %arg9[%c35, %c0_3], %0 {strides = array<i32>} : memref<36x128xbf16, #tpu.memory_space<vmem>>, vector<1x128xbf16>,
    %c0_4 = arith.constant 0 : index
    %c0_5 = arith.constant 0 : index
    %5 = vector.load %arg0[%c0_4, %c0_5] : memref<32x128xbf16, #tpu.memory_space<vmem>>, vector<32x128xbf16>
    %c0_6 = arith.constant 0 : index
    %c0_7 = arith.constant 0 : index
    %6 = vector.load %arg1[%c0_6, %c0_7] : memref<128x128xbf16, #tpu.memory_space<vmem>>, vector<128x128xbf16>
    %cst_8 = arith.constant dense<0.000000e+00> : vector<32x128xf32>
    %7 = tpu.matmul %5, %6, %cst_8 {dimension_numbers = #tpu.dot_dimension_numbers<[1], [0], [0], [1], [0, 0, 1, 1], [], []>} : vector<32x128xbf16>, vector<128x128xbf16>, vector<32x128xf32> -> vector<32x128xf32>
    %c0_9 = arith.constant 0 : index
    %c0_10 = arith.constant 0 : index
    %8 = vector.load %arg2[%c0_9, %c0_10] : memref<1x128xf32, #tpu.memory_space<vmem>>, vector<1x128xf32>
    %9 = vector.broadcast %8 : vector<1x128xf32> to vector<32x128xf32>
    %10 = arith.addf %7, %9 : vector<32x128xf32>
    %11 = vector.extract_strided_slice %10 {offsets = [0, 0], sizes = [16, 128], strides = [1, 1]} : vector<32x128xf32> to vector<16x128xf32>
    %12 = arith.truncf %11 : vector<16x128xf32> to vector<16x128xbf16>
    %c1 = arith.constant 1 : index
    %c0_11 = arith.constant 0 : index
    %13 = vector.load %arg9[%c1, %c0_11] : memref<36x128xbf16, #tpu.memory_space<vmem>>, vector<16x128xbf16>
    tpu.vector_store %arg9[%c1, %c0_11], %12 {strides = array<i32>} : memref<36x128xbf16, #tpu.memory_space<vmem>>, vector<16x128xbf16>,
    %14 = vector.extract_strided_slice %10 {offsets = [16, 0], sizes = [16, 128], strides = [1, 1]} : vector<32x128xf32> to vector<16x128xf32>
    %15 = arith.truncf %14 : vector<16x128xf32> to vector<16x128xbf16>
    %c19 = arith.constant 19 : index
    %c0_12 = arith.constant 0 : index
    %16 = vector.load %arg9[%c19, %c0_12] : memref<36x128xbf16, #tpu.memory_space<vmem>>, vector<16x128xbf16>
    tpu.vector_store %arg9[%c19, %c0_12], %15 {strides = array<i32>} : memref<36x128xbf16, #tpu.memory_space<vmem>>, vector<16x128xbf16>,
    %17 = tpu.iota {dimensions = array<i32: 0>} : vector<34x128xi32>
    %c18_i32 = arith.constant 18 : i32
    %c0_i32 = arith.constant 0 : i32
    %18 = arith.cmpi eq, %c18_i32, %c0_i32 : i32
    %c1_i32 = arith.constant 1 : i32
    %19 = arith.select %18, %c1_i32, %c18_i32 : i32
    %20 = vector.broadcast %19 : i32 to vector<34x128xi32>
    %21 = arith.remsi %17, %20 : vector<34x128xi32>
    %c0_i32_13 = arith.constant 0 : i32
    %22 = vector.broadcast %c0_i32_13 : i32 to vector<34x128xi32>
    %23 = arith.cmpi ne, %21, %22 : vector<34x128xi32>
    %c0_i32_14 = arith.constant 0 : i32
    %24 = vector.broadcast %c0_i32_14 : i32 to vector<34x128xi32>
    %25 = arith.cmpi slt, %21, %24 : vector<34x128xi32>
    %c0_i32_15 = arith.constant 0 : i32
    %26 = arith.cmpi slt, %19, %c0_i32_15 : i32
    %27 = vector.broadcast %26 : i1 to vector<34x128xi1>
    %28 = vector.broadcast %27 : vector<34x128xi1> to vector<34x128xi1>
    %29 = arith.xori %25, %28 : vector<34x128xi1>
    %30 = arith.andi %29, %23 : vector<34x128xi1>
    %31 = vector.broadcast %19 : i32 to vector<34x128xi32>
    %32 = arith.addi %21, %31 : vector<34x128xi32>
    %33 = arith.select %30, %32, %21 : vector<34x128xi1>, vector<34x128xi32>
    %c16_i32 = arith.constant 16 : i32
    %34 = vector.broadcast %c16_i32 : i32 to vector<34x128xi32>
    %35 = arith.cmpi slt, %33, %34 : vector<34x128xi32>
    %cst_16 = arith.constant 1.000000e+00 : f32
    %cst_17 = arith.constant 0.000000e+00 : f32
    %36 = vector.broadcast %cst_16 : f32 to vector<34x128xf32>
    %37 = vector.broadcast %cst_17 : f32 to vector<34x128xf32>
    %38 = arith.select %35, %36, %37 : vector<34x128xi1>, vector<34x128xf32>
    %c0_18 = arith.constant 0 : index
    %c0_19 = arith.constant 0 : index
    %39 = vector.load %arg9[%c0_18, %c0_19] : memref<36x128xbf16, #tpu.memory_space<vmem>>, vector<34x128xbf16>
    %c1_20 = arith.constant 1 : index
    %c0_21 = arith.constant 0 : index
    %40 = vector.load %arg9[%c1_20, %c0_21] : memref<36x128xbf16, #tpu.memory_space<vmem>>, vector<34x128xbf16>
    %c2 = arith.constant 2 : index
    %c0_22 = arith.constant 0 : index
    %41 = vector.load %arg9[%c2, %c0_22] : memref<36x128xbf16, #tpu.memory_space<vmem>>, vector<34x128xbf16>
    %42 = tpu.concatenate %39, %40, %41 in 1 : vector<34x128xbf16>, vector<34x128xbf16>, vector<34x128xbf16> -> vector<34x384xbf16>
    %c0_23 = arith.constant 0 : index
    %c0_24 = arith.constant 0 : index
    %c0_25 = arith.constant 0 : index
    %43 = vector.load %arg3[%c0_23, %c0_24, %c0_25] : memref<4x384x128xbf16, #tpu.memory_space<vmem>>, vector<1x384x128xbf16>
    %44 = vector.shape_cast %43 : vector<1x384x128xbf16> to vector<384x128xbf16>
    %cst_26 = arith.constant dense<0.000000e+00> : vector<34x128xf32>
    %45 = tpu.matmul %42, %44, %cst_26 {dimension_numbers = #tpu.dot_dimension_numbers<[1], [0], [0], [1], [0, 0, 1, 1], [], []>} : vector<34x384xbf16>, vector<384x128xbf16>, vector<34x128xf32> -> vector<34x128xf32>
    %46 = arith.mulf %45, %38 : vector<34x128xf32>
    %cst_27 = arith.constant dense<0.000000e+00> : vector<128xf32>
    %47 = vector.multi_reduction <add>, %46, %cst_27 [0] : vector<34x128xf32> to vector<128xf32>
    %48 = vector.shape_cast %47 : vector<128xf32> to vector<1x128xf32>
    %49 = arith.mulf %46, %46 : vector<34x128xf32>
    %cst_28 = arith.constant dense<0.000000e+00> : vector<128xf32>
    %50 = vector.multi_reduction <add>, %49, %cst_28 [0] : vector<34x128xf32> to vector<128xf32>
    %51 = vector.shape_cast %50 : vector<128xf32> to vector<1x128xf32>
    %52 = tpu.concatenate %48, %51 in 0 : vector<1x128xf32>, vector<1x128xf32> -> vector<2x128xf32>
    %c0_29 = arith.constant 0 : index
    %c0_30 = arith.constant 0 : index
    %53 = vector.load %arg6[%c0_29, %c0_30] : memref<128x8xf32, #tpu.memory_space<vmem>>, vector<128x8xf32>
    %cst_31 = arith.constant dense<0.000000e+00> : vector<2x8xf32>
    %54 = tpu.matmul %52, %53, %cst_31 {dimension_numbers = #tpu.dot_dimension_numbers<[1], [0], [0], [1], [0, 0, 1, 1], [], []>, precision = #tpu.contract_precision<fp32>} : vector<2x128xf32>, vector<128x8xf32>, vector<2x8xf32> -> vector<2x8xf32>
    %55 = vector.extract_strided_slice %54 {offsets = [0, 0], sizes = [1, 8], strides = [1, 1]} : vector<2x8xf32> to vector<1x8xf32>
    %cst_32 = arith.constant 0.001953125 : f32
    %56 = vector.broadcast %cst_32 : f32 to vector<1x8xf32>
    %57 = arith.mulf %55, %56 : vector<1x8xf32>
    %58 = vector.extract_strided_slice %54 {offsets = [1, 0], sizes = [1, 8], strides = [1, 1]} : vector<2x8xf32> to vector<1x8xf32>
    %cst_33 = arith.constant 0.001953125 : f32
    %59 = vector.broadcast %cst_33 : f32 to vector<1x8xf32>
    %60 = arith.mulf %58, %59 : vector<1x8xf32>
    %61 = arith.mulf %57, %57 : vector<1x8xf32>
    %62 = arith.subf %60, %61 : vector<1x8xf32>
    %cst_34 = arith.constant 0.000000e+00 : f32
    %63 = vector.broadcast %cst_34 : f32 to vector<1x8xf32>
    %64 = arith.maximumf %62, %63 : vector<1x8xf32>
    %c0_35 = arith.constant 0 : index
    %c0_36 = arith.constant 0 : index
    %c0_37 = arith.constant 0 : index
    %65 = vector.load %arg4[%c0_35, %c0_36, %c0_37] : memref<4x1x8xf32, #tpu.memory_space<vmem>>, vector<1x1x8xf32>
    %66 = vector.shape_cast %65 : vector<1x1x8xf32> to vector<1x8xf32>
    %cst_38 = arith.constant 9.99999974E-6 : f32
    %67 = vector.broadcast %cst_38 : f32 to vector<1x8xf32>
    %68 = arith.addf %64, %67 : vector<1x8xf32>
    %69 = math.rsqrt %68 : vector<1x8xf32>
    %70 = arith.mulf %66, %69 : vector<1x8xf32>
    %c0_39 = arith.constant 0 : index
    %c0_40 = arith.constant 0 : index
    %c0_41 = arith.constant 0 : index
    %71 = vector.load %arg5[%c0_39, %c0_40, %c0_41] : memref<4x1x8xf32, #tpu.memory_space<vmem>>, vector<1x1x8xf32>
    %72 = vector.shape_cast %71 : vector<1x1x8xf32> to vector<1x8xf32>
    %73 = arith.mulf %57, %70 : vector<1x8xf32>
    %74 = arith.subf %72, %73 : vector<1x8xf32>
    %75 = tpu.concatenate %70, %74 in 0 : vector<1x8xf32>, vector<1x8xf32> -> vector<2x8xf32>
    %c0_42 = arith.constant 0 : index
    %c0_43 = arith.constant 0 : index
    %76 = vector.load %arg7[%c0_42, %c0_43] : memref<8x128xf32, #tpu.memory_space<vmem>>, vector<8x128xf32>
    %cst_44 = arith.constant dense<0.000000e+00> : vector<2x128xf32>
    %77 = tpu.matmul %75, %76, %cst_44 {dimension_numbers = #tpu.dot_dimension_numbers<[1], [0], [0], [1], [0, 0, 1, 1], [], []>, precision = #tpu.contract_precision<fp32>} : vector<2x8xf32>, vector<8x128xf32>, vector<2x128xf32> -> vector<2x128xf32>
    %78 = vector.extract_strided_slice %77 {offsets = [0, 0], sizes = [1, 128], strides = [1, 1]} : vector<2x128xf32> to vector<1x128xf32>
    %79 = vector.broadcast %78 : vector<1x128xf32> to vector<34x128xf32>
    %80 = arith.mulf %45, %79 : vector<34x128xf32>
    %81 = vector.extract_strided_slice %77 {offsets = [1, 0], sizes = [1, 128], strides = [1, 1]} : vector<2x128xf32> to vector<1x128xf32>
    %82 = vector.broadcast %81 : vector<1x128xf32> to vector<34x128xf32>
    %83 = arith.addf %80, %82 : vector<34x128xf32>
    %cst_45 = arith.constant 5.000000e-01 : f32
    %84 = vector.broadcast %cst_45 : f32 to vector<34x128xf32>
    %85 = arith.mulf %84, %83 : vector<34x128xf32>
    %cst_46 = arith.constant 0.707106769 : f32
    %86 = vector.broadcast %cst_46 : f32 to vector<34x128xf32>
    %87 = arith.mulf %83, %86 : vector<34x128xf32>
    %cst_47 = arith.constant 0.000000e+00 : f32
    %88 = vector.broadcast %cst_47 : f32 to vector<34x128xf32>
    %89 = arith.cmpf oge, %87, %88 : vector<34x128xf32>
    %cst_48 = arith.constant 1.000000e+00 : f32
    %cst_49 = arith.constant -1.000000e+00 : f32
    %90 = vector.broadcast %cst_48 : f32 to vector<34x128xf32>
    %91 = vector.broadcast %cst_49 : f32 to vector<34x128xf32>
    %92 = arith.select %89, %90, %91 : vector<34x128xi1>, vector<34x128xf32>
    %93 = math.absf %87 : vector<34x128xf32>
    %cst_50 = arith.constant 0.327591091 : f32
    %94 = vector.broadcast %cst_50 : f32 to vector<34x128xf32>
    %95 = arith.mulf %94, %93 : vector<34x128xf32>
    %cst_51 = arith.constant 1.000000e+00 : f32
    %96 = vector.broadcast %cst_51 : f32 to vector<34x128xf32>
    %97 = arith.addf %96, %95 : vector<34x128xf32>
    %98 = tpu.reciprocal %97 {approx = true} : vector<34x128xf32> -> vector<34x128xf32>
    %cst_52 = arith.constant 1.06140542 : f32
    %99 = vector.broadcast %cst_52 : f32 to vector<34x128xf32>
    %100 = arith.mulf %99, %98 : vector<34x128xf32>
    %cst_53 = arith.constant -1.45315206 : f32
    %101 = vector.broadcast %cst_53 : f32 to vector<34x128xf32>
    %102 = arith.addf %100, %101 : vector<34x128xf32>
    %103 = arith.mulf %102, %98 : vector<34x128xf32>
    %cst_54 = arith.constant 1.42141378 : f32
    %104 = vector.broadcast %cst_54 : f32 to vector<34x128xf32>
    %105 = arith.addf %103, %104 : vector<34x128xf32>
    %106 = arith.mulf %105, %98 : vector<34x128xf32>
    %cst_55 = arith.constant -0.284496725 : f32
    %107 = vector.broadcast %cst_55 : f32 to vector<34x128xf32>
    %108 = arith.addf %106, %107 : vector<34x128xf32>
    %109 = arith.mulf %108, %98 : vector<34x128xf32>
    %cst_56 = arith.constant 0.254829586 : f32
    %110 = vector.broadcast %cst_56 : f32 to vector<34x128xf32>
    %111 = arith.addf %109, %110 : vector<34x128xf32>
    %112 = arith.mulf %111, %98 : vector<34x128xf32>
    %cst_57 = arith.constant 0.000000e+00 : f32
    %113 = vector.broadcast %cst_57 : f32 to vector<34x128xf32>
    %114 = arith.subf %113, %93 : vector<34x128xf32>
    %115 = arith.mulf %114, %93 : vector<34x128xf32>
    %116 = math.exp %115 : vector<34x128xf32>
    %117 = arith.mulf %112, %116 : vector<34x128xf32>
    %cst_58 = arith.constant 1.000000e+00 : f32
    %118 = vector.broadcast %cst_58 : f32 to vector<34x128xf32>
    %119 = arith.subf %118, %117 : vector<34x128xf32>
    %120 = arith.mulf %92, %119 : vector<34x128xf32>
    %cst_59 = arith.constant 1.000000e+00 : f32
    %121 = vector.broadcast %cst_59 : f32 to vector<34x128xf32>
    %122 = arith.addf %121, %120 : vector<34x128xf32>
    %123 = arith.mulf %85, %122 : vector<34x128xf32>
    %124 = vector.extract_strided_slice %123 {offsets = [0, 0], sizes = [16, 128], strides = [1, 1]} : vector<34x128xf32> to vector<16x128xf32>
    %125 = arith.truncf %124 : vector<16x128xf32> to vector<16x128xbf16>
    %c1_60 = arith.constant 1 : index
    %c0_61 = arith.constant 0 : index
    %126 = vector.load %arg9[%c1_60, %c0_61] : memref<36x128xbf16, #tpu.memory_space<vmem>>, vector<16x128xbf16>
    tpu.vector_store %arg9[%c1_60, %c0_61], %125 {strides = array<i32>} : memref<36x128xbf16, #tpu.memory_space<vmem>>, vector<16x128xbf16>,
    %127 = vector.extract_strided_slice %123 {offsets = [18, 0], sizes = [16, 128], strides = [1, 1]} : vector<34x128xf32> to vector<16x128xf32>
    %128 = arith.truncf %127 : vector<16x128xf32> to vector<16x128xbf16>
    %c19_62 = arith.constant 19 : index
    %c0_63 = arith.constant 0 : index
    %129 = vector.load %arg9[%c19_62, %c0_63] : memref<36x128xbf16, #tpu.memory_space<vmem>>, vector<16x128xbf16>
    tpu.vector_store %arg9[%c19_62, %c0_63], %128 {strides = array<i32>} : memref<36x128xbf16, #tpu.memory_space<vmem>>, vector<16x128xbf16>,
    %c0_64 = arith.constant 0 : index
    %c0_65 = arith.constant 0 : index
    %130 = vector.load %arg9[%c0_64, %c0_65] : memref<36x128xbf16, #tpu.memory_space<vmem>>, vector<34x128xbf16>
    %c1_66 = arith.constant 1 : index
    %c0_67 = arith.constant 0 : index
    %131 = vector.load %arg9[%c1_66, %c0_67] : memref<36x128xbf16, #tpu.memory_space<vmem>>, vector<34x128xbf16>
    %c2_68 = arith.constant 2 : index
    %c0_69 = arith.constant 0 : index
    %132 = vector.load %arg9[%c2_68, %c0_69] : memref<36x128xbf16, #tpu.memory_space<vmem>>, vector<34x128xbf16>
    %133 = tpu.concatenate %130, %131, %132 in 1 : vector<34x128xbf16>, vector<34x128xbf16>, vector<34x128xbf16> -> vector<34x384xbf16>
    %c1_70 = arith.constant 1 : index
    %c0_71 = arith.constant 0 : index
    %c0_72 = arith.constant 0 : index
    %134 = vector.load %arg3[%c1_70, %c0_71, %c0_72] : memref<4x384x128xbf16, #tpu.memory_space<vmem>>, vector<1x384x128xbf16>
    %135 = vector.shape_cast %134 : vector<1x384x128xbf16> to vector<384x128xbf16>
    %cst_73 = arith.constant dense<0.000000e+00> : vector<34x128xf32>
    %136 = tpu.matmul %133, %135, %cst_73 {dimension_numbers = #tpu.dot_dimension_numbers<[1], [0], [0], [1], [0, 0, 1, 1], [], []>} : vector<34x384xbf16>, vector<384x128xbf16>, vector<34x128xf32> -> vector<34x128xf32>
    %137 = arith.mulf %136, %38 : vector<34x128xf32>
    %cst_74 = arith.constant dense<0.000000e+00> : vector<128xf32>
    %138 = vector.multi_reduction <add>, %137, %cst_74 [0] : vector<34x128xf32> to vector<128xf32>
    %139 = vector.shape_cast %138 : vector<128xf32> to vector<1x128xf32>
    %140 = arith.mulf %137, %137 : vector<34x128xf32>
    %cst_75 = arith.constant dense<0.000000e+00> : vector<128xf32>
    %141 = vector.multi_reduction <add>, %140, %cst_75 [0] : vector<34x128xf32> to vector<128xf32>
    %142 = vector.shape_cast %141 : vector<128xf32> to vector<1x128xf32>
    %143 = tpu.concatenate %139, %142 in 0 : vector<1x128xf32>, vector<1x128xf32> -> vector<2x128xf32>
    %c0_76 = arith.constant 0 : index
    %c0_77 = arith.constant 0 : index
    %144 = vector.load %arg6[%c0_76, %c0_77] : memref<128x8xf32, #tpu.memory_space<vmem>>, vector<128x8xf32>
    %cst_78 = arith.constant dense<0.000000e+00> : vector<2x8xf32>
    %145 = tpu.matmul %143, %144, %cst_78 {dimension_numbers = #tpu.dot_dimension_numbers<[1], [0], [0], [1], [0, 0, 1, 1], [], []>, precision = #tpu.contract_precision<fp32>} : vector<2x128xf32>, vector<128x8xf32>, vector<2x8xf32> -> vector<2x8xf32>
    %146 = vector.extract_strided_slice %145 {offsets = [0, 0], sizes = [1, 8], strides = [1, 1]} : vector<2x8xf32> to vector<1x8xf32>
    %cst_79 = arith.constant 0.001953125 : f32
    %147 = vector.broadcast %cst_79 : f32 to vector<1x8xf32>
    %148 = arith.mulf %146, %147 : vector<1x8xf32>
    %149 = vector.extract_strided_slice %145 {offsets = [1, 0], sizes = [1, 8], strides = [1, 1]} : vector<2x8xf32> to vector<1x8xf32>
    %cst_80 = arith.constant 0.001953125 : f32
    %150 = vector.broadcast %cst_80 : f32 to vector<1x8xf32>
    %151 = arith.mulf %149, %150 : vector<1x8xf32>
    %152 = arith.mulf %148, %148 : vector<1x8xf32>
    %153 = arith.subf %151, %152 : vector<1x8xf32>
    %cst_81 = arith.constant 0.000000e+00 : f32
    %154 = vector.broadcast %cst_81 : f32 to vector<1x8xf32>
    %155 = arith.maximumf %153, %154 : vector<1x8xf32>
    %c1_82 = arith.constant 1 : index
    %c0_83 = arith.constant 0 : index
    %c0_84 = arith.constant 0 : index
    %156 = vector.load %arg4[%c1_82, %c0_83, %c0_84] : memref<4x1x8xf32, #tpu.memory_space<vmem>>, vector<1x1x8xf32>
    %157 = vector.shape_cast %156 : vector<1x1x8xf32> to vector<1x8xf32>
    %cst_85 = arith.constant 9.99999974E-6 : f32
    %158 = vector.broadcast %cst_85 : f32 to vector<1x8xf32>
    %159 = arith.addf %155, %158 : vector<1x8xf32>
    %160 = math.rsqrt %159 : vector<1x8xf32>
    %161 = arith.mulf %157, %160 : vector<1x8xf32>
    %c1_86 = arith.constant 1 : index
    %c0_87 = arith.constant 0 : index
    %c0_88 = arith.constant 0 : index
    %162 = vector.load %arg5[%c1_86, %c0_87, %c0_88] : memref<4x1x8xf32, #tpu.memory_space<vmem>>, vector<1x1x8xf32>
    %163 = vector.shape_cast %162 : vector<1x1x8xf32> to vector<1x8xf32>
    %164 = arith.mulf %148, %161 : vector<1x8xf32>
    %165 = arith.subf %163, %164 : vector<1x8xf32>
    %166 = tpu.concatenate %161, %165 in 0 : vector<1x8xf32>, vector<1x8xf32> -> vector<2x8xf32>
    %c0_89 = arith.constant 0 : index
    %c0_90 = arith.constant 0 : index
    %167 = vector.load %arg7[%c0_89, %c0_90] : memref<8x128xf32, #tpu.memory_space<vmem>>, vector<8x128xf32>
    %cst_91 = arith.constant dense<0.000000e+00> : vector<2x128xf32>
    %168 = tpu.matmul %166, %167, %cst_91 {dimension_numbers = #tpu.dot_dimension_numbers<[1], [0], [0], [1], [0, 0, 1, 1], [], []>, precision = #tpu.contract_precision<fp32>} : vector<2x8xf32>, vector<8x128xf32>, vector<2x128xf32> -> vector<2x128xf32>
    %169 = vector.extract_strided_slice %168 {offsets = [0, 0], sizes = [1, 128], strides = [1, 1]} : vector<2x128xf32> to vector<1x128xf32>
    %170 = vector.broadcast %169 : vector<1x128xf32> to vector<34x128xf32>
    %171 = arith.mulf %136, %170 : vector<34x128xf32>
    %172 = vector.extract_strided_slice %168 {offsets = [1, 0], sizes = [1, 128], strides = [1, 1]} : vector<2x128xf32> to vector<1x128xf32>
    %173 = vector.broadcast %172 : vector<1x128xf32> to vector<34x128xf32>
    %174 = arith.addf %171, %173 : vector<34x128xf32>
    %cst_92 = arith.constant 5.000000e-01 : f32
    %175 = vector.broadcast %cst_92 : f32 to vector<34x128xf32>
    %176 = arith.mulf %175, %174 : vector<34x128xf32>
    %cst_93 = arith.constant 0.707106769 : f32
    %177 = vector.broadcast %cst_93 : f32 to vector<34x128xf32>
    %178 = arith.mulf %174, %177 : vector<34x128xf32>
    %cst_94 = arith.constant 0.000000e+00 : f32
    %179 = vector.broadcast %cst_94 : f32 to vector<34x128xf32>
    %180 = arith.cmpf oge, %178, %179 : vector<34x128xf32>
    %cst_95 = arith.constant 1.000000e+00 : f32
    %cst_96 = arith.constant -1.000000e+00 : f32
    %181 = vector.broadcast %cst_95 : f32 to vector<34x128xf32>
    %182 = vector.broadcast %cst_96 : f32 to vector<34x128xf32>
    %183 = arith.select %180, %181, %182 : vector<34x128xi1>, vector<34x128xf32>
    %184 = math.absf %178 : vector<34x128xf32>
    %cst_97 = arith.constant 0.327591091 : f32
    %185 = vector.broadcast %cst_97 : f32 to vector<34x128xf32>
    %186 = arith.mulf %185, %184 : vector<34x128xf32>
    %cst_98 = arith.constant 1.000000e+00 : f32
    %187 = vector.broadcast %cst_98 : f32 to vector<34x128xf32>
    %188 = arith.addf %187, %186 : vector<34x128xf32>
    %189 = tpu.reciprocal %188 {approx = true} : vector<34x128xf32> -> vector<34x128xf32>
    %cst_99 = arith.constant 1.06140542 : f32
    %190 = vector.broadcast %cst_99 : f32 to vector<34x128xf32>
    %191 = arith.mulf %190, %189 : vector<34x128xf32>
    %cst_100 = arith.constant -1.45315206 : f32
    %192 = vector.broadcast %cst_100 : f32 to vector<34x128xf32>
    %193 = arith.addf %191, %192 : vector<34x128xf32>
    %194 = arith.mulf %193, %189 : vector<34x128xf32>
    %cst_101 = arith.constant 1.42141378 : f32
    %195 = vector.broadcast %cst_101 : f32 to vector<34x128xf32>
    %196 = arith.addf %194, %195 : vector<34x128xf32>
    %197 = arith.mulf %196, %189 : vector<34x128xf32>
    %cst_102 = arith.constant -0.284496725 : f32
    %198 = vector.broadcast %cst_102 : f32 to vector<34x128xf32>
    %199 = arith.addf %197, %198 : vector<34x128xf32>
    %200 = arith.mulf %199, %189 : vector<34x128xf32>
    %cst_103 = arith.constant 0.254829586 : f32
    %201 = vector.broadcast %cst_103 : f32 to vector<34x128xf32>
    %202 = arith.addf %200, %201 : vector<34x128xf32>
    %203 = arith.mulf %202, %189 : vector<34x128xf32>
    %cst_104 = arith.constant 0.000000e+00 : f32
    %204 = vector.broadcast %cst_104 : f32 to vector<34x128xf32>
    %205 = arith.subf %204, %184 : vector<34x128xf32>
    %206 = arith.mulf %205, %184 : vector<34x128xf32>
    %207 = math.exp %206 : vector<34x128xf32>
    %208 = arith.mulf %203, %207 : vector<34x128xf32>
    %cst_105 = arith.constant 1.000000e+00 : f32
    %209 = vector.broadcast %cst_105 : f32 to vector<34x128xf32>
    %210 = arith.subf %209, %208 : vector<34x128xf32>
    %211 = arith.mulf %183, %210 : vector<34x128xf32>
    %cst_106 = arith.constant 1.000000e+00 : f32
    %212 = vector.broadcast %cst_106 : f32 to vector<34x128xf32>
    %213 = arith.addf %212, %211 : vector<34x128xf32>
    %214 = arith.mulf %176, %213 : vector<34x128xf32>
    %215 = vector.extract_strided_slice %214 {offsets = [0, 0], sizes = [16, 128], strides = [1, 1]} : vector<34x128xf32> to vector<16x128xf32>
    %216 = arith.truncf %215 : vector<16x128xf32> to vector<16x128xbf16>
    %c1_107 = arith.constant 1 : index
    %c0_108 = arith.constant 0 : index
    %217 = vector.load %arg9[%c1_107, %c0_108] : memref<36x128xbf16, #tpu.memory_space<vmem>>, vector<16x128xbf16>
    tpu.vector_store %arg9[%c1_107, %c0_108], %216 {strides = array<i32>} : memref<36x128xbf16, #tpu.memory_space<vmem>>, vector<16x128xbf16>,
    %218 = vector.extract_strided_slice %214 {offsets = [18, 0], sizes = [16, 128], strides = [1, 1]} : vector<34x128xf32> to vector<16x128xf32>
    %219 = arith.truncf %218 : vector<16x128xf32> to vector<16x128xbf16>
    %c19_109 = arith.constant 19 : index
    %c0_110 = arith.constant 0 : index
    %220 = vector.load %arg9[%c19_109, %c0_110] : memref<36x128xbf16, #tpu.memory_space<vmem>>, vector<16x128xbf16>
    tpu.vector_store %arg9[%c19_109, %c0_110], %219 {strides = array<i32>} : memref<36x128xbf16, #tpu.memory_space<vmem>>, vector<16x128xbf16>,
    %c0_111 = arith.constant 0 : index
    %c0_112 = arith.constant 0 : index
    %221 = vector.load %arg9[%c0_111, %c0_112] : memref<36x128xbf16, #tpu.memory_space<vmem>>, vector<34x128xbf16>
    %c1_113 = arith.constant 1 : index
    %c0_114 = arith.constant 0 : index
    %222 = vector.load %arg9[%c1_113, %c0_114] : memref<36x128xbf16, #tpu.memory_space<vmem>>, vector<34x128xbf16>
    %c2_115 = arith.constant 2 : index
    %c0_116 = arith.constant 0 : index
    %223 = vector.load %arg9[%c2_115, %c0_116] : memref<36x128xbf16, #tpu.memory_space<vmem>>, vector<34x128xbf16>
    %224 = tpu.concatenate %221, %222, %223 in 1 : vector<34x128xbf16>, vector<34x128xbf16>, vector<34x128xbf16> -> vector<34x384xbf16>
    %c2_117 = arith.constant 2 : index
    %c0_118 = arith.constant 0 : index
    %c0_119 = arith.constant 0 : index
    %225 = vector.load %arg3[%c2_117, %c0_118, %c0_119] : memref<4x384x128xbf16, #tpu.memory_space<vmem>>, vector<1x384x128xbf16>
    %226 = vector.shape_cast %225 : vector<1x384x128xbf16> to vector<384x128xbf16>
    %cst_120 = arith.constant dense<0.000000e+00> : vector<34x128xf32>
    %227 = tpu.matmul %224, %226, %cst_120 {dimension_numbers = #tpu.dot_dimension_numbers<[1], [0], [0], [1], [0, 0, 1, 1], [], []>} : vector<34x384xbf16>, vector<384x128xbf16>, vector<34x128xf32> -> vector<34x128xf32>
    %228 = arith.mulf %227, %38 : vector<34x128xf32>
    %cst_121 = arith.constant dense<0.000000e+00> : vector<128xf32>
    %229 = vector.multi_reduction <add>, %228, %cst_121 [0] : vector<34x128xf32> to vector<128xf32>
    %230 = vector.shape_cast %229 : vector<128xf32> to vector<1x128xf32>
    %231 = arith.mulf %228, %228 : vector<34x128xf32>
    %cst_122 = arith.constant dense<0.000000e+00> : vector<128xf32>
    %232 = vector.multi_reduction <add>, %231, %cst_122 [0] : vector<34x128xf32> to vector<128xf32>
    %233 = vector.shape_cast %232 : vector<128xf32> to vector<1x128xf32>
    %234 = tpu.concatenate %230, %233 in 0 : vector<1x128xf32>, vector<1x128xf32> -> vector<2x128xf32>
    %c0_123 = arith.constant 0 : index
    %c0_124 = arith.constant 0 : index
    %235 = vector.load %arg6[%c0_123, %c0_124] : memref<128x8xf32, #tpu.memory_space<vmem>>, vector<128x8xf32>
    %cst_125 = arith.constant dense<0.000000e+00> : vector<2x8xf32>
    %236 = tpu.matmul %234, %235, %cst_125 {dimension_numbers = #tpu.dot_dimension_numbers<[1], [0], [0], [1], [0, 0, 1, 1], [], []>, precision = #tpu.contract_precision<fp32>} : vector<2x128xf32>, vector<128x8xf32>, vector<2x8xf32> -> vector<2x8xf32>
    %237 = vector.extract_strided_slice %236 {offsets = [0, 0], sizes = [1, 8], strides = [1, 1]} : vector<2x8xf32> to vector<1x8xf32>
    %cst_126 = arith.constant 0.001953125 : f32
    %238 = vector.broadcast %cst_126 : f32 to vector<1x8xf32>
    %239 = arith.mulf %237, %238 : vector<1x8xf32>
    %240 = vector.extract_strided_slice %236 {offsets = [1, 0], sizes = [1, 8], strides = [1, 1]} : vector<2x8xf32> to vector<1x8xf32>
    %cst_127 = arith.constant 0.001953125 : f32
    %241 = vector.broadcast %cst_127 : f32 to vector<1x8xf32>
    %242 = arith.mulf %240, %241 : vector<1x8xf32>
    %243 = arith.mulf %239, %239 : vector<1x8xf32>
    %244 = arith.subf %242, %243 : vector<1x8xf32>
    %cst_128 = arith.constant 0.000000e+00 : f32
    %245 = vector.broadcast %cst_128 : f32 to vector<1x8xf32>
    %246 = arith.maximumf %244, %245 : vector<1x8xf32>
    %c2_129 = arith.constant 2 : index
    %c0_130 = arith.constant 0 : index
    %c0_131 = arith.constant 0 : index
    %247 = vector.load %arg4[%c2_129, %c0_130, %c0_131] : memref<4x1x8xf32, #tpu.memory_space<vmem>>, vector<1x1x8xf32>
    %248 = vector.shape_cast %247 : vector<1x1x8xf32> to vector<1x8xf32>
    %cst_132 = arith.constant 9.99999974E-6 : f32
    %249 = vector.broadcast %cst_132 : f32 to vector<1x8xf32>
    %250 = arith.addf %246, %249 : vector<1x8xf32>
    %251 = math.rsqrt %250 : vector<1x8xf32>
    %252 = arith.mulf %248, %251 : vector<1x8xf32>
    %c2_133 = arith.constant 2 : index
    %c0_134 = arith.constant 0 : index
    %c0_135 = arith.constant 0 : index
    %253 = vector.load %arg5[%c2_133, %c0_134, %c0_135] : memref<4x1x8xf32, #tpu.memory_space<vmem>>, vector<1x1x8xf32>
    %254 = vector.shape_cast %253 : vector<1x1x8xf32> to vector<1x8xf32>
    %255 = arith.mulf %239, %252 : vector<1x8xf32>
    %256 = arith.subf %254, %255 : vector<1x8xf32>
    %257 = tpu.concatenate %252, %256 in 0 : vector<1x8xf32>, vector<1x8xf32> -> vector<2x8xf32>
    %c0_136 = arith.constant 0 : index
    %c0_137 = arith.constant 0 : index
    %258 = vector.load %arg7[%c0_136, %c0_137] : memref<8x128xf32, #tpu.memory_space<vmem>>, vector<8x128xf32>
    %cst_138 = arith.constant dense<0.000000e+00> : vector<2x128xf32>
    %259 = tpu.matmul %257, %258, %cst_138 {dimension_numbers = #tpu.dot_dimension_numbers<[1], [0], [0], [1], [0, 0, 1, 1], [], []>, precision = #tpu.contract_precision<fp32>} : vector<2x8xf32>, vector<8x128xf32>, vector<2x128xf32> -> vector<2x128xf32>
    %260 = vector.extract_strided_slice %259 {offsets = [0, 0], sizes = [1, 128], strides = [1, 1]} : vector<2x128xf32> to vector<1x128xf32>
    %261 = vector.broadcast %260 : vector<1x128xf32> to vector<34x128xf32>
    %262 = arith.mulf %227, %261 : vector<34x128xf32>
    %263 = vector.extract_strided_slice %259 {offsets = [1, 0], sizes = [1, 128], strides = [1, 1]} : vector<2x128xf32> to vector<1x128xf32>
    %264 = vector.broadcast %263 : vector<1x128xf32> to vector<34x128xf32>
    %265 = arith.addf %262, %264 : vector<34x128xf32>
    %cst_139 = arith.constant 5.000000e-01 : f32
    %266 = vector.broadcast %cst_139 : f32 to vector<34x128xf32>
    %267 = arith.mulf %266, %265 : vector<34x128xf32>
    %cst_140 = arith.constant 0.707106769 : f32
    %268 = vector.broadcast %cst_140 : f32 to vector<34x128xf32>
    %269 = arith.mulf %265, %268 : vector<34x128xf32>
    %cst_141 = arith.constant 0.000000e+00 : f32
    %270 = vector.broadcast %cst_141 : f32 to vector<34x128xf32>
    %271 = arith.cmpf oge, %269, %270 : vector<34x128xf32>
    %cst_142 = arith.constant 1.000000e+00 : f32
    %cst_143 = arith.constant -1.000000e+00 : f32
    %272 = vector.broadcast %cst_142 : f32 to vector<34x128xf32>
    %273 = vector.broadcast %cst_143 : f32 to vector<34x128xf32>
    %274 = arith.select %271, %272, %273 : vector<34x128xi1>, vector<34x128xf32>
    %275 = math.absf %269 : vector<34x128xf32>
    %cst_144 = arith.constant 0.327591091 : f32
    %276 = vector.broadcast %cst_144 : f32 to vector<34x128xf32>
    %277 = arith.mulf %276, %275 : vector<34x128xf32>
    %cst_145 = arith.constant 1.000000e+00 : f32
    %278 = vector.broadcast %cst_145 : f32 to vector<34x128xf32>
    %279 = arith.addf %278, %277 : vector<34x128xf32>
    %280 = tpu.reciprocal %279 {approx = true} : vector<34x128xf32> -> vector<34x128xf32>
    %cst_146 = arith.constant 1.06140542 : f32
    %281 = vector.broadcast %cst_146 : f32 to vector<34x128xf32>
    %282 = arith.mulf %281, %280 : vector<34x128xf32>
    %cst_147 = arith.constant -1.45315206 : f32
    %283 = vector.broadcast %cst_147 : f32 to vector<34x128xf32>
    %284 = arith.addf %282, %283 : vector<34x128xf32>
    %285 = arith.mulf %284, %280 : vector<34x128xf32>
    %cst_148 = arith.constant 1.42141378 : f32
    %286 = vector.broadcast %cst_148 : f32 to vector<34x128xf32>
    %287 = arith.addf %285, %286 : vector<34x128xf32>
    %288 = arith.mulf %287, %280 : vector<34x128xf32>
    %cst_149 = arith.constant -0.284496725 : f32
    %289 = vector.broadcast %cst_149 : f32 to vector<34x128xf32>
    %290 = arith.addf %288, %289 : vector<34x128xf32>
    %291 = arith.mulf %290, %280 : vector<34x128xf32>
    %cst_150 = arith.constant 0.254829586 : f32
    %292 = vector.broadcast %cst_150 : f32 to vector<34x128xf32>
    %293 = arith.addf %291, %292 : vector<34x128xf32>
    %294 = arith.mulf %293, %280 : vector<34x128xf32>
    %cst_151 = arith.constant 0.000000e+00 : f32
    %295 = vector.broadcast %cst_151 : f32 to vector<34x128xf32>
    %296 = arith.subf %295, %275 : vector<34x128xf32>
    %297 = arith.mulf %296, %275 : vector<34x128xf32>
    %298 = math.exp %297 : vector<34x128xf32>
    %299 = arith.mulf %294, %298 : vector<34x128xf32>
    %cst_152 = arith.constant 1.000000e+00 : f32
    %300 = vector.broadcast %cst_152 : f32 to vector<34x128xf32>
    %301 = arith.subf %300, %299 : vector<34x128xf32>
    %302 = arith.mulf %274, %301 : vector<34x128xf32>
    %cst_153 = arith.constant 1.000000e+00 : f32
    %303 = vector.broadcast %cst_153 : f32 to vector<34x128xf32>
    %304 = arith.addf %303, %302 : vector<34x128xf32>
    %305 = arith.mulf %267, %304 : vector<34x128xf32>
    %306 = vector.extract_strided_slice %305 {offsets = [0, 0], sizes = [16, 128], strides = [1, 1]} : vector<34x128xf32> to vector<16x128xf32>
    %307 = arith.truncf %306 : vector<16x128xf32> to vector<16x128xbf16>
    %c1_154 = arith.constant 1 : index
    %c0_155 = arith.constant 0 : index
    %308 = vector.load %arg9[%c1_154, %c0_155] : memref<36x128xbf16, #tpu.memory_space<vmem>>, vector<16x128xbf16>
    tpu.vector_store %arg9[%c1_154, %c0_155], %307 {strides = array<i32>} : memref<36x128xbf16, #tpu.memory_space<vmem>>, vector<16x128xbf16>,
    %309 = vector.extract_strided_slice %305 {offsets = [18, 0], sizes = [16, 128], strides = [1, 1]} : vector<34x128xf32> to vector<16x128xf32>
    %310 = arith.truncf %309 : vector<16x128xf32> to vector<16x128xbf16>
    %c19_156 = arith.constant 19 : index
    %c0_157 = arith.constant 0 : index
    %311 = vector.load %arg9[%c19_156, %c0_157] : memref<36x128xbf16, #tpu.memory_space<vmem>>, vector<16x128xbf16>
    tpu.vector_store %arg9[%c19_156, %c0_157], %310 {strides = array<i32>} : memref<36x128xbf16, #tpu.memory_space<vmem>>, vector<16x128xbf16>,
    %c0_158 = arith.constant 0 : index
    %c0_159 = arith.constant 0 : index
    %312 = vector.load %arg9[%c0_158, %c0_159] : memref<36x128xbf16, #tpu.memory_space<vmem>>, vector<34x128xbf16>
    %c1_160 = arith.constant 1 : index
    %c0_161 = arith.constant 0 : index
    %313 = vector.load %arg9[%c1_160, %c0_161] : memref<36x128xbf16, #tpu.memory_space<vmem>>, vector<34x128xbf16>
    %c2_162 = arith.constant 2 : index
    %c0_163 = arith.constant 0 : index
    %314 = vector.load %arg9[%c2_162, %c0_163] : memref<36x128xbf16, #tpu.memory_space<vmem>>, vector<34x128xbf16>
    %315 = tpu.concatenate %312, %313, %314 in 1 : vector<34x128xbf16>, vector<34x128xbf16>, vector<34x128xbf16> -> vector<34x384xbf16>
    %c3 = arith.constant 3 : index
    %c0_164 = arith.constant 0 : index
    %c0_165 = arith.constant 0 : index
    %316 = vector.load %arg3[%c3, %c0_164, %c0_165] : memref<4x384x128xbf16, #tpu.memory_space<vmem>>, vector<1x384x128xbf16>
    %317 = vector.shape_cast %316 : vector<1x384x128xbf16> to vector<384x128xbf16>
    %cst_166 = arith.constant dense<0.000000e+00> : vector<34x128xf32>
    %318 = tpu.matmul %315, %317, %cst_166 {dimension_numbers = #tpu.dot_dimension_numbers<[1], [0], [0], [1], [0, 0, 1, 1], [], []>} : vector<34x384xbf16>, vector<384x128xbf16>, vector<34x128xf32> -> vector<34x128xf32>
    %319 = arith.mulf %318, %38 : vector<34x128xf32>
    %cst_167 = arith.constant dense<0.000000e+00> : vector<128xf32>
    %320 = vector.multi_reduction <add>, %319, %cst_167 [0] : vector<34x128xf32> to vector<128xf32>
    %321 = vector.shape_cast %320 : vector<128xf32> to vector<1x128xf32>
    %322 = arith.mulf %319, %319 : vector<34x128xf32>
    %cst_168 = arith.constant dense<0.000000e+00> : vector<128xf32>
    %323 = vector.multi_reduction <add>, %322, %cst_168 [0] : vector<34x128xf32> to vector<128xf32>
    %324 = vector.shape_cast %323 : vector<128xf32> to vector<1x128xf32>
    %325 = tpu.concatenate %321, %324 in 0 : vector<1x128xf32>, vector<1x128xf32> -> vector<2x128xf32>
    %c0_169 = arith.constant 0 : index
    %c0_170 = arith.constant 0 : index
    %326 = vector.load %arg6[%c0_169, %c0_170] : memref<128x8xf32, #tpu.memory_space<vmem>>, vector<128x8xf32>
    %cst_171 = arith.constant dense<0.000000e+00> : vector<2x8xf32>
    %327 = tpu.matmul %325, %326, %cst_171 {dimension_numbers = #tpu.dot_dimension_numbers<[1], [0], [0], [1], [0, 0, 1, 1], [], []>, precision = #tpu.contract_precision<fp32>} : vector<2x128xf32>, vector<128x8xf32>, vector<2x8xf32> -> vector<2x8xf32>
    %328 = vector.extract_strided_slice %327 {offsets = [0, 0], sizes = [1, 8], strides = [1, 1]} : vector<2x8xf32> to vector<1x8xf32>
    %cst_172 = arith.constant 0.001953125 : f32
    %329 = vector.broadcast %cst_172 : f32 to vector<1x8xf32>
    %330 = arith.mulf %328, %329 : vector<1x8xf32>
    %331 = vector.extract_strided_slice %327 {offsets = [1, 0], sizes = [1, 8], strides = [1, 1]} : vector<2x8xf32> to vector<1x8xf32>
    %cst_173 = arith.constant 0.001953125 : f32
    %332 = vector.broadcast %cst_173 : f32 to vector<1x8xf32>
    %333 = arith.mulf %331, %332 : vector<1x8xf32>
    %334 = arith.mulf %330, %330 : vector<1x8xf32>
    %335 = arith.subf %333, %334 : vector<1x8xf32>
    %cst_174 = arith.constant 0.000000e+00 : f32
    %336 = vector.broadcast %cst_174 : f32 to vector<1x8xf32>
    %337 = arith.maximumf %335, %336 : vector<1x8xf32>
    %c3_175 = arith.constant 3 : index
    %c0_176 = arith.constant 0 : index
    %c0_177 = arith.constant 0 : index
    %338 = vector.load %arg4[%c3_175, %c0_176, %c0_177] : memref<4x1x8xf32, #tpu.memory_space<vmem>>, vector<1x1x8xf32>
    %339 = vector.shape_cast %338 : vector<1x1x8xf32> to vector<1x8xf32>
    %cst_178 = arith.constant 9.99999974E-6 : f32
    %340 = vector.broadcast %cst_178 : f32 to vector<1x8xf32>
    %341 = arith.addf %337, %340 : vector<1x8xf32>
    %342 = math.rsqrt %341 : vector<1x8xf32>
    %343 = arith.mulf %339, %342 : vector<1x8xf32>
    %c3_179 = arith.constant 3 : index
    %c0_180 = arith.constant 0 : index
    %c0_181 = arith.constant 0 : index
    %344 = vector.load %arg5[%c3_179, %c0_180, %c0_181] : memref<4x1x8xf32, #tpu.memory_space<vmem>>, vector<1x1x8xf32>
    %345 = vector.shape_cast %344 : vector<1x1x8xf32> to vector<1x8xf32>
    %346 = arith.mulf %330, %343 : vector<1x8xf32>
    %347 = arith.subf %345, %346 : vector<1x8xf32>
    %348 = tpu.concatenate %343, %347 in 0 : vector<1x8xf32>, vector<1x8xf32> -> vector<2x8xf32>
    %c0_182 = arith.constant 0 : index
    %c0_183 = arith.constant 0 : index
    %349 = vector.load %arg7[%c0_182, %c0_183] : memref<8x128xf32, #tpu.memory_space<vmem>>, vector<8x128xf32>
    %cst_184 = arith.constant dense<0.000000e+00> : vector<2x128xf32>
    %350 = tpu.matmul %348, %349, %cst_184 {dimension_numbers = #tpu.dot_dimension_numbers<[1], [0], [0], [1], [0, 0, 1, 1], [], []>, precision = #tpu.contract_precision<fp32>} : vector<2x8xf32>, vector<8x128xf32>, vector<2x128xf32> -> vector<2x128xf32>
    %351 = vector.extract_strided_slice %350 {offsets = [0, 0], sizes = [1, 128], strides = [1, 1]} : vector<2x128xf32> to vector<1x128xf32>
    %352 = vector.broadcast %351 : vector<1x128xf32> to vector<34x128xf32>
    %353 = arith.mulf %318, %352 : vector<34x128xf32>
    %354 = vector.extract_strided_slice %350 {offsets = [1, 0], sizes = [1, 128], strides = [1, 1]} : vector<2x128xf32> to vector<1x128xf32>
    %355 = vector.broadcast %354 : vector<1x128xf32> to vector<34x128xf32>
    %356 = arith.addf %353, %355 : vector<34x128xf32>
    %cst_185 = arith.constant 5.000000e-01 : f32
    %357 = vector.broadcast %cst_185 : f32 to vector<34x128xf32>
    %358 = arith.mulf %357, %356 : vector<34x128xf32>
    %cst_186 = arith.constant 0.707106769 : f32
    %359 = vector.broadcast %cst_186 : f32 to vector<34x128xf32>
    %360 = arith.mulf %356, %359 : vector<34x128xf32>
    %cst_187 = arith.constant 0.000000e+00 : f32
    %361 = vector.broadcast %cst_187 : f32 to vector<34x128xf32>
    %362 = arith.cmpf oge, %360, %361 : vector<34x128xf32>
    %cst_188 = arith.constant 1.000000e+00 : f32
    %cst_189 = arith.constant -1.000000e+00 : f32
    %363 = vector.broadcast %cst_188 : f32 to vector<34x128xf32>
    %364 = vector.broadcast %cst_189 : f32 to vector<34x128xf32>
    %365 = arith.select %362, %363, %364 : vector<34x128xi1>, vector<34x128xf32>
    %366 = math.absf %360 : vector<34x128xf32>
    %cst_190 = arith.constant 0.327591091 : f32
    %367 = vector.broadcast %cst_190 : f32 to vector<34x128xf32>
    %368 = arith.mulf %367, %366 : vector<34x128xf32>
    %cst_191 = arith.constant 1.000000e+00 : f32
    %369 = vector.broadcast %cst_191 : f32 to vector<34x128xf32>
    %370 = arith.addf %369, %368 : vector<34x128xf32>
    %371 = tpu.reciprocal %370 {approx = true} : vector<34x128xf32> -> vector<34x128xf32>
    %cst_192 = arith.constant 1.06140542 : f32
    %372 = vector.broadcast %cst_192 : f32 to vector<34x128xf32>
    %373 = arith.mulf %372, %371 : vector<34x128xf32>
    %cst_193 = arith.constant -1.45315206 : f32
    %374 = vector.broadcast %cst_193 : f32 to vector<34x128xf32>
    %375 = arith.addf %373, %374 : vector<34x128xf32>
    %376 = arith.mulf %375, %371 : vector<34x128xf32>
    %cst_194 = arith.constant 1.42141378 : f32
    %377 = vector.broadcast %cst_194 : f32 to vector<34x128xf32>
    %378 = arith.addf %376, %377 : vector<34x128xf32>
    %379 = arith.mulf %378, %371 : vector<34x128xf32>
    %cst_195 = arith.constant -0.284496725 : f32
    %380 = vector.broadcast %cst_195 : f32 to vector<34x128xf32>
    %381 = arith.addf %379, %380 : vector<34x128xf32>
    %382 = arith.mulf %381, %371 : vector<34x128xf32>
    %cst_196 = arith.constant 0.254829586 : f32
    %383 = vector.broadcast %cst_196 : f32 to vector<34x128xf32>
    %384 = arith.addf %382, %383 : vector<34x128xf32>
    %385 = arith.mulf %384, %371 : vector<34x128xf32>
    %cst_197 = arith.constant 0.000000e+00 : f32
    %386 = vector.broadcast %cst_197 : f32 to vector<34x128xf32>
    %387 = arith.subf %386, %366 : vector<34x128xf32>
    %388 = arith.mulf %387, %366 : vector<34x128xf32>
    %389 = math.exp %388 : vector<34x128xf32>
    %390 = arith.mulf %385, %389 : vector<34x128xf32>
    %cst_198 = arith.constant 1.000000e+00 : f32
    %391 = vector.broadcast %cst_198 : f32 to vector<34x128xf32>
    %392 = arith.subf %391, %390 : vector<34x128xf32>
    %393 = arith.mulf %365, %392 : vector<34x128xf32>
    %cst_199 = arith.constant 1.000000e+00 : f32
    %394 = vector.broadcast %cst_199 : f32 to vector<34x128xf32>
    %395 = arith.addf %394, %393 : vector<34x128xf32>
    %396 = arith.mulf %358, %395 : vector<34x128xf32>
    %397 = vector.extract_strided_slice %396 {offsets = [0, 0], sizes = [16, 128], strides = [1, 1]} : vector<34x128xf32> to vector<16x128xf32>
    %c0_200 = arith.constant 0 : index
    %c0_201 = arith.constant 0 : index
    %398 = vector.load %arg8[%c0_200, %c0_201] : memref<32x128xf32, #tpu.memory_space<vmem>>, vector<16x128xf32>
    tpu.vector_store %arg8[%c0_200, %c0_201], %397 {strides = array<i32>} : memref<32x128xf32, #tpu.memory_space<vmem>>, vector<16x128xf32>,
    %399 = vector.extract_strided_slice %396 {offsets = [18, 0], sizes = [16, 128], strides = [1, 1]} : vector<34x128xf32> to vector<16x128xf32>
    %c16 = arith.constant 16 : index
    %c0_202 = arith.constant 0 : index
    %400 = vector.load %arg8[%c16, %c0_202] : memref<32x128xf32, #tpu.memory_space<vmem>>, vector<16x128xf32>
    tpu.vector_store %arg8[%c16, %c0_202], %399 {strides = array<i32>} : memref<32x128xf32, #tpu.memory_space<vmem>>, vector<16x128xf32>,
    return
  }
}

</mosaic_0001>

<llo_original>
// kernel: tpu_custom_call.1
$region0: #{tpu_custom_call.1}
  #allocation0 [shape = 'u32[]', space=smem, size = 0x4, offset = 0x4, fixed_abs, tag = 'smem constant byte address 0x4 - core index']
  #allocation1 [shape = 'u32[144,128]{1,0:T(1,128)}', space=vmem, size = 0x12000, scoped, tag = 'internal scratch']
  #allocation2 [shape = 'bf16[36,128]{1,0:T(8,128)(2,1)}', space=vmem, size = 0x2800, scoped, tag = 'scratch operand']
  %s0 = inlined_call_operand.vmem [shape: bf16[32,128], index: 0, kind: input, shape index: {}]
  %s1 = inlined_call_operand.vmem [shape: bf16[128,128], index: 1, kind: input, shape index: {}]
  %s2 = inlined_call_operand.vmem [shape: f32[1,128], index: 2, kind: input, shape index: {}]
  %s3 = inlined_call_operand.hbm [shape: bf16[4,384,128], index: 3, kind: input, shape index: {}]
  %s4 = inlined_call_operand.vmem [shape: f32[4,1,8], index: 4, kind: input, shape index: {}]
  %s5 = inlined_call_operand.vmem [shape: f32[4,1,8], index: 5, kind: input, shape index: {}]
  %s6 = inlined_call_operand.vmem [shape: f32[128,8], index: 6, kind: input, shape index: {}]
  %s7 = inlined_call_operand.vmem [shape: f32[8,128], index: 7, kind: input, shape index: {}]
  %s8 = inlined_call_operand.hbm [shape: f32[32,128], index: 8, kind: output, shape index: {}]
  %s9 = sld [smem:[#allocation0]]
  $region46: #{tpu_custom_call.1} parent=0
    _
  %s11 = ssub.s32 1, %s9
  %s12 = scalar_select 0, %s11, %s9
  $region1: #{tpu_custom_call.1} parent=0
    #allocation3 [shape = 'u8[393216]{0}', space=vmem, size = 0x60000, scoped, tag = 'input window, operand 3, single buffered']
    #allocation4 [shape = 's32[1]{0}', space=sflag, size = 0x4, scoped, tag = 'scoped memory for tpu_custom_call.1']
    #allocation5 [shape = 's32[1]{0}', space=sflag, size = 0x4, scoped, tag = 'scoped memory for tpu_custom_call.1']
    #allocation6 [shape = 'u8[16384]{0}', space=vmem, size = 0x4000, scoped, tag = 'output window, operand 0, single buffered']
    %13 = vsyncpa [#allocation4], 0
    %14 = vsyncpa [#allocation5], 0
    // Predicated region
    $region2: #{tpu_custom_call.1} parent=1 // pred_check
      _
    $region3: #{tpu_custom_call.1} parent=1 // pred_check_branch
      %16 = sbr.rel (0) target = $region5
    $region4: #{tpu_custom_call.1} parent=1 // pred_region
      _
    $region5: #{tpu_custom_call.1} parent=1 // pred_fallthru
      _
    // Predicated region
    $region6: #{tpu_custom_call.1} parent=1 // pred_check
      _
    $region7: #{tpu_custom_call.1} parent=1 // pred_check_branch
      %18 = sbr.rel (0) target = $region9
    $region8: #{tpu_custom_call.1} parent=1 // pred_region
      _
    $region9: #{tpu_custom_call.1} parent=1 // pred_fallthru
      _
    // Predicated region
    $region10: #{tpu_custom_call.1} parent=1 // pred_check
      _
    $region11: #{tpu_custom_call.1} parent=1 // pred_check_branch
      %20 = sbr.rel (0) target = $region13
    $region12: #{tpu_custom_call.1} parent=1 // pred_region
      _
    $region13: #{tpu_custom_call.1} parent=1 // pred_fallthru
      _
    // Predicated region
    $region14: #{tpu_custom_call.1} parent=1 // pred_check
      _
    $region15: #{tpu_custom_call.1} parent=1 // pred_check_branch
      %22 = sbr.rel (0) target = $region17
    $region16: #{tpu_custom_call.1} parent=1 // pred_region
      %s24 = ssub.s32 12288, 12288
      %25 = vsyncadd [#allocation4], %s24
      %s26 = sshll.u32 [#allocation3], 4
      %s27 = int_to_ptr.vmem [resolvable:$true] %s26
      %32 = dma.hbm_to_vmem [thread:$0]  %s3, 12288, %s27, [#allocation4], 64, 64, 4
    $region17: #{tpu_custom_call.1} parent=1 // pred_fallthru
      _
    // Predicated region
    $region18: #{tpu_custom_call.1} parent=1 // pred_check
      _
    $region19: #{tpu_custom_call.1} parent=1 // pred_check_branch
      %34 = sbr.rel (0) target = $region21
    $region20: #{tpu_custom_call.1} parent=1 // pred_region
      _
    $region21: #{tpu_custom_call.1} parent=1 // pred_fallthru
      _
    // Predicated region
    $region22: #{tpu_custom_call.1} parent=1 // pred_check
      _
    $region23: #{tpu_custom_call.1} parent=1 // pred_check_branch
      %36 = sbr.rel (0) target = $region25
    $region24: #{tpu_custom_call.1} parent=1 // pred_region
      _
    $region25: #{tpu_custom_call.1} parent=1 // pred_fallthru
      _
    // Predicated region
    $region26: #{tpu_custom_call.1} parent=1 // pred_check
      _
    $region27: #{tpu_custom_call.1} parent=1 // pred_check_branch
      %38 = sbr.rel (0) target = $region29
    $region28: #{tpu_custom_call.1} parent=1 // pred_region
      _
    $region29: #{tpu_custom_call.1} parent=1 // pred_fallthru
      _
    // Predicated region
    $region30: #{tpu_custom_call.1} parent=1 // pred_check
      _
    $region31: #{tpu_custom_call.1} parent=1 // pred_check_branch
      %40 = sbr.rel (0) target = $region33
    $region32: #{tpu_custom_call.1} parent=1 // pred_region
      _
    $region33: #{tpu_custom_call.1} parent=1 // pred_fallthru
      _
    // Predicated region
    $region34: #{tpu_custom_call.1} parent=1 // pred_check
      _
    $region35: #{tpu_custom_call.1} parent=1 // pred_check_branch
      %42 = sbr.rel (0) target = $region37
    $region36: #{tpu_custom_call.1} parent=1 // pred_region
      %43 = dma.done [#allocation4], 12288
    $region37: #{tpu_custom_call.1} parent=1 // pred_fallthru
      _
    %vm45 = vcmask 1040384
    %vm46 = vsmask.f32 256
    %vm47 = vmand %vm45, %vm46
    %v48 = vld [vmem:[#allocation2] sm:$0x1]
    %v49 = vsel %vm47, 0, %v48
    %50 = vst [vmem:[#allocation2] sm:$0x1] %v49
    %vm51 = vsmask.f32 7938
    %vm52 = vmand %vm45, %vm51
    %v53 = vld [vmem:[#allocation2 + $0x8] sm:$0x1]
    %v54 = vsel %vm52, 0, %v53
    %55 = vst [vmem:[#allocation2 + $0x8] sm:$0x1] %v54
    %vm56 = vcmask 1041409
    %vm57 = vsmask.f32 1280
    %vm58 = vmand %vm56, %vm57
    %v59 = vld [vmem:[#allocation2 + $0x8] sm:$0x2]
    %v60 = vsel %vm58, 0, %v59
    %61 = vst [vmem:[#allocation2 + $0x8] sm:$0x2] %v60
    %vm62 = vsmask.f32 7942
    %vm63 = vmand %vm56, %vm62
    %v64 = vld [vmem:[#allocation2 + $0x10] sm:$0x2]
    %v65 = vsel %vm63, 0, %v64
    %66 = vst [vmem:[#allocation2 + $0x10] sm:$0x2] %v65
    %v67 = vld [vmem:[%s0] sm:$0xf]
    %v68 = vld [vmem:[%s0 + $0x4] sm:$0xf]
    %v69 = vld [vmem:[%s0 + $0x8] sm:$0xf]
    %v70 = vld [vmem:[%s0 + $0xc] sm:$0xf]
    %v71 = vld [vmem:[%s1] sm:$0xf]
    %v72 = vld [vmem:[%s1 + $0x4] sm:$0xf]
    %v73 = vld [vmem:[%s1 + $0x8] sm:$0xf]
    %v74 = vld [vmem:[%s1 + $0xc] sm:$0xf]
    %v75 = vld [vmem:[%s1 + $0x10] sm:$0xf]
    %v76 = vld [vmem:[%s1 + $0x14] sm:$0xf]
    %v77 = vld [vmem:[%s1 + $0x18] sm:$0xf]
    %v78 = vld [vmem:[%s1 + $0x1c] sm:$0xf]
    %v79 = vld [vmem:[%s1 + $0x20] sm:$0xf]
    %v80 = vld [vmem:[%s1 + $0x24] sm:$0xf]
    %v81 = vld [vmem:[%s1 + $0x28] sm:$0xf]
    %v82 = vld [vmem:[%s1 + $0x2c] sm:$0xf]
    %v83 = vld [vmem:[%s1 + $0x30] sm:$0xf]
    %v84 = vld [vmem:[%s1 + $0x34] sm:$0xf]
    %v85 = vld [vmem:[%s1 + $0x38] sm:$0xf]
    %v86 = vld [vmem:[%s1 + $0x3c] sm:$0xf]
    %v87 = vld [vmem:[%s2] sm:$0x1]
    %v89 = vlaneseq
    %v90 = vshrl.u32 %v89, 7
    %v91 = vsub.s32 0, %v90
    %v92 = vrot.slane %v87, %v91
    %v98 = vunpack.c.l.b16 %v67
    %v99 = vunpack.c.l.b16 %v68
    %v100 = vunpack.c.l.b16 %v69
    %v101 = vunpack.c.l.b16 %v70
    %v102 = vpack.c.b16 %v99, %v98
    %v103 = vpack.c.b16 %v101, %v100
    %v122 = vunpack.c.l.b16 %v71
    %v123 = vunpack.c.l.b16 %v72
    %v124 = vunpack.c.l.b16 %v73
    %v125 = vunpack.c.l.b16 %v74
    %v126 = vunpack.c.l.b16 %v75
    %v127 = vunpack.c.l.b16 %v76
    %v128 = vunpack.c.l.b16 %v77
    %v129 = vunpack.c.l.b16 %v78
    %v130 = vunpack.c.l.b16 %v79
    %v131 = vunpack.c.l.b16 %v80
    %v132 = vunpack.c.l.b16 %v81
    %v133 = vunpack.c.l.b16 %v82
    %v134 = vunpack.c.l.b16 %v83
    %v135 = vunpack.c.l.b16 %v84
    %v136 = vunpack.c.l.b16 %v85
    %v137 = vunpack.c.l.b16 %v86
    %v138 = vpack.c.b16 %v123, %v122
    %v139 = vpack.c.b16 %v125, %v124
    %v140 = vpack.c.b16 %v127, %v126
    %v141 = vpack.c.b16 %v129, %v128
    %v142 = vpack.c.b16 %v131, %v130
    %v143 = vpack.c.b16 %v133, %v132
    %v144 = vpack.c.b16 %v135, %v134
    %v145 = vpack.c.b16 %v137, %v136
    %154 = vmatprep.subr.bf16.mxu0 0
    %155 = vmatpush1.bf16.msra.mxu0 %v145
    %156 = vmatprep.subr.bf16.mxu0 0
    %157 = vmatpush1.bf16.msra.mxu0 %v144
    %158 = vmatprep.subr.bf16.mxu0 0
    %159 = vmatpush1.bf16.msra.mxu0 %v143
    %160 = vmatprep.subr.bf16.mxu0 0
    %161 = vmatpush1.bf16.msra.mxu0 %v142
    %162 = vmatprep.subr.bf16.mxu0 0
    %163 = vmatpush1.bf16.msra.mxu0 %v141
    %164 = vmatprep.subr.bf16.mxu0 0
    %165 = vmatpush1.bf16.msra.mxu0 %v140
    %166 = vmatprep.subr.bf16.mxu0 0
    %167 = vmatpush1.bf16.msra.mxu0 %v139
    %168 = vmatprep.subr.bf16.mxu0 0
    %169 = vmatpush1.bf16.msra.mxu0 %v138
    %170 = vmatprep.subr.bf16.mxu0 0
    %171 = vmatpush2.bf16.msra.mxu0 0
    %172 = vmatprep.subr.bf16.mxu0 0
    %173 = vmatpush2.bf16.msra.mxu0 0
    %174 = vmatprep.subr.bf16.mxu0 0
    %175 = vmatpush2.bf16.msra.mxu0 0
    %176 = vmatprep.subr.bf16.mxu0 0
    %177 = vmatpush2.bf16.msra.mxu0 0
    %178 = vmatprep.subr.bf16.mxu0 0
    %179 = vmatpush2.bf16.msra.mxu0 0
    %180 = vmatprep.subr.bf16.mxu0 0
    %181 = vmatpush2.bf16.msra.mxu0 0
    %182 = vmatprep.subr.bf16.mxu0 0
    %183 = vmatpush2.bf16.msra.mxu0 0
    %184 = vmatprep.subr.bf16.mxu0 0
    %185 = vmatpush2.bf16.msra.mxu0 0
    %186 = vmatprep.mubr.bf16.mxu0 0
    %187 = vmatmul.mubr.bf16.gmra.mxu0 %v102
    %v188 = vpop.f32.mrf.mxu0
    %v189 = vadd.f32 %v92, %v188
    %v190 = vpop.f32.mrf.mxu0
    %v191 = vpop.f32.mrf.mxu0
    %v192 = vadd.f32 %v92, %v191
    %v193 = vpop.f32.mrf.mxu0
    %194 = vmatprep.mubr.bf16.mxu0 0
    %195 = vmatmul.mubr.bf16.gmra.mxu0 %v103
    %v196 = vpop.f32.mrf.mxu0
    %v197 = vadd.f32 %v92, %v196
    %v198 = vpop.f32.mrf.mxu0
    %v199 = vpop.f32.mrf.mxu0
    %v200 = vadd.f32 %v92, %v199
    %v201 = vpop.f32.mrf.mxu0
    %202 = vdwg.mxu0
    %v203 = vpack.c.bf16 %v192, %v189
    %v205 = vunpack.c.l.b16 %v203
    %v206 = vunpack.c.h.b16 %v203
    %v207 = vpack.c.b16 %v205, %v205
    %v208 = vpack.c.b16 %v206, %v206
    %vm209 = vsmask.f32 4368
    %vm210 = vmor %vm46, %vm209
    %v212 = vshrl.u32 %v207, 16
    %v214 = vrot.slane %v212, 7
    %v215 = vshll.u32 %v207, 16
    %v217 = vor.u32 %v214, %v215
    %v218 = vrot.slane %v214, 4
    %v220 = vshrl.u32 %v208, 16
    %v222 = vrot.slane %v220, 7
    %v223 = vshll.u32 %v208, 16
    %v225 = vor.u32 %v222, %v223
    %v226 = vsel %vm210, %v218, %v225
    %v227 = vrot.slane %v222, 4
    %vm231 = vcmask 1043456
    %vm232 = vmand %vm231, %vm51
    %v233 = vld [vmem:[#allocation2] sm:$0xf]
    %v234 = vsel %vm232, %v217, %v233
    %235 = vst [vmem:[#allocation2] sm:$0xf] %v234
    %236 = vst [vmem:[#allocation2 + $0x4] sm:$0xf] %v226
    %v237 = vld [vmem:[#allocation2 + $0x8] sm:$0x1]
    %v238 = vsel %vm47, %v227, %v237
    %239 = vst [vmem:[#allocation2 + $0x8] sm:$0x1] %v238
    %v240 = vpack.c.bf16 %v200, %v197
    %v242 = vunpack.c.l.b16 %v240
    %v243 = vunpack.c.h.b16 %v240
    %v244 = vpack.c.b16 %v242, %v242
    %v245 = vpack.c.b16 %v243, %v243
    %vm246 = vsmask.f32 5392
    %vm247 = vmor %vm57, %vm246
    %v249 = vshrl.u32 %v244, 16
    %v251 = vrot.slane %v249, 6
    %v252 = vshll.u32 %v244, 16
    %v254 = vrot.slane %v252, 7
    %v255 = vor.u32 %v251, %v254
    %v256 = vrot.slane %v255, 4
    %v258 = vshrl.u32 %v245, 16
    %v260 = vrot.slane %v258, 6
    %v261 = vshll.u32 %v245, 16
    %v263 = vrot.slane %v261, 7
    %v264 = vor.u32 %v260, %v263
    %v265 = vsel %vm247, %v256, %v264
    %v266 = vrot.slane %v264, 4
    %vm270 = vcmask 1043457
    %vm271 = vmand %vm270, %vm62
    %v272 = vld [vmem:[#allocation2 + $0x8] sm:$0xe]
    %v273 = vsel %vm271, %v255, %v272
    %274 = vst [vmem:[#allocation2 + $0x8] sm:$0xe] %v273
    %275 = vst [vmem:[#allocation2 + $0xc] sm:$0xf] %v265
    %vm276 = vcmask 1041408
    %vm277 = vmand %vm276, %vm57
    %v278 = vld [vmem:[#allocation2 + $0x10] sm:$0x3]
    %v279 = vsel %vm277, %v266, %v278
    %280 = vst [vmem:[#allocation2 + $0x10] sm:$0x3] %v279
    %v281 = vlaneseq
    %v282 = vshrl.u32 %v281, 7
    %v283 = vadd.s32 %v282, 8
    %v284 = vadd.s32 %v282, 16
    %v285 = vadd.s32 %v282, 24
    %v286 = vadd.s32 %v282, 32
    %vm287 = vcmp.lt.s32.totalorder %v282, 0
    %v288 = vsub.s32 0, %v282
    %v289 = vsel %vm287, %v288, %v282
    %v290 = vmul.u32.u64.compose %v289, 3817748708
    %v291 = vextract.low.u32 %v290
    %v292 = vextract.high.u32 %v290
    %v293 = vshrl.u32 %v292, 4
    %v294 = vmul.u32 %v293, 18
    %v295 = vsub.s32 %v289, %v294
    %v296 = vsub.s32 0, %v295
    %v297 = vsel %vm287, %v296, %v295
    %vm298 = vcmp.lt.s32.totalorder %v283, 0
    %v299 = vsub.s32 0, %v283
    %v300 = vsel %vm298, %v299, %v283
    %v301 = vmul.u32.u64.compose %v300, 3817748708
    %v302 = vextract.low.u32 %v301
    %v303 = vextract.high.u32 %v301
    %v304 = vshrl.u32 %v303, 4
    %v305 = vmul.u32 %v304, 18
    %v306 = vsub.s32 %v300, %v305
    %v307 = vsub.s32 0, %v306
    %v308 = vsel %vm298, %v307, %v306
    %vm309 = vcmp.lt.s32.totalorder %v284, 0
    %v310 = vsub.s32 0, %v284
    %v311 = vsel %vm309, %v310, %v284
    %v312 = vmul.u32.u64.compose %v311, 3817748708
    %v313 = vextract.low.u32 %v312
    %v314 = vextract.high.u32 %v312
    %v315 = vshrl.u32 %v314, 4
    %v316 = vmul.u32 %v315, 18
    %v317 = vsub.s32 %v311, %v316
    %v318 = vsub.s32 0, %v317
    %v319 = vsel %vm309, %v318, %v317
    %vm320 = vcmp.lt.s32.totalorder %v285, 0
    %v321 = vsub.s32 0, %v285
    %v322 = vsel %vm320, %v321, %v285
    %v323 = vmul.u32.u64.compose %v322, 3817748708
    %v324 = vextract.low.u32 %v323
    %v325 = vextract.high.u32 %v323
    %v326 = vshrl.u32 %v325, 4
    %v327 = vmul.u32 %v326, 18
    %v328 = vsub.s32 %v322, %v327
    %v329 = vsub.s32 0, %v328
    %v330 = vsel %vm320, %v329, %v328
    %vm331 = vcmp.lt.s32.totalorder %v286, 0
    %v332 = vsub.s32 0, %v286
    %v333 = vsel %vm331, %v332, %v286
    %v334 = vmul.u32.u64.compose %v333, 3817748708
    %v335 = vextract.low.u32 %v334
    %v336 = vextract.high.u32 %v334
    %v337 = vshrl.u32 %v336, 4
    %v338 = vmul.u32 %v337, 18
    %v339 = vsub.s32 %v333, %v338
    %v340 = vsub.s32 0, %v339
    %v341 = vsel %vm331, %v340, %v339
    %vm342 = vcmp.ne.s32.totalorder %v297, 0
    %vm343 = vcmp.ne.s32.totalorder %v308, 0
    %vm344 = vcmp.ne.s32.totalorder %v319, 0
    %vm345 = vcmp.ne.s32.totalorder %v330, 0
    %vm346 = vcmp.ne.s32.totalorder %v341, 0
    %vm347 = vcmp.lt.s32.totalorder %v297, 0
    %vm348 = vcmp.lt.s32.totalorder %v308, 0
    %vm349 = vcmp.lt.s32.totalorder %v319, 0
    %vm350 = vcmp.lt.s32.totalorder %v330, 0
    %vm351 = vcmp.lt.s32.totalorder %v341, 0
    %vm352 = vmand %vm347, %vm342
    %vm353 = vmand %vm348, %vm343
    %vm354 = vmand %vm349, %vm344
    %vm355 = vmand %vm350, %vm345
    %vm356 = vmand %vm351, %vm346
    %v357 = vadd.s32 %v297, 18
    %v358 = vadd.s32 %v308, 18
    %v359 = vadd.s32 %v319, 18
    %v360 = vadd.s32 %v330, 18
    %v361 = vadd.s32 %v341, 18
    %v362 = vsel %vm352, %v357, %v297
    %v363 = vsel %vm353, %v358, %v308
    %v364 = vsel %vm354, %v359, %v319
    %v365 = vsel %vm355, %v360, %v330
    %v366 = vsel %vm356, %v361, %v341
    %vm367 = vcmp.lt.s32.totalorder %v362, 16
    %vm368 = vcmp.lt.s32.totalorder %v363, 16
    %vm369 = vcmp.lt.s32.totalorder %v364, 16
    %vm370 = vcmp.lt.s32.totalorder %v365, 16
    %vm371 = vcmp.lt.s32.totalorder %v366, 16
    %v372 = vsel %vm367, 1.0, 0.0
    %v373 = vsel %vm368, 1.0, 0.0
    %v374 = vsel %vm369, 1.0, 0.0
    %v375 = vsel %vm370, 1.0, 0.0
    %v376 = vsel %vm371, 1.0, 0.0
    %v377 = vld [vmem:[#allocation2] sm:$0xf]
    %v378 = vld [vmem:[#allocation2 + $0x4] sm:$0xf]
    %v379 = vld [vmem:[#allocation2 + $0x8] sm:$0xf]
    %v380 = vld [vmem:[#allocation2 + $0xc] sm:$0xf]
    %v381 = vld [vmem:[#allocation2 + $0x10] sm:$0x1]
    %v382 = vld [vmem:[#allocation2 + $0x10] sm:$0x3]
    %v383 = vld [vmem:[#allocation2] sm:$0xe]
    %v389 = vunpack.c.l.b16 %v377
    %v390 = vunpack.c.l.b16 %v378
    %v391 = vunpack.c.l.b16 %v379
    %v392 = vunpack.c.l.b16 %v380
    %v393 = vunpack.c.l.b16 %v381
    %v394 = vpack.c.b16 %v390, %v389
    %v395 = vpack.c.b16 %v392, %v391
    %v396 = vpack.c.b16 %v393, %v393
    %v401 = vunpack.c.l.b16 %v382
    %v402 = vpack.c.b16 %v401, %v401
    %vm403 = vsmask.f32 7424
    %v405 = vshrl.u32 %v394, 16
    %v407 = vshll.u32 %v394, 16
    %v409 = vrot.slane %v407, 1
    %v410 = vor.u32 %v405, %v409
    %v412 = vshll.u32 %v395, 16
    %v414 = vrot.slane %v412, 1
    %v415 = vsel %vm403, %v410, %v414
    %v416 = vshrl.u32 %v395, 16
    %v418 = vor.u32 %v416, %v414
    %v420 = vshll.u32 %v402, 16
    %v422 = vrot.slane %v420, 1
    %v423 = vsel %vm403, %v418, %v422
    %v424 = vshrl.u32 %v402, 16
    %v426 = vor.u32 %v424, %v422
    %v431 = vunpack.c.l.b16 %v383
    %v432 = vpack.c.b16 %v390, %v431
    %vm433 = vcmask 1046528
    %v434 = vrot.slane %v432, 1
    %v435 = vrot.slane %v395, 1
    %v436 = vsel %vm433, %v434, %v435
    %v437 = vrot.slane %v402, 1
    %v438 = vsel %vm433, %v435, %v437
    %v442 = vld [vmem:[#allocation3] sm:$0xf]
    %v443 = vld [vmem:[#allocation3 + $0x4] sm:$0xf]
    %v444 = vld [vmem:[#allocation3 + $0x8] sm:$0xf]
    %v445 = vld [vmem:[#allocation3 + $0xc] sm:$0xf]
    %v446 = vld [vmem:[#allocation3 + $0x10] sm:$0xf]
    %v447 = vld [vmem:[#allocation3 + $0x14] sm:$0xf]
    %v448 = vld [vmem:[#allocation3 + $0x18] sm:$0xf]
    %v449 = vld [vmem:[#allocation3 + $0x1c] sm:$0xf]
    %v450 = vld [vmem:[#allocation3 + $0x20] sm:$0xf]
    %v451 = vld [vmem:[#allocation3 + $0x24] sm:$0xf]
    %v452 = vld [vmem:[#allocation3 + $0x28] sm:$0xf]
    %v453 = vld [vmem:[#allocation3 + $0x2c] sm:$0xf]
    %v454 = vld [vmem:[#allocation3 + $0x30] sm:$0xf]
    %v455 = vld [vmem:[#allocation3 + $0x34] sm:$0xf]
    %v456 = vld [vmem:[#allocation3 + $0x38] sm:$0xf]
    %v457 = vld [vmem:[#allocation3 + $0x3c] sm:$0xf]
    %v458 = vld [vmem:[#allocation3 + $0x40] sm:$0xf]
    %v459 = vld [vmem:[#allocation3 + $0x44] sm:$0xf]
    %v460 = vld [vmem:[#allocation3 + $0x48] sm:$0xf]
    %v461 = vld [vmem:[#allocation3 + $0x4c] sm:$0xf]
    %v462 = vld [vmem:[#allocation3 + $0x50] sm:$0xf]
    %v463 = vld [vmem:[#allocation3 + $0x54] sm:$0xf]
    %v464 = vld [vmem:[#allocation3 + $0x58] sm:$0xf]
    %v465 = vld [vmem:[#allocation3 + $0x5c] sm:$0xf]
    %v466 = vld [vmem:[#allocation3 + $0x60] sm:$0xf]
    %v467 = vld [vmem:[#allocation3 + $0x64] sm:$0xf]
    %v468 = vld [vmem:[#allocation3 + $0x68] sm:$0xf]
    %v469 = vld [vmem:[#allocation3 + $0x6c] sm:$0xf]
    %v470 = vld [vmem:[#allocation3 + $0x70] sm:$0xf]
    %v471 = vld [vmem:[#allocation3 + $0x74] sm:$0xf]
    %v472 = vld [vmem:[#allocation3 + $0x78] sm:$0xf]
    %v473 = vld [vmem:[#allocation3 + $0x7c] sm:$0xf]
    %v474 = vld [vmem:[#allocation3 + $0x80] sm:$0xf]
    %v475 = vld [vmem:[#allocation3 + $0x84] sm:$0xf]
    %v476 = vld [vmem:[#allocation3 + $0x88] sm:$0xf]
    %v477 = vld [vmem:[#allocation3 + $0x8c] sm:$0xf]
    %v478 = vld [vmem:[#allocation3 + $0x90] sm:$0xf]
    %v479 = vld [vmem:[#allocation3 + $0x94] sm:$0xf]
    %v480 = vld [vmem:[#allocation3 + $0x98] sm:$0xf]
    %v481 = vld [vmem:[#allocation3 + $0x9c] sm:$0xf]
    %v482 = vld [vmem:[#allocation3 + $0xa0] sm:$0xf]
    %v483 = vld [vmem:[#allocation3 + $0xa4] sm:$0xf]
    %v484 = vld [vmem:[#allocation3 + $0xa8] sm:$0xf]
    %v485 = vld [vmem:[#allocation3 + $0xac] sm:$0xf]
    %v486 = vld [vmem:[#allocation3 + $0xb0] sm:$0xf]
    %v487 = vld [vmem:[#allocation3 + $0xb4] sm:$0xf]
    %v488 = vld [vmem:[#allocation3 + $0xb8] sm:$0xf]
    %v489 = vld [vmem:[#allocation3 + $0xbc] sm:$0xf]
    %v538 = vunpack.c.l.b16 %v442
    %v539 = vunpack.c.l.b16 %v443
    %v540 = vunpack.c.l.b16 %v444
    %v541 = vunpack.c.l.b16 %v445
    %v542 = vunpack.c.l.b16 %v446
    %v543 = vunpack.c.l.b16 %v447
    %v544 = vunpack.c.l.b16 %v448
    %v545 = vunpack.c.l.b16 %v449
    %v546 = vunpack.c.l.b16 %v450
    %v547 = vunpack.c.l.b16 %v451
    %v548 = vunpack.c.l.b16 %v452
    %v549 = vunpack.c.l.b16 %v453
    %v550 = vunpack.c.l.b16 %v454
    %v551 = vunpack.c.l.b16 %v455
    %v552 = vunpack.c.l.b16 %v456
    %v553 = vunpack.c.l.b16 %v457
    %v554 = vunpack.c.l.b16 %v458
    %v555 = vunpack.c.l.b16 %v459
    %v556 = vunpack.c.l.b16 %v460
    %v557 = vunpack.c.l.b16 %v461
    %v558 = vunpack.c.l.b16 %v462
    %v559 = vunpack.c.l.b16 %v463
    %v560 = vunpack.c.l.b16 %v464
    %v561 = vunpack.c.l.b16 %v465
    %v562 = vunpack.c.l.b16 %v466
    %v563 = vunpack.c.l.b16 %v467
    %v564 = vunpack.c.l.b16 %v468
    %v565 = vunpack.c.l.b16 %v469
    %v566 = vunpack.c.l.b16 %v470
    %v567 = vunpack.c.l.b16 %v471
    %v568 = vunpack.c.l.b16 %v472
    %v569 = vunpack.c.l.b16 %v473
    %v570 = vunpack.c.l.b16 %v474
    %v571 = vunpack.c.l.b16 %v475
    %v572 = vunpack.c.l.b16 %v476
    %v573 = vunpack.c.l.b16 %v477
    %v574 = vunpack.c.l.b16 %v478
    %v575 = vunpack.c.l.b16 %v479
    %v576 = vunpack.c.l.b16 %v480
    %v577 = vunpack.c.l.b16 %v481
    %v578 = vunpack.c.l.b16 %v482
    %v579 = vunpack.c.l.b16 %v483
    %v580 = vunpack.c.l.b16 %v484
    %v581 = vunpack.c.l.b16 %v485
    %v582 = vunpack.c.l.b16 %v486
    %v583 = vunpack.c.l.b16 %v487
    %v584 = vunpack.c.l.b16 %v488
    %v585 = vunpack.c.l.b16 %v489
    %v586 = vpack.c.b16 %v539, %v538
    %v587 = vpack.c.b16 %v541, %v540
    %v588 = vpack.c.b16 %v543, %v542
    %v589 = vpack.c.b16 %v545, %v544
    %v590 = vpack.c.b16 %v547, %v546
    %v591 = vpack.c.b16 %v549, %v548
    %v592 = vpack.c.b16 %v551, %v550
    %v593 = vpack.c.b16 %v553, %v552
    %v594 = vpack.c.b16 %v555, %v554
    %v595 = vpack.c.b16 %v557, %v556
    %v596 = vpack.c.b16 %v559, %v558
    %v597 = vpack.c.b16 %v561, %v560
    %v598 = vpack.c.b16 %v563, %v562
    %v599 = vpack.c.b16 %v565, %v564
    %v600 = vpack.c.b16 %v567, %v566
    %v601 = vpack.c.b16 %v569, %v568
    %v602 = vpack.c.b16 %v571, %v570
    %v603 = vpack.c.b16 %v573, %v572
    %v604 = vpack.c.b16 %v575, %v574
    %v605 = vpack.c.b16 %v577, %v576
    %v606 = vpack.c.b16 %v579, %v578
    %v607 = vpack.c.b16 %v581, %v580
    %v608 = vpack.c.b16 %v583, %v582
    %v609 = vpack.c.b16 %v585, %v584
    %634 = vmatprep.subr.bf16.mxu0 0
    %635 = vmatpush1.bf16.msra.mxu0 %v593
    %636 = vmatprep.subr.bf16.mxu0 0
    %637 = vmatpush1.bf16.msra.mxu0 %v592
    %638 = vmatprep.subr.bf16.mxu0 0
    %639 = vmatpush1.bf16.msra.mxu0 %v591
    %640 = vmatprep.subr.bf16.mxu0 0
    %641 = vmatpush1.bf16.msra.mxu0 %v590
    %642 = vmatprep.subr.bf16.mxu0 0
    %643 = vmatpush1.bf16.msra.mxu0 %v589
    %644 = vmatprep.subr.bf16.mxu0 0
    %645 = vmatpush1.bf16.msra.mxu0 %v588
    %646 = vmatprep.subr.bf16.mxu0 0
    %647 = vmatpush1.bf16.msra.mxu0 %v587
    %648 = vmatprep.subr.bf16.mxu0 0
    %649 = vmatpush1.bf16.msra.mxu0 %v586
    %650 = vmatprep.subr.bf16.mxu0 0
    %651 = vmatpush2.bf16.msra.mxu0 %v601
    %652 = vmatprep.subr.bf16.mxu0 0
    %653 = vmatpush2.bf16.msra.mxu0 %v600
    %654 = vmatprep.subr.bf16.mxu0 0
    %655 = vmatpush2.bf16.msra.mxu0 %v599
    %656 = vmatprep.subr.bf16.mxu0 0
    %657 = vmatpush2.bf16.msra.mxu0 %v598
    %658 = vmatprep.subr.bf16.mxu0 0
    %659 = vmatpush2.bf16.msra.mxu0 %v597
    %660 = vmatprep.subr.bf16.mxu0 0
    %661 = vmatpush2.bf16.msra.mxu0 %v596
    %662 = vmatprep.subr.bf16.mxu0 0
    %663 = vmatpush2.bf16.msra.mxu0 %v595
    %664 = vmatprep.subr.bf16.mxu0 0
    %665 = vmatpush2.bf16.msra.mxu0 %v594
    %666 = vmatprep.mubr.bf16.mxu0 %v415
    %667 = vmatmul.mubr.bf16.gmra.mxu0 %v394
    %v668 = vpop.f32.mrf.mxu0
    %v669 = vadd.f32 0.0, %v668
    %v670 = vpop.f32.mrf.mxu0
    %v671 = vpop.f32.mrf.mxu0
    %v672 = vadd.f32 0.0, %v671
    %v673 = vpop.f32.mrf.mxu0
    %674 = vmatprep.mubr.bf16.mxu0 %v423
    %675 = vmatmul.mubr.bf16.gmra.mxu0 %v395
    %v676 = vpop.f32.mrf.mxu0
    %v677 = vadd.f32 0.0, %v676
    %v678 = vpop.f32.mrf.mxu0
    %v679 = vpop.f32.mrf.mxu0
    %v680 = vadd.f32 0.0, %v679
    %v681 = vpop.f32.mrf.mxu0
    %682 = vmatprep.mubr.bf16.mxu0 %v426
    %683 = vmatmul.mubr.bf16.gmra.mxu0 %v396
    %v684 = vpop.f32.mrf.mxu0
    %v685 = vadd.f32 0.0, %v684
    %v686 = vpop.f32.mrf.mxu0
    %v687 = vpop.f32.mrf.mxu0
    %v688 = vpop.f32.mrf.mxu0
    %689 = vdwg.mxu0
    %690 = vmatprep.subr.bf16.mxu0 0
    %691 = vmatpush1.bf16.msra.mxu0 %v609
    %692 = vmatprep.subr.bf16.mxu0 0
    %693 = vmatpush1.bf16.msra.mxu0 %v608
    %694 = vmatprep.subr.bf16.mxu0 0
    %695 = vmatpush1.bf16.msra.mxu0 %v607
    %696 = vmatprep.subr.bf16.mxu0 0
    %697 = vmatpush1.bf16.msra.mxu0 %v606
    %698 = vmatprep.subr.bf16.mxu0 0
    %699 = vmatpush1.bf16.msra.mxu0 %v605
    %700 = vmatprep.subr.bf16.mxu0 0
    %701 = vmatpush1.bf16.msra.mxu0 %v604
    %702 = vmatprep.subr.bf16.mxu0 0
    %703 = vmatpush1.bf16.msra.mxu0 %v603
    %704 = vmatprep.subr.bf16.mxu0 0
    %705 = vmatpush1.bf16.msra.mxu0 %v602
    %706 = vmatprep.subr.bf16.mxu0 0
    %707 = vmatpush2.bf16.msra.mxu0 0
    %708 = vmatprep.subr.bf16.mxu0 0
    %709 = vmatpush2.bf16.msra.mxu0 0
    %710 = vmatprep.subr.bf16.mxu0 0
    %711 = vmatpush2.bf16.msra.mxu0 0
    %712 = vmatprep.subr.bf16.mxu0 0
    %713 = vmatpush2.bf16.msra.mxu0 0
    %714 = vmatprep.subr.bf16.mxu0 0
    %715 = vmatpush2.bf16.msra.mxu0 0
    %716 = vmatprep.subr.bf16.mxu0 0
    %717 = vmatpush2.bf16.msra.mxu0 0
    %718 = vmatprep.subr.bf16.mxu0 0
    %719 = vmatpush2.bf16.msra.mxu0 0
    %720 = vmatprep.subr.bf16.mxu0 0
    %721 = vmatpush2.bf16.msra.mxu0 0
    %722 = vmatprep.mubr.bf16.mxu0 0
    %723 = vmatmul.mubr.bf16.gmra.mxu0 %v436
    %v724 = vpop.f32.mrf.mxu0
    %v725 = vadd.f32 %v669, %v724
    %v726 = vpop.f32.mrf.mxu0
    %v727 = vpop.f32.mrf.mxu0
    %v728 = vadd.f32 %v672, %v727
    %v729 = vpop.f32.mrf.mxu0
    %730 = vmatprep.mubr.bf16.mxu0 0
    %731 = vmatmul.mubr.bf16.gmra.mxu0 %v438
    %v732 = vpop.f32.mrf.mxu0
    %v733 = vadd.f32 %v677, %v732
    %v734 = vpop.f32.mrf.mxu0
    %v735 = vpop.f32.mrf.mxu0
    %v736 = vadd.f32 %v680, %v735
    %v737 = vpop.f32.mrf.mxu0
    %738 = vmatprep.mubr.bf16.mxu0 0
    %739 = vmatmul.mubr.bf16.gmra.mxu0 %v437
    %v740 = vpop.f32.mrf.mxu0
    %v741 = vadd.f32 %v685, %v740
    %v742 = vpop.f32.mrf.mxu0
    %v743 = vpop.f32.mrf.mxu0
    %v744 = vpop.f32.mrf.mxu0
    %745 = vdwg.mxu0
    %v746 = vmul.f32 %v725, %v372
    %v747 = vmul.f32 %v728, %v373
    %v748 = vmul.f32 %v733, %v374
    %v749 = vmul.f32 %v736, %v375
    %v750 = vmul.f32 %v741, %v376
    %v751 = vadd.f32 %v746, %v747
    %v752 = vadd.f32 %v751, %v748
    %v753 = vadd.f32 %v752, %v749
    %vm754 = vcmask 1041408
    %v755 = vsel %vm754, %v750, 0.0
    %v756 = vadd.f32 %v753, %v755
    %v757 = vrot.slane %v756, 4
    %v758 = vadd.f32 %v756, %v757
    %v759 = vrot.slane %v758, 2
    %v760 = vadd.f32 %v758, %v759
    %v761 = vrot.slane %v760, 1
    %v762 = vadd.f32 %v760, %v761
    %v763 = vmul.f32 %v746, %v746
    %v764 = vmul.f32 %v747, %v747
    %v765 = vmul.f32 %v748, %v748
    %v766 = vmul.f32 %v749, %v749
    %v767 = vmul.f32 %v750, %v750
    %v768 = vadd.f32 %v763, %v764
    %v769 = vadd.f32 %v768, %v765
    %v770 = vadd.f32 %v769, %v766
    %v771 = vsel %vm754, %v767, 0.0
    %v772 = vadd.f32 %v770, %v771
    %v773 = vrot.slane %v772, 4
    %v774 = vadd.f32 %v772, %v773
    %v775 = vrot.slane %v774, 2
    %v776 = vadd.f32 %v774, %v775
    %v777 = vrot.slane %v776, 1
    %v778 = vadd.f32 %v776, %v777
    %vm779 = vcmask 1040384
    %v780 = vsel %vm779, %v762, %v778
    %v781 = vld [vmem:[%s6] sm:$0xff]
    %v782 = vld [vmem:[%s6 + $0x8] sm:$0xff]
    %v783 = vld [vmem:[%s6 + $0x10] sm:$0xff]
    %v784 = vld [vmem:[%s6 + $0x18] sm:$0xff]
    %v785 = vld [vmem:[%s6 + $0x20] sm:$0xff]
    %v786 = vld [vmem:[%s6 + $0x28] sm:$0xff]
    %v787 = vld [vmem:[%s6 + $0x30] sm:$0xff]
    %v788 = vld [vmem:[%s6 + $0x38] sm:$0xff]
    %v789 = vld [vmem:[%s6 + $0x40] sm:$0xff]
    %v790 = vld [vmem:[%s6 + $0x48] sm:$0xff]
    %v791 = vld [vmem:[%s6 + $0x50] sm:$0xff]
    %v792 = vld [vmem:[%s6 + $0x58] sm:$0xff]
    %v793 = vld [vmem:[%s6 + $0x60] sm:$0xff]
    %v794 = vld [vmem:[%s6 + $0x68] sm:$0xff]
    %v795 = vld [vmem:[%s6 + $0x70] sm:$0xff]
    %v796 = vld [vmem:[%s6 + $0x78] sm:$0xff]
    %797 = vmatprep.subr.mxu0 0.0
    %v798 = vand.u32 %v796, 4294901760
    %799 = vmatpush1.msra.mxu0 %v798
    %800 = vmatprep.subr.mxu0 0.0
    %v801 = vand.u32 %v795, 4294901760
    %802 = vmatpush1.msra.mxu0 %v801
    %803 = vmatprep.subr.mxu0 0.0
    %v804 = vand.u32 %v794, 4294901760
    %805 = vmatpush1.msra.mxu0 %v804
    %806 = vmatprep.subr.mxu0 0.0
    %v807 = vand.u32 %v793, 4294901760
    %808 = vmatpush1.msra.mxu0 %v807
    %809 = vmatprep.subr.mxu0 0.0
    %v810 = vand.u32 %v792, 4294901760
    %811 = vmatpush1.msra.mxu0 %v810
    %812 = vmatprep.subr.mxu0 0.0
    %v813 = vand.u32 %v791, 4294901760
    %814 = vmatpush1.msra.mxu0 %v813
    %815 = vmatprep.subr.mxu0 0.0
    %v816 = vand.u32 %v790, 4294901760
    %817 = vmatpush1.msra.mxu0 %v816
    %818 = vmatprep.subr.mxu0 0.0
    %v819 = vand.u32 %v789, 4294901760
    %820 = vmatpush1.msra.mxu0 %v819
    %821 = vmatprep.subr.mxu0 0.0
    %v822 = vand.u32 %v788, 4294901760
    %823 = vmatpush1.msra.mxu0 %v822
    %824 = vmatprep.subr.mxu0 0.0
    %v825 = vand.u32 %v787, 4294901760
    %826 = vmatpush1.msra.mxu0 %v825
    %827 = vmatprep.subr.mxu0 0.0
    %v828 = vand.u32 %v786, 4294901760
    %829 = vmatpush1.msra.mxu0 %v828
    %830 = vmatprep.subr.mxu0 0.0
    %v831 = vand.u32 %v785, 4294901760
    %832 = vmatpush1.msra.mxu0 %v831
    %833 = vmatprep.subr.mxu0 0.0
    %v834 = vand.u32 %v784, 4294901760
    %835 = vmatpush1.msra.mxu0 %v834
    %836 = vmatprep.subr.mxu0 0.0
    %v837 = vand.u32 %v783, 4294901760
    %838 = vmatpush1.msra.mxu0 %v837
    %839 = vmatprep.subr.mxu0 0.0
    %v840 = vand.u32 %v782, 4294901760
    %841 = vmatpush1.msra.mxu0 %v840
    %842 = vmatprep.subr.mxu0 0.0
    %v843 = vand.u32 %v781, 4294901760
    %844 = vmatpush1.msra.mxu0 %v843
    %845 = vmatprep.subr.mxu0 0.0
    %846 = vmatpush2.msra.mxu0 0.0
    %847 = vmatprep.subr.mxu0 0.0
    %848 = vmatpush2.msra.mxu0 0.0
    %849 = vmatprep.subr.mxu0 0.0
    %850 = vmatpush2.msra.mxu0 0.0
    %851 = vmatprep.subr.mxu0 0.0
    %852 = vmatpush2.msra.mxu0 0.0
    %853 = vmatprep.subr.mxu0 0.0
    %854 = vmatpush2.msra.mxu0 0.0
    %855 = vmatprep.subr.mxu0 0.0
    %856 = vmatpush2.msra.mxu0 0.0
    %857 = vmatprep.subr.mxu0 0.0
    %858 = vmatpush2.msra.mxu0 0.0
    %859 = vmatprep.subr.mxu0 0.0
    %860 = vmatpush2.msra.mxu0 0.0
    %861 = vmatprep.subr.mxu0 0.0
    %862 = vmatpush2.msra.mxu0 0.0
    %863 = vmatprep.subr.mxu0 0.0
    %864 = vmatpush2.msra.mxu0 0.0
    %865 = vmatprep.subr.mxu0 0.0
    %866 = vmatpush2.msra.mxu0 0.0
    %867 = vmatprep.subr.mxu0 0.0
    %868 = vmatpush2.msra.mxu0 0.0
    %869 = vmatprep.subr.mxu0 0.0
    %870 = vmatpush2.msra.mxu0 0.0
    %871 = vmatprep.subr.mxu0 0.0
    %872 = vmatpush2.msra.mxu0 0.0
    %873 = vmatprep.subr.mxu0 0.0
    %874 = vmatpush2.msra.mxu0 0.0
    %875 = vmatprep.subr.mxu0 0.0
    %876 = vmatpush2.msra.mxu0 0.0
    %877 = vmatprep.mubr.f32.mxu0 0.0
    %v878 = vand.u32 %v780, 4294901760
    %v879 = vsub.f32 %v780, %v878
    %v880 = vand.u32 %v879, 4294901760
    %v881 = vsub.f32 %v879, %v880
    %v882 = vand.u32 %v881, 4294901760
    %883 = vmatmul.mubr.f32.gmra.mxu0 %v882
    %v884 = vpop.f32.mrf.mxu0
    %v885 = vadd.f32 0.0, %v884
    %v886 = vpop.f32.mrf.mxu0
    %887 = vdwg.mxu0
    %888 = vmatprep.subr.mxu0 0.0
    %v889 = vand.u32 %v796, 4294901760
    %v890 = vsub.f32 %v796, %v889
    %v891 = vand.u32 %v890, 4294901760
    %v892 = vsub.f32 %v890, %v891
    %v893 = vand.u32 %v892, 4294901760
    %894 = vmatpush1.msra.mxu0 %v893
    %895 = vmatprep.subr.mxu0 0.0
    %v896 = vand.u32 %v795, 4294901760
    %v897 = vsub.f32 %v795, %v896
    %v898 = vand.u32 %v897, 4294901760
    %v899 = vsub.f32 %v897, %v898
    %v900 = vand.u32 %v899, 4294901760
    %901 = vmatpush1.msra.mxu0 %v900
    %902 = vmatprep.subr.mxu0 0.0
    %v903 = vand.u32 %v794, 4294901760
    %v904 = vsub.f32 %v794, %v903
    %v905 = vand.u32 %v904, 4294901760
    %v906 = vsub.f32 %v904, %v905
    %v907 = vand.u32 %v906, 4294901760
    %908 = vmatpush1.msra.mxu0 %v907
    %909 = vmatprep.subr.mxu0 0.0
    %v910 = vand.u32 %v793, 4294901760
    %v911 = vsub.f32 %v793, %v910
    %v912 = vand.u32 %v911, 4294901760
    %v913 = vsub.f32 %v911, %v912
    %v914 = vand.u32 %v913, 4294901760
    %915 = vmatpush1.msra.mxu0 %v914
    %916 = vmatprep.subr.mxu0 0.0
    %v917 = vand.u32 %v792, 4294901760
    %v918 = vsub.f32 %v792, %v917
    %v919 = vand.u32 %v918, 4294901760
    %v920 = vsub.f32 %v918, %v919
    %v921 = vand.u32 %v920, 4294901760
    %922 = vmatpush1.msra.mxu0 %v921
    %923 = vmatprep.subr.mxu0 0.0
    %v924 = vand.u32 %v791, 4294901760
    %v925 = vsub.f32 %v791, %v924
    %v926 = vand.u32 %v925, 4294901760
    %v927 = vsub.f32 %v925, %v926
    %v928 = vand.u32 %v927, 4294901760
    %929 = vmatpush1.msra.mxu0 %v928
    %930 = vmatprep.subr.mxu0 0.0
    %v931 = vand.u32 %v790, 4294901760
    %v932 = vsub.f32 %v790, %v931
    %v933 = vand.u32 %v932, 4294901760
    %v934 = vsub.f32 %v932, %v933
    %v935 = vand.u32 %v934, 4294901760
    %936 = vmatpush1.msra.mxu0 %v935
    %937 = vmatprep.subr.mxu0 0.0
    %v938 = vand.u32 %v789, 4294901760
    %v939 = vsub.f32 %v789, %v938
    %v940 = vand.u32 %v939, 4294901760
    %v941 = vsub.f32 %v939, %v940
    %v942 = vand.u32 %v941, 4294901760
    %943 = vmatpush1.msra.mxu0 %v942
    %944 = vmatprep.subr.mxu0 0.0
    %v945 = vand.u32 %v788, 4294901760
    %v946 = vsub.f32 %v788, %v945
    %v947 = vand.u32 %v946, 4294901760
    %v948 = vsub.f32 %v946, %v947
    %v949 = vand.u32 %v948, 4294901760
    %950 = vmatpush1.msra.mxu0 %v949
    %951 = vmatprep.subr.mxu0 0.0
    %v952 = vand.u32 %v787, 4294901760
    %v953 = vsub.f32 %v787, %v952
    %v954 = vand.u32 %v953, 4294901760
    %v955 = vsub.f32 %v953, %v954
    %v956 = vand.u32 %v955, 4294901760
    %957 = vmatpush1.msra.mxu0 %v956
    %958 = vmatprep.subr.mxu0 0.0
    %v959 = vand.u32 %v786, 4294901760
    %v960 = vsub.f32 %v786, %v959
    %v961 = vand.u32 %v960, 4294901760
    %v962 = vsub.f32 %v960, %v961
    %v963 = vand.u32 %v962, 4294901760
    %964 = vmatpush1.msra.mxu0 %v963
    %965 = vmatprep.subr.mxu0 0.0
    %v966 = vand.u32 %v785, 4294901760
    %v967 = vsub.f32 %v785, %v966
    %v968 = vand.u32 %v967, 4294901760
    %v969 = vsub.f32 %v967, %v968
    %v970 = vand.u32 %v969, 4294901760
    %971 = vmatpush1.msra.mxu0 %v970
    %972 = vmatprep.subr.mxu0 0.0
    %v973 = vand.u32 %v784, 4294901760
    %v974 = vsub.f32 %v784, %v973
    %v975 = vand.u32 %v974, 4294901760
    %v976 = vsub.f32 %v974, %v975
    %v977 = vand.u32 %v976, 4294901760
    %978 = vmatpush1.msra.mxu0 %v977
    %979 = vmatprep.subr.mxu0 0.0
    %v980 = vand.u32 %v783, 4294901760
    %v981 = vsub.f32 %v783, %v980
    %v982 = vand.u32 %v981, 4294901760
    %v983 = vsub.f32 %v981, %v982
    %v984 = vand.u32 %v983, 4294901760
    %985 = vmatpush1.msra.mxu0 %v984
    %986 = vmatprep.subr.mxu0 0.0
    %v987 = vand.u32 %v782, 4294901760
    %v988 = vsub.f32 %v782, %v987
    %v989 = vand.u32 %v988, 4294901760
    %v990 = vsub.f32 %v988, %v989
    %v991 = vand.u32 %v990, 4294901760
    %992 = vmatpush1.msra.mxu0 %v991
    %993 = vmatprep.subr.mxu0 0.0
    %v994 = vand.u32 %v781, 4294901760
    %v995 = vsub.f32 %v781, %v994
    %v996 = vand.u32 %v995, 4294901760
    %v997 = vsub.f32 %v995, %v996
    %v998 = vand.u32 %v997, 4294901760
    %999 = vmatpush1.msra.mxu0 %v998
    %1000 = vmatprep.subr.mxu0 0.0
    %1001 = vmatpush2.msra.mxu0 0.0
    %1002 = vmatprep.subr.mxu0 0.0
    %1003 = vmatpush2.msra.mxu0 0.0
    %1004 = vmatprep.subr.mxu0 0.0
    %1005 = vmatpush2.msra.mxu0 0.0
    %1006 = vmatprep.subr.mxu0 0.0
    %1007 = vmatpush2.msra.mxu0 0.0
    %1008 = vmatprep.subr.mxu0 0.0
    %1009 = vmatpush2.msra.mxu0 0.0
    %1010 = vmatprep.subr.mxu0 0.0
    %1011 = vmatpush2.msra.mxu0 0.0
    %1012 = vmatprep.subr.mxu0 0.0
    %1013 = vmatpush2.msra.mxu0 0.0
    %1014 = vmatprep.subr.mxu0 0.0
    %1015 = vmatpush2.msra.mxu0 0.0
    %1016 = vmatprep.subr.mxu0 0.0
    %1017 = vmatpush2.msra.mxu0 0.0
    %1018 = vmatprep.subr.mxu0 0.0
    %1019 = vmatpush2.msra.mxu0 0.0
    %1020 = vmatprep.subr.mxu0 0.0
    %1021 = vmatpush2.msra.mxu0 0.0
    %1022 = vmatprep.subr.mxu0 0.0
    %1023 = vmatpush2.msra.mxu0 0.0
    %1024 = vmatprep.subr.mxu0 0.0
    %1025 = vmatpush2.msra.mxu0 0.0
    %1026 = vmatprep.subr.mxu0 0.0
    %1027 = vmatpush2.msra.mxu0 0.0
    %1028 = vmatprep.subr.mxu0 0.0
    %1029 = vmatpush2.msra.mxu0 0.0
    %1030 = vmatprep.subr.mxu0 0.0
    %1031 = vmatpush2.msra.mxu0 0.0
    %1032 = vmatprep.mubr.f32.mxu0 0.0
    %v1033 = vand.u32 %v780, 4294901760
    %1034 = vmatmul.mubr.f32.gmra.mxu0 %v1033
    %v1035 = vpop.f32.mrf.mxu0
    %v1036 = vadd.f32 %v885, %v1035
    %v1037 = vpop.f32.mrf.mxu0
    %1038 = vdwg.mxu0
    %1039 = vmatprep.subr.mxu0 0.0
    %v1040 = vand.u32 %v796, 4294901760
    %v1041 = vsub.f32 %v796, %v1040
    %1042 = vmatpush1.msra.mxu0 %v1041
    %1043 = vmatprep.subr.mxu0 0.0
    %v1044 = vand.u32 %v795, 4294901760
    %v1045 = vsub.f32 %v795, %v1044
    %1046 = vmatpush1.msra.mxu0 %v1045
    %1047 = vmatprep.subr.mxu0 0.0
    %v1048 = vand.u32 %v794, 4294901760
    %v1049 = vsub.f32 %v794, %v1048
    %1050 = vmatpush1.msra.mxu0 %v1049
    %1051 = vmatprep.subr.mxu0 0.0
    %v1052 = vand.u32 %v793, 4294901760
    %v1053 = vsub.f32 %v793, %v1052
    %1054 = vmatpush1.msra.mxu0 %v1053
    %1055 = vmatprep.subr.mxu0 0.0
    %v1056 = vand.u32 %v792, 4294901760
    %v1057 = vsub.f32 %v792, %v1056
    %1058 = vmatpush1.msra.mxu0 %v1057
    %1059 = vmatprep.subr.mxu0 0.0
    %v1060 = vand.u32 %v791, 4294901760
    %v1061 = vsub.f32 %v791, %v1060
    %1062 = vmatpush1.msra.mxu0 %v1061
    %1063 = vmatprep.subr.mxu0 0.0
    %v1064 = vand.u32 %v790, 4294901760
    %v1065 = vsub.f32 %v790, %v1064
    %1066 = vmatpush1.msra.mxu0 %v1065
    %1067 = vmatprep.subr.mxu0 0.0
    %v1068 = vand.u32 %v789, 4294901760
    %v1069 = vsub.f32 %v789, %v1068
    %1070 = vmatpush1.msra.mxu0 %v1069
    %1071 = vmatprep.subr.mxu0 0.0
    %v1072 = vand.u32 %v788, 4294901760
    %v1073 = vsub.f32 %v788, %v1072
    %1074 = vmatpush1.msra.mxu0 %v1073
    %1075 = vmatprep.subr.mxu0 0.0
    %v1076 = vand.u32 %v787, 4294901760
    %v1077 = vsub.f32 %v787, %v1076
    %1078 = vmatpush1.msra.mxu0 %v1077
    %1079 = vmatprep.subr.mxu0 0.0
    %v1080 = vand.u32 %v786, 4294901760
    %v1081 = vsub.f32 %v786, %v1080
    %1082 = vmatpush1.msra.mxu0 %v1081
    %1083 = vmatprep.subr.mxu0 0.0
    %v1084 = vand.u32 %v785, 4294901760
    %v1085 = vsub.f32 %v785, %v1084
    %1086 = vmatpush1.msra.mxu0 %v1085
    %1087 = vmatprep.subr.mxu0 0.0
    %v1088 = vand.u32 %v784, 4294901760
    %v1089 = vsub.f32 %v784, %v1088
    %1090 = vmatpush1.msra.mxu0 %v1089
    %1091 = vmatprep.subr.mxu0 0.0
    %v1092 = vand.u32 %v783, 4294901760
    %v1093 = vsub.f32 %v783, %v1092
    %1094 = vmatpush1.msra.mxu0 %v1093
    %1095 = vmatprep.subr.mxu0 0.0
    %v1096 = vand.u32 %v782, 4294901760
    %v1097 = vsub.f32 %v782, %v1096
    %1098 = vmatpush1.msra.mxu0 %v1097
    %1099 = vmatprep.subr.mxu0 0.0
    %v1100 = vand.u32 %v781, 4294901760
    %v1101 = vsub.f32 %v781, %v1100
    %1102 = vmatpush1.msra.mxu0 %v1101
    %1103 = vmatprep.subr.mxu0 0.0
    %1104 = vmatpush2.msra.mxu0 0.0
    %1105 = vmatprep.subr.mxu0 0.0
    %1106 = vmatpush2.msra.mxu0 0.0
    %1107 = vmatprep.subr.mxu0 0.0
    %1108 = vmatpush2.msra.mxu0 0.0
    %1109 = vmatprep.subr.mxu0 0.0
    %1110 = vmatpush2.msra.mxu0 0.0
    %1111 = vmatprep.subr.mxu0 0.0
    %1112 = vmatpush2.msra.mxu0 0.0
    %1113 = vmatprep.subr.mxu0 0.0
    %1114 = vmatpush2.msra.mxu0 0.0
    %1115 = vmatprep.subr.mxu0 0.0
    %1116 = vmatpush2.msra.mxu0 0.0
    %1117 = vmatprep.subr.mxu0 0.0
    %1118 = vmatpush2.msra.mxu0 0.0
    %1119 = vmatprep.subr.mxu0 0.0
    %1120 = vmatpush2.msra.mxu0 0.0
    %1121 = vmatprep.subr.mxu0 0.0
    %1122 = vmatpush2.msra.mxu0 0.0
    %1123 = vmatprep.subr.mxu0 0.0
    %1124 = vmatpush2.msra.mxu0 0.0
    %1125 = vmatprep.subr.mxu0 0.0
    %1126 = vmatpush2.msra.mxu0 0.0
    %1127 = vmatprep.subr.mxu0 0.0
    %1128 = vmatpush2.msra.mxu0 0.0
    %1129 = vmatprep.subr.mxu0 0.0
    %1130 = vmatpush2.msra.mxu0 0.0
    %1131 = vmatprep.subr.mxu0 0.0
    %1132 = vmatpush2.msra.mxu0 0.0
    %1133 = vmatprep.subr.mxu0 0.0
    %1134 = vmatpush2.msra.mxu0 0.0
    %1135 = vmatprep.mubr.f32.mxu0 0.0
    %v1136 = vand.u32 %v780, 4294901760
    %v1137 = vsub.f32 %v780, %v1136
    %1138 = vmatmul.mubr.f32.gmra.mxu0 %v1137
    %v1139 = vpop.f32.mrf.mxu0
    %v1140 = vadd.f32 %v1036, %v1139
    %v1141 = vpop.f32.mrf.mxu0
    %1142 = vdwg.mxu0
    %1143 = vmatprep.subr.mxu0 0.0
    %v1144 = vand.u32 %v796, 4294901760
    %1145 = vmatpush1.msra.mxu0 %v1144
    %1146 = vmatprep.subr.mxu0 0.0
    %v1147 = vand.u32 %v795, 4294901760
    %1148 = vmatpush1.msra.mxu0 %v1147
    %1149 = vmatprep.subr.mxu0 0.0
    %v1150 = vand.u32 %v794, 4294901760
    %1151 = vmatpush1.msra.mxu0 %v1150
    %1152 = vmatprep.subr.mxu0 0.0
    %v1153 = vand.u32 %v793, 4294901760
    %1154 = vmatpush1.msra.mxu0 %v1153
    %1155 = vmatprep.subr.mxu0 0.0
    %v1156 = vand.u32 %v792, 4294901760
    %1157 = vmatpush1.msra.mxu0 %v1156
    %1158 = vmatprep.subr.mxu0 0.0
    %v1159 = vand.u32 %v791, 4294901760
    %1160 = vmatpush1.msra.mxu0 %v1159
    %1161 = vmatprep.subr.mxu0 0.0
    %v1162 = vand.u32 %v790, 4294901760
    %1163 = vmatpush1.msra.mxu0 %v1162
    %1164 = vmatprep.subr.mxu0 0.0
    %v1165 = vand.u32 %v789, 4294901760
    %1166 = vmatpush1.msra.mxu0 %v1165
    %1167 = vmatprep.subr.mxu0 0.0
    %v1168 = vand.u32 %v788, 4294901760
    %1169 = vmatpush1.msra.mxu0 %v1168
    %1170 = vmatprep.subr.mxu0 0.0
    %v1171 = vand.u32 %v787, 4294901760
    %1172 = vmatpush1.msra.mxu0 %v1171
    %1173 = vmatprep.subr.mxu0 0.0
    %v1174 = vand.u32 %v786, 4294901760
    %1175 = vmatpush1.msra.mxu0 %v1174
    %1176 = vmatprep.subr.mxu0 0.0
    %v1177 = vand.u32 %v785, 4294901760
    %1178 = vmatpush1.msra.mxu0 %v1177
    %1179 = vmatprep.subr.mxu0 0.0
    %v1180 = vand.u32 %v784, 4294901760
    %1181 = vmatpush1.msra.mxu0 %v1180
    %1182 = vmatprep.subr.mxu0 0.0
    %v1183 = vand.u32 %v783, 4294901760
    %1184 = vmatpush1.msra.mxu0 %v1183
    %1185 = vmatprep.subr.mxu0 0.0
    %v1186 = vand.u32 %v782, 4294901760
    %1187 = vmatpush1.msra.mxu0 %v1186
    %1188 = vmatprep.subr.mxu0 0.0
    %v1189 = vand.u32 %v781, 4294901760
    %1190 = vmatpush1.msra.mxu0 %v1189
    %1191 = vmatprep.subr.mxu0 0.0
    %1192 = vmatpush2.msra.mxu0 0.0
    %1193 = vmatprep.subr.mxu0 0.0
    %1194 = vmatpush2.msra.mxu0 0.0
    %1195 = vmatprep.subr.mxu0 0.0
    %1196 = vmatpush2.msra.mxu0 0.0
    %1197 = vmatprep.subr.mxu0 0.0
    %1198 = vmatpush2.msra.mxu0 0.0
    %1199 = vmatprep.subr.mxu0 0.0
    %1200 = vmatpush2.msra.mxu0 0.0
    %1201 = vmatprep.subr.mxu0 0.0
    %1202 = vmatpush2.msra.mxu0 0.0
    %1203 = vmatprep.subr.mxu0 0.0
    %1204 = vmatpush2.msra.mxu0 0.0
    %1205 = vmatprep.subr.mxu0 0.0
    %1206 = vmatpush2.msra.mxu0 0.0
    %1207 = vmatprep.subr.mxu0 0.0
    %1208 = vmatpush2.msra.mxu0 0.0
    %1209 = vmatprep.subr.mxu0 0.0
    %1210 = vmatpush2.msra.mxu0 0.0
    %1211 = vmatprep.subr.mxu0 0.0
    %1212 = vmatpush2.msra.mxu0 0.0
    %1213 = vmatprep.subr.mxu0 0.0
    %1214 = vmatpush2.msra.mxu0 0.0
    %1215 = vmatprep.subr.mxu0 0.0
    %1216 = vmatpush2.msra.mxu0 0.0
    %1217 = vmatprep.subr.mxu0 0.0
    %1218 = vmatpush2.msra.mxu0 0.0
    %1219 = vmatprep.subr.mxu0 0.0
    %1220 = vmatpush2.msra.mxu0 0.0
    %1221 = vmatprep.subr.mxu0 0.0
    %1222 = vmatpush2.msra.mxu0 0.0
    %1223 = vmatprep.mubr.f32.mxu0 0.0
    %v1224 = vand.u32 %v780, 4294901760
    %v1225 = vsub.f32 %v780, %v1224
    %v1226 = vand.u32 %v1225, 4294901760
    %1227 = vmatmul.mubr.f32.gmra.mxu0 %v1226
    %v1228 = vpop.f32.mrf.mxu0
    %v1229 = vadd.f32 %v1140, %v1228
    %v1230 = vpop.f32.mrf.mxu0
    %1231 = vdwg.mxu0
    %1232 = vmatprep.subr.mxu0 0.0
    %v1233 = vand.u32 %v796, 4294901760
    %v1234 = vsub.f32 %v796, %v1233
    %v1235 = vand.u32 %v1234, 4294901760
    %1236 = vmatpush1.msra.mxu0 %v1235
    %1237 = vmatprep.subr.mxu0 0.0
    %v1238 = vand.u32 %v795, 4294901760
    %v1239 = vsub.f32 %v795, %v1238
    %v1240 = vand.u32 %v1239, 4294901760
    %1241 = vmatpush1.msra.mxu0 %v1240
    %1242 = vmatprep.subr.mxu0 0.0
    %v1243 = vand.u32 %v794, 4294901760
    %v1244 = vsub.f32 %v794, %v1243
    %v1245 = vand.u32 %v1244, 4294901760
    %1246 = vmatpush1.msra.mxu0 %v1245
    %1247 = vmatprep.subr.mxu0 0.0
    %v1248 = vand.u32 %v793, 4294901760
    %v1249 = vsub.f32 %v793, %v1248
    %v1250 = vand.u32 %v1249, 4294901760
    %1251 = vmatpush1.msra.mxu0 %v1250
    %1252 = vmatprep.subr.mxu0 0.0
    %v1253 = vand.u32 %v792, 4294901760
    %v1254 = vsub.f32 %v792, %v1253
    %v1255 = vand.u32 %v1254, 4294901760
    %1256 = vmatpush1.msra.mxu0 %v1255
    %1257 = vmatprep.subr.mxu0 0.0
    %v1258 = vand.u32 %v791, 4294901760
    %v1259 = vsub.f32 %v791, %v1258
    %v1260 = vand.u32 %v1259, 4294901760
    %1261 = vmatpush1.msra.mxu0 %v1260
    %1262 = vmatprep.subr.mxu0 0.0
    %v1263 = vand.u32 %v790, 4294901760
    %v1264 = vsub.f32 %v790, %v1263
    %v1265 = vand.u32 %v1264, 4294901760
    %1266 = vmatpush1.msra.mxu0 %v1265
    %1267 = vmatprep.subr.mxu0 0.0
    %v1268 = vand.u32 %v789, 4294901760
    %v1269 = vsub.f32 %v789, %v1268
    %v1270 = vand.u32 %v1269, 4294901760
    %1271 = vmatpush1.msra.mxu0 %v1270
    %1272 = vmatprep.subr.mxu0 0.0
    %v1273 = vand.u32 %v788, 4294901760
    %v1274 = vsub.f32 %v788, %v1273
    %v1275 = vand.u32 %v1274, 4294901760
    %1276 = vmatpush1.msra.mxu0 %v1275
    %1277 = vmatprep.subr.mxu0 0.0
    %v1278 = vand.u32 %v787, 4294901760
    %v1279 = vsub.f32 %v787, %v1278
    %v1280 = vand.u32 %v1279, 4294901760
    %1281 = vmatpush1.msra.mxu0 %v1280
    %1282 = vmatprep.subr.mxu0 0.0
    %v1283 = vand.u32 %v786, 4294901760
    %v1284 = vsub.f32 %v786, %v1283
    %v1285 = vand.u32 %v1284, 4294901760
    %1286 = vmatpush1.msra.mxu0 %v1285
    %1287 = vmatprep.subr.mxu0 0.0
    %v1288 = vand.u32 %v785, 4294901760
    %v1289 = vsub.f32 %v785, %v1288
    %v1290 = vand.u32 %v1289, 4294901760
    %1291 = vmatpush1.msra.mxu0 %v1290
    %1292 = vmatprep.subr.mxu0 0.0
    %v1293 = vand.u32 %v784, 4294901760
    %v1294 = vsub.f32 %v784, %v1293
    %v1295 = vand.u32 %v1294, 4294901760
    %1296 = vmatpush1.msra.mxu0 %v1295
    %1297 = vmatprep.subr.mxu0 0.0
    %v1298 = vand.u32 %v783, 4294901760
    %v1299 = vsub.f32 %v783, %v1298
    %v1300 = vand.u32 %v1299, 4294901760
    %1301 = vmatpush1.msra.mxu0 %v1300
    %1302 = vmatprep.subr.mxu0 0.0
    %v1303 = vand.u32 %v782, 4294901760
    %v1304 = vsub.f32 %v782, %v1303
    %v1305 = vand.u32 %v1304, 4294901760
    %1306 = vmatpush1.msra.mxu0 %v1305
    %1307 = vmatprep.subr.mxu0 0.0
    %v1308 = vand.u32 %v781, 4294901760
    %v1309 = vsub.f32 %v781, %v1308
    %v1310 = vand.u32 %v1309, 4294901760
    %1311 = vmatpush1.msra.mxu0 %v1310
    %1312 = vmatprep.subr.mxu0 0.0
    %1313 = vmatpush2.msra.mxu0 0.0
    %1314 = vmatprep.subr.mxu0 0.0
    %1315 = vmatpush2.msra.mxu0 0.0
    %1316 = vmatprep.subr.mxu0 0.0
    %1317 = vmatpush2.msra.mxu0 0.0
    %1318 = vmatprep.subr.mxu0 0.0
    %1319 = vmatpush2.msra.mxu0 0.0
    %1320 = vmatprep.subr.mxu0 0.0
    %1321 = vmatpush2.msra.mxu0 0.0
    %1322 = vmatprep.subr.mxu0 0.0
    %1323 = vmatpush2.msra.mxu0 0.0
    %1324 = vmatprep.subr.mxu0 0.0
    %1325 = vmatpush2.msra.mxu0 0.0
    %1326 = vmatprep.subr.mxu0 0.0
    %1327 = vmatpush2.msra.mxu0 0.0
    %1328 = vmatprep.subr.mxu0 0.0
    %1329 = vmatpush2.msra.mxu0 0.0
    %1330 = vmatprep.subr.mxu0 0.0
    %1331 = vmatpush2.msra.mxu0 0.0
    %1332 = vmatprep.subr.mxu0 0.0
    %1333 = vmatpush2.msra.mxu0 0.0
    %1334 = vmatprep.subr.mxu0 0.0
    %1335 = vmatpush2.msra.mxu0 0.0
    %1336 = vmatprep.subr.mxu0 0.0
    %1337 = vmatpush2.msra.mxu0 0.0
    %1338 = vmatprep.subr.mxu0 0.0
    %1339 = vmatpush2.msra.mxu0 0.0
    %1340 = vmatprep.subr.mxu0 0.0
    %1341 = vmatpush2.msra.mxu0 0.0
    %1342 = vmatprep.subr.mxu0 0.0
    %1343 = vmatpush2.msra.mxu0 0.0
    %1344 = vmatprep.mubr.f32.mxu0 0.0
    %v1345 = vand.u32 %v780, 4294901760
    %1346 = vmatmul.mubr.f32.gmra.mxu0 %v1345
    %v1347 = vpop.f32.mrf.mxu0
    %v1348 = vadd.f32 %v1229, %v1347
    %v1349 = vpop.f32.mrf.mxu0
    %1350 = vdwg.mxu0
    %1351 = vmatprep.subr.mxu0 0.0
    %v1352 = vand.u32 %v796, 4294901760
    %1353 = vmatpush1.msra.mxu0 %v1352
    %1354 = vmatprep.subr.mxu0 0.0
    %v1355 = vand.u32 %v795, 4294901760
    %1356 = vmatpush1.msra.mxu0 %v1355
    %1357 = vmatprep.subr.mxu0 0.0
    %v1358 = vand.u32 %v794, 4294901760
    %1359 = vmatpush1.msra.mxu0 %v1358
    %1360 = vmatprep.subr.mxu0 0.0
    %v1361 = vand.u32 %v793, 4294901760
    %1362 = vmatpush1.msra.mxu0 %v1361
    %1363 = vmatprep.subr.mxu0 0.0
    %v1364 = vand.u32 %v792, 4294901760
    %1365 = vmatpush1.msra.mxu0 %v1364
    %1366 = vmatprep.subr.mxu0 0.0
    %v1367 = vand.u32 %v791, 4294901760
    %1368 = vmatpush1.msra.mxu0 %v1367
    %1369 = vmatprep.subr.mxu0 0.0
    %v1370 = vand.u32 %v790, 4294901760
    %1371 = vmatpush1.msra.mxu0 %v1370
    %1372 = vmatprep.subr.mxu0 0.0
    %v1373 = vand.u32 %v789, 4294901760
    %1374 = vmatpush1.msra.mxu0 %v1373
    %1375 = vmatprep.subr.mxu0 0.0
    %v1376 = vand.u32 %v788, 4294901760
    %1377 = vmatpush1.msra.mxu0 %v1376
    %1378 = vmatprep.subr.mxu0 0.0
    %v1379 = vand.u32 %v787, 4294901760
    %1380 = vmatpush1.msra.mxu0 %v1379
    %1381 = vmatprep.subr.mxu0 0.0
    %v1382 = vand.u32 %v786, 4294901760
    %1383 = vmatpush1.msra.mxu0 %v1382
    %1384 = vmatprep.subr.mxu0 0.0
    %v1385 = vand.u32 %v785, 4294901760
    %1386 = vmatpush1.msra.mxu0 %v1385
    %1387 = vmatprep.subr.mxu0 0.0
    %v1388 = vand.u32 %v784, 4294901760
    %1389 = vmatpush1.msra.mxu0 %v1388
    %1390 = vmatprep.subr.mxu0 0.0
    %v1391 = vand.u32 %v783, 4294901760
    %1392 = vmatpush1.msra.mxu0 %v1391
    %1393 = vmatprep.subr.mxu0 0.0
    %v1394 = vand.u32 %v782, 4294901760
    %1395 = vmatpush1.msra.mxu0 %v1394
    %1396 = vmatprep.subr.mxu0 0.0
    %v1397 = vand.u32 %v781, 4294901760
    %1398 = vmatpush1.msra.mxu0 %v1397
    %1399 = vmatprep.subr.mxu0 0.0
    %1400 = vmatpush2.msra.mxu0 0.0
    %1401 = vmatprep.subr.mxu0 0.0
    %1402 = vmatpush2.msra.mxu0 0.0
    %1403 = vmatprep.subr.mxu0 0.0
    %1404 = vmatpush2.msra.mxu0 0.0
    %1405 = vmatprep.subr.mxu0 0.0
    %1406 = vmatpush2.msra.mxu0 0.0
    %1407 = vmatprep.subr.mxu0 0.0
    %1408 = vmatpush2.msra.mxu0 0.0
    %1409 = vmatprep.subr.mxu0 0.0
    %1410 = vmatpush2.msra.mxu0 0.0
    %1411 = vmatprep.subr.mxu0 0.0
    %1412 = vmatpush2.msra.mxu0 0.0
    %1413 = vmatprep.subr.mxu0 0.0
    %1414 = vmatpush2.msra.mxu0 0.0
    %1415 = vmatprep.subr.mxu0 0.0
    %1416 = vmatpush2.msra.mxu0 0.0
    %1417 = vmatprep.subr.mxu0 0.0
    %1418 = vmatpush2.msra.mxu0 0.0
    %1419 = vmatprep.subr.mxu0 0.0
    %1420 = vmatpush2.msra.mxu0 0.0
    %1421 = vmatprep.subr.mxu0 0.0
    %1422 = vmatpush2.msra.mxu0 0.0
    %1423 = vmatprep.subr.mxu0 0.0
    %1424 = vmatpush2.msra.mxu0 0.0
    %1425 = vmatprep.subr.mxu0 0.0
    %1426 = vmatpush2.msra.mxu0 0.0
    %1427 = vmatprep.subr.mxu0 0.0
    %1428 = vmatpush2.msra.mxu0 0.0
    %1429 = vmatprep.subr.mxu0 0.0
    %1430 = vmatpush2.msra.mxu0 0.0
    %1431 = vmatprep.mubr.f32.mxu0 0.0
    %v1432 = vand.u32 %v780, 4294901760
    %1433 = vmatmul.mubr.f32.gmra.mxu0 %v1432
    %v1434 = vpop.f32.mrf.mxu0
    %v1435 = vadd.f32 %v1348, %v1434
    %v1436 = vpop.f32.mrf.mxu0
    %1437 = vdwg.mxu0
    %v1438 = vmul.f32 %v1435, 0.001953125
    %v1439 = vmul.f32 %v1438, %v1438
    %v1441 = vrot.slane %v1439, 7
    %v1443 = vsub.f32 %v1438, %v1441
    %v1444 = vmax.f32 %v1443, 0.0
    %v1445 = vld [vmem:[%s4] sm:$0x1]
    %v1446 = vadd.f32 %v1444, 1e-05
    %v1447 = vrsqrt.pop %v1446
    %v1450 = vunpack.c.l.s4 1966171168
    %v1451 = vunpack.c.0.s8 %v1450
    %v1452 = vlaneseq
    %v1453 = vshrl.u32 %v1452, 7
    %v1454 = vsub.s32 %v1451, %v1453
    %v1455 = vrot.slane %v1447, %v1454
    %v1456 = vcombine.high %v1455, %v1455
    %v1458 = vunpack.c.l.s4 1966171168
    %v1459 = vunpack.c.0.s8 %v1458
    %v1460 = vlaneseq
    %v1461 = vshrl.u32 %v1460, 7
    %v1462 = vsub.s32 %v1459, %v1461
    %v1463 = vrot.slane %v1456, %v1462
    %v1465 = vmul.f32 %v1445, %v1463
    %v1466 = vld [vmem:[%s5] sm:$0x1]
    %v1467 = vmul.f32 %v1438, %v1465
    %v1468 = vsub.f32 %v1466, %v1467
    %v1470 = vlaneseq
    %v1471 = vshrl.u32 %v1470, 7
    %v1472 = vsub.s32 0, %v1471
    %v1473 = vrot.slane %v1468, %v1472
    %v1475 = vsel %vm779, %v1465, %v1473
    %v1476 = vld [vmem:[%s7] sm:$0xff]
    %vm1477 = vcmask 64512
    %v1479 = vsel %vm1477, %v1475, 0
    %1481 = vmatprep.subr.mxu0 0.0
    %1482 = vmatpush1.msra.mxu0 0.0
    %1483 = vmatprep.subr.mxu0 0.0
    %1484 = vmatpush1.msra.mxu0 0.0
    %1485 = vmatprep.subr.mxu0 0.0
    %1486 = vmatpush1.msra.mxu0 0.0
    %1487 = vmatprep.subr.mxu0 0.0
    %1488 = vmatpush1.msra.mxu0 0.0
    %1489 = vmatprep.subr.mxu0 0.0
    %1490 = vmatpush1.msra.mxu0 0.0
    %1491 = vmatprep.subr.mxu0 0.0
    %1492 = vmatpush1.msra.mxu0 0.0
    %1493 = vmatprep.subr.mxu0 0.0
    %1494 = vmatpush1.msra.mxu0 0.0
    %1495 = vmatprep.subr.mxu0 0.0
    %1496 = vmatpush1.msra.mxu0 0.0
    %1497 = vmatprep.subr.mxu0 0.0
    %1498 = vmatpush1.msra.mxu0 0.0
    %1499 = vmatprep.subr.mxu0 0.0
    %1500 = vmatpush1.msra.mxu0 0.0
    %1501 = vmatprep.subr.mxu0 0.0
    %1502 = vmatpush1.msra.mxu0 0.0
    %1503 = vmatprep.subr.mxu0 0.0
    %1504 = vmatpush1.msra.mxu0 0.0
    %1505 = vmatprep.subr.mxu0 0.0
    %1506 = vmatpush1.msra.mxu0 0.0
    %1507 = vmatprep.subr.mxu0 0.0
    %1508 = vmatpush1.msra.mxu0 0.0
    %1509 = vmatprep.subr.mxu0 0.0
    %1510 = vmatpush1.msra.mxu0 0.0
    %1511 = vmatprep.subr.mxu0 0.0
    %v1512 = vand.u32 %v1476, 4294901760
    %1513 = vmatpush1.msra.mxu0 %v1512
    %1514 = vmatprep.subr.mxu0 0.0
    %1515 = vmatpush2.msra.mxu0 0.0
    %1516 = vmatprep.subr.mxu0 0.0
    %1517 = vmatpush2.msra.mxu0 0.0
    %1518 = vmatprep.subr.mxu0 0.0
    %1519 = vmatpush2.msra.mxu0 0.0
    %1520 = vmatprep.subr.mxu0 0.0
    %1521 = vmatpush2.msra.mxu0 0.0
    %1522 = vmatprep.subr.mxu0 0.0
    %1523 = vmatpush2.msra.mxu0 0.0
    %1524 = vmatprep.subr.mxu0 0.0
    %1525 = vmatpush2.msra.mxu0 0.0
    %1526 = vmatprep.subr.mxu0 0.0
    %1527 = vmatpush2.msra.mxu0 0.0
    %1528 = vmatprep.subr.mxu0 0.0
    %1529 = vmatpush2.msra.mxu0 0.0
    %1530 = vmatprep.subr.mxu0 0.0
    %1531 = vmatpush2.msra.mxu0 0.0
    %1532 = vmatprep.subr.mxu0 0.0
    %1533 = vmatpush2.msra.mxu0 0.0
    %1534 = vmatprep.subr.mxu0 0.0
    %1535 = vmatpush2.msra.mxu0 0.0
    %1536 = vmatprep.subr.mxu0 0.0
    %1537 = vmatpush2.msra.mxu0 0.0
    %1538 = vmatprep.subr.mxu0 0.0
    %1539 = vmatpush2.msra.mxu0 0.0
    %1540 = vmatprep.subr.mxu0 0.0
    %1541 = vmatpush2.msra.mxu0 0.0
    %1542 = vmatprep.subr.mxu0 0.0
    %1543 = vmatpush2.msra.mxu0 0.0
    %1544 = vmatprep.subr.mxu0 0.0
    %1545 = vmatpush2.msra.mxu0 0.0
    %1546 = vmatprep.mubr.f32.mxu0 0.0
    %v1547 = vand.u32 %v1479, 4294901760
    %v1548 = vsub.f32 %v1479, %v1547
    %v1549 = vand.u32 %v1548, 4294901760
    %v1550 = vsub.f32 %v1548, %v1549
    %v1551 = vand.u32 %v1550, 4294901760
    %1552 = vmatmul.mubr.f32.gmra.mxu0 %v1551
    %v1553 = vpop.f32.mrf.mxu0
    %v1554 = vadd.f32 0.0, %v1553
    %v1555 = vpop.f32.mrf.mxu0
    %1556 = vdwg.mxu0
    %1557 = vmatprep.subr.mxu0 0.0
    %1558 = vmatpush1.msra.mxu0 0.0
    %1559 = vmatprep.subr.mxu0 0.0
    %1560 = vmatpush1.msra.mxu0 0.0
    %1561 = vmatprep.subr.mxu0 0.0
    %1562 = vmatpush1.msra.mxu0 0.0
    %1563 = vmatprep.subr.mxu0 0.0
    %1564 = vmatpush1.msra.mxu0 0.0
    %1565 = vmatprep.subr.mxu0 0.0
    %1566 = vmatpush1.msra.mxu0 0.0
    %1567 = vmatprep.subr.mxu0 0.0
    %1568 = vmatpush1.msra.mxu0 0.0
    %1569 = vmatprep.subr.mxu0 0.0
    %1570 = vmatpush1.msra.mxu0 0.0
    %1571 = vmatprep.subr.mxu0 0.0
    %1572 = vmatpush1.msra.mxu0 0.0
    %1573 = vmatprep.subr.mxu0 0.0
    %1574 = vmatpush1.msra.mxu0 0.0
    %1575 = vmatprep.subr.mxu0 0.0
    %1576 = vmatpush1.msra.mxu0 0.0
    %1577 = vmatprep.subr.mxu0 0.0
    %1578 = vmatpush1.msra.mxu0 0.0
    %1579 = vmatprep.subr.mxu0 0.0
    %1580 = vmatpush1.msra.mxu0 0.0
    %1581 = vmatprep.subr.mxu0 0.0
    %1582 = vmatpush1.msra.mxu0 0.0
    %1583 = vmatprep.subr.mxu0 0.0
    %1584 = vmatpush1.msra.mxu0 0.0
    %1585 = vmatprep.subr.mxu0 0.0
    %1586 = vmatpush1.msra.mxu0 0.0
    %1587 = vmatprep.subr.mxu0 0.0
    %v1588 = vand.u32 %v1476, 4294901760
    %v1589 = vsub.f32 %v1476, %v1588
    %v1590 = vand.u32 %v1589, 4294901760
    %v1591 = vsub.f32 %v1589, %v1590
    %v1592 = vand.u32 %v1591, 4294901760
    %1593 = vmatpush1.msra.mxu0 %v1592
    %1594 = vmatprep.subr.mxu0 0.0
    %1595 = vmatpush2.msra.mxu0 0.0
    %1596 = vmatprep.subr.mxu0 0.0
    %1597 = vmatpush2.msra.mxu0 0.0
    %1598 = vmatprep.subr.mxu0 0.0
    %1599 = vmatpush2.msra.mxu0 0.0
    %1600 = vmatprep.subr.mxu0 0.0
    %1601 = vmatpush2.msra.mxu0 0.0
    %1602 = vmatprep.subr.mxu0 0.0
    %1603 = vmatpush2.msra.mxu0 0.0
    %1604 = vmatprep.subr.mxu0 0.0
    %1605 = vmatpush2.msra.mxu0 0.0
    %1606 = vmatprep.subr.mxu0 0.0
    %1607 = vmatpush2.msra.mxu0 0.0
    %1608 = vmatprep.subr.mxu0 0.0
    %1609 = vmatpush2.msra.mxu0 0.0
    %1610 = vmatprep.subr.mxu0 0.0
    %1611 = vmatpush2.msra.mxu0 0.0
    %1612 = vmatprep.subr.mxu0 0.0
    %1613 = vmatpush2.msra.mxu0 0.0
    %1614 = vmatprep.subr.mxu0 0.0
    %1615 = vmatpush2.msra.mxu0 0.0
    %1616 = vmatprep.subr.mxu0 0.0
    %1617 = vmatpush2.msra.mxu0 0.0
    %1618 = vmatprep.subr.mxu0 0.0
    %1619 = vmatpush2.msra.mxu0 0.0
    %1620 = vmatprep.subr.mxu0 0.0
    %1621 = vmatpush2.msra.mxu0 0.0
    %1622 = vmatprep.subr.mxu0 0.0
    %1623 = vmatpush2.msra.mxu0 0.0
    %1624 = vmatprep.subr.mxu0 0.0
    %1625 = vmatpush2.msra.mxu0 0.0
    %1626 = vmatprep.mubr.f32.mxu0 0.0
    %v1627 = vand.u32 %v1479, 4294901760
    %1628 = vmatmul.mubr.f32.gmra.mxu0 %v1627
    %v1629 = vpop.f32.mrf.mxu0
    %v1630 = vadd.f32 %v1554, %v1629
    %v1631 = vpop.f32.mrf.mxu0
    %1632 = vdwg.mxu0
    %1633 = vmatprep.subr.mxu0 0.0
    %1634 = vmatpush1.msra.mxu0 0.0
    %1635 = vmatprep.subr.mxu0 0.0
    %1636 = vmatpush1.msra.mxu0 0.0
    %1637 = vmatprep.subr.mxu0 0.0
    %1638 = vmatpush1.msra.mxu0 0.0
    %1639 = vmatprep.subr.mxu0 0.0
    %1640 = vmatpush1.msra.mxu0 0.0
    %1641 = vmatprep.subr.mxu0 0.0
    %1642 = vmatpush1.msra.mxu0 0.0
    %1643 = vmatprep.subr.mxu0 0.0
    %1644 = vmatpush1.msra.mxu0 0.0
    %1645 = vmatprep.subr.mxu0 0.0
    %1646 = vmatpush1.msra.mxu0 0.0
    %1647 = vmatprep.subr.mxu0 0.0
    %1648 = vmatpush1.msra.mxu0 0.0
    %1649 = vmatprep.subr.mxu0 0.0
    %1650 = vmatpush1.msra.mxu0 0.0
    %1651 = vmatprep.subr.mxu0 0.0
    %1652 = vmatpush1.msra.mxu0 0.0
    %1653 = vmatprep.subr.mxu0 0.0
    %1654 = vmatpush1.msra.mxu0 0.0
    %1655 = vmatprep.subr.mxu0 0.0
    %1656 = vmatpush1.msra.mxu0 0.0
    %1657 = vmatprep.subr.mxu0 0.0
    %1658 = vmatpush1.msra.mxu0 0.0
    %1659 = vmatprep.subr.mxu0 0.0
    %1660 = vmatpush1.msra.mxu0 0.0
    %1661 = vmatprep.subr.mxu0 0.0
    %1662 = vmatpush1.msra.mxu0 0.0
    %1663 = vmatprep.subr.mxu0 0.0
    %v1664 = vand.u32 %v1476, 4294901760
    %v1665 = vsub.f32 %v1476, %v1664
    %1666 = vmatpush1.msra.mxu0 %v1665
    %1667 = vmatprep.subr.mxu0 0.0
    %1668 = vmatpush2.msra.mxu0 0.0
    %1669 = vmatprep.subr.mxu0 0.0
    %1670 = vmatpush2.msra.mxu0 0.0
    %1671 = vmatprep.subr.mxu0 0.0
    %1672 = vmatpush2.msra.mxu0 0.0
    %1673 = vmatprep.subr.mxu0 0.0
    %1674 = vmatpush2.msra.mxu0 0.0
    %1675 = vmatprep.subr.mxu0 0.0
    %1676 = vmatpush2.msra.mxu0 0.0
    %1677 = vmatprep.subr.mxu0 0.0
    %1678 = vmatpush2.msra.mxu0 0.0
    %1679 = vmatprep.subr.mxu0 0.0
    %1680 = vmatpush2.msra.mxu0 0.0
    %1681 = vmatprep.subr.mxu0 0.0
    %1682 = vmatpush2.msra.mxu0 0.0
    %1683 = vmatprep.subr.mxu0 0.0
    %1684 = vmatpush2.msra.mxu0 0.0
    %1685 = vmatprep.subr.mxu0 0.0
    %1686 = vmatpush2.msra.mxu0 0.0
    %1687 = vmatprep.subr.mxu0 0.0
    %1688 = vmatpush2.msra.mxu0 0.0
    %1689 = vmatprep.subr.mxu0 0.0
    %1690 = vmatpush2.msra.mxu0 0.0
    %1691 = vmatprep.subr.mxu0 0.0
    %1692 = vmatpush2.msra.mxu0 0.0
    %1693 = vmatprep.subr.mxu0 0.0
    %1694 = vmatpush2.msra.mxu0 0.0
    %1695 = vmatprep.subr.mxu0 0.0
    %1696 = vmatpush2.msra.mxu0 0.0
    %1697 = vmatprep.subr.mxu0 0.0
    %1698 = vmatpush2.msra.mxu0 0.0
    %1699 = vmatprep.mubr.f32.mxu0 0.0
    %v1700 = vand.u32 %v1479, 4294901760
    %v1701 = vsub.f32 %v1479, %v1700
    %1702 = vmatmul.mubr.f32.gmra.mxu0 %v1701
    %v1703 = vpop.f32.mrf.mxu0
    %v1704 = vadd.f32 %v1630, %v1703
    %v1705 = vpop.f32.mrf.mxu0
    %1706 = vdwg.mxu0
    %1707 = vmatprep.subr.mxu0 0.0
    %1708 = vmatpush1.msra.mxu0 0.0
    %1709 = vmatprep.subr.mxu0 0.0
    %1710 = vmatpush1.msra.mxu0 0.0
    %1711 = vmatprep.subr.mxu0 0.0
    %1712 = vmatpush1.msra.mxu0 0.0
    %1713 = vmatprep.subr.mxu0 0.0
    %1714 = vmatpush1.msra.mxu0 0.0
    %1715 = vmatprep.subr.mxu0 0.0
    %1716 = vmatpush1.msra.mxu0 0.0
    %1717 = vmatprep.subr.mxu0 0.0
    %1718 = vmatpush1.msra.mxu0 0.0
    %1719 = vmatprep.subr.mxu0 0.0
    %1720 = vmatpush1.msra.mxu0 0.0
    %1721 = vmatprep.subr.mxu0 0.0
    %1722 = vmatpush1.msra.mxu0 0.0
    %1723 = vmatprep.subr.mxu0 0.0
    %1724 = vmatpush1.msra.mxu0 0.0
    %1725 = vmatprep.subr.mxu0 0.0
    %1726 = vmatpush1.msra.mxu0 0.0
    %1727 = vmatprep.subr.mxu0 0.0
    %1728 = vmatpush1.msra.mxu0 0.0
    %1729 = vmatprep.subr.mxu0 0.0
    %1730 = vmatpush1.msra.mxu0 0.0
    %1731 = vmatprep.subr.mxu0 0.0
    %1732 = vmatpush1.msra.mxu0 0.0
    %1733 = vmatprep.subr.mxu0 0.0
    %1734 = vmatpush1.msra.mxu0 0.0
    %1735 = vmatprep.subr.mxu0 0.0
    %1736 = vmatpush1.msra.mxu0 0.0
    %1737 = vmatprep.subr.mxu0 0.0
    %v1738 = vand.u32 %v1476, 4294901760
    %1739 = vmatpush1.msra.mxu0 %v1738
    %1740 = vmatprep.subr.mxu0 0.0
    %1741 = vmatpush2.msra.mxu0 0.0
    %1742 = vmatprep.subr.mxu0 0.0
    %1743 = vmatpush2.msra.mxu0 0.0
    %1744 = vmatprep.subr.mxu0 0.0
    %1745 = vmatpush2.msra.mxu0 0.0
    %1746 = vmatprep.subr.mxu0 0.0
    %1747 = vmatpush2.msra.mxu0 0.0
    %1748 = vmatprep.subr.mxu0 0.0
    %1749 = vmatpush2.msra.mxu0 0.0
    %1750 = vmatprep.subr.mxu0 0.0
    %1751 = vmatpush2.msra.mxu0 0.0
    %1752 = vmatprep.subr.mxu0 0.0
    %1753 = vmatpush2.msra.mxu0 0.0
    %1754 = vmatprep.subr.mxu0 0.0
    %1755 = vmatpush2.msra.mxu0 0.0
    %1756 = vmatprep.subr.mxu0 0.0
    %1757 = vmatpush2.msra.mxu0 0.0
    %1758 = vmatprep.subr.mxu0 0.0
    %1759 = vmatpush2.msra.mxu0 0.0
    %1760 = vmatprep.subr.mxu0 0.0
    %1761 = vmatpush2.msra.mxu0 0.0
    %1762 = vmatprep.subr.mxu0 0.0
    %1763 = vmatpush2.msra.mxu0 0.0
    %1764 = vmatprep.subr.mxu0 0.0
    %1765 = vmatpush2.msra.mxu0 0.0
    %1766 = vmatprep.subr.mxu0 0.0
    %1767 = vmatpush2.msra.mxu0 0.0
    %1768 = vmatprep.subr.mxu0 0.0
    %1769 = vmatpush2.msra.mxu0 0.0
    %1770 = vmatprep.subr.mxu0 0.0
    %1771 = vmatpush2.msra.mxu0 0.0
    %1772 = vmatprep.mubr.f32.mxu0 0.0
    %v1773 = vand.u32 %v1479, 4294901760
    %v1774 = vsub.f32 %v1479, %v1773
    %v1775 = vand.u32 %v1774, 4294901760
    %1776 = vmatmul.mubr.f32.gmra.mxu0 %v1775
    %v1777 = vpop.f32.mrf.mxu0
    %v1778 = vadd.f32 %v1704, %v1777
    %v1779 = vpop.f32.mrf.mxu0
    %1780 = vdwg.mxu0
    %1781 = vmatprep.subr.mxu0 0.0
    %1782 = vmatpush1.msra.mxu0 0.0
    %1783 = vmatprep.subr.mxu0 0.0
    %1784 = vmatpush1.msra.mxu0 0.0
    %1785 = vmatprep.subr.mxu0 0.0
    %1786 = vmatpush1.msra.mxu0 0.0
    %1787 = vmatprep.subr.mxu0 0.0
    %1788 = vmatpush1.msra.mxu0 0.0
    %1789 = vmatprep.subr.mxu0 0.0
    %1790 = vmatpush1.msra.mxu0 0.0
    %1791 = vmatprep.subr.mxu0 0.0
    %1792 = vmatpush1.msra.mxu0 0.0
    %1793 = vmatprep.subr.mxu0 0.0
    %1794 = vmatpush1.msra.mxu0 0.0
    %1795 = vmatprep.subr.mxu0 0.0
    %1796 = vmatpush1.msra.mxu0 0.0
    %1797 = vmatprep.subr.mxu0 0.0
    %1798 = vmatpush1.msra.mxu0 0.0
    %1799 = vmatprep.subr.mxu0 0.0
    %1800 = vmatpush1.msra.mxu0 0.0
    %1801 = vmatprep.subr.mxu0 0.0
    %1802 = vmatpush1.msra.mxu0 0.0
    %1803 = vmatprep.subr.mxu0 0.0
    %1804 = vmatpush1.msra.mxu0 0.0
    %1805 = vmatprep.subr.mxu0 0.0
    %1806 = vmatpush1.msra.mxu0 0.0
    %1807 = vmatprep.subr.mxu0 0.0
    %1808 = vmatpush1.msra.mxu0 0.0
    %1809 = vmatprep.subr.mxu0 0.0
    %1810 = vmatpush1.msra.mxu0 0.0
    %1811 = vmatprep.subr.mxu0 0.0
    %v1812 = vand.u32 %v1476, 4294901760
    %v1813 = vsub.f32 %v1476, %v1812
    %v1814 = vand.u32 %v1813, 4294901760
    %1815 = vmatpush1.msra.mxu0 %v1814
    %1816 = vmatprep.subr.mxu0 0.0
    %1817 = vmatpush2.msra.mxu0 0.0
    %1818 = vmatprep.subr.mxu0 0.0
    %1819 = vmatpush2.msra.mxu0 0.0
    %1820 = vmatprep.subr.mxu0 0.0
    %1821 = vmatpush2.msra.mxu0 0.0
    %1822 = vmatprep.subr.mxu0 0.0
    %1823 = vmatpush2.msra.mxu0 0.0
    %1824 = vmatprep.subr.mxu0 0.0
    %1825 = vmatpush2.msra.mxu0 0.0
    %1826 = vmatprep.subr.mxu0 0.0
    %1827 = vmatpush2.msra.mxu0 0.0
    %1828 = vmatprep.subr.mxu0 0.0
    %1829 = vmatpush2.msra.mxu0 0.0
    %1830 = vmatprep.subr.mxu0 0.0
    %1831 = vmatpush2.msra.mxu0 0.0
    %1832 = vmatprep.subr.mxu0 0.0
    %1833 = vmatpush2.msra.mxu0 0.0
    %1834 = vmatprep.subr.mxu0 0.0
    %1835 = vmatpush2.msra.mxu0 0.0
    %1836 = vmatprep.subr.mxu0 0.0
    %1837 = vmatpush2.msra.mxu0 0.0
    %1838 = vmatprep.subr.mxu0 0.0
    %1839 = vmatpush2.msra.mxu0 0.0
    %1840 = vmatprep.subr.mxu0 0.0
    %1841 = vmatpush2.msra.mxu0 0.0
    %1842 = vmatprep.subr.mxu0 0.0
    %1843 = vmatpush2.msra.mxu0 0.0
    %1844 = vmatprep.subr.mxu0 0.0
    %1845 = vmatpush2.msra.mxu0 0.0
    %1846 = vmatprep.subr.mxu0 0.0
    %1847 = vmatpush2.msra.mxu0 0.0
    %1848 = vmatprep.mubr.f32.mxu0 0.0
    %v1849 = vand.u32 %v1479, 4294901760
    %1850 = vmatmul.mubr.f32.gmra.mxu0 %v1849
    %v1851 = vpop.f32.mrf.mxu0
    %v1852 = vadd.f32 %v1778, %v1851
    %v1853 = vpop.f32.mrf.mxu0
    %1854 = vdwg.mxu0
    %1855 = vmatprep.subr.mxu0 0.0
    %1856 = vmatpush1.msra.mxu0 0.0
    %1857 = vmatprep.subr.mxu0 0.0
    %1858 = vmatpush1.msra.mxu0 0.0
    %1859 = vmatprep.subr.mxu0 0.0
    %1860 = vmatpush1.msra.mxu0 0.0
    %1861 = vmatprep.subr.mxu0 0.0
    %1862 = vmatpush1.msra.mxu0 0.0
    %1863 = vmatprep.subr.mxu0 0.0
    %1864 = vmatpush1.msra.mxu0 0.0
    %1865 = vmatprep.subr.mxu0 0.0
    %1866 = vmatpush1.msra.mxu0 0.0
    %1867 = vmatprep.subr.mxu0 0.0
    %1868 = vmatpush1.msra.mxu0 0.0
    %1869 = vmatprep.subr.mxu0 0.0
    %1870 = vmatpush1.msra.mxu0 0.0
    %1871 = vmatprep.subr.mxu0 0.0
    %1872 = vmatpush1.msra.mxu0 0.0
    %1873 = vmatprep.subr.mxu0 0.0
    %1874 = vmatpush1.msra.mxu0 0.0
    %1875 = vmatprep.subr.mxu0 0.0
    %1876 = vmatpush1.msra.mxu0 0.0
    %1877 = vmatprep.subr.mxu0 0.0
    %1878 = vmatpush1.msra.mxu0 0.0
    %1879 = vmatprep.subr.mxu0 0.0
    %1880 = vmatpush1.msra.mxu0 0.0
    %1881 = vmatprep.subr.mxu0 0.0
    %1882 = vmatpush1.msra.mxu0 0.0
    %1883 = vmatprep.subr.mxu0 0.0
    %1884 = vmatpush1.msra.mxu0 0.0
    %1885 = vmatprep.subr.mxu0 0.0
    %v1886 = vand.u32 %v1476, 4294901760
    %1887 = vmatpush1.msra.mxu0 %v1886
    %1888 = vmatprep.subr.mxu0 0.0
    %1889 = vmatpush2.msra.mxu0 0.0
    %1890 = vmatprep.subr.mxu0 0.0
    %1891 = vmatpush2.msra.mxu0 0.0
    %1892 = vmatprep.subr.mxu0 0.0
    %1893 = vmatpush2.msra.mxu0 0.0
    %1894 = vmatprep.subr.mxu0 0.0
    %1895 = vmatpush2.msra.mxu0 0.0
    %1896 = vmatprep.subr.mxu0 0.0
    %1897 = vmatpush2.msra.mxu0 0.0
    %1898 = vmatprep.subr.mxu0 0.0
    %1899 = vmatpush2.msra.mxu0 0.0
    %1900 = vmatprep.subr.mxu0 0.0
    %1901 = vmatpush2.msra.mxu0 0.0
    %1902 = vmatprep.subr.mxu0 0.0
    %1903 = vmatpush2.msra.mxu0 0.0
    %1904 = vmatprep.subr.mxu0 0.0
    %1905 = vmatpush2.msra.mxu0 0.0
    %1906 = vmatprep.subr.mxu0 0.0
    %1907 = vmatpush2.msra.mxu0 0.0
    %1908 = vmatprep.subr.mxu0 0.0
    %1909 = vmatpush2.msra.mxu0 0.0
    %1910 = vmatprep.subr.mxu0 0.0
    %1911 = vmatpush2.msra.mxu0 0.0
    %1912 = vmatprep.subr.mxu0 0.0
    %1913 = vmatpush2.msra.mxu0 0.0
    %1914 = vmatprep.subr.mxu0 0.0
    %1915 = vmatpush2.msra.mxu0 0.0
    %1916 = vmatprep.subr.mxu0 0.0
    %1917 = vmatpush2.msra.mxu0 0.0
    %1918 = vmatprep.subr.mxu0 0.0
    %1919 = vmatpush2.msra.mxu0 0.0
    %1920 = vmatprep.mubr.f32.mxu0 0.0
    %v1921 = vand.u32 %v1479, 4294901760
    %1922 = vmatmul.mubr.f32.gmra.mxu0 %v1921
    %v1923 = vpop.f32.mrf.mxu0
    %v1924 = vadd.f32 %v1852, %v1923
    %v1925 = vpop.f32.mrf.mxu0
    %1926 = vdwg.mxu0
    %v1927 = vlaneseq
    %v1928 = vshrl.u32 %v1927, 7
    %v1929 = vsub.s32 0, %v1928
    %v1930 = vrot.slane %v1924, %v1929
    %v1931 = vmul.f32 %v725, %v1930
    %v1932 = vmul.f32 %v728, %v1930
    %v1933 = vmul.f32 %v733, %v1930
    %v1934 = vmul.f32 %v736, %v1930
    %v1935 = vmul.f32 %v741, %v1930
    %v1936 = vlaneseq
    %v1937 = vshrl.u32 %v1936, 7
    %v1938 = vsub.s32 1, %v1937
    %v1939 = vrot.slane %v1924, %v1938
    %v1940 = vadd.f32 %v1931, %v1939
    %v1941 = vadd.f32 %v1932, %v1939
    %v1942 = vadd.f32 %v1933, %v1939
    %v1943 = vadd.f32 %v1934, %v1939
    %v1944 = vadd.f32 %v1935, %v1939
    %v1945 = vmul.f32 %v1940, 0.5
    %v1946 = vmul.f32 %v1941, 0.5
    %v1947 = vmul.f32 %v1942, 0.5
    %v1948 = vmul.f32 %v1943, 0.5
    %v1949 = vmul.f32 %v1944, 0.5
    %v1950 = vmul.f32 %v1940, 0.70710677
    %v1951 = vmul.f32 %v1941, 0.70710677
    %v1952 = vmul.f32 %v1942, 0.70710677
    %v1953 = vmul.f32 %v1943, 0.70710677
    %v1954 = vmul.f32 %v1944, 0.70710677
    %vm1955 = vcmp.ge.f32.partialorder %v1950, 0.0
    %vm1956 = vcmp.ge.f32.partialorder %v1951, 0.0
    %vm1957 = vcmp.ge.f32.partialorder %v1952, 0.0
    %vm1958 = vcmp.ge.f32.partialorder %v1953, 0.0
    %vm1959 = vcmp.ge.f32.partialorder %v1954, 0.0
    %v1960 = vsel %vm1955, 1.0, -1.0
    %v1961 = vsel %vm1956, 1.0, -1.0
    %v1962 = vsel %vm1957, 1.0, -1.0
    %v1963 = vsel %vm1958, 1.0, -1.0
    %v1964 = vsel %vm1959, 1.0, -1.0
    %v1965 = vand.u32 2147483647, %v1950
    %v1966 = vand.u32 2147483647, %v1951
    %v1967 = vand.u32 2147483647, %v1952
    %v1968 = vand.u32 2147483647, %v1953
    %v1969 = vand.u32 2147483647, %v1954
    %v1970 = vmul.f32 %v1965, 0.3275911
    %v1971 = vmul.f32 %v1966, 0.3275911
    %v1972 = vmul.f32 %v1967, 0.3275911
    %v1973 = vmul.f32 %v1968, 0.3275911
    %v1974 = vmul.f32 %v1969, 0.3275911
    %v1975 = vadd.f32 %v1970, 1.0
    %v1976 = vadd.f32 %v1971, 1.0
    %v1977 = vadd.f32 %v1972, 1.0
    %v1978 = vadd.f32 %v1973, 1.0
    %v1979 = vadd.f32 %v1974, 1.0
    %v1980 = vrcp.pop %v1975
    %v1981 = vrcp.pop %v1976
    %v1982 = vrcp.pop %v1977
    %v1983 = vrcp.pop %v1978
    %v1984 = vrcp.pop %v1979
    %v1985 = vmul.f32 %v1980, 1.0614054
    %v1986 = vmul.f32 %v1981, 1.0614054
    %v1987 = vmul.f32 %v1982, 1.0614054
    %v1988 = vmul.f32 %v1983, 1.0614054
    %v1989 = vmul.f32 %v1984, 1.0614054
    %v1990 = vadd.f32 %v1985, -1.4531521
    %v1991 = vadd.f32 %v1986, -1.4531521
    %v1992 = vadd.f32 %v1987, -1.4531521
    %v1993 = vadd.f32 %v1988, -1.4531521
    %v1994 = vadd.f32 %v1989, -1.4531521
    %v1995 = vmul.f32 %v1990, %v1980
    %v1996 = vmul.f32 %v1991, %v1981
    %v1997 = vmul.f32 %v1992, %v1982
    %v1998 = vmul.f32 %v1993, %v1983
    %v1999 = vmul.f32 %v1994, %v1984
    %v2000 = vadd.f32 %v1995, 1.4214138
    %v2001 = vadd.f32 %v1996, 1.4214138
    %v2002 = vadd.f32 %v1997, 1.4214138
    %v2003 = vadd.f32 %v1998, 1.4214138
    %v2004 = vadd.f32 %v1999, 1.4214138
    %v2005 = vmul.f32 %v2000, %v1980
    %v2006 = vmul.f32 %v2001, %v1981
    %v2007 = vmul.f32 %v2002, %v1982
    %v2008 = vmul.f32 %v2003, %v1983
    %v2009 = vmul.f32 %v2004, %v1984
    %v2010 = vadd.f32 %v2005, -0.28449672
    %v2011 = vadd.f32 %v2006, -0.28449672
    %v2012 = vadd.f32 %v2007, -0.28449672
    %v2013 = vadd.f32 %v2008, -0.28449672
    %v2014 = vadd.f32 %v2009, -0.28449672
    %v2015 = vmul.f32 %v2010, %v1980
    %v2016 = vmul.f32 %v2011, %v1981
    %v2017 = vmul.f32 %v2012, %v1982
    %v2018 = vmul.f32 %v2013, %v1983
    %v2019 = vmul.f32 %v2014, %v1984
    %v2020 = vadd.f32 %v2015, 0.2548296
    %v2021 = vadd.f32 %v2016, 0.2548296
    %v2022 = vadd.f32 %v2017, 0.2548296
    %v2023 = vadd.f32 %v2018, 0.2548296
    %v2024 = vadd.f32 %v2019, 0.2548296
    %v2025 = vmul.f32 %v2020, %v1980
    %v2026 = vmul.f32 %v2021, %v1981
    %v2027 = vmul.f32 %v2022, %v1982
    %v2028 = vmul.f32 %v2023, %v1983
    %v2029 = vmul.f32 %v2024, %v1984
    %v2030 = vsub.f32 0.0, %v1965
    %v2031 = vsub.f32 0.0, %v1966
    %v2032 = vsub.f32 0.0, %v1967
    %v2033 = vsub.f32 0.0, %v1968
    %v2034 = vsub.f32 0.0, %v1969
    %v2035 = vmul.f32 %v2030, %v1965
    %v2036 = vmul.f32 %v2031, %v1966
    %v2037 = vmul.f32 %v2032, %v1967
    %v2038 = vmul.f32 %v2033, %v1968
    %v2039 = vmul.f32 %v2034, %v1969
    %v2040 = vmul.f32 %v2035, 1.442695
    %v2041 = vpow.pop %v2040
    %v2042 = vmul.f32 %v2036, 1.442695
    %v2043 = vpow.pop %v2042
    %v2044 = vmul.f32 %v2037, 1.442695
    %v2045 = vpow.pop %v2044
    %v2046 = vmul.f32 %v2038, 1.442695
    %v2047 = vpow.pop %v2046
    %v2048 = vmul.f32 %v2039, 1.442695
    %v2049 = vpow.pop %v2048
    %v2050 = vmul.f32 %v2025, %v2041
    %v2051 = vmul.f32 %v2026, %v2043
    %v2052 = vmul.f32 %v2027, %v2045
    %v2053 = vmul.f32 %v2028, %v2047
    %v2054 = vmul.f32 %v2029, %v2049
    %v2055 = vsub.f32 1.0, %v2050
    %v2056 = vsub.f32 1.0, %v2051
    %v2057 = vsub.f32 1.0, %v2052
    %v2058 = vsub.f32 1.0, %v2053
    %v2059 = vsub.f32 1.0, %v2054
    %v2060 = vmul.f32 %v1960, %v2055
    %v2061 = vmul.f32 %v1961, %v2056
    %v2062 = vmul.f32 %v1962, %v2057
    %v2063 = vmul.f32 %v1963, %v2058
    %v2064 = vmul.f32 %v1964, %v2059
    %v2065 = vadd.f32 %v2060, 1.0
    %v2066 = vadd.f32 %v2061, 1.0
    %v2067 = vadd.f32 %v2062, 1.0
    %v2068 = vadd.f32 %v2063, 1.0
    %v2069 = vadd.f32 %v2064, 1.0
    %v2070 = vmul.f32 %v1945, %v2065
    %v2071 = vmul.f32 %v1946, %v2066
    %v2072 = vmul.f32 %v1947, %v2067
    %v2073 = vmul.f32 %v1948, %v2068
    %v2074 = vmul.f32 %v1949, %v2069
    %v2075 = vpack.c.bf16 %v2071, %v2070
    %v2077 = vunpack.c.l.b16 %v2075
    %v2078 = vunpack.c.h.b16 %v2075
    %v2079 = vpack.c.b16 %v2077, %v2077
    %v2080 = vpack.c.b16 %v2078, %v2078
    %v2082 = vshrl.u32 %v2079, 16
    %v2084 = vrot.slane %v2082, 7
    %v2085 = vshll.u32 %v2079, 16
    %v2087 = vor.u32 %v2084, %v2085
    %v2088 = vrot.slane %v2084, 4
    %v2090 = vshrl.u32 %v2080, 16
    %v2092 = vrot.slane %v2090, 7
    %v2093 = vshll.u32 %v2080, 16
    %v2095 = vor.u32 %v2092, %v2093
    %v2096 = vsel %vm210, %v2088, %v2095
    %v2097 = vrot.slane %v2092, 4
    %v2101 = vld [vmem:[#allocation2] sm:$0xf]
    %v2102 = vsel %vm232, %v2087, %v2101
    %2103 = vst [vmem:[#allocation2] sm:$0xf] %v2102
    %2104 = vst [vmem:[#allocation2 + $0x4] sm:$0xf] %v2096
    %v2105 = vld [vmem:[#allocation2 + $0x8] sm:$0x1]
    %v2106 = vsel %vm47, %v2097, %v2105
    %2107 = vst [vmem:[#allocation2 + $0x8] sm:$0x1] %v2106
    %v2108 = vpack.c.bf16 %v2073, %v2072
    %v2109 = vpack.c.bf16 %v2074, %v2074
    %v2112 = vunpack.c.l.b16 %v2108
    %v2113 = vunpack.c.h.b16 %v2108
    %v2114 = vunpack.c.l.b16 %v2109
    %v2115 = vpack.c.b16 %v2112, %v2112
    %v2116 = vpack.c.b16 %v2113, %v2113
    %v2117 = vpack.c.b16 %v2114, %v2114
    %v2119 = vshrl.u32 %v2115, 16
    %v2121 = vrot.slane %v2119, 7
    %v2122 = vshll.u32 %v2115, 16
    %v2124 = vor.u32 %v2121, %v2122
    %v2125 = vrot.slane %v2121, 4
    %v2127 = vshrl.u32 %v2116, 16
    %v2129 = vrot.slane %v2127, 7
    %v2130 = vshll.u32 %v2116, 16
    %v2132 = vor.u32 %v2129, %v2130
    %v2133 = vsel %vm210, %v2125, %v2132
    %v2134 = vrot.slane %v2129, 4
    %v2136 = vshrl.u32 %v2117, 16
    %v2138 = vrot.slane %v2136, 7
    %v2139 = vshll.u32 %v2117, 16
    %v2141 = vor.u32 %v2138, %v2139
    %v2142 = vsel %vm210, %v2134, %v2141
    %v2146 = vld [vmem:[#allocation2 + $0x8] sm:$0xe]
    %v2147 = vsel %vm271, %v2124, %v2146
    %2148 = vst [vmem:[#allocation2 + $0x8] sm:$0xe] %v2147
    %2149 = vst [vmem:[#allocation2 + $0xc] sm:$0xf] %v2133
    %v2150 = vld [vmem:[#allocation2 + $0x10] sm:$0x3]
    %v2151 = vsel %vm277, %v2142, %v2150
    %2152 = vst [vmem:[#allocation2 + $0x10] sm:$0x3] %v2151
    %v2153 = vld [vmem:[#allocation2] sm:$0xf]
    %v2154 = vld [vmem:[#allocation2 + $0x4] sm:$0xf]
    %v2155 = vld [vmem:[#allocation2 + $0x8] sm:$0xf]
    %v2156 = vld [vmem:[#allocation2 + $0xc] sm:$0xf]
    %v2157 = vld [vmem:[#allocation2 + $0x10] sm:$0x1]
    %v2158 = vld [vmem:[#allocation2 + $0x10] sm:$0x3]
    %v2159 = vld [vmem:[#allocation2] sm:$0xe]
    %v2165 = vunpack.c.l.b16 %v2153
    %v2166 = vunpack.c.l.b16 %v2154
    %v2167 = vunpack.c.l.b16 %v2155
    %v2168 = vunpack.c.l.b16 %v2156
    %v2169 = vunpack.c.l.b16 %v2157
    %v2170 = vpack.c.b16 %v2166, %v2165
    %v2171 = vpack.c.b16 %v2168, %v2167
    %v2172 = vpack.c.b16 %v2169, %v2169
    %v2177 = vunpack.c.l.b16 %v2158
    %v2178 = vpack.c.b16 %v2177, %v2177
    %v2180 = vshrl.u32 %v2170, 16
    %v2182 = vshll.u32 %v2170, 16
    %v2184 = vrot.slane %v2182, 1
    %v2185 = vor.u32 %v2180, %v2184
    %v2187 = vshll.u32 %v2171, 16
    %v2189 = vrot.slane %v2187, 1
    %v2190 = vsel %vm403, %v2185, %v2189
    %v2191 = vshrl.u32 %v2171, 16
    %v2193 = vor.u32 %v2191, %v2189
    %v2195 = vshll.u32 %v2178, 16
    %v2197 = vrot.slane %v2195, 1
    %v2198 = vsel %vm403, %v2193, %v2197
    %v2199 = vshrl.u32 %v2178, 16
    %v2201 = vor.u32 %v2199, %v2197
    %v2206 = vunpack.c.l.b16 %v2159
    %v2207 = vpack.c.b16 %v2166, %v2206
    %v2208 = vrot.slane %v2207, 1
    %v2209 = vrot.slane %v2171, 1
    %v2210 = vsel %vm433, %v2208, %v2209
    %v2211 = vrot.slane %v2178, 1
    %v2212 = vsel %vm433, %v2209, %v2211
    %s2216 = scalar_lea.vmem [#allocation3], 192
    %v2217 = vld [vmem:[%s2216] sm:$0xf]
    %v2218 = vld [vmem:[%s2216 + $0x4] sm:$0xf]
    %v2219 = vld [vmem:[%s2216 + $0x8] sm:$0xf]
    %v2220 = vld [vmem:[%s2216 + $0xc] sm:$0xf]
    %v2221 = vld [vmem:[%s2216 + $0x10] sm:$0xf]
    %v2222 = vld [vmem:[%s2216 + $0x14] sm:$0xf]
    %v2223 = vld [vmem:[%s2216 + $0x18] sm:$0xf]
    %v2224 = vld [vmem:[%s2216 + $0x1c] sm:$0xf]
    %v2225 = vld [vmem:[%s2216 + $0x20] sm:$0xf]
    %v2226 = vld [vmem:[%s2216 + $0x24] sm:$0xf]
    %v2227 = vld [vmem:[%s2216 + $0x28] sm:$0xf]
    %v2228 = vld [vmem:[%s2216 + $0x2c] sm:$0xf]
    %v2229 = vld [vmem:[%s2216 + $0x30] sm:$0xf]
    %v2230 = vld [vmem:[%s2216 + $0x34] sm:$0xf]
    %v2231 = vld [vmem:[%s2216 + $0x38] sm:$0xf]
    %v2232 = vld [vmem:[%s2216 + $0x3c] sm:$0xf]
    %v2233 = vld [vmem:[%s2216 + $0x40] sm:$0xf]
    %v2234 = vld [vmem:[%s2216 + $0x44] sm:$0xf]
    %v2235 = vld [vmem:[%s2216 + $0x48] sm:$0xf]
    %v2236 = vld [vmem:[%s2216 + $0x4c] sm:$0xf]
    %v2237 = vld [vmem:[%s2216 + $0x50] sm:$0xf]
    %v2238 = vld [vmem:[%s2216 + $0x54] sm:$0xf]
    %v2239 = vld [vmem:[%s2216 + $0x58] sm:$0xf]
    %v2240 = vld [vmem:[%s2216 + $0x5c] sm:$0xf]
    %v2241 = vld [vmem:[%s2216 + $0x60] sm:$0xf]
    %v2242 = vld [vmem:[%s2216 + $0x64] sm:$0xf]
    %v2243 = vld [vmem:[%s2216 + $0x68] sm:$0xf]
    %v2244 = vld [vmem:[%s2216 + $0x6c] sm:$0xf]
    %v2245 = vld [vmem:[%s2216 + $0x70] sm:$0xf]
    %v2246 = vld [vmem:[%s2216 + $0x74] sm:$0xf]
    %v2247 = vld [vmem:[%s2216 + $0x78] sm:$0xf]
    %v2248 = vld [vmem:[%s2216 + $0x7c] sm:$0xf]
    %v2249 = vld [vmem:[%s2216 + $0x80] sm:$0xf]
    %v2250 = vld [vmem:[%s2216 + $0x84] sm:$0xf]
    %v2251 = vld [vmem:[%s2216 + $0x88] sm:$0xf]
    %v2252 = vld [vmem:[%s2216 + $0x8c] sm:$0xf]
    %v2253 = vld [vmem:[%s2216 + $0x90] sm:$0xf]
    %v2254 = vld [vmem:[%s2216 + $0x94] sm:$0xf]
    %v2255 = vld [vmem:[%s2216 + $0x98] sm:$0xf]
    %v2256 = vld [vmem:[%s2216 + $0x9c] sm:$0xf]
    %v2257 = vld [vmem:[%s2216 + $0xa0] sm:$0xf]
    %v2258 = vld [vmem:[%s2216 + $0xa4] sm:$0xf]
    %v2259 = vld [vmem:[%s2216 + $0xa8] sm:$0xf]
    %v2260 = vld [vmem:[%s2216 + $0xac] sm:$0xf]
    %v2261 = vld [vmem:[%s2216 + $0xb0] sm:$0xf]
    %v2262 = vld [vmem:[%s2216 + $0xb4] sm:$0xf]
    %v2263 = vld [vmem:[%s2216 + $0xb8] sm:$0xf]
    %v2264 = vld [vmem:[%s2216 + $0xbc] sm:$0xf]
    %v2313 = vunpack.c.l.b16 %v2217
    %v2314 = vunpack.c.l.b16 %v2218
    %v2315 = vunpack.c.l.b16 %v2219
    %v2316 = vunpack.c.l.b16 %v2220
    %v2317 = vunpack.c.l.b16 %v2221
    %v2318 = vunpack.c.l.b16 %v2222
    %v2319 = vunpack.c.l.b16 %v2223
    %v2320 = vunpack.c.l.b16 %v2224
    %v2321 = vunpack.c.l.b16 %v2225
    %v2322 = vunpack.c.l.b16 %v2226
    %v2323 = vunpack.c.l.b16 %v2227
    %v2324 = vunpack.c.l.b16 %v2228
    %v2325 = vunpack.c.l.b16 %v2229
    %v2326 = vunpack.c.l.b16 %v2230
    %v2327 = vunpack.c.l.b16 %v2231
    %v2328 = vunpack.c.l.b16 %v2232
    %v2329 = vunpack.c.l.b16 %v2233
    %v2330 = vunpack.c.l.b16 %v2234
    %v2331 = vunpack.c.l.b16 %v2235
    %v2332 = vunpack.c.l.b16 %v2236
    %v2333 = vunpack.c.l.b16 %v2237
    %v2334 = vunpack.c.l.b16 %v2238
    %v2335 = vunpack.c.l.b16 %v2239
    %v2336 = vunpack.c.l.b16 %v2240
    %v2337 = vunpack.c.l.b16 %v2241
    %v2338 = vunpack.c.l.b16 %v2242
    %v2339 = vunpack.c.l.b16 %v2243
    %v2340 = vunpack.c.l.b16 %v2244
    %v2341 = vunpack.c.l.b16 %v2245
    %v2342 = vunpack.c.l.b16 %v2246
    %v2343 = vunpack.c.l.b16 %v2247
    %v2344 = vunpack.c.l.b16 %v2248
    %v2345 = vunpack.c.l.b16 %v2249
    %v2346 = vunpack.c.l.b16 %v2250
    %v2347 = vunpack.c.l.b16 %v2251
    %v2348 = vunpack.c.l.b16 %v2252
    %v2349 = vunpack.c.l.b16 %v2253
    %v2350 = vunpack.c.l.b16 %v2254
    %v2351 = vunpack.c.l.b16 %v2255
    %v2352 = vunpack.c.l.b16 %v2256
    %v2353 = vunpack.c.l.b16 %v2257
    %v2354 = vunpack.c.l.b16 %v2258
    %v2355 = vunpack.c.l.b16 %v2259
    %v2356 = vunpack.c.l.b16 %v2260
    %v2357 = vunpack.c.l.b16 %v2261
    %v2358 = vunpack.c.l.b16 %v2262
    %v2359 = vunpack.c.l.b16 %v2263
    %v2360 = vunpack.c.l.b16 %v2264
    %v2361 = vpack.c.b16 %v2314, %v2313
    %v2362 = vpack.c.b16 %v2316, %v2315
    %v2363 = vpack.c.b16 %v2318, %v2317
    %v2364 = vpack.c.b16 %v2320, %v2319
    %v2365 = vpack.c.b16 %v2322, %v2321
    %v2366 = vpack.c.b16 %v2324, %v2323
    %v2367 = vpack.c.b16 %v2326, %v2325
    %v2368 = vpack.c.b16 %v2328, %v2327
    %v2369 = vpack.c.b16 %v2330, %v2329
    %v2370 = vpack.c.b16 %v2332, %v2331
    %v2371 = vpack.c.b16 %v2334, %v2333
    %v2372 = vpack.c.b16 %v2336, %v2335
    %v2373 = vpack.c.b16 %v2338, %v2337
    %v2374 = vpack.c.b16 %v2340, %v2339
    %v2375 = vpack.c.b16 %v2342, %v2341
    %v2376 = vpack.c.b16 %v2344, %v2343
    %v2377 = vpack.c.b16 %v2346, %v2345
    %v2378 = vpack.c.b16 %v2348, %v2347
    %v2379 = vpack.c.b16 %v2350, %v2349
    %v2380 = vpack.c.b16 %v2352, %v2351
    %v2381 = vpack.c.b16 %v2354, %v2353
    %v2382 = vpack.c.b16 %v2356, %v2355
    %v2383 = vpack.c.b16 %v2358, %v2357
    %v2384 = vpack.c.b16 %v2360, %v2359
    %2409 = vmatprep.subr.bf16.mxu0 0
    %2410 = vmatpush1.bf16.msra.mxu0 %v2368
    %2411 = vmatprep.subr.bf16.mxu0 0
    %2412 = vmatpush1.bf16.msra.mxu0 %v2367
    %2413 = vmatprep.subr.bf16.mxu0 0
    %2414 = vmatpush1.bf16.msra.mxu0 %v2366
    %2415 = vmatprep.subr.bf16.mxu0 0
    %2416 = vmatpush1.bf16.msra.mxu0 %v2365
    %2417 = vmatprep.subr.bf16.mxu0 0
    %2418 = vmatpush1.bf16.msra.mxu0 %v2364
    %2419 = vmatprep.subr.bf16.mxu0 0
    %2420 = vmatpush1.bf16.msra.mxu0 %v2363
    %2421 = vmatprep.subr.bf16.mxu0 0
    %2422 = vmatpush1.bf16.msra.mxu0 %v2362
    %2423 = vmatprep.subr.bf16.mxu0 0
    %2424 = vmatpush1.bf16.msra.mxu0 %v2361
    %2425 = vmatprep.subr.bf16.mxu0 0
    %2426 = vmatpush2.bf16.msra.mxu0 %v2376
    %2427 = vmatprep.subr.bf16.mxu0 0
    %2428 = vmatpush2.bf16.msra.mxu0 %v2375
    %2429 = vmatprep.subr.bf16.mxu0 0
    %2430 = vmatpush2.bf16.msra.mxu0 %v2374
    %2431 = vmatprep.subr.bf16.mxu0 0
    %2432 = vmatpush2.bf16.msra.mxu0 %v2373
    %2433 = vmatprep.subr.bf16.mxu0 0
    %2434 = vmatpush2.bf16.msra.mxu0 %v2372
    %2435 = vmatprep.subr.bf16.mxu0 0
    %2436 = vmatpush2.bf16.msra.mxu0 %v2371
    %2437 = vmatprep.subr.bf16.mxu0 0
    %2438 = vmatpush2.bf16.msra.mxu0 %v2370
    %2439 = vmatprep.subr.bf16.mxu0 0
    %2440 = vmatpush2.bf16.msra.mxu0 %v2369
    %2441 = vmatprep.mubr.bf16.mxu0 %v2190
    %2442 = vmatmul.mubr.bf16.gmra.mxu0 %v2170
    %v2443 = vpop.f32.mrf.mxu0
    %v2444 = vadd.f32 0.0, %v2443
    %v2445 = vpop.f32.mrf.mxu0
    %v2446 = vpop.f32.mrf.mxu0
    %v2447 = vadd.f32 0.0, %v2446
    %v2448 = vpop.f32.mrf.mxu0
    %2449 = vmatprep.mubr.bf16.mxu0 %v2198
    %2450 = vmatmul.mubr.bf16.gmra.mxu0 %v2171
    %v2451 = vpop.f32.mrf.mxu0
    %v2452 = vadd.f32 0.0, %v2451
    %v2453 = vpop.f32.mrf.mxu0
    %v2454 = vpop.f32.mrf.mxu0
    %v2455 = vadd.f32 0.0, %v2454
    %v2456 = vpop.f32.mrf.mxu0
    %2457 = vmatprep.mubr.bf16.mxu0 %v2201
    %2458 = vmatmul.mubr.bf16.gmra.mxu0 %v2172
    %v2459 = vpop.f32.mrf.mxu0
    %v2460 = vadd.f32 0.0, %v2459
    %v2461 = vpop.f32.mrf.mxu0
    %v2462 = vpop.f32.mrf.mxu0
    %v2463 = vpop.f32.mrf.mxu0
    %2464 = vdwg.mxu0
    %2465 = vmatprep.subr.bf16.mxu0 0
    %2466 = vmatpush1.bf16.msra.mxu0 %v2384
    %2467 = vmatprep.subr.bf16.mxu0 0
    %2468 = vmatpush1.bf16.msra.mxu0 %v2383
    %2469 = vmatprep.subr.bf16.mxu0 0
    %2470 = vmatpush1.bf16.msra.mxu0 %v2382
    %2471 = vmatprep.subr.bf16.mxu0 0
    %2472 = vmatpush1.bf16.msra.mxu0 %v2381
    %2473 = vmatprep.subr.bf16.mxu0 0
    %2474 = vmatpush1.bf16.msra.mxu0 %v2380
    %2475 = vmatprep.subr.bf16.mxu0 0
    %2476 = vmatpush1.bf16.msra.mxu0 %v2379
    %2477 = vmatprep.subr.bf16.mxu0 0
    %2478 = vmatpush1.bf16.msra.mxu0 %v2378
    %2479 = vmatprep.subr.bf16.mxu0 0
    %2480 = vmatpush1.bf16.msra.mxu0 %v2377
    %2481 = vmatprep.subr.bf16.mxu0 0
    %2482 = vmatpush2.bf16.msra.mxu0 0
    %2483 = vmatprep.subr.bf16.mxu0 0
    %2484 = vmatpush2.bf16.msra.mxu0 0
    %2485 = vmatprep.subr.bf16.mxu0 0
    %2486 = vmatpush2.bf16.msra.mxu0 0
    %2487 = vmatprep.subr.bf16.mxu0 0
    %2488 = vmatpush2.bf16.msra.mxu0 0
    %2489 = vmatprep.subr.bf16.mxu0 0
    %2490 = vmatpush2.bf16.msra.mxu0 0
    %2491 = vmatprep.subr.bf16.mxu0 0
    %2492 = vmatpush2.bf16.msra.mxu0 0
    %2493 = vmatprep.subr.bf16.mxu0 0
    %2494 = vmatpush2.bf16.msra.mxu0 0
    %2495 = vmatprep.subr.bf16.mxu0 0
    %2496 = vmatpush2.bf16.msra.mxu0 0
    %2497 = vmatprep.mubr.bf16.mxu0 0
    %2498 = vmatmul.mubr.bf16.gmra.mxu0 %v2210
    %v2499 = vpop.f32.mrf.mxu0
    %v2500 = vadd.f32 %v2444, %v2499
    %v2501 = vpop.f32.mrf.mxu0
    %v2502 = vpop.f32.mrf.mxu0
    %v2503 = vadd.f32 %v2447, %v2502
    %v2504 = vpop.f32.mrf.mxu0
    %2505 = vmatprep.mubr.bf16.mxu0 0
    %2506 = vmatmul.mubr.bf16.gmra.mxu0 %v2212
    %v2507 = vpop.f32.mrf.mxu0
    %v2508 = vadd.f32 %v2452, %v2507
    %v2509 = vpop.f32.mrf.mxu0
    %v2510 = vpop.f32.mrf.mxu0
    %v2511 = vadd.f32 %v2455, %v2510
    %v2512 = vpop.f32.mrf.mxu0
    %2513 = vmatprep.mubr.bf16.mxu0 0
    %2514 = vmatmul.mubr.bf16.gmra.mxu0 %v2211
    %v2515 = vpop.f32.mrf.mxu0
    %v2516 = vadd.f32 %v2460, %v2515
    %v2517 = vpop.f32.mrf.mxu0
    %v2518 = vpop.f32.mrf.mxu0
    %v2519 = vpop.f32.mrf.mxu0
    %2520 = vdwg.mxu0
    %v2521 = vmul.f32 %v2500, %v372
    %v2522 = vmul.f32 %v2503, %v373
    %v2523 = vmul.f32 %v2508, %v374
    %v2524 = vmul.f32 %v2511, %v375
    %v2525 = vmul.f32 %v2516, %v376
    %v2526 = vadd.f32 %v2521, %v2522
    %v2527 = vadd.f32 %v2526, %v2523
    %v2528 = vadd.f32 %v2527, %v2524
    %v2529 = vsel %vm754, %v2525, 0.0
    %v2530 = vadd.f32 %v2528, %v2529
    %v2531 = vrot.slane %v2530, 4
    %v2532 = vadd.f32 %v2530, %v2531
    %v2533 = vrot.slane %v2532, 2
    %v2534 = vadd.f32 %v2532, %v2533
    %v2535 = vrot.slane %v2534, 1
    %v2536 = vadd.f32 %v2534, %v2535
    %v2537 = vmul.f32 %v2521, %v2521
    %v2538 = vmul.f32 %v2522, %v2522
    %v2539 = vmul.f32 %v2523, %v2523
    %v2540 = vmul.f32 %v2524, %v2524
    %v2541 = vmul.f32 %v2525, %v2525
    %v2542 = vadd.f32 %v2537, %v2538
    %v2543 = vadd.f32 %v2542, %v2539
    %v2544 = vadd.f32 %v2543, %v2540
    %v2545 = vsel %vm754, %v2541, 0.0
    %v2546 = vadd.f32 %v2544, %v2545
    %v2547 = vrot.slane %v2546, 4
    %v2548 = vadd.f32 %v2546, %v2547
    %v2549 = vrot.slane %v2548, 2
    %v2550 = vadd.f32 %v2548, %v2549
    %v2551 = vrot.slane %v2550, 1
    %v2552 = vadd.f32 %v2550, %v2551
    %v2553 = vsel %vm779, %v2536, %v2552
    %v2554 = vld [vmem:[%s6] sm:$0xff]
    %v2555 = vld [vmem:[%s6 + $0x8] sm:$0xff]
    %v2556 = vld [vmem:[%s6 + $0x10] sm:$0xff]
    %v2557 = vld [vmem:[%s6 + $0x18] sm:$0xff]
    %v2558 = vld [vmem:[%s6 + $0x20] sm:$0xff]
    %v2559 = vld [vmem:[%s6 + $0x28] sm:$0xff]
    %v2560 = vld [vmem:[%s6 + $0x30] sm:$0xff]
    %v2561 = vld [vmem:[%s6 + $0x38] sm:$0xff]
    %v2562 = vld [vmem:[%s6 + $0x40] sm:$0xff]
    %v2563 = vld [vmem:[%s6 + $0x48] sm:$0xff]
    %v2564 = vld [vmem:[%s6 + $0x50] sm:$0xff]
    %v2565 = vld [vmem:[%s6 + $0x58] sm:$0xff]
    %v2566 = vld [vmem:[%s6 + $0x60] sm:$0xff]
    %v2567 = vld [vmem:[%s6 + $0x68] sm:$0xff]
    %v2568 = vld [vmem:[%s6 + $0x70] sm:$0xff]
    %v2569 = vld [vmem:[%s6 + $0x78] sm:$0xff]
    %2570 = vmatprep.subr.mxu0 0.0
    %v2571 = vand.u32 %v2569, 4294901760
    %2572 = vmatpush1.msra.mxu0 %v2571
    %2573 = vmatprep.subr.mxu0 0.0
    %v2574 = vand.u32 %v2568, 4294901760
    %2575 = vmatpush1.msra.mxu0 %v2574
    %2576 = vmatprep.subr.mxu0 0.0
    %v2577 = vand.u32 %v2567, 4294901760
    %2578 = vmatpush1.msra.mxu0 %v2577
    %2579 = vmatprep.subr.mxu0 0.0
    %v2580 = vand.u32 %v2566, 4294901760
    %2581 = vmatpush1.msra.mxu0 %v2580
    %2582 = vmatprep.subr.mxu0 0.0
    %v2583 = vand.u32 %v2565, 4294901760
    %2584 = vmatpush1.msra.mxu0 %v2583
    %2585 = vmatprep.subr.mxu0 0.0
    %v2586 = vand.u32 %v2564, 4294901760
    %2587 = vmatpush1.msra.mxu0 %v2586
    %2588 = vmatprep.subr.mxu0 0.0
    %v2589 = vand.u32 %v2563, 4294901760
    %2590 = vmatpush1.msra.mxu0 %v2589
    %2591 = vmatprep.subr.mxu0 0.0
    %v2592 = vand.u32 %v2562, 4294901760
    %2593 = vmatpush1.msra.mxu0 %v2592
    %2594 = vmatprep.subr.mxu0 0.0
    %v2595 = vand.u32 %v2561, 4294901760
    %2596 = vmatpush1.msra.mxu0 %v2595
    %2597 = vmatprep.subr.mxu0 0.0
    %v2598 = vand.u32 %v2560, 4294901760
    %2599 = vmatpush1.msra.mxu0 %v2598
    %2600 = vmatprep.subr.mxu0 0.0
    %v2601 = vand.u32 %v2559, 4294901760
    %2602 = vmatpush1.msra.mxu0 %v2601
    %2603 = vmatprep.subr.mxu0 0.0
    %v2604 = vand.u32 %v2558, 4294901760
    %2605 = vmatpush1.msra.mxu0 %v2604
    %2606 = vmatprep.subr.mxu0 0.0
    %v2607 = vand.u32 %v2557, 4294901760
    %2608 = vmatpush1.msra.mxu0 %v2607
    %2609 = vmatprep.subr.mxu0 0.0
    %v2610 = vand.u32 %v2556, 4294901760
    %2611 = vmatpush1.msra.mxu0 %v2610
    %2612 = vmatprep.subr.mxu0 0.0
    %v2613 = vand.u32 %v2555, 4294901760
    %2614 = vmatpush1.msra.mxu0 %v2613
    %2615 = vmatprep.subr.mxu0 0.0
    %v2616 = vand.u32 %v2554, 4294901760
    %2617 = vmatpush1.msra.mxu0 %v2616
    %2618 = vmatprep.subr.mxu0 0.0
    %2619 = vmatpush2.msra.mxu0 0.0
    %2620 = vmatprep.subr.mxu0 0.0
    %2621 = vmatpush2.msra.mxu0 0.0
    %2622 = vmatprep.subr.mxu0 0.0
    %2623 = vmatpush2.msra.mxu0 0.0
    %2624 = vmatprep.subr.mxu0 0.0
    %2625 = vmatpush2.msra.mxu0 0.0
    %2626 = vmatprep.subr.mxu0 0.0
    %2627 = vmatpush2.msra.mxu0 0.0
    %2628 = vmatprep.subr.mxu0 0.0
    %2629 = vmatpush2.msra.mxu0 0.0
    %2630 = vmatprep.subr.mxu0 0.0
    %2631 = vmatpush2.msra.mxu0 0.0
    %2632 = vmatprep.subr.mxu0 0.0
    %2633 = vmatpush2.msra.mxu0 0.0
    %2634 = vmatprep.subr.mxu0 0.0
    %2635 = vmatpush2.msra.mxu0 0.0
    %2636 = vmatprep.subr.mxu0 0.0
    %2637 = vmatpush2.msra.mxu0 0.0
    %2638 = vmatprep.subr.mxu0 0.0
    %2639 = vmatpush2.msra.mxu0 0.0
    %2640 = vmatprep.subr.mxu0 0.0
    %2641 = vmatpush2.msra.mxu0 0.0
    %2642 = vmatprep.subr.mxu0 0.0
    %2643 = vmatpush2.msra.mxu0 0.0
    %2644 = vmatprep.subr.mxu0 0.0
    %2645 = vmatpush2.msra.mxu0 0.0
    %2646 = vmatprep.subr.mxu0 0.0
    %2647 = vmatpush2.msra.mxu0 0.0
    %2648 = vmatprep.subr.mxu0 0.0
    %2649 = vmatpush2.msra.mxu0 0.0
    %2650 = vmatprep.mubr.f32.mxu0 0.0
    %v2651 = vand.u32 %v2553, 4294901760
    %v2652 = vsub.f32 %v2553, %v2651
    %v2653 = vand.u32 %v2652, 4294901760
    %v2654 = vsub.f32 %v2652, %v2653
    %v2655 = vand.u32 %v2654, 4294901760
    %2656 = vmatmul.mubr.f32.gmra.mxu0 %v2655
    %v2657 = vpop.f32.mrf.mxu0
    %v2658 = vadd.f32 0.0, %v2657
    %v2659 = vpop.f32.mrf.mxu0
    %2660 = vdwg.mxu0
    %2661 = vmatprep.subr.mxu0 0.0
    %v2662 = vand.u32 %v2569, 4294901760
    %v2663 = vsub.f32 %v2569, %v2662
    %v2664 = vand.u32 %v2663, 4294901760
    %v2665 = vsub.f32 %v2663, %v2664
    %v2666 = vand.u32 %v2665, 4294901760
    %2667 = vmatpush1.msra.mxu0 %v2666
    %2668 = vmatprep.subr.mxu0 0.0
    %v2669 = vand.u32 %v2568, 4294901760
    %v2670 = vsub.f32 %v2568, %v2669
    %v2671 = vand.u32 %v2670, 4294901760
    %v2672 = vsub.f32 %v2670, %v2671
    %v2673 = vand.u32 %v2672, 4294901760
    %2674 = vmatpush1.msra.mxu0 %v2673
    %2675 = vmatprep.subr.mxu0 0.0
    %v2676 = vand.u32 %v2567, 4294901760
    %v2677 = vsub.f32 %v2567, %v2676
    %v2678 = vand.u32 %v2677, 4294901760
    %v2679 = vsub.f32 %v2677, %v2678
    %v2680 = vand.u32 %v2679, 4294901760
    %2681 = vmatpush1.msra.mxu0 %v2680
    %2682 = vmatprep.subr.mxu0 0.0
    %v2683 = vand.u32 %v2566, 4294901760
    %v2684 = vsub.f32 %v2566, %v2683
    %v2685 = vand.u32 %v2684, 4294901760
    %v2686 = vsub.f32 %v2684, %v2685
    %v2687 = vand.u32 %v2686, 4294901760
    %2688 = vmatpush1.msra.mxu0 %v2687
    %2689 = vmatprep.subr.mxu0 0.0
    %v2690 = vand.u32 %v2565, 4294901760
    %v2691 = vsub.f32 %v2565, %v2690
    %v2692 = vand.u32 %v2691, 4294901760
    %v2693 = vsub.f32 %v2691, %v2692
    %v2694 = vand.u32 %v2693, 4294901760
    %2695 = vmatpush1.msra.mxu0 %v2694
    %2696 = vmatprep.subr.mxu0 0.0
    %v2697 = vand.u32 %v2564, 4294901760
    %v2698 = vsub.f32 %v2564, %v2697
    %v2699 = vand.u32 %v2698, 4294901760
    %v2700 = vsub.f32 %v2698, %v2699
    %v2701 = vand.u32 %v2700, 4294901760
    %2702 = vmatpush1.msra.mxu0 %v2701
    %2703 = vmatprep.subr.mxu0 0.0
    %v2704 = vand.u32 %v2563, 4294901760
    %v2705 = vsub.f32 %v2563, %v2704
    %v2706 = vand.u32 %v2705, 4294901760
    %v2707 = vsub.f32 %v2705, %v2706
    %v2708 = vand.u32 %v2707, 4294901760
    %2709 = vmatpush1.msra.mxu0 %v2708
    %2710 = vmatprep.subr.mxu0 0.0
    %v2711 = vand.u32 %v2562, 4294901760
    %v2712 = vsub.f32 %v2562, %v2711
    %v2713 = vand.u32 %v2712, 4294901760
    %v2714 = vsub.f32 %v2712, %v2713
    %v2715 = vand.u32 %v2714, 4294901760
    %2716 = vmatpush1.msra.mxu0 %v2715
    %2717 = vmatprep.subr.mxu0 0.0
    %v2718 = vand.u32 %v2561, 4294901760
    %v2719 = vsub.f32 %v2561, %v2718
    %v2720 = vand.u32 %v2719, 4294901760
    %v2721 = vsub.f32 %v2719, %v2720
    %v2722 = vand.u32 %v2721, 4294901760
    %2723 = vmatpush1.msra.mxu0 %v2722
    %2724 = vmatprep.subr.mxu0 0.0
    %v2725 = vand.u32 %v2560, 4294901760
    %v2726 = vsub.f32 %v2560, %v2725
    %v2727 = vand.u32 %v2726, 4294901760
    %v2728 = vsub.f32 %v2726, %v2727
    %v2729 = vand.u32 %v2728, 4294901760
    %2730 = vmatpush1.msra.mxu0 %v2729
    %2731 = vmatprep.subr.mxu0 0.0
    %v2732 = vand.u32 %v2559, 4294901760
    %v2733 = vsub.f32 %v2559, %v2732
    %v2734 = vand.u32 %v2733, 4294901760
    %v2735 = vsub.f32 %v2733, %v2734
    %v2736 = vand.u32 %v2735, 4294901760
    %2737 = vmatpush1.msra.mxu0 %v2736
    %2738 = vmatprep.subr.mxu0 0.0
    %v2739 = vand.u32 %v2558, 4294901760
    %v2740 = vsub.f32 %v2558, %v2739
    %v2741 = vand.u32 %v2740, 4294901760
    %v2742 = vsub.f32 %v2740, %v2741
    %v2743 = vand.u32 %v2742, 4294901760
    %2744 = vmatpush1.msra.mxu0 %v2743
    %2745 = vmatprep.subr.mxu0 0.0
    %v2746 = vand.u32 %v2557, 4294901760
    %v2747 = vsub.f32 %v2557, %v2746
    %v2748 = vand.u32 %v2747, 4294901760
    %v2749 = vsub.f32 %v2747, %v2748
    %v2750 = vand.u32 %v2749, 4294901760
    %2751 = vmatpush1.msra.mxu0 %v2750
    %2752 = vmatprep.subr.mxu0 0.0
    %v2753 = vand.u32 %v2556, 4294901760
    %v2754 = vsub.f32 %v2556, %v2753
    %v2755 = vand.u32 %v2754, 4294901760
    %v2756 = vsub.f32 %v2754, %v2755
    %v2757 = vand.u32 %v2756, 4294901760
    %2758 = vmatpush1.msra.mxu0 %v2757
    %2759 = vmatprep.subr.mxu0 0.0
    %v2760 = vand.u32 %v2555, 4294901760
    %v2761 = vsub.f32 %v2555, %v2760
    %v2762 = vand.u32 %v2761, 4294901760
    %v2763 = vsub.f32 %v2761, %v2762
    %v2764 = vand.u32 %v2763, 4294901760
    %2765 = vmatpush1.msra.mxu0 %v2764
    %2766 = vmatprep.subr.mxu0 0.0
    %v2767 = vand.u32 %v2554, 4294901760
    %v2768 = vsub.f32 %v2554, %v2767
    %v2769 = vand.u32 %v2768, 4294901760
    %v2770 = vsub.f32 %v2768, %v2769
    %v2771 = vand.u32 %v2770, 4294901760
    %2772 = vmatpush1.msra.mxu0 %v2771
    %2773 = vmatprep.subr.mxu0 0.0
    %2774 = vmatpush2.msra.mxu0 0.0
    %2775 = vmatprep.subr.mxu0 0.0
    %2776 = vmatpush2.msra.mxu0 0.0
    %2777 = vmatprep.subr.mxu0 0.0
    %2778 = vmatpush2.msra.mxu0 0.0
    %2779 = vmatprep.subr.mxu0 0.0
    %2780 = vmatpush2.msra.mxu0 0.0
    %2781 = vmatprep.subr.mxu0 0.0
    %2782 = vmatpush2.msra.mxu0 0.0
    %2783 = vmatprep.subr.mxu0 0.0
    %2784 = vmatpush2.msra.mxu0 0.0
    %2785 = vmatprep.subr.mxu0 0.0
    %2786 = vmatpush2.msra.mxu0 0.0
    %2787 = vmatprep.subr.mxu0 0.0
    %2788 = vmatpush2.msra.mxu0 0.0
    %2789 = vmatprep.subr.mxu0 0.0
    %2790 = vmatpush2.msra.mxu0 0.0
    %2791 = vmatprep.subr.mxu0 0.0
    %2792 = vmatpush2.msra.mxu0 0.0
    %2793 = vmatprep.subr.mxu0 0.0
    %2794 = vmatpush2.msra.mxu0 0.0
    %2795 = vmatprep.subr.mxu0 0.0
    %2796 = vmatpush2.msra.mxu0 0.0
    %2797 = vmatprep.subr.mxu0 0.0
    %2798 = vmatpush2.msra.mxu0 0.0
    %2799 = vmatprep.subr.mxu0 0.0
    %2800 = vmatpush2.msra.mxu0 0.0
    %2801 = vmatprep.subr.mxu0 0.0
    %2802 = vmatpush2.msra.mxu0 0.0
    %2803 = vmatprep.subr.mxu0 0.0
    %2804 = vmatpush2.msra.mxu0 0.0
    %2805 = vmatprep.mubr.f32.mxu0 0.0
    %v2806 = vand.u32 %v2553, 4294901760
    %2807 = vmatmul.mubr.f32.gmra.mxu0 %v2806
    %v2808 = vpop.f32.mrf.mxu0
    %v2809 = vadd.f32 %v2658, %v2808
    %v2810 = vpop.f32.mrf.mxu0
    %2811 = vdwg.mxu0
    %2812 = vmatprep.subr.mxu0 0.0
    %v2813 = vand.u32 %v2569, 4294901760
    %v2814 = vsub.f32 %v2569, %v2813
    %2815 = vmatpush1.msra.mxu0 %v2814
    %2816 = vmatprep.subr.mxu0 0.0
    %v2817 = vand.u32 %v2568, 4294901760
    %v2818 = vsub.f32 %v2568, %v2817
    %2819 = vmatpush1.msra.mxu0 %v2818
    %2820 = vmatprep.subr.mxu0 0.0
    %v2821 = vand.u32 %v2567, 4294901760
    %v2822 = vsub.f32 %v2567, %v2821
    %2823 = vmatpush1.msra.mxu0 %v2822
    %2824 = vmatprep.subr.mxu0 0.0
    %v2825 = vand.u32 %v2566, 4294901760
    %v2826 = vsub.f32 %v2566, %v2825
    %2827 = vmatpush1.msra.mxu0 %v2826
    %2828 = vmatprep.subr.mxu0 0.0
    %v2829 = vand.u32 %v2565, 4294901760
    %v2830 = vsub.f32 %v2565, %v2829
    %2831 = vmatpush1.msra.mxu0 %v2830
    %2832 = vmatprep.subr.mxu0 0.0
    %v2833 = vand.u32 %v2564, 4294901760
    %v2834 = vsub.f32 %v2564, %v2833
    %2835 = vmatpush1.msra.mxu0 %v2834
    %2836 = vmatprep.subr.mxu0 0.0
    %v2837 = vand.u32 %v2563, 4294901760
    %v2838 = vsub.f32 %v2563, %v2837
    %2839 = vmatpush1.msra.mxu0 %v2838
    %2840 = vmatprep.subr.mxu0 0.0
    %v2841 = vand.u32 %v2562, 4294901760
    %v2842 = vsub.f32 %v2562, %v2841
    %2843 = vmatpush1.msra.mxu0 %v2842
    %2844 = vmatprep.subr.mxu0 0.0
    %v2845 = vand.u32 %v2561, 4294901760
    %v2846 = vsub.f32 %v2561, %v2845
    %2847 = vmatpush1.msra.mxu0 %v2846
    %2848 = vmatprep.subr.mxu0 0.0
    %v2849 = vand.u32 %v2560, 4294901760
    %v2850 = vsub.f32 %v2560, %v2849
    %2851 = vmatpush1.msra.mxu0 %v2850
    %2852 = vmatprep.subr.mxu0 0.0
    %v2853 = vand.u32 %v2559, 4294901760
    %v2854 = vsub.f32 %v2559, %v2853
    %2855 = vmatpush1.msra.mxu0 %v2854
    %2856 = vmatprep.subr.mxu0 0.0
    %v2857 = vand.u32 %v2558, 4294901760
    %v2858 = vsub.f32 %v2558, %v2857
    %2859 = vmatpush1.msra.mxu0 %v2858
    %2860 = vmatprep.subr.mxu0 0.0
    %v2861 = vand.u32 %v2557, 4294901760
    %v2862 = vsub.f32 %v2557, %v2861
    %2863 = vmatpush1.msra.mxu0 %v2862
    %2864 = vmatprep.subr.mxu0 0.0
    %v2865 = vand.u32 %v2556, 4294901760
    %v2866 = vsub.f32 %v2556, %v2865
    %2867 = vmatpush1.msra.mxu0 %v2866
    %2868 = vmatprep.subr.mxu0 0.0
    %v2869 = vand.u32 %v2555, 4294901760
    %v2870 = vsub.f32 %v2555, %v2869
    %2871 = vmatpush1.msra.mxu0 %v2870
    %2872 = vmatprep.subr.mxu0 0.0
    %v2873 = vand.u32 %v2554, 4294901760
    %v2874 = vsub.f32 %v2554, %v2873
    %2875 = vmatpush1.msra.mxu0 %v2874
    %2876 = vmatprep.subr.mxu0 0.0
    %2877 = vmatpush2.msra.mxu0 0.0
    %2878 = vmatprep.subr.mxu0 0.0
    %2879 = vmatpush2.msra.mxu0 0.0
    %2880 = vmatprep.subr.mxu0 0.0
    %2881 = vmatpush2.msra.mxu0 0.0
    %2882 = vmatprep.subr.mxu0 0.0
    %2883 = vmatpush2.msra.mxu0 0.0
    %2884 = vmatprep.subr.mxu0 0.0
    %2885 = vmatpush2.msra.mxu0 0.0
    %2886 = vmatprep.subr.mxu0 0.0
    %2887 = vmatpush2.msra.mxu0 0.0
    %2888 = vmatprep.subr.mxu0 0.0
    %2889 = vmatpush2.msra.mxu0 0.0
    %2890 = vmatprep.subr.mxu0 0.0
    %2891 = vmatpush2.msra.mxu0 0.0
    %2892 = vmatprep.subr.mxu0 0.0
    %2893 = vmatpush2.msra.mxu0 0.0
    %2894 = vmatprep.subr.mxu0 0.0
    %2895 = vmatpush2.msra.mxu0 0.0
    %2896 = vmatprep.subr.mxu0 0.0
    %2897 = vmatpush2.msra.mxu0 0.0
    %2898 = vmatprep.subr.mxu0 0.0
    %2899 = vmatpush2.msra.mxu0 0.0
    %2900 = vmatprep.subr.mxu0 0.0
    %2901 = vmatpush2.msra.mxu0 0.0
    %2902 = vmatprep.subr.mxu0 0.0
    %2903 = vmatpush2.msra.mxu0 0.0
    %2904 = vmatprep.subr.mxu0 0.0
    %2905 = vmatpush2.msra.mxu0 0.0
    %2906 = vmatprep.subr.mxu0 0.0
    %2907 = vmatpush2.msra.mxu0 0.0
    %2908 = vmatprep.mubr.f32.mxu0 0.0
    %v2909 = vand.u32 %v2553, 4294901760
    %v2910 = vsub.f32 %v2553, %v2909
    %2911 = vmatmul.mubr.f32.gmra.mxu0 %v2910
    %v2912 = vpop.f32.mrf.mxu0
    %v2913 = vadd.f32 %v2809, %v2912
    %v2914 = vpop.f32.mrf.mxu0
    %2915 = vdwg.mxu0
    %2916 = vmatprep.subr.mxu0 0.0
    %v2917 = vand.u32 %v2569, 4294901760
    %2918 = vmatpush1.msra.mxu0 %v2917
    %2919 = vmatprep.subr.mxu0 0.0
    %v2920 = vand.u32 %v2568, 4294901760
    %2921 = vmatpush1.msra.mxu0 %v2920
    %2922 = vmatprep.subr.mxu0 0.0
    %v2923 = vand.u32 %v2567, 4294901760
    %2924 = vmatpush1.msra.mxu0 %v2923
    %2925 = vmatprep.subr.mxu0 0.0
    %v2926 = vand.u32 %v2566, 4294901760
    %2927 = vmatpush1.msra.mxu0 %v2926
    %2928 = vmatprep.subr.mxu0 0.0
    %v2929 = vand.u32 %v2565, 4294901760
    %2930 = vmatpush1.msra.mxu0 %v2929
    %2931 = vmatprep.subr.mxu0 0.0
    %v2932 = vand.u32 %v2564, 4294901760
    %2933 = vmatpush1.msra.mxu0 %v2932
    %2934 = vmatprep.subr.mxu0 0.0
    %v2935 = vand.u32 %v2563, 4294901760
    %2936 = vmatpush1.msra.mxu0 %v2935
    %2937 = vmatprep.subr.mxu0 0.0
    %v2938 = vand.u32 %v2562, 4294901760
    %2939 = vmatpush1.msra.mxu0 %v2938
    %2940 = vmatprep.subr.mxu0 0.0
    %v2941 = vand.u32 %v2561, 4294901760
    %2942 = vmatpush1.msra.mxu0 %v2941
    %2943 = vmatprep.subr.mxu0 0.0
    %v2944 = vand.u32 %v2560, 4294901760
    %2945 = vmatpush1.msra.mxu0 %v2944
    %2946 = vmatprep.subr.mxu0 0.0
    %v2947 = vand.u32 %v2559, 4294901760
    %2948 = vmatpush1.msra.mxu0 %v2947
    %2949 = vmatprep.subr.mxu0 0.0
    %v2950 = vand.u32 %v2558, 4294901760
    %2951 = vmatpush1.msra.mxu0 %v2950
    %2952 = vmatprep.subr.mxu0 0.0
    %v2953 = vand.u32 %v2557, 4294901760
    %2954 = vmatpush1.msra.mxu0 %v2953
    %2955 = vmatprep.subr.mxu0 0.0
    %v2956 = vand.u32 %v2556, 4294901760
    %2957 = vmatpush1.msra.mxu0 %v2956
    %2958 = vmatprep.subr.mxu0 0.0
    %v2959 = vand.u32 %v2555, 4294901760
    %2960 = vmatpush1.msra.mxu0 %v2959
    %2961 = vmatprep.subr.mxu0 0.0
    %v2962 = vand.u32 %v2554, 4294901760
    %2963 = vmatpush1.msra.mxu0 %v2962
    %2964 = vmatprep.subr.mxu0 0.0
    %2965 = vmatpush2.msra.mxu0 0.0
    %2966 = vmatprep.subr.mxu0 0.0
    %2967 = vmatpush2.msra.mxu0 0.0
    %2968 = vmatprep.subr.mxu0 0.0
    %2969 = vmatpush2.msra.mxu0 0.0
    %2970 = vmatprep.subr.mxu0 0.0
    %2971 = vmatpush2.msra.mxu0 0.0
    %2972 = vmatprep.subr.mxu0 0.0
    %2973 = vmatpush2.msra.mxu0 0.0
    %2974 = vmatprep.subr.mxu0 0.0
    %2975 = vmatpush2.msra.mxu0 0.0
    %2976 = vmatprep.subr.mxu0 0.0
    %2977 = vmatpush2.msra.mxu0 0.0
    %2978 = vmatprep.subr.mxu0 0.0
    %2979 = vmatpush2.msra.mxu0 0.0
    %2980 = vmatprep.subr.mxu0 0.0
    %2981 = vmatpush2.msra.mxu0 0.0
    %2982 = vmatprep.subr.mxu0 0.0
    %2983 = vmatpush2.msra.mxu0 0.0
    %2984 = vmatprep.subr.mxu0 0.0
    %2985 = vmatpush2.msra.mxu0 0.0
    %2986 = vmatprep.subr.mxu0 0.0
    %2987 = vmatpush2.msra.mxu0 0.0
    %2988 = vmatprep.subr.mxu0 0.0
    %2989 = vmatpush2.msra.mxu0 0.0
    %2990 = vmatprep.subr.mxu0 0.0
    %2991 = vmatpush2.msra.mxu0 0.0
    %2992 = vmatprep.subr.mxu0 0.0
    %2993 = vmatpush2.msra.mxu0 0.0
    %2994 = vmatprep.subr.mxu0 0.0
    %2995 = vmatpush2.msra.mxu0 0.0
    %2996 = vmatprep.mubr.f32.mxu0 0.0
    %v2997 = vand.u32 %v2553, 4294901760
    %v2998 = vsub.f32 %v2553, %v2997
    %v2999 = vand.u32 %v2998, 4294901760
    %3000 = vmatmul.mubr.f32.gmra.mxu0 %v2999
    %v3001 = vpop.f32.mrf.mxu0
    %v3002 = vadd.f32 %v2913, %v3001
    %v3003 = vpop.f32.mrf.mxu0
    %3004 = vdwg.mxu0
    %3005 = vmatprep.subr.mxu0 0.0
    %v3006 = vand.u32 %v2569, 4294901760
    %v3007 = vsub.f32 %v2569, %v3006
    %v3008 = vand.u32 %v3007, 4294901760
    %3009 = vmatpush1.msra.mxu0 %v3008
    %3010 = vmatprep.subr.mxu0 0.0
    %v3011 = vand.u32 %v2568, 4294901760
    %v3012 = vsub.f32 %v2568, %v3011
    %v3013 = vand.u32 %v3012, 4294901760
    %3014 = vmatpush1.msra.mxu0 %v3013
    %3015 = vmatprep.subr.mxu0 0.0
    %v3016 = vand.u32 %v2567, 4294901760
    %v3017 = vsub.f32 %v2567, %v3016
    %v3018 = vand.u32 %v3017, 4294901760
    %3019 = vmatpush1.msra.mxu0 %v3018
    %3020 = vmatprep.subr.mxu0 0.0
    %v3021 = vand.u32 %v2566, 4294901760
    %v3022 = vsub.f32 %v2566, %v3021
    %v3023 = vand.u32 %v3022, 4294901760
    %3024 = vmatpush1.msra.mxu0 %v3023
    %3025 = vmatprep.subr.mxu0 0.0
    %v3026 = vand.u32 %v2565, 4294901760
    %v3027 = vsub.f32 %v2565, %v3026
    %v3028 = vand.u32 %v3027, 4294901760
    %3029 = vmatpush1.msra.mxu0 %v3028
    %3030 = vmatprep.subr.mxu0 0.0
    %v3031 = vand.u32 %v2564, 4294901760
    %v3032 = vsub.f32 %v2564, %v3031
    %v3033 = vand.u32 %v3032, 4294901760
    %3034 = vmatpush1.msra.mxu0 %v3033
    %3035 = vmatprep.subr.mxu0 0.0
    %v3036 = vand.u32 %v2563, 4294901760
    %v3037 = vsub.f32 %v2563, %v3036
    %v3038 = vand.u32 %v3037, 4294901760
    %3039 = vmatpush1.msra.mxu0 %v3038
    %3040 = vmatprep.subr.mxu0 0.0
    %v3041 = vand.u32 %v2562, 4294901760
    %v3042 = vsub.f32 %v2562, %v3041
    %v3043 = vand.u32 %v3042, 4294901760
    %3044 = vmatpush1.msra.mxu0 %v3043
    %3045 = vmatprep.subr.mxu0 0.0
    %v3046 = vand.u32 %v2561, 4294901760
    %v3047 = vsub.f32 %v2561, %v3046
    %v3048 = vand.u32 %v3047, 4294901760
    %3049 = vmatpush1.msra.mxu0 %v3048
    %3050 = vmatprep.subr.mxu0 0.0
    %v3051 = vand.u32 %v2560, 4294901760
    %v3052 = vsub.f32 %v2560, %v3051
    %v3053 = vand.u32 %v3052, 4294901760
    %3054 = vmatpush1.msra.mxu0 %v3053
    %3055 = vmatprep.subr.mxu0 0.0
    %v3056 = vand.u32 %v2559, 4294901760
    %v3057 = vsub.f32 %v2559, %v3056
    %v3058 = vand.u32 %v3057, 4294901760
    %3059 = vmatpush1.msra.mxu0 %v3058
    %3060 = vmatprep.subr.mxu0 0.0
    %v3061 = vand.u32 %v2558, 4294901760
    %v3062 = vsub.f32 %v2558, %v3061
    %v3063 = vand.u32 %v3062, 4294901760
    %3064 = vmatpush1.msra.mxu0 %v3063
    %3065 = vmatprep.subr.mxu0 0.0
    %v3066 = vand.u32 %v2557, 4294901760
    %v3067 = vsub.f32 %v2557, %v3066
    %v3068 = vand.u32 %v3067, 4294901760
    %3069 = vmatpush1.msra.mxu0 %v3068
    %3070 = vmatprep.subr.mxu0 0.0
    %v3071 = vand.u32 %v2556, 4294901760
    %v3072 = vsub.f32 %v2556, %v3071
    %v3073 = vand.u32 %v3072, 4294901760
    %3074 = vmatpush1.msra.mxu0 %v3073
    %3075 = vmatprep.subr.mxu0 0.0
    %v3076 = vand.u32 %v2555, 4294901760
    %v3077 = vsub.f32 %v2555, %v3076
    %v3078 = vand.u32 %v3077, 4294901760
    %3079 = vmatpush1.msra.mxu0 %v3078
    %3080 = vmatprep.subr.mxu0 0.0
    %v3081 = vand.u32 %v2554, 4294901760
    %v3082 = vsub.f32 %v2554, %v3081
    %v3083 = vand.u32 %v3082, 4294901760
    %3084 = vmatpush1.msra.mxu0 %v3083
    %3085 = vmatprep.subr.mxu0 0.0
    %3086 = vmatpush2.msra.mxu0 0.0
    %3087 = vmatprep.subr.mxu0 0.0
    %3088 = vmatpush2.msra.mxu0 0.0
    %3089 = vmatprep.subr.mxu0 0.0
    %3090 = vmatpush2.msra.mxu0 0.0
    %3091 = vmatprep.subr.mxu0 0.0
    %3092 = vmatpush2.msra.mxu0 0.0
    %3093 = vmatprep.subr.mxu0 0.0
    %3094 = vmatpush2.msra.mxu0 0.0
    %3095 = vmatprep.subr.mxu0 0.0
    %3096 = vmatpush2.msra.mxu0 0.0
    %3097 = vmatprep.subr.mxu0 0.0
    %3098 = vmatpush2.msra.mxu0 0.0
    %3099 = vmatprep.subr.mxu0 0.0
    %3100 = vmatpush2.msra.mxu0 0.0
    %3101 = vmatprep.subr.mxu0 0.0
    %3102 = vmatpush2.msra.mxu0 0.0
    %3103 = vmatprep.subr.mxu0 0.0
    %3104 = vmatpush2.msra.mxu0 0.0
    %3105 = vmatprep.subr.mxu0 0.0
    %3106 = vmatpush2.msra.mxu0 0.0
    %3107 = vmatprep.subr.mxu0 0.0
    %3108 = vmatpush2.msra.mxu0 0.0
    %3109 = vmatprep.subr.mxu0 0.0
    %3110 = vmatpush2.msra.mxu0 0.0
    %3111 = vmatprep.subr.mxu0 0.0
    %3112 = vmatpush2.msra.mxu0 0.0
    %3113 = vmatprep.subr.mxu0 0.0
    %3114 = vmatpush2.msra.mxu0 0.0
    %3115 = vmatprep.subr.mxu0 0.0
    %3116 = vmatpush2.msra.mxu0 0.0
    %3117 = vmatprep.mubr.f32.mxu0 0.0
    %v3118 = vand.u32 %v2553, 4294901760
    %3119 = vmatmul.mubr.f32.gmra.mxu0 %v3118
    %v3120 = vpop.f32.mrf.mxu0
    %v3121 = vadd.f32 %v3002, %v3120
    %v3122 = vpop.f32.mrf.mxu0
    %3123 = vdwg.mxu0
    %3124 = vmatprep.subr.mxu0 0.0
    %v3125 = vand.u32 %v2569, 4294901760
    %3126 = vmatpush1.msra.mxu0 %v3125
    %3127 = vmatprep.subr.mxu0 0.0
    %v3128 = vand.u32 %v2568, 4294901760
    %3129 = vmatpush1.msra.mxu0 %v3128
    %3130 = vmatprep.subr.mxu0 0.0
    %v3131 = vand.u32 %v2567, 4294901760
    %3132 = vmatpush1.msra.mxu0 %v3131
    %3133 = vmatprep.subr.mxu0 0.0
    %v3134 = vand.u32 %v2566, 4294901760
    %3135 = vmatpush1.msra.mxu0 %v3134
    %3136 = vmatprep.subr.mxu0 0.0
    %v3137 = vand.u32 %v2565, 4294901760
    %3138 = vmatpush1.msra.mxu0 %v3137
    %3139 = vmatprep.subr.mxu0 0.0
    %v3140 = vand.u32 %v2564, 4294901760
    %3141 = vmatpush1.msra.mxu0 %v3140
    %3142 = vmatprep.subr.mxu0 0.0
    %v3143 = vand.u32 %v2563, 4294901760
    %3144 = vmatpush1.msra.mxu0 %v3143
    %3145 = vmatprep.subr.mxu0 0.0
    %v3146 = vand.u32 %v2562, 4294901760
    %3147 = vmatpush1.msra.mxu0 %v3146
    %3148 = vmatprep.subr.mxu0 0.0
    %v3149 = vand.u32 %v2561, 4294901760
    %3150 = vmatpush1.msra.mxu0 %v3149
    %3151 = vmatprep.subr.mxu0 0.0
    %v3152 = vand.u32 %v2560, 4294901760
    %3153 = vmatpush1.msra.mxu0 %v3152
    %3154 = vmatprep.subr.mxu0 0.0
    %v3155 = vand.u32 %v2559, 4294901760
    %3156 = vmatpush1.msra.mxu0 %v3155
    %3157 = vmatprep.subr.mxu0 0.0
    %v3158 = vand.u32 %v2558, 4294901760
    %3159 = vmatpush1.msra.mxu0 %v3158
    %3160 = vmatprep.subr.mxu0 0.0
    %v3161 = vand.u32 %v2557, 4294901760
    %3162 = vmatpush1.msra.mxu0 %v3161
    %3163 = vmatprep.subr.mxu0 0.0
    %v3164 = vand.u32 %v2556, 4294901760
    %3165 = vmatpush1.msra.mxu0 %v3164
    %3166 = vmatprep.subr.mxu0 0.0
    %v3167 = vand.u32 %v2555, 4294901760
    %3168 = vmatpush1.msra.mxu0 %v3167
    %3169 = vmatprep.subr.mxu0 0.0
    %v3170 = vand.u32 %v2554, 4294901760
    %3171 = vmatpush1.msra.mxu0 %v3170
    %3172 = vmatprep.subr.mxu0 0.0
    %3173 = vmatpush2.msra.mxu0 0.0
    %3174 = vmatprep.subr.mxu0 0.0
    %3175 = vmatpush2.msra.mxu0 0.0
    %3176 = vmatprep.subr.mxu0 0.0
    %3177 = vmatpush2.msra.mxu0 0.0
    %3178 = vmatprep.subr.mxu0 0.0
    %3179 = vmatpush2.msra.mxu0 0.0
    %3180 = vmatprep.subr.mxu0 0.0
    %3181 = vmatpush2.msra.mxu0 0.0
    %3182 = vmatprep.subr.mxu0 0.0
    %3183 = vmatpush2.msra.mxu0 0.0
    %3184 = vmatprep.subr.mxu0 0.0
    %3185 = vmatpush2.msra.mxu0 0.0
    %3186 = vmatprep.subr.mxu0 0.0
    %3187 = vmatpush2.msra.mxu0 0.0
    %3188 = vmatprep.subr.mxu0 0.0
    %3189 = vmatpush2.msra.mxu0 0.0
    %3190 = vmatprep.subr.mxu0 0.0
    %3191 = vmatpush2.msra.mxu0 0.0
    %3192 = vmatprep.subr.mxu0 0.0
    %3193 = vmatpush2.msra.mxu0 0.0
    %3194 = vmatprep.subr.mxu0 0.0
    %3195 = vmatpush2.msra.mxu0 0.0
    %3196 = vmatprep.subr.mxu0 0.0
    %3197 = vmatpush2.msra.mxu0 0.0
    %3198 = vmatprep.subr.mxu0 0.0
    %3199 = vmatpush2.msra.mxu0 0.0
    %3200 = vmatprep.subr.mxu0 0.0
    %3201 = vmatpush2.msra.mxu0 0.0
    %3202 = vmatprep.subr.mxu0 0.0
    %3203 = vmatpush2.msra.mxu0 0.0
    %3204 = vmatprep.mubr.f32.mxu0 0.0
    %v3205 = vand.u32 %v2553, 4294901760
    %3206 = vmatmul.mubr.f32.gmra.mxu0 %v3205
    %v3207 = vpop.f32.mrf.mxu0
    %v3208 = vadd.f32 %v3121, %v3207
    %v3209 = vpop.f32.mrf.mxu0
    %3210 = vdwg.mxu0
    %v3211 = vmul.f32 %v3208, 0.001953125
    %v3212 = vmul.f32 %v3211, %v3211
    %v3214 = vrot.slane %v3212, 7
    %v3216 = vsub.f32 %v3211, %v3214
    %v3217 = vmax.f32 %v3216, 0.0
    %s3218 = scalar_lea.vmem %s4, 1
    %v3219 = vld [vmem:[%s3218] sm:$0x1]
    %v3220 = vadd.f32 %v3217, 1e-05
    %v3221 = vrsqrt.pop %v3220
    %v3224 = vunpack.c.l.s4 1966171168
    %v3225 = vunpack.c.0.s8 %v3224
    %v3226 = vlaneseq
    %v3227 = vshrl.u32 %v3226, 7
    %v3228 = vsub.s32 %v3225, %v3227
    %v3229 = vrot.slane %v3221, %v3228
    %v3230 = vcombine.high %v3229, %v3229
    %v3232 = vunpack.c.l.s4 1966171168
    %v3233 = vunpack.c.0.s8 %v3232
    %v3234 = vlaneseq
    %v3235 = vshrl.u32 %v3234, 7
    %v3236 = vsub.s32 %v3233, %v3235
    %v3237 = vrot.slane %v3230, %v3236
    %v3239 = vmul.f32 %v3219, %v3237
    %s3240 = scalar_lea.vmem %s5, 1
    %v3241 = vld [vmem:[%s3240] sm:$0x1]
    %v3242 = vmul.f32 %v3211, %v3239
    %v3243 = vsub.f32 %v3241, %v3242
    %v3245 = vlaneseq
    %v3246 = vshrl.u32 %v3245, 7
    %v3247 = vsub.s32 0, %v3246
    %v3248 = vrot.slane %v3243, %v3247
    %v3250 = vsel %vm779, %v3239, %v3248
    %v3251 = vld [vmem:[%s7] sm:$0xff]
    %v3253 = vsel %vm1477, %v3250, 0
    %3255 = vmatprep.subr.mxu0 0.0
    %3256 = vmatpush1.msra.mxu0 0.0
    %3257 = vmatprep.subr.mxu0 0.0
    %3258 = vmatpush1.msra.mxu0 0.0
    %3259 = vmatprep.subr.mxu0 0.0
    %3260 = vmatpush1.msra.mxu0 0.0
    %3261 = vmatprep.subr.mxu0 0.0
    %3262 = vmatpush1.msra.mxu0 0.0
    %3263 = vmatprep.subr.mxu0 0.0
    %3264 = vmatpush1.msra.mxu0 0.0
    %3265 = vmatprep.subr.mxu0 0.0
    %3266 = vmatpush1.msra.mxu0 0.0
    %3267 = vmatprep.subr.mxu0 0.0
    %3268 = vmatpush1.msra.mxu0 0.0
    %3269 = vmatprep.subr.mxu0 0.0
    %3270 = vmatpush1.msra.mxu0 0.0
    %3271 = vmatprep.subr.mxu0 0.0
    %3272 = vmatpush1.msra.mxu0 0.0
    %3273 = vmatprep.subr.mxu0 0.0
    %3274 = vmatpush1.msra.mxu0 0.0
    %3275 = vmatprep.subr.mxu0 0.0
    %3276 = vmatpush1.msra.mxu0 0.0
    %3277 = vmatprep.subr.mxu0 0.0
    %3278 = vmatpush1.msra.mxu0 0.0
    %3279 = vmatprep.subr.mxu0 0.0
    %3280 = vmatpush1.msra.mxu0 0.0
    %3281 = vmatprep.subr.mxu0 0.0
    %3282 = vmatpush1.msra.mxu0 0.0
    %3283 = vmatprep.subr.mxu0 0.0
    %3284 = vmatpush1.msra.mxu0 0.0
    %3285 = vmatprep.subr.mxu0 0.0
    %v3286 = vand.u32 %v3251, 4294901760
    %3287 = vmatpush1.msra.mxu0 %v3286
    %3288 = vmatprep.subr.mxu0 0.0
    %3289 = vmatpush2.msra.mxu0 0.0
    %3290 = vmatprep.subr.mxu0 0.0
    %3291 = vmatpush2.msra.mxu0 0.0
    %3292 = vmatprep.subr.mxu0 0.0
    %3293 = vmatpush2.msra.mxu0 0.0
    %3294 = vmatprep.subr.mxu0 0.0
    %3295 = vmatpush2.msra.mxu0 0.0
    %3296 = vmatprep.subr.mxu0 0.0
    %3297 = vmatpush2.msra.mxu0 0.0
    %3298 = vmatprep.subr.mxu0 0.0
    %3299 = vmatpush2.msra.mxu0 0.0
    %3300 = vmatprep.subr.mxu0 0.0
    %3301 = vmatpush2.msra.mxu0 0.0
    %3302 = vmatprep.subr.mxu0 0.0
    %3303 = vmatpush2.msra.mxu0 0.0
    %3304 = vmatprep.subr.mxu0 0.0
    %3305 = vmatpush2.msra.mxu0 0.0
    %3306 = vmatprep.subr.mxu0 0.0
    %3307 = vmatpush2.msra.mxu0 0.0
    %3308 = vmatprep.subr.mxu0 0.0
    %3309 = vmatpush2.msra.mxu0 0.0
    %3310 = vmatprep.subr.mxu0 0.0
    %3311 = vmatpush2.msra.mxu0 0.0
    %3312 = vmatprep.subr.mxu0 0.0
    %3313 = vmatpush2.msra.mxu0 0.0
    %3314 = vmatprep.subr.mxu0 0.0
    %3315 = vmatpush2.msra.mxu0 0.0
    %3316 = vmatprep.subr.mxu0 0.0
    %3317 = vmatpush2.msra.mxu0 0.0
    %3318 = vmatprep.subr.mxu0 0.0
    %3319 = vmatpush2.msra.mxu0 0.0
    %3320 = vmatprep.mubr.f32.mxu0 0.0
    %v3321 = vand.u32 %v3253, 4294901760
    %v3322 = vsub.f32 %v3253, %v3321
    %v3323 = vand.u32 %v3322, 4294901760
    %v3324 = vsub.f32 %v3322, %v3323
    %v3325 = vand.u32 %v3324, 4294901760
    %3326 = vmatmul.mubr.f32.gmra.mxu0 %v3325
    %v3327 = vpop.f32.mrf.mxu0
    %v3328 = vadd.f32 0.0, %v3327
    %v3329 = vpop.f32.mrf.mxu0
    %3330 = vdwg.mxu0
    %3331 = vmatprep.subr.mxu0 0.0
    %3332 = vmatpush1.msra.mxu0 0.0
    %3333 = vmatprep.subr.mxu0 0.0
    %3334 = vmatpush1.msra.mxu0 0.0
    %3335 = vmatprep.subr.mxu0 0.0
    %3336 = vmatpush1.msra.mxu0 0.0
    %3337 = vmatprep.subr.mxu0 0.0
    %3338 = vmatpush1.msra.mxu0 0.0
    %3339 = vmatprep.subr.mxu0 0.0
    %3340 = vmatpush1.msra.mxu0 0.0
    %3341 = vmatprep.subr.mxu0 0.0
    %3342 = vmatpush1.msra.mxu0 0.0
    %3343 = vmatprep.subr.mxu0 0.0
    %3344 = vmatpush1.msra.mxu0 0.0
    %3345 = vmatprep.subr.mxu0 0.0
    %3346 = vmatpush1.msra.mxu0 0.0
    %3347 = vmatprep.subr.mxu0 0.0
    %3348 = vmatpush1.msra.mxu0 0.0
    %3349 = vmatprep.subr.mxu0 0.0
    %3350 = vmatpush1.msra.mxu0 0.0
    %3351 = vmatprep.subr.mxu0 0.0
    %3352 = vmatpush1.msra.mxu0 0.0
    %3353 = vmatprep.subr.mxu0 0.0
    %3354 = vmatpush1.msra.mxu0 0.0
    %3355 = vmatprep.subr.mxu0 0.0
    %3356 = vmatpush1.msra.mxu0 0.0
    %3357 = vmatprep.subr.mxu0 0.0
    %3358 = vmatpush1.msra.mxu0 0.0
    %3359 = vmatprep.subr.mxu0 0.0
    %3360 = vmatpush1.msra.mxu0 0.0
    %3361 = vmatprep.subr.mxu0 0.0
    %v3362 = vand.u32 %v3251, 4294901760
    %v3363 = vsub.f32 %v3251, %v3362
    %v3364 = vand.u32 %v3363, 4294901760
    %v3365 = vsub.f32 %v3363, %v3364
    %v3366 = vand.u32 %v3365, 4294901760
    %3367 = vmatpush1.msra.mxu0 %v3366
    %3368 = vmatprep.subr.mxu0 0.0
    %3369 = vmatpush2.msra.mxu0 0.0
    %3370 = vmatprep.subr.mxu0 0.0
    %3371 = vmatpush2.msra.mxu0 0.0
    %3372 = vmatprep.subr.mxu0 0.0
    %3373 = vmatpush2.msra.mxu0 0.0
    %3374 = vmatprep.subr.mxu0 0.0
    %3375 = vmatpush2.msra.mxu0 0.0
    %3376 = vmatprep.subr.mxu0 0.0
    %3377 = vmatpush2.msra.mxu0 0.0
    %3378 = vmatprep.subr.mxu0 0.0
    %3379 = vmatpush2.msra.mxu0 0.0
    %3380 = vmatprep.subr.mxu0 0.0
    %3381 = vmatpush2.msra.mxu0 0.0
    %3382 = vmatprep.subr.mxu0 0.0
    %3383 = vmatpush2.msra.mxu0 0.0
    %3384 = vmatprep.subr.mxu0 0.0
    %3385 = vmatpush2.msra.mxu0 0.0
    %3386 = vmatprep.subr.mxu0 0.0
    %3387 = vmatpush2.msra.mxu0 0.0
    %3388 = vmatprep.subr.mxu0 0.0
    %3389 = vmatpush2.msra.mxu0 0.0
    %3390 = vmatprep.subr.mxu0 0.0
    %3391 = vmatpush2.msra.mxu0 0.0
    %3392 = vmatprep.subr.mxu0 0.0
    %3393 = vmatpush2.msra.mxu0 0.0
    %3394 = vmatprep.subr.mxu0 0.0
    %3395 = vmatpush2.msra.mxu0 0.0
    %3396 = vmatprep.subr.mxu0 0.0
    %3397 = vmatpush2.msra.mxu0 0.0
    %3398 = vmatprep.subr.mxu0 0.0
    %3399 = vmatpush2.msra.mxu0 0.0
    %3400 = vmatprep.mubr.f32.mxu0 0.0
    %v3401 = vand.u32 %v3253, 4294901760
    %3402 = vmatmul.mubr.f32.gmra.mxu0 %v3401
    %v3403 = vpop.f32.mrf.mxu0
    %v3404 = vadd.f32 %v3328, %v3403
    %v3405 = vpop.f32.mrf.mxu0
    %3406 = vdwg.mxu0
    %3407 = vmatprep.subr.mxu0 0.0
    %3408 = vmatpush1.msra.mxu0 0.0
    %3409 = vmatprep.subr.mxu0 0.0
    %3410 = vmatpush1.msra.mxu0 0.0
    %3411 = vmatprep.subr.mxu0 0.0
    %3412 = vmatpush1.msra.mxu0 0.0
    %3413 = vmatprep.subr.mxu0 0.0
    %3414 = vmatpush1.msra.mxu0 0.0
    %3415 = vmatprep.subr.mxu0 0.0
    %3416 = vmatpush1.msra.mxu0 0.0
    %3417 = vmatprep.subr.mxu0 0.0
    %3418 = vmatpush1.msra.mxu0 0.0
    %3419 = vmatprep.subr.mxu0 0.0
    %3420 = vmatpush1.msra.mxu0 0.0
    %3421 = vmatprep.subr.mxu0 0.0
    %3422 = vmatpush1.msra.mxu0 0.0
    %3423 = vmatprep.subr.mxu0 0.0
    %3424 = vmatpush1.msra.mxu0 0.0
    %3425 = vmatprep.subr.mxu0 0.0
    %3426 = vmatpush1.msra.mxu0 0.0
    %3427 = vmatprep.subr.mxu0 0.0
    %3428 = vmatpush1.msra.mxu0 0.0
    %3429 = vmatprep.subr.mxu0 0.0
    %3430 = vmatpush1.msra.mxu0 0.0
    %3431 = vmatprep.subr.mxu0 0.0
    %3432 = vmatpush1.msra.mxu0 0.0
    %3433 = vmatprep.subr.mxu0 0.0
    %3434 = vmatpush1.msra.mxu0 0.0
    %3435 = vmatprep.subr.mxu0 0.0
    %3436 = vmatpush1.msra.mxu0 0.0
    %3437 = vmatprep.subr.mxu0 0.0
    %v3438 = vand.u32 %v3251, 4294901760
    %v3439 = vsub.f32 %v3251, %v3438
    %3440 = vmatpush1.msra.mxu0 %v3439
    %3441 = vmatprep.subr.mxu0 0.0
    %3442 = vmatpush2.msra.mxu0 0.0
    %3443 = vmatprep.subr.mxu0 0.0
    %3444 = vmatpush2.msra.mxu0 0.0
    %3445 = vmatprep.subr.mxu0 0.0
    %3446 = vmatpush2.msra.mxu0 0.0
    %3447 = vmatprep.subr.mxu0 0.0
    %3448 = vmatpush2.msra.mxu0 0.0
    %3449 = vmatprep.subr.mxu0 0.0
    %3450 = vmatpush2.msra.mxu0 0.0
    %3451 = vmatprep.subr.mxu0 0.0
    %3452 = vmatpush2.msra.mxu0 0.0
    %3453 = vmatprep.subr.mxu0 0.0
    %3454 = vmatpush2.msra.mxu0 0.0
    %3455 = vmatprep.subr.mxu0 0.0
    %3456 = vmatpush2.msra.mxu0 0.0
    %3457 = vmatprep.subr.mxu0 0.0
    %3458 = vmatpush2.msra.mxu0 0.0
    %3459 = vmatprep.subr.mxu0 0.0
    %3460 = vmatpush2.msra.mxu0 0.0
    %3461 = vmatprep.subr.mxu0 0.0
    %3462 = vmatpush2.msra.mxu0 0.0
    %3463 = vmatprep.subr.mxu0 0.0
    %3464 = vmatpush2.msra.mxu0 0.0
    %3465 = vmatprep.subr.mxu0 0.0
    %3466 = vmatpush2.msra.mxu0 0.0
    %3467 = vmatprep.subr.mxu0 0.0
    %3468 = vmatpush2.msra.mxu0 0.0
    %3469 = vmatprep.subr.mxu0 0.0
    %3470 = vmatpush2.msra.mxu0 0.0
    %3471 = vmatprep.subr.mxu0 0.0
    %3472 = vmatpush2.msra.mxu0 0.0
    %3473 = vmatprep.mubr.f32.mxu0 0.0
    %v3474 = vand.u32 %v3253, 4294901760
    %v3475 = vsub.f32 %v3253, %v3474
    %3476 = vmatmul.mubr.f32.gmra.mxu0 %v3475
    %v3477 = vpop.f32.mrf.mxu0
    %v3478 = vadd.f32 %v3404, %v3477
    %v3479 = vpop.f32.mrf.mxu0
    %3480 = vdwg.mxu0
    %3481 = vmatprep.subr.mxu0 0.0
    %3482 = vmatpush1.msra.mxu0 0.0
    %3483 = vmatprep.subr.mxu0 0.0
    %3484 = vmatpush1.msra.mxu0 0.0
    %3485 = vmatprep.subr.mxu0 0.0
    %3486 = vmatpush1.msra.mxu0 0.0
    %3487 = vmatprep.subr.mxu0 0.0
    %3488 = vmatpush1.msra.mxu0 0.0
    %3489 = vmatprep.subr.mxu0 0.0
    %3490 = vmatpush1.msra.mxu0 0.0
    %3491 = vmatprep.subr.mxu0 0.0
    %3492 = vmatpush1.msra.mxu0 0.0
    %3493 = vmatprep.subr.mxu0 0.0
    %3494 = vmatpush1.msra.mxu0 0.0
    %3495 = vmatprep.subr.mxu0 0.0
    %3496 = vmatpush1.msra.mxu0 0.0
    %3497 = vmatprep.subr.mxu0 0.0
    %3498 = vmatpush1.msra.mxu0 0.0
    %3499 = vmatprep.subr.mxu0 0.0
    %3500 = vmatpush1.msra.mxu0 0.0
    %3501 = vmatprep.subr.mxu0 0.0
    %3502 = vmatpush1.msra.mxu0 0.0
    %3503 = vmatprep.subr.mxu0 0.0
    %3504 = vmatpush1.msra.mxu0 0.0
    %3505 = vmatprep.subr.mxu0 0.0
    %3506 = vmatpush1.msra.mxu0 0.0
    %3507 = vmatprep.subr.mxu0 0.0
    %3508 = vmatpush1.msra.mxu0 0.0
    %3509 = vmatprep.subr.mxu0 0.0
    %3510 = vmatpush1.msra.mxu0 0.0
    %3511 = vmatprep.subr.mxu0 0.0
    %v3512 = vand.u32 %v3251, 4294901760
    %3513 = vmatpush1.msra.mxu0 %v3512
    %3514 = vmatprep.subr.mxu0 0.0
    %3515 = vmatpush2.msra.mxu0 0.0
    %3516 = vmatprep.subr.mxu0 0.0
    %3517 = vmatpush2.msra.mxu0 0.0
    %3518 = vmatprep.subr.mxu0 0.0
    %3519 = vmatpush2.msra.mxu0 0.0
    %3520 = vmatprep.subr.mxu0 0.0
    %3521 = vmatpush2.msra.mxu0 0.0
    %3522 = vmatprep.subr.mxu0 0.0
    %3523 = vmatpush2.msra.mxu0 0.0
    %3524 = vmatprep.subr.mxu0 0.0
    %3525 = vmatpush2.msra.mxu0 0.0
    %3526 = vmatprep.subr.mxu0 0.0
    %3527 = vmatpush2.msra.mxu0 0.0
    %3528 = vmatprep.subr.mxu0 0.0
    %3529 = vmatpush2.msra.mxu0 0.0
    %3530 = vmatprep.subr.mxu0 0.0
    %3531 = vmatpush2.msra.mxu0 0.0
    %3532 = vmatprep.subr.mxu0 0.0
    %3533 = vmatpush2.msra.mxu0 0.0
    %3534 = vmatprep.subr.mxu0 0.0
    %3535 = vmatpush2.msra.mxu0 0.0
    %3536 = vmatprep.subr.mxu0 0.0
    %3537 = vmatpush2.msra.mxu0 0.0
    %3538 = vmatprep.subr.mxu0 0.0
    %3539 = vmatpush2.msra.mxu0 0.0
    %3540 = vmatprep.subr.mxu0 0.0
    %3541 = vmatpush2.msra.mxu0 0.0
    %3542 = vmatprep.subr.mxu0 0.0
    %3543 = vmatpush2.msra.mxu0 0.0
    %3544 = vmatprep.subr.mxu0 0.0
    %3545 = vmatpush2.msra.mxu0 0.0
    %3546 = vmatprep.mubr.f32.mxu0 0.0
    %v3547 = vand.u32 %v3253, 4294901760
    %v3548 = vsub.f32 %v3253, %v3547
    %v3549 = vand.u32 %v3548, 4294901760
    %3550 = vmatmul.mubr.f32.gmra.mxu0 %v3549
    %v3551 = vpop.f32.mrf.mxu0
    %v3552 = vadd.f32 %v3478, %v3551
    %v3553 = vpop.f32.mrf.mxu0
    %3554 = vdwg.mxu0
    %3555 = vmatprep.subr.mxu0 0.0
    %3556 = vmatpush1.msra.mxu0 0.0
    %3557 = vmatprep.subr.mxu0 0.0
    %3558 = vmatpush1.msra.mxu0 0.0
    %3559 = vmatprep.subr.mxu0 0.0
    %3560 = vmatpush1.msra.mxu0 0.0
    %3561 = vmatprep.subr.mxu0 0.0
    %3562 = vmatpush1.msra.mxu0 0.0
    %3563 = vmatprep.subr.mxu0 0.0
    %3564 = vmatpush1.msra.mxu0 0.0
    %3565 = vmatprep.subr.mxu0 0.0
    %3566 = vmatpush1.msra.mxu0 0.0
    %3567 = vmatprep.subr.mxu0 0.0
    %3568 = vmatpush1.msra.mxu0 0.0
    %3569 = vmatprep.subr.mxu0 0.0
    %3570 = vmatpush1.msra.mxu0 0.0
    %3571 = vmatprep.subr.mxu0 0.0
    %3572 = vmatpush1.msra.mxu0 0.0
    %3573 = vmatprep.subr.mxu0 0.0
    %3574 = vmatpush1.msra.mxu0 0.0
    %3575 = vmatprep.subr.mxu0 0.0
    %3576 = vmatpush1.msra.mxu0 0.0
    %3577 = vmatprep.subr.mxu0 0.0
    %3578 = vmatpush1.msra.mxu0 0.0
    %3579 = vmatprep.subr.mxu0 0.0
    %3580 = vmatpush1.msra.mxu0 0.0
    %3581 = vmatprep.subr.mxu0 0.0
    %3582 = vmatpush1.msra.mxu0 0.0
    %3583 = vmatprep.subr.mxu0 0.0
    %3584 = vmatpush1.msra.mxu0 0.0
    %3585 = vmatprep.subr.mxu0 0.0
    %v3586 = vand.u32 %v3251, 4294901760
    %v3587 = vsub.f32 %v3251, %v3586
    %v3588 = vand.u32 %v3587, 4294901760
    %3589 = vmatpush1.msra.mxu0 %v3588
    %3590 = vmatprep.subr.mxu0 0.0
    %3591 = vmatpush2.msra.mxu0 0.0
    %3592 = vmatprep.subr.mxu0 0.0
    %3593 = vmatpush2.msra.mxu0 0.0
    %3594 = vmatprep.subr.mxu0 0.0
    %3595 = vmatpush2.msra.mxu0 0.0
    %3596 = vmatprep.subr.mxu0 0.0
    %3597 = vmatpush2.msra.mxu0 0.0
    %3598 = vmatprep.subr.mxu0 0.0
    %3599 = vmatpush2.msra.mxu0 0.0
    %3600 = vmatprep.subr.mxu0 0.0
    %3601 = vmatpush2.msra.mxu0 0.0
    %3602 = vmatprep.subr.mxu0 0.0
    %3603 = vmatpush2.msra.mxu0 0.0
    %3604 = vmatprep.subr.mxu0 0.0
    %3605 = vmatpush2.msra.mxu0 0.0
    %3606 = vmatprep.subr.mxu0 0.0
    %3607 = vmatpush2.msra.mxu0 0.0
    %3608 = vmatprep.subr.mxu0 0.0
    %3609 = vmatpush2.msra.mxu0 0.0
    %3610 = vmatprep.subr.mxu0 0.0
    %3611 = vmatpush2.msra.mxu0 0.0
    %3612 = vmatprep.subr.mxu0 0.0
    %3613 = vmatpush2.msra.mxu0 0.0
    %3614 = vmatprep.subr.mxu0 0.0
    %3615 = vmatpush2.msra.mxu0 0.0
    %3616 = vmatprep.subr.mxu0 0.0
    %3617 = vmatpush2.msra.mxu0 0.0
    %3618 = vmatprep.subr.mxu0 0.0
    %3619 = vmatpush2.msra.mxu0 0.0
    %3620 = vmatprep.subr.mxu0 0.0
    %3621 = vmatpush2.msra.mxu0 0.0
    %3622 = vmatprep.mubr.f32.mxu0 0.0
    %v3623 = vand.u32 %v3253, 4294901760
    %3624 = vmatmul.mubr.f32.gmra.mxu0 %v3623
    %v3625 = vpop.f32.mrf.mxu0
    %v3626 = vadd.f32 %v3552, %v3625
    %v3627 = vpop.f32.mrf.mxu0
    %3628 = vdwg.mxu0
    %3629 = vmatprep.subr.mxu0 0.0
    %3630 = vmatpush1.msra.mxu0 0.0
    %3631 = vmatprep.subr.mxu0 0.0
    %3632 = vmatpush1.msra.mxu0 0.0
    %3633 = vmatprep.subr.mxu0 0.0
    %3634 = vmatpush1.msra.mxu0 0.0
    %3635 = vmatprep.subr.mxu0 0.0
    %3636 = vmatpush1.msra.mxu0 0.0
    %3637 = vmatprep.subr.mxu0 0.0
    %3638 = vmatpush1.msra.mxu0 0.0
    %3639 = vmatprep.subr.mxu0 0.0
    %3640 = vmatpush1.msra.mxu0 0.0
    %3641 = vmatprep.subr.mxu0 0.0
    %3642 = vmatpush1.msra.mxu0 0.0
    %3643 = vmatprep.subr.mxu0 0.0
    %3644 = vmatpush1.msra.mxu0 0.0
    %3645 = vmatprep.subr.mxu0 0.0
    %3646 = vmatpush1.msra.mxu0 0.0
    %3647 = vmatprep.subr.mxu0 0.0
    %3648 = vmatpush1.msra.mxu0 0.0
    %3649 = vmatprep.subr.mxu0 0.0
    %3650 = vmatpush1.msra.mxu0 0.0
    %3651 = vmatprep.subr.mxu0 0.0
    %3652 = vmatpush1.msra.mxu0 0.0
    %3653 = vmatprep.subr.mxu0 0.0
    %3654 = vmatpush1.msra.mxu0 0.0
    %3655 = vmatprep.subr.mxu0 0.0
    %3656 = vmatpush1.msra.mxu0 0.0
    %3657 = vmatprep.subr.mxu0 0.0
    %3658 = vmatpush1.msra.mxu0 0.0
    %3659 = vmatprep.subr.mxu0 0.0
    %v3660 = vand.u32 %v3251, 4294901760
    %3661 = vmatpush1.msra.mxu0 %v3660
    %3662 = vmatprep.subr.mxu0 0.0
    %3663 = vmatpush2.msra.mxu0 0.0
    %3664 = vmatprep.subr.mxu0 0.0
    %3665 = vmatpush2.msra.mxu0 0.0
    %3666 = vmatprep.subr.mxu0 0.0
    %3667 = vmatpush2.msra.mxu0 0.0
    %3668 = vmatprep.subr.mxu0 0.0
    %3669 = vmatpush2.msra.mxu0 0.0
    %3670 = vmatprep.subr.mxu0 0.0
    %3671 = vmatpush2.msra.mxu0 0.0
    %3672 = vmatprep.subr.mxu0 0.0
    %3673 = vmatpush2.msra.mxu0 0.0
    %3674 = vmatprep.subr.mxu0 0.0
    %3675 = vmatpush2.msra.mxu0 0.0
    %3676 = vmatprep.subr.mxu0 0.0
    %3677 = vmatpush2.msra.mxu0 0.0
    %3678 = vmatprep.subr.mxu0 0.0
    %3679 = vmatpush2.msra.mxu0 0.0
    %3680 = vmatprep.subr.mxu0 0.0
    %3681 = vmatpush2.msra.mxu0 0.0
    %3682 = vmatprep.subr.mxu0 0.0
    %3683 = vmatpush2.msra.mxu0 0.0
    %3684 = vmatprep.subr.mxu0 0.0
    %3685 = vmatpush2.msra.mxu0 0.0
    %3686 = vmatprep.subr.mxu0 0.0
    %3687 = vmatpush2.msra.mxu0 0.0
    %3688 = vmatprep.subr.mxu0 0.0
    %3689 = vmatpush2.msra.mxu0 0.0
    %3690 = vmatprep.subr.mxu0 0.0
    %3691 = vmatpush2.msra.mxu0 0.0
    %3692 = vmatprep.subr.mxu0 0.0
    %3693 = vmatpush2.msra.mxu0 0.0
    %3694 = vmatprep.mubr.f32.mxu0 0.0
    %v3695 = vand.u32 %v3253, 4294901760
    %3696 = vmatmul.mubr.f32.gmra.mxu0 %v3695
    %v3697 = vpop.f32.mrf.mxu0
    %v3698 = vadd.f32 %v3626, %v3697
    %v3699 = vpop.f32.mrf.mxu0
    %3700 = vdwg.mxu0
    %v3701 = vlaneseq
    %v3702 = vshrl.u32 %v3701, 7
    %v3703 = vsub.s32 0, %v3702
    %v3704 = vrot.slane %v3698, %v3703
    %v3705 = vmul.f32 %v2500, %v3704
    %v3706 = vmul.f32 %v2503, %v3704
    %v3707 = vmul.f32 %v2508, %v3704
    %v3708 = vmul.f32 %v2511, %v3704
    %v3709 = vmul.f32 %v2516, %v3704
    %v3710 = vlaneseq
    %v3711 = vshrl.u32 %v3710, 7
    %v3712 = vsub.s32 1, %v3711
    %v3713 = vrot.slane %v3698, %v3712
    %v3714 = vadd.f32 %v3705, %v3713
    %v3715 = vadd.f32 %v3706, %v3713
    %v3716 = vadd.f32 %v3707, %v3713
    %v3717 = vadd.f32 %v3708, %v3713
    %v3718 = vadd.f32 %v3709, %v3713
    %v3719 = vmul.f32 %v3714, 0.5
    %v3720 = vmul.f32 %v3715, 0.5
    %v3721 = vmul.f32 %v3716, 0.5
    %v3722 = vmul.f32 %v3717, 0.5
    %v3723 = vmul.f32 %v3718, 0.5
    %v3724 = vmul.f32 %v3714, 0.70710677
    %v3725 = vmul.f32 %v3715, 0.70710677
    %v3726 = vmul.f32 %v3716, 0.70710677
    %v3727 = vmul.f32 %v3717, 0.70710677
    %v3728 = vmul.f32 %v3718, 0.70710677
    %vm3729 = vcmp.ge.f32.partialorder %v3724, 0.0
    %vm3730 = vcmp.ge.f32.partialorder %v3725, 0.0
    %vm3731 = vcmp.ge.f32.partialorder %v3726, 0.0
    %vm3732 = vcmp.ge.f32.partialorder %v3727, 0.0
    %vm3733 = vcmp.ge.f32.partialorder %v3728, 0.0
    %v3734 = vsel %vm3729, 1.0, -1.0
    %v3735 = vsel %vm3730, 1.0, -1.0
    %v3736 = vsel %vm3731, 1.0, -1.0
    %v3737 = vsel %vm3732, 1.0, -1.0
    %v3738 = vsel %vm3733, 1.0, -1.0
    %v3739 = vand.u32 2147483647, %v3724
    %v3740 = vand.u32 2147483647, %v3725
    %v3741 = vand.u32 2147483647, %v3726
    %v3742 = vand.u32 2147483647, %v3727
    %v3743 = vand.u32 2147483647, %v3728
    %v3744 = vmul.f32 %v3739, 0.3275911
    %v3745 = vmul.f32 %v3740, 0.3275911
    %v3746 = vmul.f32 %v3741, 0.3275911
    %v3747 = vmul.f32 %v3742, 0.3275911
    %v3748 = vmul.f32 %v3743, 0.3275911
    %v3749 = vadd.f32 %v3744, 1.0
    %v3750 = vadd.f32 %v3745, 1.0
    %v3751 = vadd.f32 %v3746, 1.0
    %v3752 = vadd.f32 %v3747, 1.0
    %v3753 = vadd.f32 %v3748, 1.0
    %v3754 = vrcp.pop %v3749
    %v3755 = vrcp.pop %v3750
    %v3756 = vrcp.pop %v3751
    %v3757 = vrcp.pop %v3752
    %v3758 = vrcp.pop %v3753
    %v3759 = vmul.f32 %v3754, 1.0614054
    %v3760 = vmul.f32 %v3755, 1.0614054
    %v3761 = vmul.f32 %v3756, 1.0614054
    %v3762 = vmul.f32 %v3757, 1.0614054
    %v3763 = vmul.f32 %v3758, 1.0614054
    %v3764 = vadd.f32 %v3759, -1.4531521
    %v3765 = vadd.f32 %v3760, -1.4531521
    %v3766 = vadd.f32 %v3761, -1.4531521
    %v3767 = vadd.f32 %v3762, -1.4531521
    %v3768 = vadd.f32 %v3763, -1.4531521
    %v3769 = vmul.f32 %v3764, %v3754
    %v3770 = vmul.f32 %v3765, %v3755
    %v3771 = vmul.f32 %v3766, %v3756
    %v3772 = vmul.f32 %v3767, %v3757
    %v3773 = vmul.f32 %v3768, %v3758
    %v3774 = vadd.f32 %v3769, 1.4214138
    %v3775 = vadd.f32 %v3770, 1.4214138
    %v3776 = vadd.f32 %v3771, 1.4214138
    %v3777 = vadd.f32 %v3772, 1.4214138
    %v3778 = vadd.f32 %v3773, 1.4214138
    %v3779 = vmul.f32 %v3774, %v3754
    %v3780 = vmul.f32 %v3775, %v3755
    %v3781 = vmul.f32 %v3776, %v3756
    %v3782 = vmul.f32 %v3777, %v3757
    %v3783 = vmul.f32 %v3778, %v3758
    %v3784 = vadd.f32 %v3779, -0.28449672
    %v3785 = vadd.f32 %v3780, -0.28449672
    %v3786 = vadd.f32 %v3781, -0.28449672
    %v3787 = vadd.f32 %v3782, -0.28449672
    %v3788 = vadd.f32 %v3783, -0.28449672
    %v3789 = vmul.f32 %v3784, %v3754
    %v3790 = vmul.f32 %v3785, %v3755
    %v3791 = vmul.f32 %v3786, %v3756
    %v3792 = vmul.f32 %v3787, %v3757
    %v3793 = vmul.f32 %v3788, %v3758
    %v3794 = vadd.f32 %v3789, 0.2548296
    %v3795 = vadd.f32 %v3790, 0.2548296
    %v3796 = vadd.f32 %v3791, 0.2548296
    %v3797 = vadd.f32 %v3792, 0.2548296
    %v3798 = vadd.f32 %v3793, 0.2548296
    %v3799 = vmul.f32 %v3794, %v3754
    %v3800 = vmul.f32 %v3795, %v3755
    %v3801 = vmul.f32 %v3796, %v3756
    %v3802 = vmul.f32 %v3797, %v3757
    %v3803 = vmul.f32 %v3798, %v3758
    %v3804 = vsub.f32 0.0, %v3739
    %v3805 = vsub.f32 0.0, %v3740
    %v3806 = vsub.f32 0.0, %v3741
    %v3807 = vsub.f32 0.0, %v3742
    %v3808 = vsub.f32 0.0, %v3743
    %v3809 = vmul.f32 %v3804, %v3739
    %v3810 = vmul.f32 %v3805, %v3740
    %v3811 = vmul.f32 %v3806, %v3741
    %v3812 = vmul.f32 %v3807, %v3742
    %v3813 = vmul.f32 %v3808, %v3743
    %v3814 = vmul.f32 %v3809, 1.442695
    %v3815 = vpow.pop %v3814
    %v3816 = vmul.f32 %v3810, 1.442695
    %v3817 = vpow.pop %v3816
    %v3818 = vmul.f32 %v3811, 1.442695
    %v3819 = vpow.pop %v3818
    %v3820 = vmul.f32 %v3812, 1.442695
    %v3821 = vpow.pop %v3820
    %v3822 = vmul.f32 %v3813, 1.442695
    %v3823 = vpow.pop %v3822
    %v3824 = vmul.f32 %v3799, %v3815
    %v3825 = vmul.f32 %v3800, %v3817
    %v3826 = vmul.f32 %v3801, %v3819
    %v3827 = vmul.f32 %v3802, %v3821
    %v3828 = vmul.f32 %v3803, %v3823
    %v3829 = vsub.f32 1.0, %v3824
    %v3830 = vsub.f32 1.0, %v3825
    %v3831 = vsub.f32 1.0, %v3826
    %v3832 = vsub.f32 1.0, %v3827
    %v3833 = vsub.f32 1.0, %v3828
    %v3834 = vmul.f32 %v3734, %v3829
    %v3835 = vmul.f32 %v3735, %v3830
    %v3836 = vmul.f32 %v3736, %v3831
    %v3837 = vmul.f32 %v3737, %v3832
    %v3838 = vmul.f32 %v3738, %v3833
    %v3839 = vadd.f32 %v3834, 1.0
    %v3840 = vadd.f32 %v3835, 1.0
    %v3841 = vadd.f32 %v3836, 1.0
    %v3842 = vadd.f32 %v3837, 1.0
    %v3843 = vadd.f32 %v3838, 1.0
    %v3844 = vmul.f32 %v3719, %v3839
    %v3845 = vmul.f32 %v3720, %v3840
    %v3846 = vmul.f32 %v3721, %v3841
    %v3847 = vmul.f32 %v3722, %v3842
    %v3848 = vmul.f32 %v3723, %v3843
    %v3849 = vpack.c.bf16 %v3845, %v3844
    %v3851 = vunpack.c.l.b16 %v3849
    %v3852 = vunpack.c.h.b16 %v3849
    %v3853 = vpack.c.b16 %v3851, %v3851
    %v3854 = vpack.c.b16 %v3852, %v3852
    %v3856 = vshrl.u32 %v3853, 16
    %v3858 = vrot.slane %v3856, 7
    %v3859 = vshll.u32 %v3853, 16
    %v3861 = vor.u32 %v3858, %v3859
    %v3862 = vrot.slane %v3858, 4
    %v3864 = vshrl.u32 %v3854, 16
    %v3866 = vrot.slane %v3864, 7
    %v3867 = vshll.u32 %v3854, 16
    %v3869 = vor.u32 %v3866, %v3867
    %v3870 = vsel %vm210, %v3862, %v3869
    %v3871 = vrot.slane %v3866, 4
    %v3875 = vld [vmem:[#allocation2] sm:$0xf]
    %v3876 = vsel %vm232, %v3861, %v3875
    %3877 = vst [vmem:[#allocation2] sm:$0xf] %v3876
    %3878 = vst [vmem:[#allocation2 + $0x4] sm:$0xf] %v3870
    %v3879 = vld [vmem:[#allocation2 + $0x8] sm:$0x1]
    %v3880 = vsel %vm47, %v3871, %v3879
    %3881 = vst [vmem:[#allocation2 + $0x8] sm:$0x1] %v3880
    %v3882 = vpack.c.bf16 %v3847, %v3846
    %v3883 = vpack.c.bf16 %v3848, %v3848
    %v3886 = vunpack.c.l.b16 %v3882
    %v3887 = vunpack.c.h.b16 %v3882
    %v3888 = vunpack.c.l.b16 %v3883
    %v3889 = vpack.c.b16 %v3886, %v3886
    %v3890 = vpack.c.b16 %v3887, %v3887
    %v3891 = vpack.c.b16 %v3888, %v3888
    %v3893 = vshrl.u32 %v3889, 16
    %v3895 = vrot.slane %v3893, 7
    %v3896 = vshll.u32 %v3889, 16
    %v3898 = vor.u32 %v3895, %v3896
    %v3899 = vrot.slane %v3895, 4
    %v3901 = vshrl.u32 %v3890, 16
    %v3903 = vrot.slane %v3901, 7
    %v3904 = vshll.u32 %v3890, 16
    %v3906 = vor.u32 %v3903, %v3904
    %v3907 = vsel %vm210, %v3899, %v3906
    %v3908 = vrot.slane %v3903, 4
    %v3910 = vshrl.u32 %v3891, 16
    %v3912 = vrot.slane %v3910, 7
    %v3913 = vshll.u32 %v3891, 16
    %v3915 = vor.u32 %v3912, %v3913
    %v3916 = vsel %vm210, %v3908, %v3915
    %v3920 = vld [vmem:[#allocation2 + $0x8] sm:$0xe]
    %v3921 = vsel %vm271, %v3898, %v3920
    %3922 = vst [vmem:[#allocation2 + $0x8] sm:$0xe] %v3921
    %3923 = vst [vmem:[#allocation2 + $0xc] sm:$0xf] %v3907
    %v3924 = vld [vmem:[#allocation2 + $0x10] sm:$0x3]
    %v3925 = vsel %vm277, %v3916, %v3924
    %3926 = vst [vmem:[#allocation2 + $0x10] sm:$0x3] %v3925
    %v3927 = vld [vmem:[#allocation2] sm:$0xf]
    %v3928 = vld [vmem:[#allocation2 + $0x4] sm:$0xf]
    %v3929 = vld [vmem:[#allocation2 + $0x8] sm:$0xf]
    %v3930 = vld [vmem:[#allocation2 + $0xc] sm:$0xf]
    %v3931 = vld [vmem:[#allocation2 + $0x10] sm:$0x1]
    %v3932 = vld [vmem:[#allocation2 + $0x10] sm:$0x3]
    %v3933 = vld [vmem:[#allocation2] sm:$0xe]
    %v3939 = vunpack.c.l.b16 %v3927
    %v3940 = vunpack.c.l.b16 %v3928
    %v3941 = vunpack.c.l.b16 %v3929
    %v3942 = vunpack.c.l.b16 %v3930
    %v3943 = vunpack.c.l.b16 %v3931
    %v3944 = vpack.c.b16 %v3940, %v3939
    %v3945 = vpack.c.b16 %v3942, %v3941
    %v3946 = vpack.c.b16 %v3943, %v3943
    %v3951 = vunpack.c.l.b16 %v3932
    %v3952 = vpack.c.b16 %v3951, %v3951
    %v3954 = vshrl.u32 %v3944, 16
    %v3956 = vshll.u32 %v3944, 16
    %v3958 = vrot.slane %v3956, 1
    %v3959 = vor.u32 %v3954, %v3958
    %v3961 = vshll.u32 %v3945, 16
    %v3963 = vrot.slane %v3961, 1
    %v3964 = vsel %vm403, %v3959, %v3963
    %v3965 = vshrl.u32 %v3945, 16
    %v3967 = vor.u32 %v3965, %v3963
    %v3969 = vshll.u32 %v3952, 16
    %v3971 = vrot.slane %v3969, 1
    %v3972 = vsel %vm403, %v3967, %v3971
    %v3973 = vshrl.u32 %v3952, 16
    %v3975 = vor.u32 %v3973, %v3971
    %v3980 = vunpack.c.l.b16 %v3933
    %v3981 = vpack.c.b16 %v3940, %v3980
    %v3982 = vrot.slane %v3981, 1
    %v3983 = vrot.slane %v3945, 1
    %v3984 = vsel %vm433, %v3982, %v3983
    %v3985 = vrot.slane %v3952, 1
    %v3986 = vsel %vm433, %v3983, %v3985
    %s3990 = scalar_lea.vmem [#allocation3], 384
    %v3991 = vld [vmem:[%s3990] sm:$0xf]
    %v3992 = vld [vmem:[%s3990 + $0x4] sm:$0xf]
    %v3993 = vld [vmem:[%s3990 + $0x8] sm:$0xf]
    %v3994 = vld [vmem:[%s3990 + $0xc] sm:$0xf]
    %v3995 = vld [vmem:[%s3990 + $0x10] sm:$0xf]
    %v3996 = vld [vmem:[%s3990 + $0x14] sm:$0xf]
    %v3997 = vld [vmem:[%s3990 + $0x18] sm:$0xf]
    %v3998 = vld [vmem:[%s3990 + $0x1c] sm:$0xf]
    %v3999 = vld [vmem:[%s3990 + $0x20] sm:$0xf]
    %v4000 = vld [vmem:[%s3990 + $0x24] sm:$0xf]
    %v4001 = vld [vmem:[%s3990 + $0x28] sm:$0xf]
    %v4002 = vld [vmem:[%s3990 + $0x2c] sm:$0xf]
    %v4003 = vld [vmem:[%s3990 + $0x30] sm:$0xf]
    %v4004 = vld [vmem:[%s3990 + $0x34] sm:$0xf]
    %v4005 = vld [vmem:[%s3990 + $0x38] sm:$0xf]
    %v4006 = vld [vmem:[%s3990 + $0x3c] sm:$0xf]
    %v4007 = vld [vmem:[%s3990 + $0x40] sm:$0xf]
    %v4008 = vld [vmem:[%s3990 + $0x44] sm:$0xf]
    %v4009 = vld [vmem:[%s3990 + $0x48] sm:$0xf]
    %v4010 = vld [vmem:[%s3990 + $0x4c] sm:$0xf]
    %v4011 = vld [vmem:[%s3990 + $0x50] sm:$0xf]
    %v4012 = vld [vmem:[%s3990 + $0x54] sm:$0xf]
    %v4013 = vld [vmem:[%s3990 + $0x58] sm:$0xf]
    %v4014 = vld [vmem:[%s3990 + $0x5c] sm:$0xf]
    %v4015 = vld [vmem:[%s3990 + $0x60] sm:$0xf]
    %v4016 = vld [vmem:[%s3990 + $0x64] sm:$0xf]
    %v4017 = vld [vmem:[%s3990 + $0x68] sm:$0xf]
    %v4018 = vld [vmem:[%s3990 + $0x6c] sm:$0xf]
    %v4019 = vld [vmem:[%s3990 + $0x70] sm:$0xf]
    %v4020 = vld [vmem:[%s3990 + $0x74] sm:$0xf]
    %v4021 = vld [vmem:[%s3990 + $0x78] sm:$0xf]
    %v4022 = vld [vmem:[%s3990 + $0x7c] sm:$0xf]
    %v4023 = vld [vmem:[%s3990 + $0x80] sm:$0xf]
    %v4024 = vld [vmem:[%s3990 + $0x84] sm:$0xf]
    %v4025 = vld [vmem:[%s3990 + $0x88] sm:$0xf]
    %v4026 = vld [vmem:[%s3990 + $0x8c] sm:$0xf]
    %v4027 = vld [vmem:[%s3990 + $0x90] sm:$0xf]
    %v4028 = vld [vmem:[%s3990 + $0x94] sm:$0xf]
    %v4029 = vld [vmem:[%s3990 + $0x98] sm:$0xf]
    %v4030 = vld [vmem:[%s3990 + $0x9c] sm:$0xf]
    %v4031 = vld [vmem:[%s3990 + $0xa0] sm:$0xf]
    %v4032 = vld [vmem:[%s3990 + $0xa4] sm:$0xf]
    %v4033 = vld [vmem:[%s3990 + $0xa8] sm:$0xf]
    %v4034 = vld [vmem:[%s3990 + $0xac] sm:$0xf]
    %v4035 = vld [vmem:[%s3990 + $0xb0] sm:$0xf]
    %v4036 = vld [vmem:[%s3990 + $0xb4] sm:$0xf]
    %v4037 = vld [vmem:[%s3990 + $0xb8] sm:$0xf]
    %v4038 = vld [vmem:[%s3990 + $0xbc] sm:$0xf]
    %v4087 = vunpack.c.l.b16 %v3991
    %v4088 = vunpack.c.l.b16 %v3992
    %v4089 = vunpack.c.l.b16 %v3993
    %v4090 = vunpack.c.l.b16 %v3994
    %v4091 = vunpack.c.l.b16 %v3995
    %v4092 = vunpack.c.l.b16 %v3996
    %v4093 = vunpack.c.l.b16 %v3997
    %v4094 = vunpack.c.l.b16 %v3998
    %v4095 = vunpack.c.l.b16 %v3999
    %v4096 = vunpack.c.l.b16 %v4000
    %v4097 = vunpack.c.l.b16 %v4001
    %v4098 = vunpack.c.l.b16 %v4002
    %v4099 = vunpack.c.l.b16 %v4003
    %v4100 = vunpack.c.l.b16 %v4004
    %v4101 = vunpack.c.l.b16 %v4005
    %v4102 = vunpack.c.l.b16 %v4006
    %v4103 = vunpack.c.l.b16 %v4007
    %v4104 = vunpack.c.l.b16 %v4008
    %v4105 = vunpack.c.l.b16 %v4009
    %v4106 = vunpack.c.l.b16 %v4010
    %v4107 = vunpack.c.l.b16 %v4011
    %v4108 = vunpack.c.l.b16 %v4012
    %v4109 = vunpack.c.l.b16 %v4013
    %v4110 = vunpack.c.l.b16 %v4014
    %v4111 = vunpack.c.l.b16 %v4015
    %v4112 = vunpack.c.l.b16 %v4016
    %v4113 = vunpack.c.l.b16 %v4017
    %v4114 = vunpack.c.l.b16 %v4018
    %v4115 = vunpack.c.l.b16 %v4019
    %v4116 = vunpack.c.l.b16 %v4020
    %v4117 = vunpack.c.l.b16 %v4021
    %v4118 = vunpack.c.l.b16 %v4022
    %v4119 = vunpack.c.l.b16 %v4023
    %v4120 = vunpack.c.l.b16 %v4024
    %v4121 = vunpack.c.l.b16 %v4025
    %v4122 = vunpack.c.l.b16 %v4026
    %v4123 = vunpack.c.l.b16 %v4027
    %v4124 = vunpack.c.l.b16 %v4028
    %v4125 = vunpack.c.l.b16 %v4029
    %v4126 = vunpack.c.l.b16 %v4030
    %v4127 = vunpack.c.l.b16 %v4031
    %v4128 = vunpack.c.l.b16 %v4032
    %v4129 = vunpack.c.l.b16 %v4033
    %v4130 = vunpack.c.l.b16 %v4034
    %v4131 = vunpack.c.l.b16 %v4035
    %v4132 = vunpack.c.l.b16 %v4036
    %v4133 = vunpack.c.l.b16 %v4037
    %v4134 = vunpack.c.l.b16 %v4038
    %v4135 = vpack.c.b16 %v4088, %v4087
    %v4136 = vpack.c.b16 %v4090, %v4089
    %v4137 = vpack.c.b16 %v4092, %v4091
    %v4138 = vpack.c.b16 %v4094, %v4093
    %v4139 = vpack.c.b16 %v4096, %v4095
    %v4140 = vpack.c.b16 %v4098, %v4097
    %v4141 = vpack.c.b16 %v4100, %v4099
    %v4142 = vpack.c.b16 %v4102, %v4101
    %v4143 = vpack.c.b16 %v4104, %v4103
    %v4144 = vpack.c.b16 %v4106, %v4105
    %v4145 = vpack.c.b16 %v4108, %v4107
    %v4146 = vpack.c.b16 %v4110, %v4109
    %v4147 = vpack.c.b16 %v4112, %v4111
    %v4148 = vpack.c.b16 %v4114, %v4113
    %v4149 = vpack.c.b16 %v4116, %v4115
    %v4150 = vpack.c.b16 %v4118, %v4117
    %v4151 = vpack.c.b16 %v4120, %v4119
    %v4152 = vpack.c.b16 %v4122, %v4121
    %v4153 = vpack.c.b16 %v4124, %v4123
    %v4154 = vpack.c.b16 %v4126, %v4125
    %v4155 = vpack.c.b16 %v4128, %v4127
    %v4156 = vpack.c.b16 %v4130, %v4129
    %v4157 = vpack.c.b16 %v4132, %v4131
    %v4158 = vpack.c.b16 %v4134, %v4133
    %4183 = vmatprep.subr.bf16.mxu0 0
    %4184 = vmatpush1.bf16.msra.mxu0 %v4142
    %4185 = vmatprep.subr.bf16.mxu0 0
    %4186 = vmatpush1.bf16.msra.mxu0 %v4141
    %4187 = vmatprep.subr.bf16.mxu0 0
    %4188 = vmatpush1.bf16.msra.mxu0 %v4140
    %4189 = vmatprep.subr.bf16.mxu0 0
    %4190 = vmatpush1.bf16.msra.mxu0 %v4139
    %4191 = vmatprep.subr.bf16.mxu0 0
    %4192 = vmatpush1.bf16.msra.mxu0 %v4138
    %4193 = vmatprep.subr.bf16.mxu0 0
    %4194 = vmatpush1.bf16.msra.mxu0 %v4137
    %4195 = vmatprep.subr.bf16.mxu0 0
    %4196 = vmatpush1.bf16.msra.mxu0 %v4136
    %4197 = vmatprep.subr.bf16.mxu0 0
    %4198 = vmatpush1.bf16.msra.mxu0 %v4135
    %4199 = vmatprep.subr.bf16.mxu0 0
    %4200 = vmatpush2.bf16.msra.mxu0 %v4150
    %4201 = vmatprep.subr.bf16.mxu0 0
    %4202 = vmatpush2.bf16.msra.mxu0 %v4149
    %4203 = vmatprep.subr.bf16.mxu0 0
    %4204 = vmatpush2.bf16.msra.mxu0 %v4148
    %4205 = vmatprep.subr.bf16.mxu0 0
    %4206 = vmatpush2.bf16.msra.mxu0 %v4147
    %4207 = vmatprep.subr.bf16.mxu0 0
    %4208 = vmatpush2.bf16.msra.mxu0 %v4146
    %4209 = vmatprep.subr.bf16.mxu0 0
    %4210 = vmatpush2.bf16.msra.mxu0 %v4145
    %4211 = vmatprep.subr.bf16.mxu0 0
    %4212 = vmatpush2.bf16.msra.mxu0 %v4144
    %4213 = vmatprep.subr.bf16.mxu0 0
    %4214 = vmatpush2.bf16.msra.mxu0 %v4143
    %4215 = vmatprep.mubr.bf16.mxu0 %v3964
    %4216 = vmatmul.mubr.bf16.gmra.mxu0 %v3944
    %v4217 = vpop.f32.mrf.mxu0
    %v4218 = vadd.f32 0.0, %v4217
    %v4219 = vpop.f32.mrf.mxu0
    %v4220 = vpop.f32.mrf.mxu0
    %v4221 = vadd.f32 0.0, %v4220
    %v4222 = vpop.f32.mrf.mxu0
    %4223 = vmatprep.mubr.bf16.mxu0 %v3972
    %4224 = vmatmul.mubr.bf16.gmra.mxu0 %v3945
    %v4225 = vpop.f32.mrf.mxu0
    %v4226 = vadd.f32 0.0, %v4225
    %v4227 = vpop.f32.mrf.mxu0
    %v4228 = vpop.f32.mrf.mxu0
    %v4229 = vadd.f32 0.0, %v4228
    %v4230 = vpop.f32.mrf.mxu0
    %4231 = vmatprep.mubr.bf16.mxu0 %v3975
    %4232 = vmatmul.mubr.bf16.gmra.mxu0 %v3946
    %v4233 = vpop.f32.mrf.mxu0
    %v4234 = vadd.f32 0.0, %v4233
    %v4235 = vpop.f32.mrf.mxu0
    %v4236 = vpop.f32.mrf.mxu0
    %v4237 = vpop.f32.mrf.mxu0
    %4238 = vdwg.mxu0
    %4239 = vmatprep.subr.bf16.mxu0 0
    %4240 = vmatpush1.bf16.msra.mxu0 %v4158
    %4241 = vmatprep.subr.bf16.mxu0 0
    %4242 = vmatpush1.bf16.msra.mxu0 %v4157
    %4243 = vmatprep.subr.bf16.mxu0 0
    %4244 = vmatpush1.bf16.msra.mxu0 %v4156
    %4245 = vmatprep.subr.bf16.mxu0 0
    %4246 = vmatpush1.bf16.msra.mxu0 %v4155
    %4247 = vmatprep.subr.bf16.mxu0 0
    %4248 = vmatpush1.bf16.msra.mxu0 %v4154
    %4249 = vmatprep.subr.bf16.mxu0 0
    %4250 = vmatpush1.bf16.msra.mxu0 %v4153
    %4251 = vmatprep.subr.bf16.mxu0 0
    %4252 = vmatpush1.bf16.msra.mxu0 %v4152
    %4253 = vmatprep.subr.bf16.mxu0 0
    %4254 = vmatpush1.bf16.msra.mxu0 %v4151
    %4255 = vmatprep.subr.bf16.mxu0 0
    %4256 = vmatpush2.bf16.msra.mxu0 0
    %4257 = vmatprep.subr.bf16.mxu0 0
    %4258 = vmatpush2.bf16.msra.mxu0 0
    %4259 = vmatprep.subr.bf16.mxu0 0
    %4260 = vmatpush2.bf16.msra.mxu0 0
    %4261 = vmatprep.subr.bf16.mxu0 0
    %4262 = vmatpush2.bf16.msra.mxu0 0
    %4263 = vmatprep.subr.bf16.mxu0 0
    %4264 = vmatpush2.bf16.msra.mxu0 0
    %4265 = vmatprep.subr.bf16.mxu0 0
    %4266 = vmatpush2.bf16.msra.mxu0 0
    %4267 = vmatprep.subr.bf16.mxu0 0
    %4268 = vmatpush2.bf16.msra.mxu0 0
    %4269 = vmatprep.subr.bf16.mxu0 0
    %4270 = vmatpush2.bf16.msra.mxu0 0
    %4271 = vmatprep.mubr.bf16.mxu0 0
    %4272 = vmatmul.mubr.bf16.gmra.mxu0 %v3984
    %v4273 = vpop.f32.mrf.mxu0
    %v4274 = vadd.f32 %v4218, %v4273
    %v4275 = vpop.f32.mrf.mxu0
    %v4276 = vpop.f32.mrf.mxu0
    %v4277 = vadd.f32 %v4221, %v4276
    %v4278 = vpop.f32.mrf.mxu0
    %4279 = vmatprep.mubr.bf16.mxu0 0
    %4280 = vmatmul.mubr.bf16.gmra.mxu0 %v3986
    %v4281 = vpop.f32.mrf.mxu0
    %v4282 = vadd.f32 %v4226, %v4281
    %v4283 = vpop.f32.mrf.mxu0
    %v4284 = vpop.f32.mrf.mxu0
    %v4285 = vadd.f32 %v4229, %v4284
    %v4286 = vpop.f32.mrf.mxu0
    %4287 = vmatprep.mubr.bf16.mxu0 0
    %4288 = vmatmul.mubr.bf16.gmra.mxu0 %v3985
    %v4289 = vpop.f32.mrf.mxu0
    %v4290 = vadd.f32 %v4234, %v4289
    %v4291 = vpop.f32.mrf.mxu0
    %v4292 = vpop.f32.mrf.mxu0
    %v4293 = vpop.f32.mrf.mxu0
    %4294 = vdwg.mxu0
    %v4295 = vmul.f32 %v4274, %v372
    %v4296 = vmul.f32 %v4277, %v373
    %v4297 = vmul.f32 %v4282, %v374
    %v4298 = vmul.f32 %v4285, %v375
    %v4299 = vmul.f32 %v4290, %v376
    %v4300 = vadd.f32 %v4295, %v4296
    %v4301 = vadd.f32 %v4300, %v4297
    %v4302 = vadd.f32 %v4301, %v4298
    %v4303 = vsel %vm754, %v4299, 0.0
    %v4304 = vadd.f32 %v4302, %v4303
    %v4305 = vrot.slane %v4304, 4
    %v4306 = vadd.f32 %v4304, %v4305
    %v4307 = vrot.slane %v4306, 2
    %v4308 = vadd.f32 %v4306, %v4307
    %v4309 = vrot.slane %v4308, 1
    %v4310 = vadd.f32 %v4308, %v4309
    %v4311 = vmul.f32 %v4295, %v4295
    %v4312 = vmul.f32 %v4296, %v4296
    %v4313 = vmul.f32 %v4297, %v4297
    %v4314 = vmul.f32 %v4298, %v4298
    %v4315 = vmul.f32 %v4299, %v4299
    %v4316 = vadd.f32 %v4311, %v4312
    %v4317 = vadd.f32 %v4316, %v4313
    %v4318 = vadd.f32 %v4317, %v4314
    %v4319 = vsel %vm754, %v4315, 0.0
    %v4320 = vadd.f32 %v4318, %v4319
    %v4321 = vrot.slane %v4320, 4
    %v4322 = vadd.f32 %v4320, %v4321
    %v4323 = vrot.slane %v4322, 2
    %v4324 = vadd.f32 %v4322, %v4323
    %v4325 = vrot.slane %v4324, 1
    %v4326 = vadd.f32 %v4324, %v4325
    %v4327 = vsel %vm779, %v4310, %v4326
    %v4328 = vld [vmem:[%s6] sm:$0xff]
    %v4329 = vld [vmem:[%s6 + $0x8] sm:$0xff]
    %v4330 = vld [vmem:[%s6 + $0x10] sm:$0xff]
    %v4331 = vld [vmem:[%s6 + $0x18] sm:$0xff]
    %v4332 = vld [vmem:[%s6 + $0x20] sm:$0xff]
    %v4333 = vld [vmem:[%s6 + $0x28] sm:$0xff]
    %v4334 = vld [vmem:[%s6 + $0x30] sm:$0xff]
    %v4335 = vld [vmem:[%s6 + $0x38] sm:$0xff]
    %v4336 = vld [vmem:[%s6 + $0x40] sm:$0xff]
    %v4337 = vld [vmem:[%s6 + $0x48] sm:$0xff]
    %v4338 = vld [vmem:[%s6 + $0x50] sm:$0xff]
    %v4339 = vld [vmem:[%s6 + $0x58] sm:$0xff]
    %v4340 = vld [vmem:[%s6 + $0x60] sm:$0xff]
    %v4341 = vld [vmem:[%s6 + $0x68] sm:$0xff]
    %v4342 = vld [vmem:[%s6 + $0x70] sm:$0xff]
    %v4343 = vld [vmem:[%s6 + $0x78] sm:$0xff]
    %4344 = vmatprep.subr.mxu0 0.0
    %v4345 = vand.u32 %v4343, 4294901760
    %4346 = vmatpush1.msra.mxu0 %v4345
    %4347 = vmatprep.subr.mxu0 0.0
    %v4348 = vand.u32 %v4342, 4294901760
    %4349 = vmatpush1.msra.mxu0 %v4348
    %4350 = vmatprep.subr.mxu0 0.0
    %v4351 = vand.u32 %v4341, 4294901760
    %4352 = vmatpush1.msra.mxu0 %v4351
    %4353 = vmatprep.subr.mxu0 0.0
    %v4354 = vand.u32 %v4340, 4294901760
    %4355 = vmatpush1.msra.mxu0 %v4354
    %4356 = vmatprep.subr.mxu0 0.0
    %v4357 = vand.u32 %v4339, 4294901760
    %4358 = vmatpush1.msra.mxu0 %v4357
    %4359 = vmatprep.subr.mxu0 0.0
    %v4360 = vand.u32 %v4338, 4294901760
    %4361 = vmatpush1.msra.mxu0 %v4360
    %4362 = vmatprep.subr.mxu0 0.0
    %v4363 = vand.u32 %v4337, 4294901760
    %4364 = vmatpush1.msra.mxu0 %v4363
    %4365 = vmatprep.subr.mxu0 0.0
    %v4366 = vand.u32 %v4336, 4294901760
    %4367 = vmatpush1.msra.mxu0 %v4366
    %4368 = vmatprep.subr.mxu0 0.0
    %v4369 = vand.u32 %v4335, 4294901760
    %4370 = vmatpush1.msra.mxu0 %v4369
    %4371 = vmatprep.subr.mxu0 0.0
    %v4372 = vand.u32 %v4334, 4294901760
    %4373 = vmatpush1.msra.mxu0 %v4372
    %4374 = vmatprep.subr.mxu0 0.0
    %v4375 = vand.u32 %v4333, 4294901760
    %4376 = vmatpush1.msra.mxu0 %v4375
    %4377 = vmatprep.subr.mxu0 0.0
    %v4378 = vand.u32 %v4332, 4294901760
    %4379 = vmatpush1.msra.mxu0 %v4378
    %4380 = vmatprep.subr.mxu0 0.0
    %v4381 = vand.u32 %v4331, 4294901760
    %4382 = vmatpush1.msra.mxu0 %v4381
    %4383 = vmatprep.subr.mxu0 0.0
    %v4384 = vand.u32 %v4330, 4294901760
    %4385 = vmatpush1.msra.mxu0 %v4384
    %4386 = vmatprep.subr.mxu0 0.0
    %v4387 = vand.u32 %v4329, 4294901760
    %4388 = vmatpush1.msra.mxu0 %v4387
    %4389 = vmatprep.subr.mxu0 0.0
    %v4390 = vand.u32 %v4328, 4294901760
    %4391 = vmatpush1.msra.mxu0 %v4390
    %4392 = vmatprep.subr.mxu0 0.0
    %4393 = vmatpush2.msra.mxu0 0.0
    %4394 = vmatprep.subr.mxu0 0.0
    %4395 = vmatpush2.msra.mxu0 0.0
    %4396 = vmatprep.subr.mxu0 0.0
    %4397 = vmatpush2.msra.mxu0 0.0
    %4398 = vmatprep.subr.mxu0 0.0
    %4399 = vmatpush2.msra.mxu0 0.0
    %4400 = vmatprep.subr.mxu0 0.0
    %4401 = vmatpush2.msra.mxu0 0.0
    %4402 = vmatprep.subr.mxu0 0.0
    %4403 = vmatpush2.msra.mxu0 0.0
    %4404 = vmatprep.subr.mxu0 0.0
    %4405 = vmatpush2.msra.mxu0 0.0
    %4406 = vmatprep.subr.mxu0 0.0
    %4407 = vmatpush2.msra.mxu0 0.0
    %4408 = vmatprep.subr.mxu0 0.0
    %4409 = vmatpush2.msra.mxu0 0.0
    %4410 = vmatprep.subr.mxu0 0.0
    %4411 = vmatpush2.msra.mxu0 0.0
    %4412 = vmatprep.subr.mxu0 0.0
    %4413 = vmatpush2.msra.mxu0 0.0
    %4414 = vmatprep.subr.mxu0 0.0
    %4415 = vmatpush2.msra.mxu0 0.0
    %4416 = vmatprep.subr.mxu0 0.0
    %4417 = vmatpush2.msra.mxu0 0.0
    %4418 = vmatprep.subr.mxu0 0.0
    %4419 = vmatpush2.msra.mxu0 0.0
    %4420 = vmatprep.subr.mxu0 0.0
    %4421 = vmatpush2.msra.mxu0 0.0
    %4422 = vmatprep.subr.mxu0 0.0
    %4423 = vmatpush2.msra.mxu0 0.0
    %4424 = vmatprep.mubr.f32.mxu0 0.0
    %v4425 = vand.u32 %v4327, 4294901760
    %v4426 = vsub.f32 %v4327, %v4425
    %v4427 = vand.u32 %v4426, 4294901760
    %v4428 = vsub.f32 %v4426, %v4427
    %v4429 = vand.u32 %v4428, 4294901760
    %4430 = vmatmul.mubr.f32.gmra.mxu0 %v4429
    %v4431 = vpop.f32.mrf.mxu0
    %v4432 = vadd.f32 0.0, %v4431
    %v4433 = vpop.f32.mrf.mxu0
    %4434 = vdwg.mxu0
    %4435 = vmatprep.subr.mxu0 0.0
    %v4436 = vand.u32 %v4343, 4294901760
    %v4437 = vsub.f32 %v4343, %v4436
    %v4438 = vand.u32 %v4437, 4294901760
    %v4439 = vsub.f32 %v4437, %v4438
    %v4440 = vand.u32 %v4439, 4294901760
    %4441 = vmatpush1.msra.mxu0 %v4440
    %4442 = vmatprep.subr.mxu0 0.0
    %v4443 = vand.u32 %v4342, 4294901760
    %v4444 = vsub.f32 %v4342, %v4443
    %v4445 = vand.u32 %v4444, 4294901760
    %v4446 = vsub.f32 %v4444, %v4445
    %v4447 = vand.u32 %v4446, 4294901760
    %4448 = vmatpush1.msra.mxu0 %v4447
    %4449 = vmatprep.subr.mxu0 0.0
    %v4450 = vand.u32 %v4341, 4294901760
    %v4451 = vsub.f32 %v4341, %v4450
    %v4452 = vand.u32 %v4451, 4294901760
    %v4453 = vsub.f32 %v4451, %v4452
    %v4454 = vand.u32 %v4453, 4294901760
    %4455 = vmatpush1.msra.mxu0 %v4454
    %4456 = vmatprep.subr.mxu0 0.0
    %v4457 = vand.u32 %v4340, 4294901760
    %v4458 = vsub.f32 %v4340, %v4457
    %v4459 = vand.u32 %v4458, 4294901760
    %v4460 = vsub.f32 %v4458, %v4459
    %v4461 = vand.u32 %v4460, 4294901760
    %4462 = vmatpush1.msra.mxu0 %v4461
    %4463 = vmatprep.subr.mxu0 0.0
    %v4464 = vand.u32 %v4339, 4294901760
    %v4465 = vsub.f32 %v4339, %v4464
    %v4466 = vand.u32 %v4465, 4294901760
    %v4467 = vsub.f32 %v4465, %v4466
    %v4468 = vand.u32 %v4467, 4294901760
    %4469 = vmatpush1.msra.mxu0 %v4468
    %4470 = vmatprep.subr.mxu0 0.0
    %v4471 = vand.u32 %v4338, 4294901760
    %v4472 = vsub.f32 %v4338, %v4471
    %v4473 = vand.u32 %v4472, 4294901760
    %v4474 = vsub.f32 %v4472, %v4473
    %v4475 = vand.u32 %v4474, 4294901760
    %4476 = vmatpush1.msra.mxu0 %v4475
    %4477 = vmatprep.subr.mxu0 0.0
    %v4478 = vand.u32 %v4337, 4294901760
    %v4479 = vsub.f32 %v4337, %v4478
    %v4480 = vand.u32 %v4479, 4294901760
    %v4481 = vsub.f32 %v4479, %v4480
    %v4482 = vand.u32 %v4481, 4294901760
    %4483 = vmatpush1.msra.mxu0 %v4482
    %4484 = vmatprep.subr.mxu0 0.0
    %v4485 = vand.u32 %v4336, 4294901760
    %v4486 = vsub.f32 %v4336, %v4485
    %v4487 = vand.u32 %v4486, 4294901760
    %v4488 = vsub.f32 %v4486, %v4487
    %v4489 = vand.u32 %v4488, 4294901760
    %4490 = vmatpush1.msra.mxu0 %v4489
    %4491 = vmatprep.subr.mxu0 0.0
    %v4492 = vand.u32 %v4335, 4294901760
    %v4493 = vsub.f32 %v4335, %v4492
    %v4494 = vand.u32 %v4493, 4294901760
    %v4495 = vsub.f32 %v4493, %v4494
    %v4496 = vand.u32 %v4495, 4294901760
    %4497 = vmatpush1.msra.mxu0 %v4496
    %4498 = vmatprep.subr.mxu0 0.0
    %v4499 = vand.u32 %v4334, 4294901760
    %v4500 = vsub.f32 %v4334, %v4499
    %v4501 = vand.u32 %v4500, 4294901760
    %v4502 = vsub.f32 %v4500, %v4501
    %v4503 = vand.u32 %v4502, 4294901760
    %4504 = vmatpush1.msra.mxu0 %v4503
    %4505 = vmatprep.subr.mxu0 0.0
    %v4506 = vand.u32 %v4333, 4294901760
    %v4507 = vsub.f32 %v4333, %v4506
    %v4508 = vand.u32 %v4507, 4294901760
    %v4509 = vsub.f32 %v4507, %v4508
    %v4510 = vand.u32 %v4509, 4294901760
    %4511 = vmatpush1.msra.mxu0 %v4510
    %4512 = vmatprep.subr.mxu0 0.0
    %v4513 = vand.u32 %v4332, 4294901760
    %v4514 = vsub.f32 %v4332, %v4513
    %v4515 = vand.u32 %v4514, 4294901760
    %v4516 = vsub.f32 %v4514, %v4515
    %v4517 = vand.u32 %v4516, 4294901760
    %4518 = vmatpush1.msra.mxu0 %v4517
    %4519 = vmatprep.subr.mxu0 0.0
    %v4520 = vand.u32 %v4331, 4294901760
    %v4521 = vsub.f32 %v4331, %v4520
    %v4522 = vand.u32 %v4521, 4294901760
    %v4523 = vsub.f32 %v4521, %v4522
    %v4524 = vand.u32 %v4523, 4294901760
    %4525 = vmatpush1.msra.mxu0 %v4524
    %4526 = vmatprep.subr.mxu0 0.0
    %v4527 = vand.u32 %v4330, 4294901760
    %v4528 = vsub.f32 %v4330, %v4527
    %v4529 = vand.u32 %v4528, 4294901760
    %v4530 = vsub.f32 %v4528, %v4529
    %v4531 = vand.u32 %v4530, 4294901760
    %4532 = vmatpush1.msra.mxu0 %v4531
    %4533 = vmatprep.subr.mxu0 0.0
    %v4534 = vand.u32 %v4329, 4294901760
    %v4535 = vsub.f32 %v4329, %v4534
    %v4536 = vand.u32 %v4535, 4294901760
    %v4537 = vsub.f32 %v4535, %v4536
    %v4538 = vand.u32 %v4537, 4294901760
    %4539 = vmatpush1.msra.mxu0 %v4538
    %4540 = vmatprep.subr.mxu0 0.0
    %v4541 = vand.u32 %v4328, 4294901760
    %v4542 = vsub.f32 %v4328, %v4541
    %v4543 = vand.u32 %v4542, 4294901760
    %v4544 = vsub.f32 %v4542, %v4543
    %v4545 = vand.u32 %v4544, 4294901760
    %4546 = vmatpush1.msra.mxu0 %v4545
    %4547 = vmatprep.subr.mxu0 0.0
    %4548 = vmatpush2.msra.mxu0 0.0
    %4549 = vmatprep.subr.mxu0 0.0
    %4550 = vmatpush2.msra.mxu0 0.0
    %4551 = vmatprep.subr.mxu0 0.0
    %4552 = vmatpush2.msra.mxu0 0.0
    %4553 = vmatprep.subr.mxu0 0.0
    %4554 = vmatpush2.msra.mxu0 0.0
    %4555 = vmatprep.subr.mxu0 0.0
    %4556 = vmatpush2.msra.mxu0 0.0
    %4557 = vmatprep.subr.mxu0 0.0
    %4558 = vmatpush2.msra.mxu0 0.0
    %4559 = vmatprep.subr.mxu0 0.0
    %4560 = vmatpush2.msra.mxu0 0.0
    %4561 = vmatprep.subr.mxu0 0.0
    %4562 = vmatpush2.msra.mxu0 0.0
    %4563 = vmatprep.subr.mxu0 0.0
    %4564 = vmatpush2.msra.mxu0 0.0
    %4565 = vmatprep.subr.mxu0 0.0
    %4566 = vmatpush2.msra.mxu0 0.0
    %4567 = vmatprep.subr.mxu0 0.0
    %4568 = vmatpush2.msra.mxu0 0.0
    %4569 = vmatprep.subr.mxu0 0.0
    %4570 = vmatpush2.msra.mxu0 0.0
    %4571 = vmatprep.subr.mxu0 0.0
    %4572 = vmatpush2.msra.mxu0 0.0
    %4573 = vmatprep.subr.mxu0 0.0
    %4574 = vmatpush2.msra.mxu0 0.0
    %4575 = vmatprep.subr.mxu0 0.0
    %4576 = vmatpush2.msra.mxu0 0.0
    %4577 = vmatprep.subr.mxu0 0.0
    %4578 = vmatpush2.msra.mxu0 0.0
    %4579 = vmatprep.mubr.f32.mxu0 0.0
    %v4580 = vand.u32 %v4327, 4294901760
    %4581 = vmatmul.mubr.f32.gmra.mxu0 %v4580
    %v4582 = vpop.f32.mrf.mxu0
    %v4583 = vadd.f32 %v4432, %v4582
    %v4584 = vpop.f32.mrf.mxu0
    %4585 = vdwg.mxu0
    %4586 = vmatprep.subr.mxu0 0.0
    %v4587 = vand.u32 %v4343, 4294901760
    %v4588 = vsub.f32 %v4343, %v4587
    %4589 = vmatpush1.msra.mxu0 %v4588
    %4590 = vmatprep.subr.mxu0 0.0
    %v4591 = vand.u32 %v4342, 4294901760
    %v4592 = vsub.f32 %v4342, %v4591
    %4593 = vmatpush1.msra.mxu0 %v4592
    %4594 = vmatprep.subr.mxu0 0.0
    %v4595 = vand.u32 %v4341, 4294901760
    %v4596 = vsub.f32 %v4341, %v4595
    %4597 = vmatpush1.msra.mxu0 %v4596
    %4598 = vmatprep.subr.mxu0 0.0
    %v4599 = vand.u32 %v4340, 4294901760
    %v4600 = vsub.f32 %v4340, %v4599
    %4601 = vmatpush1.msra.mxu0 %v4600
    %4602 = vmatprep.subr.mxu0 0.0
    %v4603 = vand.u32 %v4339, 4294901760
    %v4604 = vsub.f32 %v4339, %v4603
    %4605 = vmatpush1.msra.mxu0 %v4604
    %4606 = vmatprep.subr.mxu0 0.0
    %v4607 = vand.u32 %v4338, 4294901760
    %v4608 = vsub.f32 %v4338, %v4607
    %4609 = vmatpush1.msra.mxu0 %v4608
    %4610 = vmatprep.subr.mxu0 0.0
    %v4611 = vand.u32 %v4337, 4294901760
    %v4612 = vsub.f32 %v4337, %v4611
    %4613 = vmatpush1.msra.mxu0 %v4612
    %4614 = vmatprep.subr.mxu0 0.0
    %v4615 = vand.u32 %v4336, 4294901760
    %v4616 = vsub.f32 %v4336, %v4615
    %4617 = vmatpush1.msra.mxu0 %v4616
    %4618 = vmatprep.subr.mxu0 0.0
    %v4619 = vand.u32 %v4335, 4294901760
    %v4620 = vsub.f32 %v4335, %v4619
    %4621 = vmatpush1.msra.mxu0 %v4620
    %4622 = vmatprep.subr.mxu0 0.0
    %v4623 = vand.u32 %v4334, 4294901760
    %v4624 = vsub.f32 %v4334, %v4623
    %4625 = vmatpush1.msra.mxu0 %v4624
    %4626 = vmatprep.subr.mxu0 0.0
    %v4627 = vand.u32 %v4333, 4294901760
    %v4628 = vsub.f32 %v4333, %v4627
    %4629 = vmatpush1.msra.mxu0 %v4628
    %4630 = vmatprep.subr.mxu0 0.0
    %v4631 = vand.u32 %v4332, 4294901760
    %v4632 = vsub.f32 %v4332, %v4631
    %4633 = vmatpush1.msra.mxu0 %v4632
    %4634 = vmatprep.subr.mxu0 0.0
    %v4635 = vand.u32 %v4331, 4294901760
    %v4636 = vsub.f32 %v4331, %v4635
    %4637 = vmatpush1.msra.mxu0 %v4636
    %4638 = vmatprep.subr.mxu0 0.0
    %v4639 = vand.u32 %v4330, 4294901760
    %v4640 = vsub.f32 %v4330, %v4639
    %4641 = vmatpush1.msra.mxu0 %v4640
    %4642 = vmatprep.subr.mxu0 0.0
    %v4643 = vand.u32 %v4329, 4294901760
    %v4644 = vsub.f32 %v4329, %v4643
    %4645 = vmatpush1.msra.mxu0 %v4644
    %4646 = vmatprep.subr.mxu0 0.0
    %v4647 = vand.u32 %v4328, 4294901760
    %v4648 = vsub.f32 %v4328, %v4647
    %4649 = vmatpush1.msra.mxu0 %v4648
    %4650 = vmatprep.subr.mxu0 0.0
    %4651 = vmatpush2.msra.mxu0 0.0
    %4652 = vmatprep.subr.mxu0 0.0
    %4653 = vmatpush2.msra.mxu0 0.0
    %4654 = vmatprep.subr.mxu0 0.0
    %4655 = vmatpush2.msra.mxu0 0.0
    %4656 = vmatprep.subr.mxu0 0.0
    %4657 = vmatpush2.msra.mxu0 0.0
    %4658 = vmatprep.subr.mxu0 0.0
    %4659 = vmatpush2.msra.mxu0 0.0
    %4660 = vmatprep.subr.mxu0 0.0
    %4661 = vmatpush2.msra.mxu0 0.0
    %4662 = vmatprep.subr.mxu0 0.0
    %4663 = vmatpush2.msra.mxu0 0.0
    %4664 = vmatprep.subr.mxu0 0.0
    %4665 = vmatpush2.msra.mxu0 0.0
    %4666 = vmatprep.subr.mxu0 0.0
    %4667 = vmatpush2.msra.mxu0 0.0
    %4668 = vmatprep.subr.mxu0 0.0
    %4669 = vmatpush2.msra.mxu0 0.0
    %4670 = vmatprep.subr.mxu0 0.0
    %4671 = vmatpush2.msra.mxu0 0.0
    %4672 = vmatprep.subr.mxu0 0.0
    %4673 = vmatpush2.msra.mxu0 0.0
    %4674 = vmatprep.subr.mxu0 0.0
    %4675 = vmatpush2.msra.mxu0 0.0
    %4676 = vmatprep.subr.mxu0 0.0
    %4677 = vmatpush2.msra.mxu0 0.0
    %4678 = vmatprep.subr.mxu0 0.0
    %4679 = vmatpush2.msra.mxu0 0.0
    %4680 = vmatprep.subr.mxu0 0.0
    %4681 = vmatpush2.msra.mxu0 0.0
    %4682 = vmatprep.mubr.f32.mxu0 0.0
    %v4683 = vand.u32 %v4327, 4294901760
    %v4684 = vsub.f32 %v4327, %v4683
    %4685 = vmatmul.mubr.f32.gmra.mxu0 %v4684
    %v4686 = vpop.f32.mrf.mxu0
    %v4687 = vadd.f32 %v4583, %v4686
    %v4688 = vpop.f32.mrf.mxu0
    %4689 = vdwg.mxu0
    %4690 = vmatprep.subr.mxu0 0.0
    %v4691 = vand.u32 %v4343, 4294901760
    %4692 = vmatpush1.msra.mxu0 %v4691
    %4693 = vmatprep.subr.mxu0 0.0
    %v4694 = vand.u32 %v4342, 4294901760
    %4695 = vmatpush1.msra.mxu0 %v4694
    %4696 = vmatprep.subr.mxu0 0.0
    %v4697 = vand.u32 %v4341, 4294901760
    %4698 = vmatpush1.msra.mxu0 %v4697
    %4699 = vmatprep.subr.mxu0 0.0
    %v4700 = vand.u32 %v4340, 4294901760
    %4701 = vmatpush1.msra.mxu0 %v4700
    %4702 = vmatprep.subr.mxu0 0.0
    %v4703 = vand.u32 %v4339, 4294901760
    %4704 = vmatpush1.msra.mxu0 %v4703
    %4705 = vmatprep.subr.mxu0 0.0
    %v4706 = vand.u32 %v4338, 4294901760
    %4707 = vmatpush1.msra.mxu0 %v4706
    %4708 = vmatprep.subr.mxu0 0.0
    %v4709 = vand.u32 %v4337, 4294901760
    %4710 = vmatpush1.msra.mxu0 %v4709
    %4711 = vmatprep.subr.mxu0 0.0
    %v4712 = vand.u32 %v4336, 4294901760
    %4713 = vmatpush1.msra.mxu0 %v4712
    %4714 = vmatprep.subr.mxu0 0.0
    %v4715 = vand.u32 %v4335, 4294901760
    %4716 = vmatpush1.msra.mxu0 %v4715
    %4717 = vmatprep.subr.mxu0 0.0
    %v4718 = vand.u32 %v4334, 4294901760
    %4719 = vmatpush1.msra.mxu0 %v4718
    %4720 = vmatprep.subr.mxu0 0.0
    %v4721 = vand.u32 %v4333, 4294901760
    %4722 = vmatpush1.msra.mxu0 %v4721
    %4723 = vmatprep.subr.mxu0 0.0
    %v4724 = vand.u32 %v4332, 4294901760
    %4725 = vmatpush1.msra.mxu0 %v4724
    %4726 = vmatprep.subr.mxu0 0.0
    %v4727 = vand.u32 %v4331, 4294901760
    %4728 = vmatpush1.msra.mxu0 %v4727
    %4729 = vmatprep.subr.mxu0 0.0
    %v4730 = vand.u32 %v4330, 4294901760
    %4731 = vmatpush1.msra.mxu0 %v4730
    %4732 = vmatprep.subr.mxu0 0.0
    %v4733 = vand.u32 %v4329, 4294901760
    %4734 = vmatpush1.msra.mxu0 %v4733
    %4735 = vmatprep.subr.mxu0 0.0
    %v4736 = vand.u32 %v4328, 4294901760
    %4737 = vmatpush1.msra.mxu0 %v4736
    %4738 = vmatprep.subr.mxu0 0.0
    %4739 = vmatpush2.msra.mxu0 0.0
    %4740 = vmatprep.subr.mxu0 0.0
    %4741 = vmatpush2.msra.mxu0 0.0
    %4742 = vmatprep.subr.mxu0 0.0
    %4743 = vmatpush2.msra.mxu0 0.0
    %4744 = vmatprep.subr.mxu0 0.0
    %4745 = vmatpush2.msra.mxu0 0.0
    %4746 = vmatprep.subr.mxu0 0.0
    %4747 = vmatpush2.msra.mxu0 0.0
    %4748 = vmatprep.subr.mxu0 0.0
    %4749 = vmatpush2.msra.mxu0 0.0
    %4750 = vmatprep.subr.mxu0 0.0
    %4751 = vmatpush2.msra.mxu0 0.0
    %4752 = vmatprep.subr.mxu0 0.0
    %4753 = vmatpush2.msra.mxu0 0.0
    %4754 = vmatprep.subr.mxu0 0.0
    %4755 = vmatpush2.msra.mxu0 0.0
    %4756 = vmatprep.subr.mxu0 0.0
    %4757 = vmatpush2.msra.mxu0 0.0
    %4758 = vmatprep.subr.mxu0 0.0
    %4759 = vmatpush2.msra.mxu0 0.0
    %4760 = vmatprep.subr.mxu0 0.0
    %4761 = vmatpush2.msra.mxu0 0.0
    %4762 = vmatprep.subr.mxu0 0.0
    %4763 = vmatpush2.msra.mxu0 0.0
    %4764 = vmatprep.subr.mxu0 0.0
    %4765 = vmatpush2.msra.mxu0 0.0
    %4766 = vmatprep.subr.mxu0 0.0
    %4767 = vmatpush2.msra.mxu0 0.0
    %4768 = vmatprep.subr.mxu0 0.0
    %4769 = vmatpush2.msra.mxu0 0.0
    %4770 = vmatprep.mubr.f32.mxu0 0.0
    %v4771 = vand.u32 %v4327, 4294901760
    %v4772 = vsub.f32 %v4327, %v4771
    %v4773 = vand.u32 %v4772, 4294901760
    %4774 = vmatmul.mubr.f32.gmra.mxu0 %v4773
    %v4775 = vpop.f32.mrf.mxu0
    %v4776 = vadd.f32 %v4687, %v4775
    %v4777 = vpop.f32.mrf.mxu0
    %4778 = vdwg.mxu0
    %4779 = vmatprep.subr.mxu0 0.0
    %v4780 = vand.u32 %v4343, 4294901760
    %v4781 = vsub.f32 %v4343, %v4780
    %v4782 = vand.u32 %v4781, 4294901760
    %4783 = vmatpush1.msra.mxu0 %v4782
    %4784 = vmatprep.subr.mxu0 0.0
    %v4785 = vand.u32 %v4342, 4294901760
    %v4786 = vsub.f32 %v4342, %v4785
    %v4787 = vand.u32 %v4786, 4294901760
    %4788 = vmatpush1.msra.mxu0 %v4787
    %4789 = vmatprep.subr.mxu0 0.0
    %v4790 = vand.u32 %v4341, 4294901760
    %v4791 = vsub.f32 %v4341, %v4790
    %v4792 = vand.u32 %v4791, 4294901760
    %4793 = vmatpush1.msra.mxu0 %v4792
    %4794 = vmatprep.subr.mxu0 0.0
    %v4795 = vand.u32 %v4340, 4294901760
    %v4796 = vsub.f32 %v4340, %v4795
    %v4797 = vand.u32 %v4796, 4294901760
    %4798 = vmatpush1.msra.mxu0 %v4797
    %4799 = vmatprep.subr.mxu0 0.0
    %v4800 = vand.u32 %v4339, 4294901760
    %v4801 = vsub.f32 %v4339, %v4800
    %v4802 = vand.u32 %v4801, 4294901760
    %4803 = vmatpush1.msra.mxu0 %v4802
    %4804 = vmatprep.subr.mxu0 0.0
    %v4805 = vand.u32 %v4338, 4294901760
    %v4806 = vsub.f32 %v4338, %v4805
    %v4807 = vand.u32 %v4806, 4294901760
    %4808 = vmatpush1.msra.mxu0 %v4807
    %4809 = vmatprep.subr.mxu0 0.0
    %v4810 = vand.u32 %v4337, 4294901760
    %v4811 = vsub.f32 %v4337, %v4810
    %v4812 = vand.u32 %v4811, 4294901760
    %4813 = vmatpush1.msra.mxu0 %v4812
    %4814 = vmatprep.subr.mxu0 0.0
    %v4815 = vand.u32 %v4336, 4294901760
    %v4816 = vsub.f32 %v4336, %v4815
    %v4817 = vand.u32 %v4816, 4294901760
    %4818 = vmatpush1.msra.mxu0 %v4817
    %4819 = vmatprep.subr.mxu0 0.0
    %v4820 = vand.u32 %v4335, 4294901760
    %v4821 = vsub.f32 %v4335, %v4820
    %v4822 = vand.u32 %v4821, 4294901760
    %4823 = vmatpush1.msra.mxu0 %v4822
    %4824 = vmatprep.subr.mxu0 0.0
    %v4825 = vand.u32 %v4334, 4294901760
    %v4826 = vsub.f32 %v4334, %v4825
    %v4827 = vand.u32 %v4826, 4294901760
    %4828 = vmatpush1.msra.mxu0 %v4827
    %4829 = vmatprep.subr.mxu0 0.0
    %v4830 = vand.u32 %v4333, 4294901760
    %v4831 = vsub.f32 %v4333, %v4830
    %v4832 = vand.u32 %v4831, 4294901760
    %4833 = vmatpush1.msra.mxu0 %v4832
    %4834 = vmatprep.subr.mxu0 0.0
    %v4835 = vand.u32 %v4332, 4294901760
    %v4836 = vsub.f32 %v4332, %v4835
    %v4837 = vand.u32 %v4836, 4294901760
    %4838 = vmatpush1.msra.mxu0 %v4837
    %4839 = vmatprep.subr.mxu0 0.0
    %v4840 = vand.u32 %v4331, 4294901760
    %v4841 = vsub.f32 %v4331, %v4840
    %v4842 = vand.u32 %v4841, 4294901760
    %4843 = vmatpush1.msra.mxu0 %v4842
    %4844 = vmatprep.subr.mxu0 0.0
    %v4845 = vand.u32 %v4330, 4294901760
    %v4846 = vsub.f32 %v4330, %v4845
    %v4847 = vand.u32 %v4846, 4294901760
    %4848 = vmatpush1.msra.mxu0 %v4847
    %4849 = vmatprep.subr.mxu0 0.0
    %v4850 = vand.u32 %v4329, 4294901760
    %v4851 = vsub.f32 %v4329, %v4850
    %v4852 = vand.u32 %v4851, 4294901760
    %4853 = vmatpush1.msra.mxu0 %v4852
    %4854 = vmatprep.subr.mxu0 0.0
    %v4855 = vand.u32 %v4328, 4294901760
    %v4856 = vsub.f32 %v4328, %v4855
    %v4857 = vand.u32 %v4856, 4294901760
    %4858 = vmatpush1.msra.mxu0 %v4857
    %4859 = vmatprep.subr.mxu0 0.0
    %4860 = vmatpush2.msra.mxu0 0.0
    %4861 = vmatprep.subr.mxu0 0.0
    %4862 = vmatpush2.msra.mxu0 0.0
    %4863 = vmatprep.subr.mxu0 0.0
    %4864 = vmatpush2.msra.mxu0 0.0
    %4865 = vmatprep.subr.mxu0 0.0
    %4866 = vmatpush2.msra.mxu0 0.0
    %4867 = vmatprep.subr.mxu0 0.0
    %4868 = vmatpush2.msra.mxu0 0.0
    %4869 = vmatprep.subr.mxu0 0.0
    %4870 = vmatpush2.msra.mxu0 0.0
    %4871 = vmatprep.subr.mxu0 0.0
    %4872 = vmatpush2.msra.mxu0 0.0
    %4873 = vmatprep.subr.mxu0 0.0
    %4874 = vmatpush2.msra.mxu0 0.0
    %4875 = vmatprep.subr.mxu0 0.0
    %4876 = vmatpush2.msra.mxu0 0.0
    %4877 = vmatprep.subr.mxu0 0.0
    %4878 = vmatpush2.msra.mxu0 0.0
    %4879 = vmatprep.subr.mxu0 0.0
    %4880 = vmatpush2.msra.mxu0 0.0
    %4881 = vmatprep.subr.mxu0 0.0
    %4882 = vmatpush2.msra.mxu0 0.0
    %4883 = vmatprep.subr.mxu0 0.0
    %4884 = vmatpush2.msra.mxu0 0.0
    %4885 = vmatprep.subr.mxu0 0.0
    %4886 = vmatpush2.msra.mxu0 0.0
    %4887 = vmatprep.subr.mxu0 0.0
    %4888 = vmatpush2.msra.mxu0 0.0
    %4889 = vmatprep.subr.mxu0 0.0
    %4890 = vmatpush2.msra.mxu0 0.0
    %4891 = vmatprep.mubr.f32.mxu0 0.0
    %v4892 = vand.u32 %v4327, 4294901760
    %4893 = vmatmul.mubr.f32.gmra.mxu0 %v4892
    %v4894 = vpop.f32.mrf.mxu0
    %v4895 = vadd.f32 %v4776, %v4894
    %v4896 = vpop.f32.mrf.mxu0
    %4897 = vdwg.mxu0
    %4898 = vmatprep.subr.mxu0 0.0
    %v4899 = vand.u32 %v4343, 4294901760
    %4900 = vmatpush1.msra.mxu0 %v4899
    %4901 = vmatprep.subr.mxu0 0.0
    %v4902 = vand.u32 %v4342, 4294901760
    %4903 = vmatpush1.msra.mxu0 %v4902
    %4904 = vmatprep.subr.mxu0 0.0
    %v4905 = vand.u32 %v4341, 4294901760
    %4906 = vmatpush1.msra.mxu0 %v4905
    %4907 = vmatprep.subr.mxu0 0.0
    %v4908 = vand.u32 %v4340, 4294901760
    %4909 = vmatpush1.msra.mxu0 %v4908
    %4910 = vmatprep.subr.mxu0 0.0
    %v4911 = vand.u32 %v4339, 4294901760
    %4912 = vmatpush1.msra.mxu0 %v4911
    %4913 = vmatprep.subr.mxu0 0.0
    %v4914 = vand.u32 %v4338, 4294901760
    %4915 = vmatpush1.msra.mxu0 %v4914
    %4916 = vmatprep.subr.mxu0 0.0
    %v4917 = vand.u32 %v4337, 4294901760
    %4918 = vmatpush1.msra.mxu0 %v4917
    %4919 = vmatprep.subr.mxu0 0.0
    %v4920 = vand.u32 %v4336, 4294901760
    %4921 = vmatpush1.msra.mxu0 %v4920
    %4922 = vmatprep.subr.mxu0 0.0
    %v4923 = vand.u32 %v4335, 4294901760
    %4924 = vmatpush1.msra.mxu0 %v4923
    %4925 = vmatprep.subr.mxu0 0.0
    %v4926 = vand.u32 %v4334, 4294901760
    %4927 = vmatpush1.msra.mxu0 %v4926
    %4928 = vmatprep.subr.mxu0 0.0
    %v4929 = vand.u32 %v4333, 4294901760
    %4930 = vmatpush1.msra.mxu0 %v4929
    %4931 = vmatprep.subr.mxu0 0.0
    %v4932 = vand.u32 %v4332, 4294901760
    %4933 = vmatpush1.msra.mxu0 %v4932
    %4934 = vmatprep.subr.mxu0 0.0
    %v4935 = vand.u32 %v4331, 4294901760
    %4936 = vmatpush1.msra.mxu0 %v4935
    %4937 = vmatprep.subr.mxu0 0.0
    %v4938 = vand.u32 %v4330, 4294901760
    %4939 = vmatpush1.msra.mxu0 %v4938
    %4940 = vmatprep.subr.mxu0 0.0
    %v4941 = vand.u32 %v4329, 4294901760
    %4942 = vmatpush1.msra.mxu0 %v4941
    %4943 = vmatprep.subr.mxu0 0.0
    %v4944 = vand.u32 %v4328, 4294901760
    %4945 = vmatpush1.msra.mxu0 %v4944
    %4946 = vmatprep.subr.mxu0 0.0
    %4947 = vmatpush2.msra.mxu0 0.0
    %4948 = vmatprep.subr.mxu0 0.0
    %4949 = vmatpush2.msra.mxu0 0.0
    %4950 = vmatprep.subr.mxu0 0.0
    %4951 = vmatpush2.msra.mxu0 0.0
    %4952 = vmatprep.subr.mxu0 0.0
    %4953 = vmatpush2.msra.mxu0 0.0
    %4954 = vmatprep.subr.mxu0 0.0
    %4955 = vmatpush2.msra.mxu0 0.0
    %4956 = vmatprep.subr.mxu0 0.0
    %4957 = vmatpush2.msra.mxu0 0.0
    %4958 = vmatprep.subr.mxu0 0.0
    %4959 = vmatpush2.msra.mxu0 0.0
    %4960 = vmatprep.subr.mxu0 0.0
    %4961 = vmatpush2.msra.mxu0 0.0
    %4962 = vmatprep.subr.mxu0 0.0
    %4963 = vmatpush2.msra.mxu0 0.0
    %4964 = vmatprep.subr.mxu0 0.0
    %4965 = vmatpush2.msra.mxu0 0.0
    %4966 = vmatprep.subr.mxu0 0.0
    %4967 = vmatpush2.msra.mxu0 0.0
    %4968 = vmatprep.subr.mxu0 0.0
    %4969 = vmatpush2.msra.mxu0 0.0
    %4970 = vmatprep.subr.mxu0 0.0
    %4971 = vmatpush2.msra.mxu0 0.0
    %4972 = vmatprep.subr.mxu0 0.0
    %4973 = vmatpush2.msra.mxu0 0.0
    %4974 = vmatprep.subr.mxu0 0.0
    %4975 = vmatpush2.msra.mxu0 0.0
    %4976 = vmatprep.subr.mxu0 0.0
    %4977 = vmatpush2.msra.mxu0 0.0
    %4978 = vmatprep.mubr.f32.mxu0 0.0
    %v4979 = vand.u32 %v4327, 4294901760
    %4980 = vmatmul.mubr.f32.gmra.mxu0 %v4979
    %v4981 = vpop.f32.mrf.mxu0
    %v4982 = vadd.f32 %v4895, %v4981
    %v4983 = vpop.f32.mrf.mxu0
    %4984 = vdwg.mxu0
    %v4985 = vmul.f32 %v4982, 0.001953125
    %v4986 = vmul.f32 %v4985, %v4985
    %v4988 = vrot.slane %v4986, 7
    %v4990 = vsub.f32 %v4985, %v4988
    %v4991 = vmax.f32 %v4990, 0.0
    %s4992 = scalar_lea.vmem %s4, 2
    %v4993 = vld [vmem:[%s4992] sm:$0x1]
    %v4994 = vadd.f32 %v4991, 1e-05
    %v4995 = vrsqrt.pop %v4994
    %v4998 = vunpack.c.l.s4 1966171168
    %v4999 = vunpack.c.0.s8 %v4998
    %v5000 = vlaneseq
    %v5001 = vshrl.u32 %v5000, 7
    %v5002 = vsub.s32 %v4999, %v5001
    %v5003 = vrot.slane %v4995, %v5002
    %v5004 = vcombine.high %v5003, %v5003
    %v5006 = vunpack.c.l.s4 1966171168
    %v5007 = vunpack.c.0.s8 %v5006
    %v5008 = vlaneseq
    %v5009 = vshrl.u32 %v5008, 7
    %v5010 = vsub.s32 %v5007, %v5009
    %v5011 = vrot.slane %v5004, %v5010
    %v5013 = vmul.f32 %v4993, %v5011
    %s5014 = scalar_lea.vmem %s5, 2
    %v5015 = vld [vmem:[%s5014] sm:$0x1]
    %v5016 = vmul.f32 %v4985, %v5013
    %v5017 = vsub.f32 %v5015, %v5016
    %v5019 = vlaneseq
    %v5020 = vshrl.u32 %v5019, 7
    %v5021 = vsub.s32 0, %v5020
    %v5022 = vrot.slane %v5017, %v5021
    %v5024 = vsel %vm779, %v5013, %v5022
    %v5025 = vld [vmem:[%s7] sm:$0xff]
    %v5027 = vsel %vm1477, %v5024, 0
    %5029 = vmatprep.subr.mxu0 0.0
    %5030 = vmatpush1.msra.mxu0 0.0
    %5031 = vmatprep.subr.mxu0 0.0
    %5032 = vmatpush1.msra.mxu0 0.0
    %5033 = vmatprep.subr.mxu0 0.0
    %5034 = vmatpush1.msra.mxu0 0.0
    %5035 = vmatprep.subr.mxu0 0.0
    %5036 = vmatpush1.msra.mxu0 0.0
    %5037 = vmatprep.subr.mxu0 0.0
    %5038 = vmatpush1.msra.mxu0 0.0
    %5039 = vmatprep.subr.mxu0 0.0
    %5040 = vmatpush1.msra.mxu0 0.0
    %5041 = vmatprep.subr.mxu0 0.0
    %5042 = vmatpush1.msra.mxu0 0.0
    %5043 = vmatprep.subr.mxu0 0.0
    %5044 = vmatpush1.msra.mxu0 0.0
    %5045 = vmatprep.subr.mxu0 0.0
    %5046 = vmatpush1.msra.mxu0 0.0
    %5047 = vmatprep.subr.mxu0 0.0
    %5048 = vmatpush1.msra.mxu0 0.0
    %5049 = vmatprep.subr.mxu0 0.0
    %5050 = vmatpush1.msra.mxu0 0.0
    %5051 = vmatprep.subr.mxu0 0.0
    %5052 = vmatpush1.msra.mxu0 0.0
    %5053 = vmatprep.subr.mxu0 0.0
    %5054 = vmatpush1.msra.mxu0 0.0
    %5055 = vmatprep.subr.mxu0 0.0
    %5056 = vmatpush1.msra.mxu0 0.0
    %5057 = vmatprep.subr.mxu0 0.0
    %5058 = vmatpush1.msra.mxu0 0.0
    %5059 = vmatprep.subr.mxu0 0.0
    %v5060 = vand.u32 %v5025, 4294901760
    %5061 = vmatpush1.msra.mxu0 %v5060
    %5062 = vmatprep.subr.mxu0 0.0
    %5063 = vmatpush2.msra.mxu0 0.0
    %5064 = vmatprep.subr.mxu0 0.0
    %5065 = vmatpush2.msra.mxu0 0.0
    %5066 = vmatprep.subr.mxu0 0.0
    %5067 = vmatpush2.msra.mxu0 0.0
    %5068 = vmatprep.subr.mxu0 0.0
    %5069 = vmatpush2.msra.mxu0 0.0
    %5070 = vmatprep.subr.mxu0 0.0
    %5071 = vmatpush2.msra.mxu0 0.0
    %5072 = vmatprep.subr.mxu0 0.0
    %5073 = vmatpush2.msra.mxu0 0.0
    %5074 = vmatprep.subr.mxu0 0.0
    %5075 = vmatpush2.msra.mxu0 0.0
    %5076 = vmatprep.subr.mxu0 0.0
    %5077 = vmatpush2.msra.mxu0 0.0
    %5078 = vmatprep.subr.mxu0 0.0
    %5079 = vmatpush2.msra.mxu0 0.0
    %5080 = vmatprep.subr.mxu0 0.0
    %5081 = vmatpush2.msra.mxu0 0.0
    %5082 = vmatprep.subr.mxu0 0.0
    %5083 = vmatpush2.msra.mxu0 0.0
    %5084 = vmatprep.subr.mxu0 0.0
    %5085 = vmatpush2.msra.mxu0 0.0
    %5086 = vmatprep.subr.mxu0 0.0
    %5087 = vmatpush2.msra.mxu0 0.0
    %5088 = vmatprep.subr.mxu0 0.0
    %5089 = vmatpush2.msra.mxu0 0.0
    %5090 = vmatprep.subr.mxu0 0.0
    %5091 = vmatpush2.msra.mxu0 0.0
    %5092 = vmatprep.subr.mxu0 0.0
    %5093 = vmatpush2.msra.mxu0 0.0
    %5094 = vmatprep.mubr.f32.mxu0 0.0
    %v5095 = vand.u32 %v5027, 4294901760
    %v5096 = vsub.f32 %v5027, %v5095
    %v5097 = vand.u32 %v5096, 4294901760
    %v5098 = vsub.f32 %v5096, %v5097
    %v5099 = vand.u32 %v5098, 4294901760
    %5100 = vmatmul.mubr.f32.gmra.mxu0 %v5099
    %v5101 = vpop.f32.mrf.mxu0
    %v5102 = vadd.f32 0.0, %v5101
    %v5103 = vpop.f32.mrf.mxu0
    %5104 = vdwg.mxu0
    %5105 = vmatprep.subr.mxu0 0.0
    %5106 = vmatpush1.msra.mxu0 0.0
    %5107 = vmatprep.subr.mxu0 0.0
    %5108 = vmatpush1.msra.mxu0 0.0
    %5109 = vmatprep.subr.mxu0 0.0
    %5110 = vmatpush1.msra.mxu0 0.0
    %5111 = vmatprep.subr.mxu0 0.0
    %5112 = vmatpush1.msra.mxu0 0.0
    %5113 = vmatprep.subr.mxu0 0.0
    %5114 = vmatpush1.msra.mxu0 0.0
    %5115 = vmatprep.subr.mxu0 0.0
    %5116 = vmatpush1.msra.mxu0 0.0
    %5117 = vmatprep.subr.mxu0 0.0
    %5118 = vmatpush1.msra.mxu0 0.0
    %5119 = vmatprep.subr.mxu0 0.0
    %5120 = vmatpush1.msra.mxu0 0.0
    %5121 = vmatprep.subr.mxu0 0.0
    %5122 = vmatpush1.msra.mxu0 0.0
    %5123 = vmatprep.subr.mxu0 0.0
    %5124 = vmatpush1.msra.mxu0 0.0
    %5125 = vmatprep.subr.mxu0 0.0
    %5126 = vmatpush1.msra.mxu0 0.0
    %5127 = vmatprep.subr.mxu0 0.0
    %5128 = vmatpush1.msra.mxu0 0.0
    %5129 = vmatprep.subr.mxu0 0.0
    %5130 = vmatpush1.msra.mxu0 0.0
    %5131 = vmatprep.subr.mxu0 0.0
    %5132 = vmatpush1.msra.mxu0 0.0
    %5133 = vmatprep.subr.mxu0 0.0
    %5134 = vmatpush1.msra.mxu0 0.0
    %5135 = vmatprep.subr.mxu0 0.0
    %v5136 = vand.u32 %v5025, 4294901760
    %v5137 = vsub.f32 %v5025, %v5136
    %v5138 = vand.u32 %v5137, 4294901760
    %v5139 = vsub.f32 %v5137, %v5138
    %v5140 = vand.u32 %v5139, 4294901760
    %5141 = vmatpush1.msra.mxu0 %v5140
    %5142 = vmatprep.subr.mxu0 0.0
    %5143 = vmatpush2.msra.mxu0 0.0
    %5144 = vmatprep.subr.mxu0 0.0
    %5145 = vmatpush2.msra.mxu0 0.0
    %5146 = vmatprep.subr.mxu0 0.0
    %5147 = vmatpush2.msra.mxu0 0.0
    %5148 = vmatprep.subr.mxu0 0.0
    %5149 = vmatpush2.msra.mxu0 0.0
    %5150 = vmatprep.subr.mxu0 0.0
    %5151 = vmatpush2.msra.mxu0 0.0
    %5152 = vmatprep.subr.mxu0 0.0
    %5153 = vmatpush2.msra.mxu0 0.0
    %5154 = vmatprep.subr.mxu0 0.0
    %5155 = vmatpush2.msra.mxu0 0.0
    %5156 = vmatprep.subr.mxu0 0.0
    %5157 = vmatpush2.msra.mxu0 0.0
    %5158 = vmatprep.subr.mxu0 0.0
    %5159 = vmatpush2.msra.mxu0 0.0
    %5160 = vmatprep.subr.mxu0 0.0
    %5161 = vmatpush2.msra.mxu0 0.0
    %5162 = vmatprep.subr.mxu0 0.0
    %5163 = vmatpush2.msra.mxu0 0.0
    %5164 = vmatprep.subr.mxu0 0.0
    %5165 = vmatpush2.msra.mxu0 0.0
    %5166 = vmatprep.subr.mxu0 0.0
    %5167 = vmatpush2.msra.mxu0 0.0
    %5168 = vmatprep.subr.mxu0 0.0
    %5169 = vmatpush2.msra.mxu0 0.0
    %5170 = vmatprep.subr.mxu0 0.0
    %5171 = vmatpush2.msra.mxu0 0.0
    %5172 = vmatprep.subr.mxu0 0.0
    %5173 = vmatpush2.msra.mxu0 0.0
    %5174 = vmatprep.mubr.f32.mxu0 0.0
    %v5175 = vand.u32 %v5027, 4294901760
    %5176 = vmatmul.mubr.f32.gmra.mxu0 %v5175
    %v5177 = vpop.f32.mrf.mxu0
    %v5178 = vadd.f32 %v5102, %v5177
    %v5179 = vpop.f32.mrf.mxu0
    %5180 = vdwg.mxu0
    %5181 = vmatprep.subr.mxu0 0.0
    %5182 = vmatpush1.msra.mxu0 0.0
    %5183 = vmatprep.subr.mxu0 0.0
    %5184 = vmatpush1.msra.mxu0 0.0
    %5185 = vmatprep.subr.mxu0 0.0
    %5186 = vmatpush1.msra.mxu0 0.0
    %5187 = vmatprep.subr.mxu0 0.0
    %5188 = vmatpush1.msra.mxu0 0.0
    %5189 = vmatprep.subr.mxu0 0.0
    %5190 = vmatpush1.msra.mxu0 0.0
    %5191 = vmatprep.subr.mxu0 0.0
    %5192 = vmatpush1.msra.mxu0 0.0
    %5193 = vmatprep.subr.mxu0 0.0
    %5194 = vmatpush1.msra.mxu0 0.0
    %5195 = vmatprep.subr.mxu0 0.0
    %5196 = vmatpush1.msra.mxu0 0.0
    %5197 = vmatprep.subr.mxu0 0.0
    %5198 = vmatpush1.msra.mxu0 0.0
    %5199 = vmatprep.subr.mxu0 0.0
    %5200 = vmatpush1.msra.mxu0 0.0
    %5201 = vmatprep.subr.mxu0 0.0
    %5202 = vmatpush1.msra.mxu0 0.0
    %5203 = vmatprep.subr.mxu0 0.0
    %5204 = vmatpush1.msra.mxu0 0.0
    %5205 = vmatprep.subr.mxu0 0.0
    %5206 = vmatpush1.msra.mxu0 0.0
    %5207 = vmatprep.subr.mxu0 0.0
    %5208 = vmatpush1.msra.mxu0 0.0
    %5209 = vmatprep.subr.mxu0 0.0
    %5210 = vmatpush1.msra.mxu0 0.0
    %5211 = vmatprep.subr.mxu0 0.0
    %v5212 = vand.u32 %v5025, 4294901760
    %v5213 = vsub.f32 %v5025, %v5212
    %5214 = vmatpush1.msra.mxu0 %v5213
    %5215 = vmatprep.subr.mxu0 0.0
    %5216 = vmatpush2.msra.mxu0 0.0
    %5217 = vmatprep.subr.mxu0 0.0
    %5218 = vmatpush2.msra.mxu0 0.0
    %5219 = vmatprep.subr.mxu0 0.0
    %5220 = vmatpush2.msra.mxu0 0.0
    %5221 = vmatprep.subr.mxu0 0.0
    %5222 = vmatpush2.msra.mxu0 0.0
    %5223 = vmatprep.subr.mxu0 0.0
    %5224 = vmatpush2.msra.mxu0 0.0
    %5225 = vmatprep.subr.mxu0 0.0
    %5226 = vmatpush2.msra.mxu0 0.0
    %5227 = vmatprep.subr.mxu0 0.0
    %5228 = vmatpush2.msra.mxu0 0.0
    %5229 = vmatprep.subr.mxu0 0.0
    %5230 = vmatpush2.msra.mxu0 0.0
    %5231 = vmatprep.subr.mxu0 0.0
    %5232 = vmatpush2.msra.mxu0 0.0
    %5233 = vmatprep.subr.mxu0 0.0
    %5234 = vmatpush2.msra.mxu0 0.0
    %5235 = vmatprep.subr.mxu0 0.0
    %5236 = vmatpush2.msra.mxu0 0.0
    %5237 = vmatprep.subr.mxu0 0.0
    %5238 = vmatpush2.msra.mxu0 0.0
    %5239 = vmatprep.subr.mxu0 0.0
    %5240 = vmatpush2.msra.mxu0 0.0
    %5241 = vmatprep.subr.mxu0 0.0
    %5242 = vmatpush2.msra.mxu0 0.0
    %5243 = vmatprep.subr.mxu0 0.0
    %5244 = vmatpush2.msra.mxu0 0.0
    %5245 = vmatprep.subr.mxu0 0.0
    %5246 = vmatpush2.msra.mxu0 0.0
    %5247 = vmatprep.mubr.f32.mxu0 0.0
    %v5248 = vand.u32 %v5027, 4294901760
    %v5249 = vsub.f32 %v5027, %v5248
    %5250 = vmatmul.mubr.f32.gmra.mxu0 %v5249
    %v5251 = vpop.f32.mrf.mxu0
    %v5252 = vadd.f32 %v5178, %v5251
    %v5253 = vpop.f32.mrf.mxu0
    %5254 = vdwg.mxu0
    %5255 = vmatprep.subr.mxu0 0.0
    %5256 = vmatpush1.msra.mxu0 0.0
    %5257 = vmatprep.subr.mxu0 0.0
    %5258 = vmatpush1.msra.mxu0 0.0
    %5259 = vmatprep.subr.mxu0 0.0
    %5260 = vmatpush1.msra.mxu0 0.0
    %5261 = vmatprep.subr.mxu0 0.0
    %5262 = vmatpush1.msra.mxu0 0.0
    %5263 = vmatprep.subr.mxu0 0.0
    %5264 = vmatpush1.msra.mxu0 0.0
    %5265 = vmatprep.subr.mxu0 0.0
    %5266 = vmatpush1.msra.mxu0 0.0
    %5267 = vmatprep.subr.mxu0 0.0
    %5268 = vmatpush1.msra.mxu0 0.0
    %5269 = vmatprep.subr.mxu0 0.0
    %5270 = vmatpush1.msra.mxu0 0.0
    %5271 = vmatprep.subr.mxu0 0.0
    %5272 = vmatpush1.msra.mxu0 0.0
    %5273 = vmatprep.subr.mxu0 0.0
    %5274 = vmatpush1.msra.mxu0 0.0
    %5275 = vmatprep.subr.mxu0 0.0
    %5276 = vmatpush1.msra.mxu0 0.0
    %5277 = vmatprep.subr.mxu0 0.0
    %5278 = vmatpush1.msra.mxu0 0.0
    %5279 = vmatprep.subr.mxu0 0.0
    %5280 = vmatpush1.msra.mxu0 0.0
    %5281 = vmatprep.subr.mxu0 0.0
    %5282 = vmatpush1.msra.mxu0 0.0
    %5283 = vmatprep.subr.mxu0 0.0
    %5284 = vmatpush1.msra.mxu0 0.0
    %5285 = vmatprep.subr.mxu0 0.0
    %v5286 = vand.u32 %v5025, 4294901760
    %5287 = vmatpush1.msra.mxu0 %v5286
    %5288 = vmatprep.subr.mxu0 0.0
    %5289 = vmatpush2.msra.mxu0 0.0
    %5290 = vmatprep.subr.mxu0 0.0
    %5291 = vmatpush2.msra.mxu0 0.0
    %5292 = vmatprep.subr.mxu0 0.0
    %5293 = vmatpush2.msra.mxu0 0.0
    %5294 = vmatprep.subr.mxu0 0.0
    %5295 = vmatpush2.msra.mxu0 0.0
    %5296 = vmatprep.subr.mxu0 0.0
    %5297 = vmatpush2.msra.mxu0 0.0
    %5298 = vmatprep.subr.mxu0 0.0
    %5299 = vmatpush2.msra.mxu0 0.0
    %5300 = vmatprep.subr.mxu0 0.0
    %5301 = vmatpush2.msra.mxu0 0.0
    %5302 = vmatprep.subr.mxu0 0.0
    %5303 = vmatpush2.msra.mxu0 0.0
    %5304 = vmatprep.subr.mxu0 0.0
    %5305 = vmatpush2.msra.mxu0 0.0
    %5306 = vmatprep.subr.mxu0 0.0
    %5307 = vmatpush2.msra.mxu0 0.0
    %5308 = vmatprep.subr.mxu0 0.0
    %5309 = vmatpush2.msra.mxu0 0.0
    %5310 = vmatprep.subr.mxu0 0.0
    %5311 = vmatpush2.msra.mxu0 0.0
    %5312 = vmatprep.subr.mxu0 0.0
    %5313 = vmatpush2.msra.mxu0 0.0
    %5314 = vmatprep.subr.mxu0 0.0
    %5315 = vmatpush2.msra.mxu0 0.0
    %5316 = vmatprep.subr.mxu0 0.0
    %5317 = vmatpush2.msra.mxu0 0.0
    %5318 = vmatprep.subr.mxu0 0.0
    %5319 = vmatpush2.msra.mxu0 0.0
    %5320 = vmatprep.mubr.f32.mxu0 0.0
    %v5321 = vand.u32 %v5027, 4294901760
    %v5322 = vsub.f32 %v5027, %v5321
    %v5323 = vand.u32 %v5322, 4294901760
    %5324 = vmatmul.mubr.f32.gmra.mxu0 %v5323
    %v5325 = vpop.f32.mrf.mxu0
    %v5326 = vadd.f32 %v5252, %v5325
    %v5327 = vpop.f32.mrf.mxu0
    %5328 = vdwg.mxu0
    %5329 = vmatprep.subr.mxu0 0.0
    %5330 = vmatpush1.msra.mxu0 0.0
    %5331 = vmatprep.subr.mxu0 0.0
    %5332 = vmatpush1.msra.mxu0 0.0
    %5333 = vmatprep.subr.mxu0 0.0
    %5334 = vmatpush1.msra.mxu0 0.0
    %5335 = vmatprep.subr.mxu0 0.0
    %5336 = vmatpush1.msra.mxu0 0.0
    %5337 = vmatprep.subr.mxu0 0.0
    %5338 = vmatpush1.msra.mxu0 0.0
    %5339 = vmatprep.subr.mxu0 0.0
    %5340 = vmatpush1.msra.mxu0 0.0
    %5341 = vmatprep.subr.mxu0 0.0
    %5342 = vmatpush1.msra.mxu0 0.0
    %5343 = vmatprep.subr.mxu0 0.0
    %5344 = vmatpush1.msra.mxu0 0.0
    %5345 = vmatprep.subr.mxu0 0.0
    %5346 = vmatpush1.msra.mxu0 0.0
    %5347 = vmatprep.subr.mxu0 0.0
    %5348 = vmatpush1.msra.mxu0 0.0
    %5349 = vmatprep.subr.mxu0 0.0
    %5350 = vmatpush1.msra.mxu0 0.0
    %5351 = vmatprep.subr.mxu0 0.0
    %5352 = vmatpush1.msra.mxu0 0.0
    %5353 = vmatprep.subr.mxu0 0.0
    %5354 = vmatpush1.msra.mxu0 0.0
    %5355 = vmatprep.subr.mxu0 0.0
    %5356 = vmatpush1.msra.mxu0 0.0
    %5357 = vmatprep.subr.mxu0 0.0
    %5358 = vmatpush1.msra.mxu0 0.0
    %5359 = vmatprep.subr.mxu0 0.0
    %v5360 = vand.u32 %v5025, 4294901760
    %v5361 = vsub.f32 %v5025, %v5360
    %v5362 = vand.u32 %v5361, 4294901760
    %5363 = vmatpush1.msra.mxu0 %v5362
    %5364 = vmatprep.subr.mxu0 0.0
    %5365 = vmatpush2.msra.mxu0 0.0
    %5366 = vmatprep.subr.mxu0 0.0
    %5367 = vmatpush2.msra.mxu0 0.0
    %5368 = vmatprep.subr.mxu0 0.0
    %5369 = vmatpush2.msra.mxu0 0.0
    %5370 = vmatprep.subr.mxu0 0.0
    %5371 = vmatpush2.msra.mxu0 0.0
    %5372 = vmatprep.subr.mxu0 0.0
    %5373 = vmatpush2.msra.mxu0 0.0
    %5374 = vmatprep.subr.mxu0 0.0
    %5375 = vmatpush2.msra.mxu0 0.0
    %5376 = vmatprep.subr.mxu0 0.0
    %5377 = vmatpush2.msra.mxu0 0.0
    %5378 = vmatprep.subr.mxu0 0.0
    %5379 = vmatpush2.msra.mxu0 0.0
    %5380 = vmatprep.subr.mxu0 0.0
    %5381 = vmatpush2.msra.mxu0 0.0
    %5382 = vmatprep.subr.mxu0 0.0
    %5383 = vmatpush2.msra.mxu0 0.0
    %5384 = vmatprep.subr.mxu0 0.0
    %5385 = vmatpush2.msra.mxu0 0.0
    %5386 = vmatprep.subr.mxu0 0.0
    %5387 = vmatpush2.msra.mxu0 0.0
    %5388 = vmatprep.subr.mxu0 0.0
    %5389 = vmatpush2.msra.mxu0 0.0
    %5390 = vmatprep.subr.mxu0 0.0
    %5391 = vmatpush2.msra.mxu0 0.0
    %5392 = vmatprep.subr.mxu0 0.0
    %5393 = vmatpush2.msra.mxu0 0.0
    %5394 = vmatprep.subr.mxu0 0.0
    %5395 = vmatpush2.msra.mxu0 0.0
    %5396 = vmatprep.mubr.f32.mxu0 0.0
    %v5397 = vand.u32 %v5027, 4294901760
    %5398 = vmatmul.mubr.f32.gmra.mxu0 %v5397
    %v5399 = vpop.f32.mrf.mxu0
    %v5400 = vadd.f32 %v5326, %v5399
    %v5401 = vpop.f32.mrf.mxu0
    %5402 = vdwg.mxu0
    %5403 = vmatprep.subr.mxu0 0.0
    %5404 = vmatpush1.msra.mxu0 0.0
    %5405 = vmatprep.subr.mxu0 0.0
    %5406 = vmatpush1.msra.mxu0 0.0
    %5407 = vmatprep.subr.mxu0 0.0
    %5408 = vmatpush1.msra.mxu0 0.0
    %5409 = vmatprep.subr.mxu0 0.0
    %5410 = vmatpush1.msra.mxu0 0.0
    %5411 = vmatprep.subr.mxu0 0.0
    %5412 = vmatpush1.msra.mxu0 0.0
    %5413 = vmatprep.subr.mxu0 0.0
    %5414 = vmatpush1.msra.mxu0 0.0
    %5415 = vmatprep.subr.mxu0 0.0
    %5416 = vmatpush1.msra.mxu0 0.0
    %5417 = vmatprep.subr.mxu0 0.0
    %5418 = vmatpush1.msra.mxu0 0.0
    %5419 = vmatprep.subr.mxu0 0.0
    %5420 = vmatpush1.msra.mxu0 0.0
    %5421 = vmatprep.subr.mxu0 0.0
    %5422 = vmatpush1.msra.mxu0 0.0
    %5423 = vmatprep.subr.mxu0 0.0
    %5424 = vmatpush1.msra.mxu0 0.0
    %5425 = vmatprep.subr.mxu0 0.0
    %5426 = vmatpush1.msra.mxu0 0.0
    %5427 = vmatprep.subr.mxu0 0.0
    %5428 = vmatpush1.msra.mxu0 0.0
    %5429 = vmatprep.subr.mxu0 0.0
    %5430 = vmatpush1.msra.mxu0 0.0
    %5431 = vmatprep.subr.mxu0 0.0
    %5432 = vmatpush1.msra.mxu0 0.0
    %5433 = vmatprep.subr.mxu0 0.0
    %v5434 = vand.u32 %v5025, 4294901760
    %5435 = vmatpush1.msra.mxu0 %v5434
    %5436 = vmatprep.subr.mxu0 0.0
    %5437 = vmatpush2.msra.mxu0 0.0
    %5438 = vmatprep.subr.mxu0 0.0
    %5439 = vmatpush2.msra.mxu0 0.0
    %5440 = vmatprep.subr.mxu0 0.0
    %5441 = vmatpush2.msra.mxu0 0.0
    %5442 = vmatprep.subr.mxu0 0.0
    %5443 = vmatpush2.msra.mxu0 0.0
    %5444 = vmatprep.subr.mxu0 0.0
    %5445 = vmatpush2.msra.mxu0 0.0
    %5446 = vmatprep.subr.mxu0 0.0
    %5447 = vmatpush2.msra.mxu0 0.0
    %5448 = vmatprep.subr.mxu0 0.0
    %5449 = vmatpush2.msra.mxu0 0.0
    %5450 = vmatprep.subr.mxu0 0.0
    %5451 = vmatpush2.msra.mxu0 0.0
    %5452 = vmatprep.subr.mxu0 0.0
    %5453 = vmatpush2.msra.mxu0 0.0
    %5454 = vmatprep.subr.mxu0 0.0
    %5455 = vmatpush2.msra.mxu0 0.0
    %5456 = vmatprep.subr.mxu0 0.0
    %5457 = vmatpush2.msra.mxu0 0.0
    %5458 = vmatprep.subr.mxu0 0.0
    %5459 = vmatpush2.msra.mxu0 0.0
    %5460 = vmatprep.subr.mxu0 0.0
    %5461 = vmatpush2.msra.mxu0 0.0
    %5462 = vmatprep.subr.mxu0 0.0
    %5463 = vmatpush2.msra.mxu0 0.0
    %5464 = vmatprep.subr.mxu0 0.0
    %5465 = vmatpush2.msra.mxu0 0.0
    %5466 = vmatprep.subr.mxu0 0.0
    %5467 = vmatpush2.msra.mxu0 0.0
    %5468 = vmatprep.mubr.f32.mxu0 0.0
    %v5469 = vand.u32 %v5027, 4294901760
    %5470 = vmatmul.mubr.f32.gmra.mxu0 %v5469
    %v5471 = vpop.f32.mrf.mxu0
    %v5472 = vadd.f32 %v5400, %v5471
    %v5473 = vpop.f32.mrf.mxu0
    %5474 = vdwg.mxu0
    %v5475 = vlaneseq
    %v5476 = vshrl.u32 %v5475, 7
    %v5477 = vsub.s32 0, %v5476
    %v5478 = vrot.slane %v5472, %v5477
    %v5479 = vmul.f32 %v4274, %v5478
    %v5480 = vmul.f32 %v4277, %v5478
    %v5481 = vmul.f32 %v4282, %v5478
    %v5482 = vmul.f32 %v4285, %v5478
    %v5483 = vmul.f32 %v4290, %v5478
    %v5484 = vlaneseq
    %v5485 = vshrl.u32 %v5484, 7
    %v5486 = vsub.s32 1, %v5485
    %v5487 = vrot.slane %v5472, %v5486
    %v5488 = vadd.f32 %v5479, %v5487
    %v5489 = vadd.f32 %v5480, %v5487
    %v5490 = vadd.f32 %v5481, %v5487
    %v5491 = vadd.f32 %v5482, %v5487
    %v5492 = vadd.f32 %v5483, %v5487
    %v5493 = vmul.f32 %v5488, 0.5
    %v5494 = vmul.f32 %v5489, 0.5
    %v5495 = vmul.f32 %v5490, 0.5
    %v5496 = vmul.f32 %v5491, 0.5
    %v5497 = vmul.f32 %v5492, 0.5
    %v5498 = vmul.f32 %v5488, 0.70710677
    %v5499 = vmul.f32 %v5489, 0.70710677
    %v5500 = vmul.f32 %v5490, 0.70710677
    %v5501 = vmul.f32 %v5491, 0.70710677
    %v5502 = vmul.f32 %v5492, 0.70710677
    %vm5503 = vcmp.ge.f32.partialorder %v5498, 0.0
    %vm5504 = vcmp.ge.f32.partialorder %v5499, 0.0
    %vm5505 = vcmp.ge.f32.partialorder %v5500, 0.0
    %vm5506 = vcmp.ge.f32.partialorder %v5501, 0.0
    %vm5507 = vcmp.ge.f32.partialorder %v5502, 0.0
    %v5508 = vsel %vm5503, 1.0, -1.0
    %v5509 = vsel %vm5504, 1.0, -1.0
    %v5510 = vsel %vm5505, 1.0, -1.0
    %v5511 = vsel %vm5506, 1.0, -1.0
    %v5512 = vsel %vm5507, 1.0, -1.0
    %v5513 = vand.u32 2147483647, %v5498
    %v5514 = vand.u32 2147483647, %v5499
    %v5515 = vand.u32 2147483647, %v5500
    %v5516 = vand.u32 2147483647, %v5501
    %v5517 = vand.u32 2147483647, %v5502
    %v5518 = vmul.f32 %v5513, 0.3275911
    %v5519 = vmul.f32 %v5514, 0.3275911
    %v5520 = vmul.f32 %v5515, 0.3275911
    %v5521 = vmul.f32 %v5516, 0.3275911
    %v5522 = vmul.f32 %v5517, 0.3275911
    %v5523 = vadd.f32 %v5518, 1.0
    %v5524 = vadd.f32 %v5519, 1.0
    %v5525 = vadd.f32 %v5520, 1.0
    %v5526 = vadd.f32 %v5521, 1.0
    %v5527 = vadd.f32 %v5522, 1.0
    %v5528 = vrcp.pop %v5523
    %v5529 = vrcp.pop %v5524
    %v5530 = vrcp.pop %v5525
    %v5531 = vrcp.pop %v5526
    %v5532 = vrcp.pop %v5527
    %v5533 = vmul.f32 %v5528, 1.0614054
    %v5534 = vmul.f32 %v5529, 1.0614054
    %v5535 = vmul.f32 %v5530, 1.0614054
    %v5536 = vmul.f32 %v5531, 1.0614054
    %v5537 = vmul.f32 %v5532, 1.0614054
    %v5538 = vadd.f32 %v5533, -1.4531521
    %v5539 = vadd.f32 %v5534, -1.4531521
    %v5540 = vadd.f32 %v5535, -1.4531521
    %v5541 = vadd.f32 %v5536, -1.4531521
    %v5542 = vadd.f32 %v5537, -1.4531521
    %v5543 = vmul.f32 %v5538, %v5528
    %v5544 = vmul.f32 %v5539, %v5529
    %v5545 = vmul.f32 %v5540, %v5530
    %v5546 = vmul.f32 %v5541, %v5531
    %v5547 = vmul.f32 %v5542, %v5532
    %v5548 = vadd.f32 %v5543, 1.4214138
    %v5549 = vadd.f32 %v5544, 1.4214138
    %v5550 = vadd.f32 %v5545, 1.4214138
    %v5551 = vadd.f32 %v5546, 1.4214138
    %v5552 = vadd.f32 %v5547, 1.4214138
    %v5553 = vmul.f32 %v5548, %v5528
    %v5554 = vmul.f32 %v5549, %v5529
    %v5555 = vmul.f32 %v5550, %v5530
    %v5556 = vmul.f32 %v5551, %v5531
    %v5557 = vmul.f32 %v5552, %v5532
    %v5558 = vadd.f32 %v5553, -0.28449672
    %v5559 = vadd.f32 %v5554, -0.28449672
    %v5560 = vadd.f32 %v5555, -0.28449672
    %v5561 = vadd.f32 %v5556, -0.28449672
    %v5562 = vadd.f32 %v5557, -0.28449672
    %v5563 = vmul.f32 %v5558, %v5528
    %v5564 = vmul.f32 %v5559, %v5529
    %v5565 = vmul.f32 %v5560, %v5530
    %v5566 = vmul.f32 %v5561, %v5531
    %v5567 = vmul.f32 %v5562, %v5532
    %v5568 = vadd.f32 %v5563, 0.2548296
    %v5569 = vadd.f32 %v5564, 0.2548296
    %v5570 = vadd.f32 %v5565, 0.2548296
    %v5571 = vadd.f32 %v5566, 0.2548296
    %v5572 = vadd.f32 %v5567, 0.2548296
    %v5573 = vmul.f32 %v5568, %v5528
    %v5574 = vmul.f32 %v5569, %v5529
    %v5575 = vmul.f32 %v5570, %v5530
    %v5576 = vmul.f32 %v5571, %v5531
    %v5577 = vmul.f32 %v5572, %v5532
    %v5578 = vsub.f32 0.0, %v5513
    %v5579 = vsub.f32 0.0, %v5514
    %v5580 = vsub.f32 0.0, %v5515
    %v5581 = vsub.f32 0.0, %v5516
    %v5582 = vsub.f32 0.0, %v5517
    %v5583 = vmul.f32 %v5578, %v5513
    %v5584 = vmul.f32 %v5579, %v5514
    %v5585 = vmul.f32 %v5580, %v5515
    %v5586 = vmul.f32 %v5581, %v5516
    %v5587 = vmul.f32 %v5582, %v5517
    %v5588 = vmul.f32 %v5583, 1.442695
    %v5589 = vpow.pop %v5588
    %v5590 = vmul.f32 %v5584, 1.442695
    %v5591 = vpow.pop %v5590
    %v5592 = vmul.f32 %v5585, 1.442695
    %v5593 = vpow.pop %v5592
    %v5594 = vmul.f32 %v5586, 1.442695
    %v5595 = vpow.pop %v5594
    %v5596 = vmul.f32 %v5587, 1.442695
    %v5597 = vpow.pop %v5596
    %v5598 = vmul.f32 %v5573, %v5589
    %v5599 = vmul.f32 %v5574, %v5591
    %v5600 = vmul.f32 %v5575, %v5593
    %v5601 = vmul.f32 %v5576, %v5595
    %v5602 = vmul.f32 %v5577, %v5597
    %v5603 = vsub.f32 1.0, %v5598
    %v5604 = vsub.f32 1.0, %v5599
    %v5605 = vsub.f32 1.0, %v5600
    %v5606 = vsub.f32 1.0, %v5601
    %v5607 = vsub.f32 1.0, %v5602
    %v5608 = vmul.f32 %v5508, %v5603
    %v5609 = vmul.f32 %v5509, %v5604
    %v5610 = vmul.f32 %v5510, %v5605
    %v5611 = vmul.f32 %v5511, %v5606
    %v5612 = vmul.f32 %v5512, %v5607
    %v5613 = vadd.f32 %v5608, 1.0
    %v5614 = vadd.f32 %v5609, 1.0
    %v5615 = vadd.f32 %v5610, 1.0
    %v5616 = vadd.f32 %v5611, 1.0
    %v5617 = vadd.f32 %v5612, 1.0
    %v5618 = vmul.f32 %v5493, %v5613
    %v5619 = vmul.f32 %v5494, %v5614
    %v5620 = vmul.f32 %v5495, %v5615
    %v5621 = vmul.f32 %v5496, %v5616
    %v5622 = vmul.f32 %v5497, %v5617
    %v5623 = vpack.c.bf16 %v5619, %v5618
    %v5625 = vunpack.c.l.b16 %v5623
    %v5626 = vunpack.c.h.b16 %v5623
    %v5627 = vpack.c.b16 %v5625, %v5625
    %v5628 = vpack.c.b16 %v5626, %v5626
    %v5630 = vshrl.u32 %v5627, 16
    %v5632 = vrot.slane %v5630, 7
    %v5633 = vshll.u32 %v5627, 16
    %v5635 = vor.u32 %v5632, %v5633
    %v5636 = vrot.slane %v5632, 4
    %v5638 = vshrl.u32 %v5628, 16
    %v5640 = vrot.slane %v5638, 7
    %v5641 = vshll.u32 %v5628, 16
    %v5643 = vor.u32 %v5640, %v5641
    %v5644 = vsel %vm210, %v5636, %v5643
    %v5645 = vrot.slane %v5640, 4
    %v5649 = vld [vmem:[#allocation2] sm:$0xf]
    %v5650 = vsel %vm232, %v5635, %v5649
    %5651 = vst [vmem:[#allocation2] sm:$0xf] %v5650
    %5652 = vst [vmem:[#allocation2 + $0x4] sm:$0xf] %v5644
    %v5653 = vld [vmem:[#allocation2 + $0x8] sm:$0x1]
    %v5654 = vsel %vm47, %v5645, %v5653
    %5655 = vst [vmem:[#allocation2 + $0x8] sm:$0x1] %v5654
    %v5656 = vpack.c.bf16 %v5621, %v5620
    %v5657 = vpack.c.bf16 %v5622, %v5622
    %v5660 = vunpack.c.l.b16 %v5656
    %v5661 = vunpack.c.h.b16 %v5656
    %v5662 = vunpack.c.l.b16 %v5657
    %v5663 = vpack.c.b16 %v5660, %v5660
    %v5664 = vpack.c.b16 %v5661, %v5661
    %v5665 = vpack.c.b16 %v5662, %v5662
    %v5667 = vshrl.u32 %v5663, 16
    %v5669 = vrot.slane %v5667, 7
    %v5670 = vshll.u32 %v5663, 16
    %v5672 = vor.u32 %v5669, %v5670
    %v5673 = vrot.slane %v5669, 4
    %v5675 = vshrl.u32 %v5664, 16
    %v5677 = vrot.slane %v5675, 7
    %v5678 = vshll.u32 %v5664, 16
    %v5680 = vor.u32 %v5677, %v5678
    %v5681 = vsel %vm210, %v5673, %v5680
    %v5682 = vrot.slane %v5677, 4
    %v5684 = vshrl.u32 %v5665, 16
    %v5686 = vrot.slane %v5684, 7
    %v5687 = vshll.u32 %v5665, 16
    %v5689 = vor.u32 %v5686, %v5687
    %v5690 = vsel %vm210, %v5682, %v5689
    %v5694 = vld [vmem:[#allocation2 + $0x8] sm:$0xe]
    %v5695 = vsel %vm271, %v5672, %v5694
    %5696 = vst [vmem:[#allocation2 + $0x8] sm:$0xe] %v5695
    %5697 = vst [vmem:[#allocation2 + $0xc] sm:$0xf] %v5681
    %v5698 = vld [vmem:[#allocation2 + $0x10] sm:$0x3]
    %v5699 = vsel %vm277, %v5690, %v5698
    %5700 = vst [vmem:[#allocation2 + $0x10] sm:$0x3] %v5699
    %v5701 = vld [vmem:[#allocation2] sm:$0xf]
    %v5702 = vld [vmem:[#allocation2 + $0x4] sm:$0xf]
    %v5703 = vld [vmem:[#allocation2 + $0x8] sm:$0xf]
    %v5704 = vld [vmem:[#allocation2 + $0xc] sm:$0xf]
    %v5705 = vld [vmem:[#allocation2 + $0x10] sm:$0x1]
    %v5706 = vld [vmem:[#allocation2 + $0x10] sm:$0x3]
    %v5707 = vld [vmem:[#allocation2] sm:$0xe]
    %v5713 = vunpack.c.l.b16 %v5701
    %v5714 = vunpack.c.l.b16 %v5702
    %v5715 = vunpack.c.l.b16 %v5703
    %v5716 = vunpack.c.l.b16 %v5704
    %v5717 = vunpack.c.l.b16 %v5705
    %v5718 = vpack.c.b16 %v5714, %v5713
    %v5719 = vpack.c.b16 %v5716, %v5715
    %v5720 = vpack.c.b16 %v5717, %v5717
    %v5725 = vunpack.c.l.b16 %v5706
    %v5726 = vpack.c.b16 %v5725, %v5725
    %v5728 = vshrl.u32 %v5718, 16
    %v5730 = vshll.u32 %v5718, 16
    %v5732 = vrot.slane %v5730, 1
    %v5733 = vor.u32 %v5728, %v5732
    %v5735 = vshll.u32 %v5719, 16
    %v5737 = vrot.slane %v5735, 1
    %v5738 = vsel %vm403, %v5733, %v5737
    %v5739 = vshrl.u32 %v5719, 16
    %v5741 = vor.u32 %v5739, %v5737
    %v5743 = vshll.u32 %v5726, 16
    %v5745 = vrot.slane %v5743, 1
    %v5746 = vsel %vm403, %v5741, %v5745
    %v5747 = vshrl.u32 %v5726, 16
    %v5749 = vor.u32 %v5747, %v5745
    %v5754 = vunpack.c.l.b16 %v5707
    %v5755 = vpack.c.b16 %v5714, %v5754
    %v5756 = vrot.slane %v5755, 1
    %v5757 = vrot.slane %v5719, 1
    %v5758 = vsel %vm433, %v5756, %v5757
    %v5759 = vrot.slane %v5726, 1
    %v5760 = vsel %vm433, %v5757, %v5759
    %s5764 = scalar_lea.vmem [#allocation3], 576
    %v5765 = vld [vmem:[%s5764] sm:$0xf]
    %v5766 = vld [vmem:[%s5764 + $0x4] sm:$0xf]
    %v5767 = vld [vmem:[%s5764 + $0x8] sm:$0xf]
    %v5768 = vld [vmem:[%s5764 + $0xc] sm:$0xf]
    %v5769 = vld [vmem:[%s5764 + $0x10] sm:$0xf]
    %v5770 = vld [vmem:[%s5764 + $0x14] sm:$0xf]
    %v5771 = vld [vmem:[%s5764 + $0x18] sm:$0xf]
    %v5772 = vld [vmem:[%s5764 + $0x1c] sm:$0xf]
    %v5773 = vld [vmem:[%s5764 + $0x20] sm:$0xf]
    %v5774 = vld [vmem:[%s5764 + $0x24] sm:$0xf]
    %v5775 = vld [vmem:[%s5764 + $0x28] sm:$0xf]
    %v5776 = vld [vmem:[%s5764 + $0x2c] sm:$0xf]
    %v5777 = vld [vmem:[%s5764 + $0x30] sm:$0xf]
    %v5778 = vld [vmem:[%s5764 + $0x34] sm:$0xf]
    %v5779 = vld [vmem:[%s5764 + $0x38] sm:$0xf]
    %v5780 = vld [vmem:[%s5764 + $0x3c] sm:$0xf]
    %v5781 = vld [vmem:[%s5764 + $0x40] sm:$0xf]
    %v5782 = vld [vmem:[%s5764 + $0x44] sm:$0xf]
    %v5783 = vld [vmem:[%s5764 + $0x48] sm:$0xf]
    %v5784 = vld [vmem:[%s5764 + $0x4c] sm:$0xf]
    %v5785 = vld [vmem:[%s5764 + $0x50] sm:$0xf]
    %v5786 = vld [vmem:[%s5764 + $0x54] sm:$0xf]
    %v5787 = vld [vmem:[%s5764 + $0x58] sm:$0xf]
    %v5788 = vld [vmem:[%s5764 + $0x5c] sm:$0xf]
    %v5789 = vld [vmem:[%s5764 + $0x60] sm:$0xf]
    %v5790 = vld [vmem:[%s5764 + $0x64] sm:$0xf]
    %v5791 = vld [vmem:[%s5764 + $0x68] sm:$0xf]
    %v5792 = vld [vmem:[%s5764 + $0x6c] sm:$0xf]
    %v5793 = vld [vmem:[%s5764 + $0x70] sm:$0xf]
    %v5794 = vld [vmem:[%s5764 + $0x74] sm:$0xf]
    %v5795 = vld [vmem:[%s5764 + $0x78] sm:$0xf]
    %v5796 = vld [vmem:[%s5764 + $0x7c] sm:$0xf]
    %v5797 = vld [vmem:[%s5764 + $0x80] sm:$0xf]
    %v5798 = vld [vmem:[%s5764 + $0x84] sm:$0xf]
    %v5799 = vld [vmem:[%s5764 + $0x88] sm:$0xf]
    %v5800 = vld [vmem:[%s5764 + $0x8c] sm:$0xf]
    %v5801 = vld [vmem:[%s5764 + $0x90] sm:$0xf]
    %v5802 = vld [vmem:[%s5764 + $0x94] sm:$0xf]
    %v5803 = vld [vmem:[%s5764 + $0x98] sm:$0xf]
    %v5804 = vld [vmem:[%s5764 + $0x9c] sm:$0xf]
    %v5805 = vld [vmem:[%s5764 + $0xa0] sm:$0xf]
    %v5806 = vld [vmem:[%s5764 + $0xa4] sm:$0xf]
    %v5807 = vld [vmem:[%s5764 + $0xa8] sm:$0xf]
    %v5808 = vld [vmem:[%s5764 + $0xac] sm:$0xf]
    %v5809 = vld [vmem:[%s5764 + $0xb0] sm:$0xf]
    %v5810 = vld [vmem:[%s5764 + $0xb4] sm:$0xf]
    %v5811 = vld [vmem:[%s5764 + $0xb8] sm:$0xf]
    %v5812 = vld [vmem:[%s5764 + $0xbc] sm:$0xf]
    %v5861 = vunpack.c.l.b16 %v5765
    %v5862 = vunpack.c.l.b16 %v5766
    %v5863 = vunpack.c.l.b16 %v5767
    %v5864 = vunpack.c.l.b16 %v5768
    %v5865 = vunpack.c.l.b16 %v5769
    %v5866 = vunpack.c.l.b16 %v5770
    %v5867 = vunpack.c.l.b16 %v5771
    %v5868 = vunpack.c.l.b16 %v5772
    %v5869 = vunpack.c.l.b16 %v5773
    %v5870 = vunpack.c.l.b16 %v5774
    %v5871 = vunpack.c.l.b16 %v5775
    %v5872 = vunpack.c.l.b16 %v5776
    %v5873 = vunpack.c.l.b16 %v5777
    %v5874 = vunpack.c.l.b16 %v5778
    %v5875 = vunpack.c.l.b16 %v5779
    %v5876 = vunpack.c.l.b16 %v5780
    %v5877 = vunpack.c.l.b16 %v5781
    %v5878 = vunpack.c.l.b16 %v5782
    %v5879 = vunpack.c.l.b16 %v5783
    %v5880 = vunpack.c.l.b16 %v5784
    %v5881 = vunpack.c.l.b16 %v5785
    %v5882 = vunpack.c.l.b16 %v5786
    %v5883 = vunpack.c.l.b16 %v5787
    %v5884 = vunpack.c.l.b16 %v5788
    %v5885 = vunpack.c.l.b16 %v5789
    %v5886 = vunpack.c.l.b16 %v5790
    %v5887 = vunpack.c.l.b16 %v5791
    %v5888 = vunpack.c.l.b16 %v5792
    %v5889 = vunpack.c.l.b16 %v5793
    %v5890 = vunpack.c.l.b16 %v5794
    %v5891 = vunpack.c.l.b16 %v5795
    %v5892 = vunpack.c.l.b16 %v5796
    %v5893 = vunpack.c.l.b16 %v5797
    %v5894 = vunpack.c.l.b16 %v5798
    %v5895 = vunpack.c.l.b16 %v5799
    %v5896 = vunpack.c.l.b16 %v5800
    %v5897 = vunpack.c.l.b16 %v5801
    %v5898 = vunpack.c.l.b16 %v5802
    %v5899 = vunpack.c.l.b16 %v5803
    %v5900 = vunpack.c.l.b16 %v5804
    %v5901 = vunpack.c.l.b16 %v5805
    %v5902 = vunpack.c.l.b16 %v5806
    %v5903 = vunpack.c.l.b16 %v5807
    %v5904 = vunpack.c.l.b16 %v5808
    %v5905 = vunpack.c.l.b16 %v5809
    %v5906 = vunpack.c.l.b16 %v5810
    %v5907 = vunpack.c.l.b16 %v5811
    %v5908 = vunpack.c.l.b16 %v5812
    %v5909 = vpack.c.b16 %v5862, %v5861
    %v5910 = vpack.c.b16 %v5864, %v5863
    %v5911 = vpack.c.b16 %v5866, %v5865
    %v5912 = vpack.c.b16 %v5868, %v5867
    %v5913 = vpack.c.b16 %v5870, %v5869
    %v5914 = vpack.c.b16 %v5872, %v5871
    %v5915 = vpack.c.b16 %v5874, %v5873
    %v5916 = vpack.c.b16 %v5876, %v5875
    %v5917 = vpack.c.b16 %v5878, %v5877
    %v5918 = vpack.c.b16 %v5880, %v5879
    %v5919 = vpack.c.b16 %v5882, %v5881
    %v5920 = vpack.c.b16 %v5884, %v5883
    %v5921 = vpack.c.b16 %v5886, %v5885
    %v5922 = vpack.c.b16 %v5888, %v5887
    %v5923 = vpack.c.b16 %v5890, %v5889
    %v5924 = vpack.c.b16 %v5892, %v5891
    %v5925 = vpack.c.b16 %v5894, %v5893
    %v5926 = vpack.c.b16 %v5896, %v5895
    %v5927 = vpack.c.b16 %v5898, %v5897
    %v5928 = vpack.c.b16 %v5900, %v5899
    %v5929 = vpack.c.b16 %v5902, %v5901
    %v5930 = vpack.c.b16 %v5904, %v5903
    %v5931 = vpack.c.b16 %v5906, %v5905
    %v5932 = vpack.c.b16 %v5908, %v5907
    %5957 = vmatprep.subr.bf16.mxu0 0
    %5958 = vmatpush1.bf16.msra.mxu0 %v5916
    %5959 = vmatprep.subr.bf16.mxu0 0
    %5960 = vmatpush1.bf16.msra.mxu0 %v5915
    %5961 = vmatprep.subr.bf16.mxu0 0
    %5962 = vmatpush1.bf16.msra.mxu0 %v5914
    %5963 = vmatprep.subr.bf16.mxu0 0
    %5964 = vmatpush1.bf16.msra.mxu0 %v5913
    %5965 = vmatprep.subr.bf16.mxu0 0
    %5966 = vmatpush1.bf16.msra.mxu0 %v5912
    %5967 = vmatprep.subr.bf16.mxu0 0
    %5968 = vmatpush1.bf16.msra.mxu0 %v5911
    %5969 = vmatprep.subr.bf16.mxu0 0
    %5970 = vmatpush1.bf16.msra.mxu0 %v5910
    %5971 = vmatprep.subr.bf16.mxu0 0
    %5972 = vmatpush1.bf16.msra.mxu0 %v5909
    %5973 = vmatprep.subr.bf16.mxu0 0
    %5974 = vmatpush2.bf16.msra.mxu0 %v5924
    %5975 = vmatprep.subr.bf16.mxu0 0
    %5976 = vmatpush2.bf16.msra.mxu0 %v5923
    %5977 = vmatprep.subr.bf16.mxu0 0
    %5978 = vmatpush2.bf16.msra.mxu0 %v5922
    %5979 = vmatprep.subr.bf16.mxu0 0
    %5980 = vmatpush2.bf16.msra.mxu0 %v5921
    %5981 = vmatprep.subr.bf16.mxu0 0
    %5982 = vmatpush2.bf16.msra.mxu0 %v5920
    %5983 = vmatprep.subr.bf16.mxu0 0
    %5984 = vmatpush2.bf16.msra.mxu0 %v5919
    %5985 = vmatprep.subr.bf16.mxu0 0
    %5986 = vmatpush2.bf16.msra.mxu0 %v5918
    %5987 = vmatprep.subr.bf16.mxu0 0
    %5988 = vmatpush2.bf16.msra.mxu0 %v5917
    %5989 = vmatprep.mubr.bf16.mxu0 %v5738
    %5990 = vmatmul.mubr.bf16.gmra.mxu0 %v5718
    %v5991 = vpop.f32.mrf.mxu0
    %v5992 = vadd.f32 0.0, %v5991
    %v5993 = vpop.f32.mrf.mxu0
    %v5994 = vpop.f32.mrf.mxu0
    %v5995 = vadd.f32 0.0, %v5994
    %v5996 = vpop.f32.mrf.mxu0
    %5997 = vmatprep.mubr.bf16.mxu0 %v5746
    %5998 = vmatmul.mubr.bf16.gmra.mxu0 %v5719
    %v5999 = vpop.f32.mrf.mxu0
    %v6000 = vadd.f32 0.0, %v5999
    %v6001 = vpop.f32.mrf.mxu0
    %v6002 = vpop.f32.mrf.mxu0
    %v6003 = vadd.f32 0.0, %v6002
    %v6004 = vpop.f32.mrf.mxu0
    %6005 = vmatprep.mubr.bf16.mxu0 %v5749
    %6006 = vmatmul.mubr.bf16.gmra.mxu0 %v5720
    %v6007 = vpop.f32.mrf.mxu0
    %v6008 = vadd.f32 0.0, %v6007
    %v6009 = vpop.f32.mrf.mxu0
    %v6010 = vpop.f32.mrf.mxu0
    %v6011 = vpop.f32.mrf.mxu0
    %6012 = vdwg.mxu0
    %6013 = vmatprep.subr.bf16.mxu0 0
    %6014 = vmatpush1.bf16.msra.mxu0 %v5932
    %6015 = vmatprep.subr.bf16.mxu0 0
    %6016 = vmatpush1.bf16.msra.mxu0 %v5931
    %6017 = vmatprep.subr.bf16.mxu0 0
    %6018 = vmatpush1.bf16.msra.mxu0 %v5930
    %6019 = vmatprep.subr.bf16.mxu0 0
    %6020 = vmatpush1.bf16.msra.mxu0 %v5929
    %6021 = vmatprep.subr.bf16.mxu0 0
    %6022 = vmatpush1.bf16.msra.mxu0 %v5928
    %6023 = vmatprep.subr.bf16.mxu0 0
    %6024 = vmatpush1.bf16.msra.mxu0 %v5927
    %6025 = vmatprep.subr.bf16.mxu0 0
    %6026 = vmatpush1.bf16.msra.mxu0 %v5926
    %6027 = vmatprep.subr.bf16.mxu0 0
    %6028 = vmatpush1.bf16.msra.mxu0 %v5925
    %6029 = vmatprep.subr.bf16.mxu0 0
    %6030 = vmatpush2.bf16.msra.mxu0 0
    %6031 = vmatprep.subr.bf16.mxu0 0
    %6032 = vmatpush2.bf16.msra.mxu0 0
    %6033 = vmatprep.subr.bf16.mxu0 0
    %6034 = vmatpush2.bf16.msra.mxu0 0
    %6035 = vmatprep.subr.bf16.mxu0 0
    %6036 = vmatpush2.bf16.msra.mxu0 0
    %6037 = vmatprep.subr.bf16.mxu0 0
    %6038 = vmatpush2.bf16.msra.mxu0 0
    %6039 = vmatprep.subr.bf16.mxu0 0
    %6040 = vmatpush2.bf16.msra.mxu0 0
    %6041 = vmatprep.subr.bf16.mxu0 0
    %6042 = vmatpush2.bf16.msra.mxu0 0
    %6043 = vmatprep.subr.bf16.mxu0 0
    %6044 = vmatpush2.bf16.msra.mxu0 0
    %6045 = vmatprep.mubr.bf16.mxu0 0
    %6046 = vmatmul.mubr.bf16.gmra.mxu0 %v5758
    %v6047 = vpop.f32.mrf.mxu0
    %v6048 = vadd.f32 %v5992, %v6047
    %v6049 = vpop.f32.mrf.mxu0
    %v6050 = vpop.f32.mrf.mxu0
    %v6051 = vadd.f32 %v5995, %v6050
    %v6052 = vpop.f32.mrf.mxu0
    %6053 = vmatprep.mubr.bf16.mxu0 0
    %6054 = vmatmul.mubr.bf16.gmra.mxu0 %v5760
    %v6055 = vpop.f32.mrf.mxu0
    %v6056 = vadd.f32 %v6000, %v6055
    %v6057 = vpop.f32.mrf.mxu0
    %v6058 = vpop.f32.mrf.mxu0
    %v6059 = vadd.f32 %v6003, %v6058
    %v6060 = vpop.f32.mrf.mxu0
    %6061 = vmatprep.mubr.bf16.mxu0 0
    %6062 = vmatmul.mubr.bf16.gmra.mxu0 %v5759
    %v6063 = vpop.f32.mrf.mxu0
    %v6064 = vadd.f32 %v6008, %v6063
    %v6065 = vpop.f32.mrf.mxu0
    %v6066 = vpop.f32.mrf.mxu0
    %v6067 = vpop.f32.mrf.mxu0
    %6068 = vdwg.mxu0
    %v6069 = vmul.f32 %v6048, %v372
    %v6070 = vmul.f32 %v6051, %v373
    %v6071 = vmul.f32 %v6056, %v374
    %v6072 = vmul.f32 %v6059, %v375
    %v6073 = vmul.f32 %v6064, %v376
    %v6074 = vadd.f32 %v6069, %v6070
    %v6075 = vadd.f32 %v6074, %v6071
    %v6076 = vadd.f32 %v6075, %v6072
    %v6077 = vsel %vm754, %v6073, 0.0
    %v6078 = vadd.f32 %v6076, %v6077
    %v6079 = vrot.slane %v6078, 4
    %v6080 = vadd.f32 %v6078, %v6079
    %v6081 = vrot.slane %v6080, 2
    %v6082 = vadd.f32 %v6080, %v6081
    %v6083 = vrot.slane %v6082, 1
    %v6084 = vadd.f32 %v6082, %v6083
    %v6085 = vmul.f32 %v6069, %v6069
    %v6086 = vmul.f32 %v6070, %v6070
    %v6087 = vmul.f32 %v6071, %v6071
    %v6088 = vmul.f32 %v6072, %v6072
    %v6089 = vmul.f32 %v6073, %v6073
    %v6090 = vadd.f32 %v6085, %v6086
    %v6091 = vadd.f32 %v6090, %v6087
    %v6092 = vadd.f32 %v6091, %v6088
    %v6093 = vsel %vm754, %v6089, 0.0
    %v6094 = vadd.f32 %v6092, %v6093
    %v6095 = vrot.slane %v6094, 4
    %v6096 = vadd.f32 %v6094, %v6095
    %v6097 = vrot.slane %v6096, 2
    %v6098 = vadd.f32 %v6096, %v6097
    %v6099 = vrot.slane %v6098, 1
    %v6100 = vadd.f32 %v6098, %v6099
    %v6101 = vsel %vm779, %v6084, %v6100
    %v6102 = vld [vmem:[%s6] sm:$0xff]
    %v6103 = vld [vmem:[%s6 + $0x8] sm:$0xff]
    %v6104 = vld [vmem:[%s6 + $0x10] sm:$0xff]
    %v6105 = vld [vmem:[%s6 + $0x18] sm:$0xff]
    %v6106 = vld [vmem:[%s6 + $0x20] sm:$0xff]
    %v6107 = vld [vmem:[%s6 + $0x28] sm:$0xff]
    %v6108 = vld [vmem:[%s6 + $0x30] sm:$0xff]
    %v6109 = vld [vmem:[%s6 + $0x38] sm:$0xff]
    %v6110 = vld [vmem:[%s6 + $0x40] sm:$0xff]
    %v6111 = vld [vmem:[%s6 + $0x48] sm:$0xff]
    %v6112 = vld [vmem:[%s6 + $0x50] sm:$0xff]
    %v6113 = vld [vmem:[%s6 + $0x58] sm:$0xff]
    %v6114 = vld [vmem:[%s6 + $0x60] sm:$0xff]
    %v6115 = vld [vmem:[%s6 + $0x68] sm:$0xff]
    %v6116 = vld [vmem:[%s6 + $0x70] sm:$0xff]
    %v6117 = vld [vmem:[%s6 + $0x78] sm:$0xff]
    %6118 = vmatprep.subr.mxu0 0.0
    %v6119 = vand.u32 %v6117, 4294901760
    %6120 = vmatpush1.msra.mxu0 %v6119
    %6121 = vmatprep.subr.mxu0 0.0
    %v6122 = vand.u32 %v6116, 4294901760
    %6123 = vmatpush1.msra.mxu0 %v6122
    %6124 = vmatprep.subr.mxu0 0.0
    %v6125 = vand.u32 %v6115, 4294901760
    %6126 = vmatpush1.msra.mxu0 %v6125
    %6127 = vmatprep.subr.mxu0 0.0
    %v6128 = vand.u32 %v6114, 4294901760
    %6129 = vmatpush1.msra.mxu0 %v6128
    %6130 = vmatprep.subr.mxu0 0.0
    %v6131 = vand.u32 %v6113, 4294901760
    %6132 = vmatpush1.msra.mxu0 %v6131
    %6133 = vmatprep.subr.mxu0 0.0
    %v6134 = vand.u32 %v6112, 4294901760
    %6135 = vmatpush1.msra.mxu0 %v6134
    %6136 = vmatprep.subr.mxu0 0.0
    %v6137 = vand.u32 %v6111, 4294901760
    %6138 = vmatpush1.msra.mxu0 %v6137
    %6139 = vmatprep.subr.mxu0 0.0
    %v6140 = vand.u32 %v6110, 4294901760
    %6141 = vmatpush1.msra.mxu0 %v6140
    %6142 = vmatprep.subr.mxu0 0.0
    %v6143 = vand.u32 %v6109, 4294901760
    %6144 = vmatpush1.msra.mxu0 %v6143
    %6145 = vmatprep.subr.mxu0 0.0
    %v6146 = vand.u32 %v6108, 4294901760
    %6147 = vmatpush1.msra.mxu0 %v6146
    %6148 = vmatprep.subr.mxu0 0.0
    %v6149 = vand.u32 %v6107, 4294901760
    %6150 = vmatpush1.msra.mxu0 %v6149
    %6151 = vmatprep.subr.mxu0 0.0
    %v6152 = vand.u32 %v6106, 4294901760
    %6153 = vmatpush1.msra.mxu0 %v6152
    %6154 = vmatprep.subr.mxu0 0.0
    %v6155 = vand.u32 %v6105, 4294901760
    %6156 = vmatpush1.msra.mxu0 %v6155
    %6157 = vmatprep.subr.mxu0 0.0
    %v6158 = vand.u32 %v6104, 4294901760
    %6159 = vmatpush1.msra.mxu0 %v6158
    %6160 = vmatprep.subr.mxu0 0.0
    %v6161 = vand.u32 %v6103, 4294901760
    %6162 = vmatpush1.msra.mxu0 %v6161
    %6163 = vmatprep.subr.mxu0 0.0
    %v6164 = vand.u32 %v6102, 4294901760
    %6165 = vmatpush1.msra.mxu0 %v6164
    %6166 = vmatprep.subr.mxu0 0.0
    %6167 = vmatpush2.msra.mxu0 0.0
    %6168 = vmatprep.subr.mxu0 0.0
    %6169 = vmatpush2.msra.mxu0 0.0
    %6170 = vmatprep.subr.mxu0 0.0
    %6171 = vmatpush2.msra.mxu0 0.0
    %6172 = vmatprep.subr.mxu0 0.0
    %6173 = vmatpush2.msra.mxu0 0.0
    %6174 = vmatprep.subr.mxu0 0.0
    %6175 = vmatpush2.msra.mxu0 0.0
    %6176 = vmatprep.subr.mxu0 0.0
    %6177 = vmatpush2.msra.mxu0 0.0
    %6178 = vmatprep.subr.mxu0 0.0
    %6179 = vmatpush2.msra.mxu0 0.0
    %6180 = vmatprep.subr.mxu0 0.0
    %6181 = vmatpush2.msra.mxu0 0.0
    %6182 = vmatprep.subr.mxu0 0.0
    %6183 = vmatpush2.msra.mxu0 0.0
    %6184 = vmatprep.subr.mxu0 0.0
    %6185 = vmatpush2.msra.mxu0 0.0
    %6186 = vmatprep.subr.mxu0 0.0
    %6187 = vmatpush2.msra.mxu0 0.0
    %6188 = vmatprep.subr.mxu0 0.0
    %6189 = vmatpush2.msra.mxu0 0.0
    %6190 = vmatprep.subr.mxu0 0.0
    %6191 = vmatpush2.msra.mxu0 0.0
    %6192 = vmatprep.subr.mxu0 0.0
    %6193 = vmatpush2.msra.mxu0 0.0
    %6194 = vmatprep.subr.mxu0 0.0
    %6195 = vmatpush2.msra.mxu0 0.0
    %6196 = vmatprep.subr.mxu0 0.0
    %6197 = vmatpush2.msra.mxu0 0.0
    %6198 = vmatprep.mubr.f32.mxu0 0.0
    %v6199 = vand.u32 %v6101, 4294901760
    %v6200 = vsub.f32 %v6101, %v6199
    %v6201 = vand.u32 %v6200, 4294901760
    %v6202 = vsub.f32 %v6200, %v6201
    %v6203 = vand.u32 %v6202, 4294901760
    %6204 = vmatmul.mubr.f32.gmra.mxu0 %v6203
    %v6205 = vpop.f32.mrf.mxu0
    %v6206 = vadd.f32 0.0, %v6205
    %v6207 = vpop.f32.mrf.mxu0
    %6208 = vdwg.mxu0
    %6209 = vmatprep.subr.mxu0 0.0
    %v6210 = vand.u32 %v6117, 4294901760
    %v6211 = vsub.f32 %v6117, %v6210
    %v6212 = vand.u32 %v6211, 4294901760
    %v6213 = vsub.f32 %v6211, %v6212
    %v6214 = vand.u32 %v6213, 4294901760
    %6215 = vmatpush1.msra.mxu0 %v6214
    %6216 = vmatprep.subr.mxu0 0.0
    %v6217 = vand.u32 %v6116, 4294901760
    %v6218 = vsub.f32 %v6116, %v6217
    %v6219 = vand.u32 %v6218, 4294901760
    %v6220 = vsub.f32 %v6218, %v6219
    %v6221 = vand.u32 %v6220, 4294901760
    %6222 = vmatpush1.msra.mxu0 %v6221
    %6223 = vmatprep.subr.mxu0 0.0
    %v6224 = vand.u32 %v6115, 4294901760
    %v6225 = vsub.f32 %v6115, %v6224
    %v6226 = vand.u32 %v6225, 4294901760
    %v6227 = vsub.f32 %v6225, %v6226
    %v6228 = vand.u32 %v6227, 4294901760
    %6229 = vmatpush1.msra.mxu0 %v6228
    %6230 = vmatprep.subr.mxu0 0.0
    %v6231 = vand.u32 %v6114, 4294901760
    %v6232 = vsub.f32 %v6114, %v6231
    %v6233 = vand.u32 %v6232, 4294901760
    %v6234 = vsub.f32 %v6232, %v6233
    %v6235 = vand.u32 %v6234, 4294901760
    %6236 = vmatpush1.msra.mxu0 %v6235
    %6237 = vmatprep.subr.mxu0 0.0
    %v6238 = vand.u32 %v6113, 4294901760
    %v6239 = vsub.f32 %v6113, %v6238
    %v6240 = vand.u32 %v6239, 4294901760
    %v6241 = vsub.f32 %v6239, %v6240
    %v6242 = vand.u32 %v6241, 4294901760
    %6243 = vmatpush1.msra.mxu0 %v6242
    %6244 = vmatprep.subr.mxu0 0.0
    %v6245 = vand.u32 %v6112, 4294901760
    %v6246 = vsub.f32 %v6112, %v6245
    %v6247 = vand.u32 %v6246, 4294901760
    %v6248 = vsub.f32 %v6246, %v6247
    %v6249 = vand.u32 %v6248, 4294901760
    %6250 = vmatpush1.msra.mxu0 %v6249
    %6251 = vmatprep.subr.mxu0 0.0
    %v6252 = vand.u32 %v6111, 4294901760
    %v6253 = vsub.f32 %v6111, %v6252
    %v6254 = vand.u32 %v6253, 4294901760
    %v6255 = vsub.f32 %v6253, %v6254
    %v6256 = vand.u32 %v6255, 4294901760
    %6257 = vmatpush1.msra.mxu0 %v6256
    %6258 = vmatprep.subr.mxu0 0.0
    %v6259 = vand.u32 %v6110, 4294901760
    %v6260 = vsub.f32 %v6110, %v6259
    %v6261 = vand.u32 %v6260, 4294901760
    %v6262 = vsub.f32 %v6260, %v6261
    %v6263 = vand.u32 %v6262, 4294901760
    %6264 = vmatpush1.msra.mxu0 %v6263
    %6265 = vmatprep.subr.mxu0 0.0
    %v6266 = vand.u32 %v6109, 4294901760
    %v6267 = vsub.f32 %v6109, %v6266
    %v6268 = vand.u32 %v6267, 4294901760
    %v6269 = vsub.f32 %v6267, %v6268
    %v6270 = vand.u32 %v6269, 4294901760
    %6271 = vmatpush1.msra.mxu0 %v6270
    %6272 = vmatprep.subr.mxu0 0.0
    %v6273 = vand.u32 %v6108, 4294901760
    %v6274 = vsub.f32 %v6108, %v6273
    %v6275 = vand.u32 %v6274, 4294901760
    %v6276 = vsub.f32 %v6274, %v6275
    %v6277 = vand.u32 %v6276, 4294901760
    %6278 = vmatpush1.msra.mxu0 %v6277
    %6279 = vmatprep.subr.mxu0 0.0
    %v6280 = vand.u32 %v6107, 4294901760
    %v6281 = vsub.f32 %v6107, %v6280
    %v6282 = vand.u32 %v6281, 4294901760
    %v6283 = vsub.f32 %v6281, %v6282
    %v6284 = vand.u32 %v6283, 4294901760
    %6285 = vmatpush1.msra.mxu0 %v6284
    %6286 = vmatprep.subr.mxu0 0.0
    %v6287 = vand.u32 %v6106, 4294901760
    %v6288 = vsub.f32 %v6106, %v6287
    %v6289 = vand.u32 %v6288, 4294901760
    %v6290 = vsub.f32 %v6288, %v6289
    %v6291 = vand.u32 %v6290, 4294901760
    %6292 = vmatpush1.msra.mxu0 %v6291
    %6293 = vmatprep.subr.mxu0 0.0
    %v6294 = vand.u32 %v6105, 4294901760
    %v6295 = vsub.f32 %v6105, %v6294
    %v6296 = vand.u32 %v6295, 4294901760
    %v6297 = vsub.f32 %v6295, %v6296
    %v6298 = vand.u32 %v6297, 4294901760
    %6299 = vmatpush1.msra.mxu0 %v6298
    %6300 = vmatprep.subr.mxu0 0.0
    %v6301 = vand.u32 %v6104, 4294901760
    %v6302 = vsub.f32 %v6104, %v6301
    %v6303 = vand.u32 %v6302, 4294901760
    %v6304 = vsub.f32 %v6302, %v6303
    %v6305 = vand.u32 %v6304, 4294901760
    %6306 = vmatpush1.msra.mxu0 %v6305
    %6307 = vmatprep.subr.mxu0 0.0
    %v6308 = vand.u32 %v6103, 4294901760
    %v6309 = vsub.f32 %v6103, %v6308
    %v6310 = vand.u32 %v6309, 4294901760
    %v6311 = vsub.f32 %v6309, %v6310
    %v6312 = vand.u32 %v6311, 4294901760
    %6313 = vmatpush1.msra.mxu0 %v6312
    %6314 = vmatprep.subr.mxu0 0.0
    %v6315 = vand.u32 %v6102, 4294901760
    %v6316 = vsub.f32 %v6102, %v6315
    %v6317 = vand.u32 %v6316, 4294901760
    %v6318 = vsub.f32 %v6316, %v6317
    %v6319 = vand.u32 %v6318, 4294901760
    %6320 = vmatpush1.msra.mxu0 %v6319
    %6321 = vmatprep.subr.mxu0 0.0
    %6322 = vmatpush2.msra.mxu0 0.0
    %6323 = vmatprep.subr.mxu0 0.0
    %6324 = vmatpush2.msra.mxu0 0.0
    %6325 = vmatprep.subr.mxu0 0.0
    %6326 = vmatpush2.msra.mxu0 0.0
    %6327 = vmatprep.subr.mxu0 0.0
    %6328 = vmatpush2.msra.mxu0 0.0
    %6329 = vmatprep.subr.mxu0 0.0
    %6330 = vmatpush2.msra.mxu0 0.0
    %6331 = vmatprep.subr.mxu0 0.0
    %6332 = vmatpush2.msra.mxu0 0.0
    %6333 = vmatprep.subr.mxu0 0.0
    %6334 = vmatpush2.msra.mxu0 0.0
    %6335 = vmatprep.subr.mxu0 0.0
    %6336 = vmatpush2.msra.mxu0 0.0
    %6337 = vmatprep.subr.mxu0 0.0
    %6338 = vmatpush2.msra.mxu0 0.0
    %6339 = vmatprep.subr.mxu0 0.0
    %6340 = vmatpush2.msra.mxu0 0.0
    %6341 = vmatprep.subr.mxu0 0.0
    %6342 = vmatpush2.msra.mxu0 0.0
    %6343 = vmatprep.subr.mxu0 0.0
    %6344 = vmatpush2.msra.mxu0 0.0
    %6345 = vmatprep.subr.mxu0 0.0
    %6346 = vmatpush2.msra.mxu0 0.0
    %6347 = vmatprep.subr.mxu0 0.0
    %6348 = vmatpush2.msra.mxu0 0.0
    %6349 = vmatprep.subr.mxu0 0.0
    %6350 = vmatpush2.msra.mxu0 0.0
    %6351 = vmatprep.subr.mxu0 0.0
    %6352 = vmatpush2.msra.mxu0 0.0
    %6353 = vmatprep.mubr.f32.mxu0 0.0
    %v6354 = vand.u32 %v6101, 4294901760
    %6355 = vmatmul.mubr.f32.gmra.mxu0 %v6354
    %v6356 = vpop.f32.mrf.mxu0
    %v6357 = vadd.f32 %v6206, %v6356
    %v6358 = vpop.f32.mrf.mxu0
    %6359 = vdwg.mxu0
    %6360 = vmatprep.subr.mxu0 0.0
    %v6361 = vand.u32 %v6117, 4294901760
    %v6362 = vsub.f32 %v6117, %v6361
    %6363 = vmatpush1.msra.mxu0 %v6362
    %6364 = vmatprep.subr.mxu0 0.0
    %v6365 = vand.u32 %v6116, 4294901760
    %v6366 = vsub.f32 %v6116, %v6365
    %6367 = vmatpush1.msra.mxu0 %v6366
    %6368 = vmatprep.subr.mxu0 0.0
    %v6369 = vand.u32 %v6115, 4294901760
    %v6370 = vsub.f32 %v6115, %v6369
    %6371 = vmatpush1.msra.mxu0 %v6370
    %6372 = vmatprep.subr.mxu0 0.0
    %v6373 = vand.u32 %v6114, 4294901760
    %v6374 = vsub.f32 %v6114, %v6373
    %6375 = vmatpush1.msra.mxu0 %v6374
    %6376 = vmatprep.subr.mxu0 0.0
    %v6377 = vand.u32 %v6113, 4294901760
    %v6378 = vsub.f32 %v6113, %v6377
    %6379 = vmatpush1.msra.mxu0 %v6378
    %6380 = vmatprep.subr.mxu0 0.0
    %v6381 = vand.u32 %v6112, 4294901760
    %v6382 = vsub.f32 %v6112, %v6381
    %6383 = vmatpush1.msra.mxu0 %v6382
    %6384 = vmatprep.subr.mxu0 0.0
    %v6385 = vand.u32 %v6111, 4294901760
    %v6386 = vsub.f32 %v6111, %v6385
    %6387 = vmatpush1.msra.mxu0 %v6386
    %6388 = vmatprep.subr.mxu0 0.0
    %v6389 = vand.u32 %v6110, 4294901760
    %v6390 = vsub.f32 %v6110, %v6389
    %6391 = vmatpush1.msra.mxu0 %v6390
    %6392 = vmatprep.subr.mxu0 0.0
    %v6393 = vand.u32 %v6109, 4294901760
    %v6394 = vsub.f32 %v6109, %v6393
    %6395 = vmatpush1.msra.mxu0 %v6394
    %6396 = vmatprep.subr.mxu0 0.0
    %v6397 = vand.u32 %v6108, 4294901760
    %v6398 = vsub.f32 %v6108, %v6397
    %6399 = vmatpush1.msra.mxu0 %v6398
    %6400 = vmatprep.subr.mxu0 0.0
    %v6401 = vand.u32 %v6107, 4294901760
    %v6402 = vsub.f32 %v6107, %v6401
    %6403 = vmatpush1.msra.mxu0 %v6402
    %6404 = vmatprep.subr.mxu0 0.0
    %v6405 = vand.u32 %v6106, 4294901760
    %v6406 = vsub.f32 %v6106, %v6405
    %6407 = vmatpush1.msra.mxu0 %v6406
    %6408 = vmatprep.subr.mxu0 0.0
    %v6409 = vand.u32 %v6105, 4294901760
    %v6410 = vsub.f32 %v6105, %v6409
    %6411 = vmatpush1.msra.mxu0 %v6410
    %6412 = vmatprep.subr.mxu0 0.0
    %v6413 = vand.u32 %v6104, 4294901760
    %v6414 = vsub.f32 %v6104, %v6413
    %6415 = vmatpush1.msra.mxu0 %v6414
    %6416 = vmatprep.subr.mxu0 0.0
    %v6417 = vand.u32 %v6103, 4294901760
    %v6418 = vsub.f32 %v6103, %v6417
    %6419 = vmatpush1.msra.mxu0 %v6418
    %6420 = vmatprep.subr.mxu0 0.0
    %v6421 = vand.u32 %v6102, 4294901760
    %v6422 = vsub.f32 %v6102, %v6421
    %6423 = vmatpush1.msra.mxu0 %v6422
    %6424 = vmatprep.subr.mxu0 0.0
    %6425 = vmatpush2.msra.mxu0 0.0
    %6426 = vmatprep.subr.mxu0 0.0
    %6427 = vmatpush2.msra.mxu0 0.0
    %6428 = vmatprep.subr.mxu0 0.0
    %6429 = vmatpush2.msra.mxu0 0.0
    %6430 = vmatprep.subr.mxu0 0.0
    %6431 = vmatpush2.msra.mxu0 0.0
    %6432 = vmatprep.subr.mxu0 0.0
    %6433 = vmatpush2.msra.mxu0 0.0
    %6434 = vmatprep.subr.mxu0 0.0
    %6435 = vmatpush2.msra.mxu0 0.0
    %6436 = vmatprep.subr.mxu0 0.0
    %6437 = vmatpush2.msra.mxu0 0.0
    %6438 = vmatprep.subr.mxu0 0.0
    %6439 = vmatpush2.msra.mxu0 0.0
    %6440 = vmatprep.subr.mxu0 0.0
    %6441 = vmatpush2.msra.mxu0 0.0
    %6442 = vmatprep.subr.mxu0 0.0
    %6443 = vmatpush2.msra.mxu0 0.0
    %6444 = vmatprep.subr.mxu0 0.0
    %6445 = vmatpush2.msra.mxu0 0.0
    %6446 = vmatprep.subr.mxu0 0.0
    %6447 = vmatpush2.msra.mxu0 0.0
    %6448 = vmatprep.subr.mxu0 0.0
    %6449 = vmatpush2.msra.mxu0 0.0
    %6450 = vmatprep.subr.mxu0 0.0
    %6451 = vmatpush2.msra.mxu0 0.0
    %6452 = vmatprep.subr.mxu0 0.0
    %6453 = vmatpush2.msra.mxu0 0.0
    %6454 = vmatprep.subr.mxu0 0.0
    %6455 = vmatpush2.msra.mxu0 0.0
    %6456 = vmatprep.mubr.f32.mxu0 0.0
    %v6457 = vand.u32 %v6101, 4294901760
    %v6458 = vsub.f32 %v6101, %v6457
    %6459 = vmatmul.mubr.f32.gmra.mxu0 %v6458
    %v6460 = vpop.f32.mrf.mxu0
    %v6461 = vadd.f32 %v6357, %v6460
    %v6462 = vpop.f32.mrf.mxu0
    %6463 = vdwg.mxu0
    %6464 = vmatprep.subr.mxu0 0.0
    %v6465 = vand.u32 %v6117, 4294901760
    %6466 = vmatpush1.msra.mxu0 %v6465
    %6467 = vmatprep.subr.mxu0 0.0
    %v6468 = vand.u32 %v6116, 4294901760
    %6469 = vmatpush1.msra.mxu0 %v6468
    %6470 = vmatprep.subr.mxu0 0.0
    %v6471 = vand.u32 %v6115, 4294901760
    %6472 = vmatpush1.msra.mxu0 %v6471
    %6473 = vmatprep.subr.mxu0 0.0
    %v6474 = vand.u32 %v6114, 4294901760
    %6475 = vmatpush1.msra.mxu0 %v6474
    %6476 = vmatprep.subr.mxu0 0.0
    %v6477 = vand.u32 %v6113, 4294901760
    %6478 = vmatpush1.msra.mxu0 %v6477
    %6479 = vmatprep.subr.mxu0 0.0
    %v6480 = vand.u32 %v6112, 4294901760
    %6481 = vmatpush1.msra.mxu0 %v6480
    %6482 = vmatprep.subr.mxu0 0.0
    %v6483 = vand.u32 %v6111, 4294901760
    %6484 = vmatpush1.msra.mxu0 %v6483
    %6485 = vmatprep.subr.mxu0 0.0
    %v6486 = vand.u32 %v6110, 4294901760
    %6487 = vmatpush1.msra.mxu0 %v6486
    %6488 = vmatprep.subr.mxu0 0.0
    %v6489 = vand.u32 %v6109, 4294901760
    %6490 = vmatpush1.msra.mxu0 %v6489
    %6491 = vmatprep.subr.mxu0 0.0
    %v6492 = vand.u32 %v6108, 4294901760
    %6493 = vmatpush1.msra.mxu0 %v6492
    %6494 = vmatprep.subr.mxu0 0.0
    %v6495 = vand.u32 %v6107, 4294901760
    %6496 = vmatpush1.msra.mxu0 %v6495
    %6497 = vmatprep.subr.mxu0 0.0
    %v6498 = vand.u32 %v6106, 4294901760
    %6499 = vmatpush1.msra.mxu0 %v6498
    %6500 = vmatprep.subr.mxu0 0.0
    %v6501 = vand.u32 %v6105, 4294901760
    %6502 = vmatpush1.msra.mxu0 %v6501
    %6503 = vmatprep.subr.mxu0 0.0
    %v6504 = vand.u32 %v6104, 4294901760
    %6505 = vmatpush1.msra.mxu0 %v6504
    %6506 = vmatprep.subr.mxu0 0.0
    %v6507 = vand.u32 %v6103, 4294901760
    %6508 = vmatpush1.msra.mxu0 %v6507
    %6509 = vmatprep.subr.mxu0 0.0
    %v6510 = vand.u32 %v6102, 4294901760
    %6511 = vmatpush1.msra.mxu0 %v6510
    %6512 = vmatprep.subr.mxu0 0.0
    %6513 = vmatpush2.msra.mxu0 0.0
    %6514 = vmatprep.subr.mxu0 0.0
    %6515 = vmatpush2.msra.mxu0 0.0
    %6516 = vmatprep.subr.mxu0 0.0
    %6517 = vmatpush2.msra.mxu0 0.0
    %6518 = vmatprep.subr.mxu0 0.0
    %6519 = vmatpush2.msra.mxu0 0.0
    %6520 = vmatprep.subr.mxu0 0.0
    %6521 = vmatpush2.msra.mxu0 0.0
    %6522 = vmatprep.subr.mxu0 0.0
    %6523 = vmatpush2.msra.mxu0 0.0
    %6524 = vmatprep.subr.mxu0 0.0
    %6525 = vmatpush2.msra.mxu0 0.0
    %6526 = vmatprep.subr.mxu0 0.0
    %6527 = vmatpush2.msra.mxu0 0.0
    %6528 = vmatprep.subr.mxu0 0.0
    %6529 = vmatpush2.msra.mxu0 0.0
    %6530 = vmatprep.subr.mxu0 0.0
    %6531 = vmatpush2.msra.mxu0 0.0
    %6532 = vmatprep.subr.mxu0 0.0
    %6533 = vmatpush2.msra.mxu0 0.0
    %6534 = vmatprep.subr.mxu0 0.0
    %6535 = vmatpush2.msra.mxu0 0.0
    %6536 = vmatprep.subr.mxu0 0.0
    %6537 = vmatpush2.msra.mxu0 0.0
    %6538 = vmatprep.subr.mxu0 0.0
    %6539 = vmatpush2.msra.mxu0 0.0
    %6540 = vmatprep.subr.mxu0 0.0
    %6541 = vmatpush2.msra.mxu0 0.0
    %6542 = vmatprep.subr.mxu0 0.0
    %6543 = vmatpush2.msra.mxu0 0.0
    %6544 = vmatprep.mubr.f32.mxu0 0.0
    %v6545 = vand.u32 %v6101, 4294901760
    %v6546 = vsub.f32 %v6101, %v6545
    %v6547 = vand.u32 %v6546, 4294901760
    %6548 = vmatmul.mubr.f32.gmra.mxu0 %v6547
    %v6549 = vpop.f32.mrf.mxu0
    %v6550 = vadd.f32 %v6461, %v6549
    %v6551 = vpop.f32.mrf.mxu0
    %6552 = vdwg.mxu0
    %6553 = vmatprep.subr.mxu0 0.0
    %v6554 = vand.u32 %v6117, 4294901760
    %v6555 = vsub.f32 %v6117, %v6554
    %v6556 = vand.u32 %v6555, 4294901760
    %6557 = vmatpush1.msra.mxu0 %v6556
    %6558 = vmatprep.subr.mxu0 0.0
    %v6559 = vand.u32 %v6116, 4294901760
    %v6560 = vsub.f32 %v6116, %v6559
    %v6561 = vand.u32 %v6560, 4294901760
    %6562 = vmatpush1.msra.mxu0 %v6561
    %6563 = vmatprep.subr.mxu0 0.0
    %v6564 = vand.u32 %v6115, 4294901760
    %v6565 = vsub.f32 %v6115, %v6564
    %v6566 = vand.u32 %v6565, 4294901760
    %6567 = vmatpush1.msra.mxu0 %v6566
    %6568 = vmatprep.subr.mxu0 0.0
    %v6569 = vand.u32 %v6114, 4294901760
    %v6570 = vsub.f32 %v6114, %v6569
    %v6571 = vand.u32 %v6570, 4294901760
    %6572 = vmatpush1.msra.mxu0 %v6571
    %6573 = vmatprep.subr.mxu0 0.0
    %v6574 = vand.u32 %v6113, 4294901760
    %v6575 = vsub.f32 %v6113, %v6574
    %v6576 = vand.u32 %v6575, 4294901760
    %6577 = vmatpush1.msra.mxu0 %v6576
    %6578 = vmatprep.subr.mxu0 0.0
    %v6579 = vand.u32 %v6112, 4294901760
    %v6580 = vsub.f32 %v6112, %v6579
    %v6581 = vand.u32 %v6580, 4294901760
    %6582 = vmatpush1.msra.mxu0 %v6581
    %6583 = vmatprep.subr.mxu0 0.0
    %v6584 = vand.u32 %v6111, 4294901760
    %v6585 = vsub.f32 %v6111, %v6584
    %v6586 = vand.u32 %v6585, 4294901760
    %6587 = vmatpush1.msra.mxu0 %v6586
    %6588 = vmatprep.subr.mxu0 0.0
    %v6589 = vand.u32 %v6110, 4294901760
    %v6590 = vsub.f32 %v6110, %v6589
    %v6591 = vand.u32 %v6590, 4294901760
    %6592 = vmatpush1.msra.mxu0 %v6591
    %6593 = vmatprep.subr.mxu0 0.0
    %v6594 = vand.u32 %v6109, 4294901760
    %v6595 = vsub.f32 %v6109, %v6594
    %v6596 = vand.u32 %v6595, 4294901760
    %6597 = vmatpush1.msra.mxu0 %v6596
    %6598 = vmatprep.subr.mxu0 0.0
    %v6599 = vand.u32 %v6108, 4294901760
    %v6600 = vsub.f32 %v6108, %v6599
    %v6601 = vand.u32 %v6600, 4294901760
    %6602 = vmatpush1.msra.mxu0 %v6601
    %6603 = vmatprep.subr.mxu0 0.0
    %v6604 = vand.u32 %v6107, 4294901760
    %v6605 = vsub.f32 %v6107, %v6604
    %v6606 = vand.u32 %v6605, 4294901760
    %6607 = vmatpush1.msra.mxu0 %v6606
    %6608 = vmatprep.subr.mxu0 0.0
    %v6609 = vand.u32 %v6106, 4294901760
    %v6610 = vsub.f32 %v6106, %v6609
    %v6611 = vand.u32 %v6610, 4294901760
    %6612 = vmatpush1.msra.mxu0 %v6611
    %6613 = vmatprep.subr.mxu0 0.0
    %v6614 = vand.u32 %v6105, 4294901760
    %v6615 = vsub.f32 %v6105, %v6614
    %v6616 = vand.u32 %v6615, 4294901760
    %6617 = vmatpush1.msra.mxu0 %v6616
    %6618 = vmatprep.subr.mxu0 0.0
    %v6619 = vand.u32 %v6104, 4294901760
    %v6620 = vsub.f32 %v6104, %v6619
    %v6621 = vand.u32 %v6620, 4294901760
    %6622 = vmatpush1.msra.mxu0 %v6621
    %6623 = vmatprep.subr.mxu0 0.0
    %v6624 = vand.u32 %v6103, 4294901760
    %v6625 = vsub.f32 %v6103, %v6624
    %v6626 = vand.u32 %v6625, 4294901760
    %6627 = vmatpush1.msra.mxu0 %v6626
    %6628 = vmatprep.subr.mxu0 0.0
    %v6629 = vand.u32 %v6102, 4294901760
    %v6630 = vsub.f32 %v6102, %v6629
    %v6631 = vand.u32 %v6630, 4294901760
    %6632 = vmatpush1.msra.mxu0 %v6631
    %6633 = vmatprep.subr.mxu0 0.0
    %6634 = vmatpush2.msra.mxu0 0.0
    %6635 = vmatprep.subr.mxu0 0.0
    %6636 = vmatpush2.msra.mxu0 0.0
    %6637 = vmatprep.subr.mxu0 0.0
    %6638 = vmatpush2.msra.mxu0 0.0
    %6639 = vmatprep.subr.mxu0 0.0
    %6640 = vmatpush2.msra.mxu0 0.0
    %6641 = vmatprep.subr.mxu0 0.0
    %6642 = vmatpush2.msra.mxu0 0.0
    %6643 = vmatprep.subr.mxu0 0.0
    %6644 = vmatpush2.msra.mxu0 0.0
    %6645 = vmatprep.subr.mxu0 0.0
    %6646 = vmatpush2.msra.mxu0 0.0
    %6647 = vmatprep.subr.mxu0 0.0
    %6648 = vmatpush2.msra.mxu0 0.0
    %6649 = vmatprep.subr.mxu0 0.0
    %6650 = vmatpush2.msra.mxu0 0.0
    %6651 = vmatprep.subr.mxu0 0.0
    %6652 = vmatpush2.msra.mxu0 0.0
    %6653 = vmatprep.subr.mxu0 0.0
    %6654 = vmatpush2.msra.mxu0 0.0
    %6655 = vmatprep.subr.mxu0 0.0
    %6656 = vmatpush2.msra.mxu0 0.0
    %6657 = vmatprep.subr.mxu0 0.0
    %6658 = vmatpush2.msra.mxu0 0.0
    %6659 = vmatprep.subr.mxu0 0.0
    %6660 = vmatpush2.msra.mxu0 0.0
    %6661 = vmatprep.subr.mxu0 0.0
    %6662 = vmatpush2.msra.mxu0 0.0
    %6663 = vmatprep.subr.mxu0 0.0
    %6664 = vmatpush2.msra.mxu0 0.0
    %6665 = vmatprep.mubr.f32.mxu0 0.0
    %v6666 = vand.u32 %v6101, 4294901760
    %6667 = vmatmul.mubr.f32.gmra.mxu0 %v6666
    %v6668 = vpop.f32.mrf.mxu0
    %v6669 = vadd.f32 %v6550, %v6668
    %v6670 = vpop.f32.mrf.mxu0
    %6671 = vdwg.mxu0
    %6672 = vmatprep.subr.mxu0 0.0
    %v6673 = vand.u32 %v6117, 4294901760
    %6674 = vmatpush1.msra.mxu0 %v6673
    %6675 = vmatprep.subr.mxu0 0.0
    %v6676 = vand.u32 %v6116, 4294901760
    %6677 = vmatpush1.msra.mxu0 %v6676
    %6678 = vmatprep.subr.mxu0 0.0
    %v6679 = vand.u32 %v6115, 4294901760
    %6680 = vmatpush1.msra.mxu0 %v6679
    %6681 = vmatprep.subr.mxu0 0.0
    %v6682 = vand.u32 %v6114, 4294901760
    %6683 = vmatpush1.msra.mxu0 %v6682
    %6684 = vmatprep.subr.mxu0 0.0
    %v6685 = vand.u32 %v6113, 4294901760
    %6686 = vmatpush1.msra.mxu0 %v6685
    %6687 = vmatprep.subr.mxu0 0.0
    %v6688 = vand.u32 %v6112, 4294901760
    %6689 = vmatpush1.msra.mxu0 %v6688
    %6690 = vmatprep.subr.mxu0 0.0
    %v6691 = vand.u32 %v6111, 4294901760
    %6692 = vmatpush1.msra.mxu0 %v6691
    %6693 = vmatprep.subr.mxu0 0.0
    %v6694 = vand.u32 %v6110, 4294901760
    %6695 = vmatpush1.msra.mxu0 %v6694
    %6696 = vmatprep.subr.mxu0 0.0
    %v6697 = vand.u32 %v6109, 4294901760
    %6698 = vmatpush1.msra.mxu0 %v6697
    %6699 = vmatprep.subr.mxu0 0.0
    %v6700 = vand.u32 %v6108, 4294901760
    %6701 = vmatpush1.msra.mxu0 %v6700
    %6702 = vmatprep.subr.mxu0 0.0
    %v6703 = vand.u32 %v6107, 4294901760
    %6704 = vmatpush1.msra.mxu0 %v6703
    %6705 = vmatprep.subr.mxu0 0.0
    %v6706 = vand.u32 %v6106, 4294901760
    %6707 = vmatpush1.msra.mxu0 %v6706
    %6708 = vmatprep.subr.mxu0 0.0
    %v6709 = vand.u32 %v6105, 4294901760
    %6710 = vmatpush1.msra.mxu0 %v6709
    %6711 = vmatprep.subr.mxu0 0.0
    %v6712 = vand.u32 %v6104, 4294901760
    %6713 = vmatpush1.msra.mxu0 %v6712
    %6714 = vmatprep.subr.mxu0 0.0
    %v6715 = vand.u32 %v6103, 4294901760
    %6716 = vmatpush1.msra.mxu0 %v6715
    %6717 = vmatprep.subr.mxu0 0.0
    %v6718 = vand.u32 %v6102, 4294901760
    %6719 = vmatpush1.msra.mxu0 %v6718
    %6720 = vmatprep.subr.mxu0 0.0
    %6721 = vmatpush2.msra.mxu0 0.0
    %6722 = vmatprep.subr.mxu0 0.0
    %6723 = vmatpush2.msra.mxu0 0.0
    %6724 = vmatprep.subr.mxu0 0.0
    %6725 = vmatpush2.msra.mxu0 0.0
    %6726 = vmatprep.subr.mxu0 0.0
    %6727 = vmatpush2.msra.mxu0 0.0
    %6728 = vmatprep.subr.mxu0 0.0
    %6729 = vmatpush2.msra.mxu0 0.0
    %6730 = vmatprep.subr.mxu0 0.0
    %6731 = vmatpush2.msra.mxu0 0.0
    %6732 = vmatprep.subr.mxu0 0.0
    %6733 = vmatpush2.msra.mxu0 0.0
    %6734 = vmatprep.subr.mxu0 0.0
    %6735 = vmatpush2.msra.mxu0 0.0
    %6736 = vmatprep.subr.mxu0 0.0
    %6737 = vmatpush2.msra.mxu0 0.0
    %6738 = vmatprep.subr.mxu0 0.0
    %6739 = vmatpush2.msra.mxu0 0.0
    %6740 = vmatprep.subr.mxu0 0.0
    %6741 = vmatpush2.msra.mxu0 0.0
    %6742 = vmatprep.subr.mxu0 0.0
    %6743 = vmatpush2.msra.mxu0 0.0
    %6744 = vmatprep.subr.mxu0 0.0
    %6745 = vmatpush2.msra.mxu0 0.0
    %6746 = vmatprep.subr.mxu0 0.0
    %6747 = vmatpush2.msra.mxu0 0.0
    %6748 = vmatprep.subr.mxu0 0.0
    %6749 = vmatpush2.msra.mxu0 0.0
    %6750 = vmatprep.subr.mxu0 0.0
    %6751 = vmatpush2.msra.mxu0 0.0
    %6752 = vmatprep.mubr.f32.mxu0 0.0
    %v6753 = vand.u32 %v6101, 4294901760
    %6754 = vmatmul.mubr.f32.gmra.mxu0 %v6753
    %v6755 = vpop.f32.mrf.mxu0
    %v6756 = vadd.f32 %v6669, %v6755
    %v6757 = vpop.f32.mrf.mxu0
    %6758 = vdwg.mxu0
    %v6759 = vmul.f32 %v6756, 0.001953125
    %v6760 = vmul.f32 %v6759, %v6759
    %v6762 = vrot.slane %v6760, 7
    %v6764 = vsub.f32 %v6759, %v6762
    %v6765 = vmax.f32 %v6764, 0.0
    %s6766 = scalar_lea.vmem %s4, 3
    %v6767 = vld [vmem:[%s6766] sm:$0x1]
    %v6768 = vadd.f32 %v6765, 1e-05
    %v6769 = vrsqrt.pop %v6768
    %v6772 = vunpack.c.l.s4 1966171168
    %v6773 = vunpack.c.0.s8 %v6772
    %v6774 = vlaneseq
    %v6775 = vshrl.u32 %v6774, 7
    %v6776 = vsub.s32 %v6773, %v6775
    %v6777 = vrot.slane %v6769, %v6776
    %v6778 = vcombine.high %v6777, %v6777
    %v6780 = vunpack.c.l.s4 1966171168
    %v6781 = vunpack.c.0.s8 %v6780
    %v6782 = vlaneseq
    %v6783 = vshrl.u32 %v6782, 7
    %v6784 = vsub.s32 %v6781, %v6783
    %v6785 = vrot.slane %v6778, %v6784
    %v6787 = vmul.f32 %v6767, %v6785
    %s6788 = scalar_lea.vmem %s5, 3
    %v6789 = vld [vmem:[%s6788] sm:$0x1]
    %v6790 = vmul.f32 %v6759, %v6787
    %v6791 = vsub.f32 %v6789, %v6790
    %v6793 = vlaneseq
    %v6794 = vshrl.u32 %v6793, 7
    %v6795 = vsub.s32 0, %v6794
    %v6796 = vrot.slane %v6791, %v6795
    %v6798 = vsel %vm779, %v6787, %v6796
    %v6799 = vld [vmem:[%s7] sm:$0xff]
    %v6801 = vsel %vm1477, %v6798, 0
    %6803 = vmatprep.subr.mxu0 0.0
    %6804 = vmatpush1.msra.mxu0 0.0
    %6805 = vmatprep.subr.mxu0 0.0
    %6806 = vmatpush1.msra.mxu0 0.0
    %6807 = vmatprep.subr.mxu0 0.0
    %6808 = vmatpush1.msra.mxu0 0.0
    %6809 = vmatprep.subr.mxu0 0.0
    %6810 = vmatpush1.msra.mxu0 0.0
    %6811 = vmatprep.subr.mxu0 0.0
    %6812 = vmatpush1.msra.mxu0 0.0
    %6813 = vmatprep.subr.mxu0 0.0
    %6814 = vmatpush1.msra.mxu0 0.0
    %6815 = vmatprep.subr.mxu0 0.0
    %6816 = vmatpush1.msra.mxu0 0.0
    %6817 = vmatprep.subr.mxu0 0.0
    %6818 = vmatpush1.msra.mxu0 0.0
    %6819 = vmatprep.subr.mxu0 0.0
    %6820 = vmatpush1.msra.mxu0 0.0
    %6821 = vmatprep.subr.mxu0 0.0
    %6822 = vmatpush1.msra.mxu0 0.0
    %6823 = vmatprep.subr.mxu0 0.0
    %6824 = vmatpush1.msra.mxu0 0.0
    %6825 = vmatprep.subr.mxu0 0.0
    %6826 = vmatpush1.msra.mxu0 0.0
    %6827 = vmatprep.subr.mxu0 0.0
    %6828 = vmatpush1.msra.mxu0 0.0
    %6829 = vmatprep.subr.mxu0 0.0
    %6830 = vmatpush1.msra.mxu0 0.0
    %6831 = vmatprep.subr.mxu0 0.0
    %6832 = vmatpush1.msra.mxu0 0.0
    %6833 = vmatprep.subr.mxu0 0.0
    %v6834 = vand.u32 %v6799, 4294901760
    %6835 = vmatpush1.msra.mxu0 %v6834
    %6836 = vmatprep.subr.mxu0 0.0
    %6837 = vmatpush2.msra.mxu0 0.0
    %6838 = vmatprep.subr.mxu0 0.0
    %6839 = vmatpush2.msra.mxu0 0.0
    %6840 = vmatprep.subr.mxu0 0.0
    %6841 = vmatpush2.msra.mxu0 0.0
    %6842 = vmatprep.subr.mxu0 0.0
    %6843 = vmatpush2.msra.mxu0 0.0
    %6844 = vmatprep.subr.mxu0 0.0
    %6845 = vmatpush2.msra.mxu0 0.0
    %6846 = vmatprep.subr.mxu0 0.0
    %6847 = vmatpush2.msra.mxu0 0.0
    %6848 = vmatprep.subr.mxu0 0.0
    %6849 = vmatpush2.msra.mxu0 0.0
    %6850 = vmatprep.subr.mxu0 0.0
    %6851 = vmatpush2.msra.mxu0 0.0
    %6852 = vmatprep.subr.mxu0 0.0
    %6853 = vmatpush2.msra.mxu0 0.0
    %6854 = vmatprep.subr.mxu0 0.0
    %6855 = vmatpush2.msra.mxu0 0.0
    %6856 = vmatprep.subr.mxu0 0.0
    %6857 = vmatpush2.msra.mxu0 0.0
    %6858 = vmatprep.subr.mxu0 0.0
    %6859 = vmatpush2.msra.mxu0 0.0
    %6860 = vmatprep.subr.mxu0 0.0
    %6861 = vmatpush2.msra.mxu0 0.0
    %6862 = vmatprep.subr.mxu0 0.0
    %6863 = vmatpush2.msra.mxu0 0.0
    %6864 = vmatprep.subr.mxu0 0.0
    %6865 = vmatpush2.msra.mxu0 0.0
    %6866 = vmatprep.subr.mxu0 0.0
    %6867 = vmatpush2.msra.mxu0 0.0
    %6868 = vmatprep.mubr.f32.mxu0 0.0
    %v6869 = vand.u32 %v6801, 4294901760
    %v6870 = vsub.f32 %v6801, %v6869
    %v6871 = vand.u32 %v6870, 4294901760
    %v6872 = vsub.f32 %v6870, %v6871
    %v6873 = vand.u32 %v6872, 4294901760
    %6874 = vmatmul.mubr.f32.gmra.mxu0 %v6873
    %v6875 = vpop.f32.mrf.mxu0
    %v6876 = vadd.f32 0.0, %v6875
    %v6877 = vpop.f32.mrf.mxu0
    %6878 = vdwg.mxu0
    %6879 = vmatprep.subr.mxu0 0.0
    %6880 = vmatpush1.msra.mxu0 0.0
    %6881 = vmatprep.subr.mxu0 0.0
    %6882 = vmatpush1.msra.mxu0 0.0
    %6883 = vmatprep.subr.mxu0 0.0
    %6884 = vmatpush1.msra.mxu0 0.0
    %6885 = vmatprep.subr.mxu0 0.0
    %6886 = vmatpush1.msra.mxu0 0.0
    %6887 = vmatprep.subr.mxu0 0.0
    %6888 = vmatpush1.msra.mxu0 0.0
    %6889 = vmatprep.subr.mxu0 0.0
    %6890 = vmatpush1.msra.mxu0 0.0
    %6891 = vmatprep.subr.mxu0 0.0
    %6892 = vmatpush1.msra.mxu0 0.0
    %6893 = vmatprep.subr.mxu0 0.0
    %6894 = vmatpush1.msra.mxu0 0.0
    %6895 = vmatprep.subr.mxu0 0.0
    %6896 = vmatpush1.msra.mxu0 0.0
    %6897 = vmatprep.subr.mxu0 0.0
    %6898 = vmatpush1.msra.mxu0 0.0
    %6899 = vmatprep.subr.mxu0 0.0
    %6900 = vmatpush1.msra.mxu0 0.0
    %6901 = vmatprep.subr.mxu0 0.0
    %6902 = vmatpush1.msra.mxu0 0.0
    %6903 = vmatprep.subr.mxu0 0.0
    %6904 = vmatpush1.msra.mxu0 0.0
    %6905 = vmatprep.subr.mxu0 0.0
    %6906 = vmatpush1.msra.mxu0 0.0
    %6907 = vmatprep.subr.mxu0 0.0
    %6908 = vmatpush1.msra.mxu0 0.0
    %6909 = vmatprep.subr.mxu0 0.0
    %v6910 = vand.u32 %v6799, 4294901760
    %v6911 = vsub.f32 %v6799, %v6910
    %v6912 = vand.u32 %v6911, 4294901760
    %v6913 = vsub.f32 %v6911, %v6912
    %v6914 = vand.u32 %v6913, 4294901760
    %6915 = vmatpush1.msra.mxu0 %v6914
    %6916 = vmatprep.subr.mxu0 0.0
    %6917 = vmatpush2.msra.mxu0 0.0
    %6918 = vmatprep.subr.mxu0 0.0
    %6919 = vmatpush2.msra.mxu0 0.0
    %6920 = vmatprep.subr.mxu0 0.0
    %6921 = vmatpush2.msra.mxu0 0.0
    %6922 = vmatprep.subr.mxu0 0.0
    %6923 = vmatpush2.msra.mxu0 0.0
    %6924 = vmatprep.subr.mxu0 0.0
    %6925 = vmatpush2.msra.mxu0 0.0
    %6926 = vmatprep.subr.mxu0 0.0
    %6927 = vmatpush2.msra.mxu0 0.0
    %6928 = vmatprep.subr.mxu0 0.0
    %6929 = vmatpush2.msra.mxu0 0.0
    %6930 = vmatprep.subr.mxu0 0.0
    %6931 = vmatpush2.msra.mxu0 0.0
    %6932 = vmatprep.subr.mxu0 0.0
    %6933 = vmatpush2.msra.mxu0 0.0
    %6934 = vmatprep.subr.mxu0 0.0
    %6935 = vmatpush2.msra.mxu0 0.0
    %6936 = vmatprep.subr.mxu0 0.0
    %6937 = vmatpush2.msra.mxu0 0.0
    %6938 = vmatprep.subr.mxu0 0.0
    %6939 = vmatpush2.msra.mxu0 0.0
    %6940 = vmatprep.subr.mxu0 0.0
    %6941 = vmatpush2.msra.mxu0 0.0
    %6942 = vmatprep.subr.mxu0 0.0
    %6943 = vmatpush2.msra.mxu0 0.0
    %6944 = vmatprep.subr.mxu0 0.0
    %6945 = vmatpush2.msra.mxu0 0.0
    %6946 = vmatprep.subr.mxu0 0.0
    %6947 = vmatpush2.msra.mxu0 0.0
    %6948 = vmatprep.mubr.f32.mxu0 0.0
    %v6949 = vand.u32 %v6801, 4294901760
    %6950 = vmatmul.mubr.f32.gmra.mxu0 %v6949
    %v6951 = vpop.f32.mrf.mxu0
    %v6952 = vadd.f32 %v6876, %v6951
    %v6953 = vpop.f32.mrf.mxu0
    %6954 = vdwg.mxu0
    %6955 = vmatprep.subr.mxu0 0.0
    %6956 = vmatpush1.msra.mxu0 0.0
    %6957 = vmatprep.subr.mxu0 0.0
    %6958 = vmatpush1.msra.mxu0 0.0
    %6959 = vmatprep.subr.mxu0 0.0
    %6960 = vmatpush1.msra.mxu0 0.0
    %6961 = vmatprep.subr.mxu0 0.0
    %6962 = vmatpush1.msra.mxu0 0.0
    %6963 = vmatprep.subr.mxu0 0.0
    %6964 = vmatpush1.msra.mxu0 0.0
    %6965 = vmatprep.subr.mxu0 0.0
    %6966 = vmatpush1.msra.mxu0 0.0
    %6967 = vmatprep.subr.mxu0 0.0
    %6968 = vmatpush1.msra.mxu0 0.0
    %6969 = vmatprep.subr.mxu0 0.0
    %6970 = vmatpush1.msra.mxu0 0.0
    %6971 = vmatprep.subr.mxu0 0.0
    %6972 = vmatpush1.msra.mxu0 0.0
    %6973 = vmatprep.subr.mxu0 0.0
    %6974 = vmatpush1.msra.mxu0 0.0
    %6975 = vmatprep.subr.mxu0 0.0
    %6976 = vmatpush1.msra.mxu0 0.0
    %6977 = vmatprep.subr.mxu0 0.0
    %6978 = vmatpush1.msra.mxu0 0.0
    %6979 = vmatprep.subr.mxu0 0.0
    %6980 = vmatpush1.msra.mxu0 0.0
    %6981 = vmatprep.subr.mxu0 0.0
    %6982 = vmatpush1.msra.mxu0 0.0
    %6983 = vmatprep.subr.mxu0 0.0
    %6984 = vmatpush1.msra.mxu0 0.0
    %6985 = vmatprep.subr.mxu0 0.0
    %v6986 = vand.u32 %v6799, 4294901760
    %v6987 = vsub.f32 %v6799, %v6986
    %6988 = vmatpush1.msra.mxu0 %v6987
    %6989 = vmatprep.subr.mxu0 0.0
    %6990 = vmatpush2.msra.mxu0 0.0
    %6991 = vmatprep.subr.mxu0 0.0
    %6992 = vmatpush2.msra.mxu0 0.0
    %6993 = vmatprep.subr.mxu0 0.0
    %6994 = vmatpush2.msra.mxu0 0.0
    %6995 = vmatprep.subr.mxu0 0.0
    %6996 = vmatpush2.msra.mxu0 0.0
    %6997 = vmatprep.subr.mxu0 0.0
    %6998 = vmatpush2.msra.mxu0 0.0
    %6999 = vmatprep.subr.mxu0 0.0
    %7000 = vmatpush2.msra.mxu0 0.0
    %7001 = vmatprep.subr.mxu0 0.0
    %7002 = vmatpush2.msra.mxu0 0.0
    %7003 = vmatprep.subr.mxu0 0.0
    %7004 = vmatpush2.msra.mxu0 0.0
    %7005 = vmatprep.subr.mxu0 0.0
    %7006 = vmatpush2.msra.mxu0 0.0
    %7007 = vmatprep.subr.mxu0 0.0
    %7008 = vmatpush2.msra.mxu0 0.0
    %7009 = vmatprep.subr.mxu0 0.0
    %7010 = vmatpush2.msra.mxu0 0.0
    %7011 = vmatprep.subr.mxu0 0.0
    %7012 = vmatpush2.msra.mxu0 0.0
    %7013 = vmatprep.subr.mxu0 0.0
    %7014 = vmatpush2.msra.mxu0 0.0
    %7015 = vmatprep.subr.mxu0 0.0
    %7016 = vmatpush2.msra.mxu0 0.0
    %7017 = vmatprep.subr.mxu0 0.0
    %7018 = vmatpush2.msra.mxu0 0.0
    %7019 = vmatprep.subr.mxu0 0.0
    %7020 = vmatpush2.msra.mxu0 0.0
    %7021 = vmatprep.mubr.f32.mxu0 0.0
    %v7022 = vand.u32 %v6801, 4294901760
    %v7023 = vsub.f32 %v6801, %v7022
    %7024 = vmatmul.mubr.f32.gmra.mxu0 %v7023
    %v7025 = vpop.f32.mrf.mxu0
    %v7026 = vadd.f32 %v6952, %v7025
    %v7027 = vpop.f32.mrf.mxu0
    %7028 = vdwg.mxu0
    %7029 = vmatprep.subr.mxu0 0.0
    %7030 = vmatpush1.msra.mxu0 0.0
    %7031 = vmatprep.subr.mxu0 0.0
    %7032 = vmatpush1.msra.mxu0 0.0
    %7033 = vmatprep.subr.mxu0 0.0
    %7034 = vmatpush1.msra.mxu0 0.0
    %7035 = vmatprep.subr.mxu0 0.0
    %7036 = vmatpush1.msra.mxu0 0.0
    %7037 = vmatprep.subr.mxu0 0.0
    %7038 = vmatpush1.msra.mxu0 0.0
    %7039 = vmatprep.subr.mxu0 0.0
    %7040 = vmatpush1.msra.mxu0 0.0
    %7041 = vmatprep.subr.mxu0 0.0
    %7042 = vmatpush1.msra.mxu0 0.0
    %7043 = vmatprep.subr.mxu0 0.0
    %7044 = vmatpush1.msra.mxu0 0.0
    %7045 = vmatprep.subr.mxu0 0.0
    %7046 = vmatpush1.msra.mxu0 0.0
    %7047 = vmatprep.subr.mxu0 0.0
    %7048 = vmatpush1.msra.mxu0 0.0
    %7049 = vmatprep.subr.mxu0 0.0
    %7050 = vmatpush1.msra.mxu0 0.0
    %7051 = vmatprep.subr.mxu0 0.0
    %7052 = vmatpush1.msra.mxu0 0.0
    %7053 = vmatprep.subr.mxu0 0.0
    %7054 = vmatpush1.msra.mxu0 0.0
    %7055 = vmatprep.subr.mxu0 0.0
    %7056 = vmatpush1.msra.mxu0 0.0
    %7057 = vmatprep.subr.mxu0 0.0
    %7058 = vmatpush1.msra.mxu0 0.0
    %7059 = vmatprep.subr.mxu0 0.0
    %v7060 = vand.u32 %v6799, 4294901760
    %7061 = vmatpush1.msra.mxu0 %v7060
    %7062 = vmatprep.subr.mxu0 0.0
    %7063 = vmatpush2.msra.mxu0 0.0
    %7064 = vmatprep.subr.mxu0 0.0
    %7065 = vmatpush2.msra.mxu0 0.0
    %7066 = vmatprep.subr.mxu0 0.0
    %7067 = vmatpush2.msra.mxu0 0.0
    %7068 = vmatprep.subr.mxu0 0.0
    %7069 = vmatpush2.msra.mxu0 0.0
    %7070 = vmatprep.subr.mxu0 0.0
    %7071 = vmatpush2.msra.mxu0 0.0
    %7072 = vmatprep.subr.mxu0 0.0
    %7073 = vmatpush2.msra.mxu0 0.0
    %7074 = vmatprep.subr.mxu0 0.0
    %7075 = vmatpush2.msra.mxu0 0.0
    %7076 = vmatprep.subr.mxu0 0.0
    %7077 = vmatpush2.msra.mxu0 0.0
    %7078 = vmatprep.subr.mxu0 0.0
    %7079 = vmatpush2.msra.mxu0 0.0
    %7080 = vmatprep.subr.mxu0 0.0
    %7081 = vmatpush2.msra.mxu0 0.0
    %7082 = vmatprep.subr.mxu0 0.0
    %7083 = vmatpush2.msra.mxu0 0.0
    %7084 = vmatprep.subr.mxu0 0.0
    %7085 = vmatpush2.msra.mxu0 0.0
    %7086 = vmatprep.subr.mxu0 0.0
    %7087 = vmatpush2.msra.mxu0 0.0
    %7088 = vmatprep.subr.mxu0 0.0
    %7089 = vmatpush2.msra.mxu0 0.0
    %7090 = vmatprep.subr.mxu0 0.0
    %7091 = vmatpush2.msra.mxu0 0.0
    %7092 = vmatprep.subr.mxu0 0.0
    %7093 = vmatpush2.msra.mxu0 0.0
    %7094 = vmatprep.mubr.f32.mxu0 0.0
    %v7095 = vand.u32 %v6801, 4294901760
    %v7096 = vsub.f32 %v6801, %v7095
    %v7097 = vand.u32 %v7096, 4294901760
    %7098 = vmatmul.mubr.f32.gmra.mxu0 %v7097
    %v7099 = vpop.f32.mrf.mxu0
    %v7100 = vadd.f32 %v7026, %v7099
    %v7101 = vpop.f32.mrf.mxu0
    %7102 = vdwg.mxu0
    %7103 = vmatprep.subr.mxu0 0.0
    %7104 = vmatpush1.msra.mxu0 0.0
    %7105 = vmatprep.subr.mxu0 0.0
    %7106 = vmatpush1.msra.mxu0 0.0
    %7107 = vmatprep.subr.mxu0 0.0
    %7108 = vmatpush1.msra.mxu0 0.0
    %7109 = vmatprep.subr.mxu0 0.0
    %7110 = vmatpush1.msra.mxu0 0.0
    %7111 = vmatprep.subr.mxu0 0.0
    %7112 = vmatpush1.msra.mxu0 0.0
    %7113 = vmatprep.subr.mxu0 0.0
    %7114 = vmatpush1.msra.mxu0 0.0
    %7115 = vmatprep.subr.mxu0 0.0
    %7116 = vmatpush1.msra.mxu0 0.0
    %7117 = vmatprep.subr.mxu0 0.0
    %7118 = vmatpush1.msra.mxu0 0.0
    %7119 = vmatprep.subr.mxu0 0.0
    %7120 = vmatpush1.msra.mxu0 0.0
    %7121 = vmatprep.subr.mxu0 0.0
    %7122 = vmatpush1.msra.mxu0 0.0
    %7123 = vmatprep.subr.mxu0 0.0
    %7124 = vmatpush1.msra.mxu0 0.0
    %7125 = vmatprep.subr.mxu0 0.0
    %7126 = vmatpush1.msra.mxu0 0.0
    %7127 = vmatprep.subr.mxu0 0.0
    %7128 = vmatpush1.msra.mxu0 0.0
    %7129 = vmatprep.subr.mxu0 0.0
    %7130 = vmatpush1.msra.mxu0 0.0
    %7131 = vmatprep.subr.mxu0 0.0
    %7132 = vmatpush1.msra.mxu0 0.0
    %7133 = vmatprep.subr.mxu0 0.0
    %v7134 = vand.u32 %v6799, 4294901760
    %v7135 = vsub.f32 %v6799, %v7134
    %v7136 = vand.u32 %v7135, 4294901760
    %7137 = vmatpush1.msra.mxu0 %v7136
    %7138 = vmatprep.subr.mxu0 0.0
    %7139 = vmatpush2.msra.mxu0 0.0
    %7140 = vmatprep.subr.mxu0 0.0
    %7141 = vmatpush2.msra.mxu0 0.0
    %7142 = vmatprep.subr.mxu0 0.0
    %7143 = vmatpush2.msra.mxu0 0.0
    %7144 = vmatprep.subr.mxu0 0.0
    %7145 = vmatpush2.msra.mxu0 0.0
    %7146 = vmatprep.subr.mxu0 0.0
    %7147 = vmatpush2.msra.mxu0 0.0
    %7148 = vmatprep.subr.mxu0 0.0
    %7149 = vmatpush2.msra.mxu0 0.0
    %7150 = vmatprep.subr.mxu0 0.0
    %7151 = vmatpush2.msra.mxu0 0.0
    %7152 = vmatprep.subr.mxu0 0.0
    %7153 = vmatpush2.msra.mxu0 0.0
    %7154 = vmatprep.subr.mxu0 0.0
    %7155 = vmatpush2.msra.mxu0 0.0
    %7156 = vmatprep.subr.mxu0 0.0
    %7157 = vmatpush2.msra.mxu0 0.0
    %7158 = vmatprep.subr.mxu0 0.0
    %7159 = vmatpush2.msra.mxu0 0.0
    %7160 = vmatprep.subr.mxu0 0.0
    %7161 = vmatpush2.msra.mxu0 0.0
    %7162 = vmatprep.subr.mxu0 0.0
    %7163 = vmatpush2.msra.mxu0 0.0
    %7164 = vmatprep.subr.mxu0 0.0
    %7165 = vmatpush2.msra.mxu0 0.0
    %7166 = vmatprep.subr.mxu0 0.0
    %7167 = vmatpush2.msra.mxu0 0.0
    %7168 = vmatprep.subr.mxu0 0.0
    %7169 = vmatpush2.msra.mxu0 0.0
    %7170 = vmatprep.mubr.f32.mxu0 0.0
    %v7171 = vand.u32 %v6801, 4294901760
    %7172 = vmatmul.mubr.f32.gmra.mxu0 %v7171
    %v7173 = vpop.f32.mrf.mxu0
    %v7174 = vadd.f32 %v7100, %v7173
    %v7175 = vpop.f32.mrf.mxu0
    %7176 = vdwg.mxu0
    %7177 = vmatprep.subr.mxu0 0.0
    %7178 = vmatpush1.msra.mxu0 0.0
    %7179 = vmatprep.subr.mxu0 0.0
    %7180 = vmatpush1.msra.mxu0 0.0
    %7181 = vmatprep.subr.mxu0 0.0
    %7182 = vmatpush1.msra.mxu0 0.0
    %7183 = vmatprep.subr.mxu0 0.0
    %7184 = vmatpush1.msra.mxu0 0.0
    %7185 = vmatprep.subr.mxu0 0.0
    %7186 = vmatpush1.msra.mxu0 0.0
    %7187 = vmatprep.subr.mxu0 0.0
    %7188 = vmatpush1.msra.mxu0 0.0
    %7189 = vmatprep.subr.mxu0 0.0
    %7190 = vmatpush1.msra.mxu0 0.0
    %7191 = vmatprep.subr.mxu0 0.0
    %7192 = vmatpush1.msra.mxu0 0.0
    %7193 = vmatprep.subr.mxu0 0.0
    %7194 = vmatpush1.msra.mxu0 0.0
    %7195 = vmatprep.subr.mxu0 0.0
    %7196 = vmatpush1.msra.mxu0 0.0
    %7197 = vmatprep.subr.mxu0 0.0
    %7198 = vmatpush1.msra.mxu0 0.0
    %7199 = vmatprep.subr.mxu0 0.0
    %7200 = vmatpush1.msra.mxu0 0.0
    %7201 = vmatprep.subr.mxu0 0.0
    %7202 = vmatpush1.msra.mxu0 0.0
    %7203 = vmatprep.subr.mxu0 0.0
    %7204 = vmatpush1.msra.mxu0 0.0
    %7205 = vmatprep.subr.mxu0 0.0
    %7206 = vmatpush1.msra.mxu0 0.0
    %7207 = vmatprep.subr.mxu0 0.0
    %v7208 = vand.u32 %v6799, 4294901760
    %7209 = vmatpush1.msra.mxu0 %v7208
    %7210 = vmatprep.subr.mxu0 0.0
    %7211 = vmatpush2.msra.mxu0 0.0
    %7212 = vmatprep.subr.mxu0 0.0
    %7213 = vmatpush2.msra.mxu0 0.0
    %7214 = vmatprep.subr.mxu0 0.0
    %7215 = vmatpush2.msra.mxu0 0.0
    %7216 = vmatprep.subr.mxu0 0.0
    %7217 = vmatpush2.msra.mxu0 0.0
    %7218 = vmatprep.subr.mxu0 0.0
    %7219 = vmatpush2.msra.mxu0 0.0
    %7220 = vmatprep.subr.mxu0 0.0
    %7221 = vmatpush2.msra.mxu0 0.0
    %7222 = vmatprep.subr.mxu0 0.0
    %7223 = vmatpush2.msra.mxu0 0.0
    %7224 = vmatprep.subr.mxu0 0.0
    %7225 = vmatpush2.msra.mxu0 0.0
    %7226 = vmatprep.subr.mxu0 0.0
    %7227 = vmatpush2.msra.mxu0 0.0
    %7228 = vmatprep.subr.mxu0 0.0
    %7229 = vmatpush2.msra.mxu0 0.0
    %7230 = vmatprep.subr.mxu0 0.0
    %7231 = vmatpush2.msra.mxu0 0.0
    %7232 = vmatprep.subr.mxu0 0.0
    %7233 = vmatpush2.msra.mxu0 0.0
    %7234 = vmatprep.subr.mxu0 0.0
    %7235 = vmatpush2.msra.mxu0 0.0
    %7236 = vmatprep.subr.mxu0 0.0
    %7237 = vmatpush2.msra.mxu0 0.0
    %7238 = vmatprep.subr.mxu0 0.0
    %7239 = vmatpush2.msra.mxu0 0.0
    %7240 = vmatprep.subr.mxu0 0.0
    %7241 = vmatpush2.msra.mxu0 0.0
    %7242 = vmatprep.mubr.f32.mxu0 0.0
    %v7243 = vand.u32 %v6801, 4294901760
    %7244 = vmatmul.mubr.f32.gmra.mxu0 %v7243
    %v7245 = vpop.f32.mrf.mxu0
    %v7246 = vadd.f32 %v7174, %v7245
    %v7247 = vpop.f32.mrf.mxu0
    %7248 = vdwg.mxu0
    %v7249 = vlaneseq
    %v7250 = vshrl.u32 %v7249, 7
    %v7251 = vsub.s32 0, %v7250
    %v7252 = vrot.slane %v7246, %v7251
    %v7253 = vmul.f32 %v6048, %v7252
    %v7254 = vmul.f32 %v6051, %v7252
    %v7255 = vmul.f32 %v6056, %v7252
    %v7256 = vmul.f32 %v6059, %v7252
    %v7257 = vmul.f32 %v6064, %v7252
    %v7258 = vlaneseq
    %v7259 = vshrl.u32 %v7258, 7
    %v7260 = vsub.s32 1, %v7259
    %v7261 = vrot.slane %v7246, %v7260
    %v7262 = vadd.f32 %v7253, %v7261
    %v7263 = vadd.f32 %v7254, %v7261
    %v7264 = vadd.f32 %v7255, %v7261
    %v7265 = vadd.f32 %v7256, %v7261
    %v7266 = vadd.f32 %v7257, %v7261
    %v7267 = vmul.f32 %v7262, 0.5
    %v7268 = vmul.f32 %v7263, 0.5
    %v7269 = vmul.f32 %v7264, 0.5
    %v7270 = vmul.f32 %v7265, 0.5
    %v7271 = vmul.f32 %v7266, 0.5
    %v7272 = vmul.f32 %v7262, 0.70710677
    %v7273 = vmul.f32 %v7263, 0.70710677
    %v7274 = vmul.f32 %v7264, 0.70710677
    %v7275 = vmul.f32 %v7265, 0.70710677
    %v7276 = vmul.f32 %v7266, 0.70710677
    %vm7277 = vcmp.ge.f32.partialorder %v7272, 0.0
    %vm7278 = vcmp.ge.f32.partialorder %v7273, 0.0
    %vm7279 = vcmp.ge.f32.partialorder %v7274, 0.0
    %vm7280 = vcmp.ge.f32.partialorder %v7275, 0.0
    %vm7281 = vcmp.ge.f32.partialorder %v7276, 0.0
    %v7282 = vsel %vm7277, 1.0, -1.0
    %v7283 = vsel %vm7278, 1.0, -1.0
    %v7284 = vsel %vm7279, 1.0, -1.0
    %v7285 = vsel %vm7280, 1.0, -1.0
    %v7286 = vsel %vm7281, 1.0, -1.0
    %v7287 = vand.u32 2147483647, %v7272
    %v7288 = vand.u32 2147483647, %v7273
    %v7289 = vand.u32 2147483647, %v7274
    %v7290 = vand.u32 2147483647, %v7275
    %v7291 = vand.u32 2147483647, %v7276
    %v7292 = vmul.f32 %v7287, 0.3275911
    %v7293 = vmul.f32 %v7288, 0.3275911
    %v7294 = vmul.f32 %v7289, 0.3275911
    %v7295 = vmul.f32 %v7290, 0.3275911
    %v7296 = vmul.f32 %v7291, 0.3275911
    %v7297 = vadd.f32 %v7292, 1.0
    %v7298 = vadd.f32 %v7293, 1.0
    %v7299 = vadd.f32 %v7294, 1.0
    %v7300 = vadd.f32 %v7295, 1.0
    %v7301 = vadd.f32 %v7296, 1.0
    %v7302 = vrcp.pop %v7297
    %v7303 = vrcp.pop %v7298
    %v7304 = vrcp.pop %v7299
    %v7305 = vrcp.pop %v7300
    %v7306 = vrcp.pop %v7301
    %v7307 = vmul.f32 %v7302, 1.0614054
    %v7308 = vmul.f32 %v7303, 1.0614054
    %v7309 = vmul.f32 %v7304, 1.0614054
    %v7310 = vmul.f32 %v7305, 1.0614054
    %v7311 = vmul.f32 %v7306, 1.0614054
    %v7312 = vadd.f32 %v7307, -1.4531521
    %v7313 = vadd.f32 %v7308, -1.4531521
    %v7314 = vadd.f32 %v7309, -1.4531521
    %v7315 = vadd.f32 %v7310, -1.4531521
    %v7316 = vadd.f32 %v7311, -1.4531521
    %v7317 = vmul.f32 %v7312, %v7302
    %v7318 = vmul.f32 %v7313, %v7303
    %v7319 = vmul.f32 %v7314, %v7304
    %v7320 = vmul.f32 %v7315, %v7305
    %v7321 = vmul.f32 %v7316, %v7306
    %v7322 = vadd.f32 %v7317, 1.4214138
    %v7323 = vadd.f32 %v7318, 1.4214138
    %v7324 = vadd.f32 %v7319, 1.4214138
    %v7325 = vadd.f32 %v7320, 1.4214138
    %v7326 = vadd.f32 %v7321, 1.4214138
    %v7327 = vmul.f32 %v7322, %v7302
    %v7328 = vmul.f32 %v7323, %v7303
    %v7329 = vmul.f32 %v7324, %v7304
    %v7330 = vmul.f32 %v7325, %v7305
    %v7331 = vmul.f32 %v7326, %v7306
    %v7332 = vadd.f32 %v7327, -0.28449672
    %v7333 = vadd.f32 %v7328, -0.28449672
    %v7334 = vadd.f32 %v7329, -0.28449672
    %v7335 = vadd.f32 %v7330, -0.28449672
    %v7336 = vadd.f32 %v7331, -0.28449672
    %v7337 = vmul.f32 %v7332, %v7302
    %v7338 = vmul.f32 %v7333, %v7303
    %v7339 = vmul.f32 %v7334, %v7304
    %v7340 = vmul.f32 %v7335, %v7305
    %v7341 = vmul.f32 %v7336, %v7306
    %v7342 = vadd.f32 %v7337, 0.2548296
    %v7343 = vadd.f32 %v7338, 0.2548296
    %v7344 = vadd.f32 %v7339, 0.2548296
    %v7345 = vadd.f32 %v7340, 0.2548296
    %v7346 = vadd.f32 %v7341, 0.2548296
    %v7347 = vmul.f32 %v7342, %v7302
    %v7348 = vmul.f32 %v7343, %v7303
    %v7349 = vmul.f32 %v7344, %v7304
    %v7350 = vmul.f32 %v7345, %v7305
    %v7351 = vmul.f32 %v7346, %v7306
    %v7352 = vsub.f32 0.0, %v7287
    %v7353 = vsub.f32 0.0, %v7288
    %v7354 = vsub.f32 0.0, %v7289
    %v7355 = vsub.f32 0.0, %v7290
    %v7356 = vsub.f32 0.0, %v7291
    %v7357 = vmul.f32 %v7352, %v7287
    %v7358 = vmul.f32 %v7353, %v7288
    %v7359 = vmul.f32 %v7354, %v7289
    %v7360 = vmul.f32 %v7355, %v7290
    %v7361 = vmul.f32 %v7356, %v7291
    %v7362 = vmul.f32 %v7357, 1.442695
    %v7363 = vpow.pop %v7362
    %v7364 = vmul.f32 %v7358, 1.442695
    %v7365 = vpow.pop %v7364
    %v7366 = vmul.f32 %v7359, 1.442695
    %v7367 = vpow.pop %v7366
    %v7368 = vmul.f32 %v7360, 1.442695
    %v7369 = vpow.pop %v7368
    %v7370 = vmul.f32 %v7361, 1.442695
    %v7371 = vpow.pop %v7370
    %v7372 = vmul.f32 %v7347, %v7363
    %v7373 = vmul.f32 %v7348, %v7365
    %v7374 = vmul.f32 %v7349, %v7367
    %v7375 = vmul.f32 %v7350, %v7369
    %v7376 = vmul.f32 %v7351, %v7371
    %v7377 = vsub.f32 1.0, %v7372
    %v7378 = vsub.f32 1.0, %v7373
    %v7379 = vsub.f32 1.0, %v7374
    %v7380 = vsub.f32 1.0, %v7375
    %v7381 = vsub.f32 1.0, %v7376
    %v7382 = vmul.f32 %v7282, %v7377
    %v7383 = vmul.f32 %v7283, %v7378
    %v7384 = vmul.f32 %v7284, %v7379
    %v7385 = vmul.f32 %v7285, %v7380
    %v7386 = vmul.f32 %v7286, %v7381
    %v7387 = vadd.f32 %v7382, 1.0
    %v7388 = vadd.f32 %v7383, 1.0
    %v7389 = vadd.f32 %v7384, 1.0
    %v7390 = vadd.f32 %v7385, 1.0
    %v7391 = vadd.f32 %v7386, 1.0
    %v7392 = vmul.f32 %v7267, %v7387
    %v7393 = vmul.f32 %v7268, %v7388
    %v7394 = vmul.f32 %v7269, %v7389
    %v7395 = vmul.f32 %v7270, %v7390
    %v7396 = vmul.f32 %v7271, %v7391
    %7397 = vst [vmem:[#allocation6] sm:$0xff] %v7392
    %7398 = vst [vmem:[#allocation6 + $0x8] sm:$0xff] %v7393
    %7399 = vst [vmem:[#allocation6 + $0xe] sm:$0xfc] %v7394
    %7400 = vst [vmem:[#allocation6 + $0x16] sm:$0xff] %v7395
    %7401 = vst [vmem:[#allocation6 + $0x1e] sm:$0x3] %v7396
    // Predicated region
    $region38: #{tpu_custom_call.1} parent=1 // pred_check
      _
    $region39: #{tpu_custom_call.1} parent=1 // pred_check_branch
      %7403 = sbr.rel (0) target = $region41
    $region40: #{tpu_custom_call.1} parent=1 // pred_region
      %s7405 = ssub.s32 512, 512
      %7406 = vsyncadd [#allocation5], %s7405
      %s7407 = sshll.u32 [#allocation6], 4
      %s7408 = int_to_ptr.vmem [resolvable:$true] %s7407
      %7413 = dma.vmem_to_hbm [thread:$0]  %s7408, 512, %s8, [#allocation5], 128, 128, 8
    $region41: #{tpu_custom_call.1} parent=1 // pred_fallthru
      _
    // Predicated region
    $region42: #{tpu_custom_call.1} parent=1 // pred_check
      _
    $region43: #{tpu_custom_call.1} parent=1 // pred_check_branch
      %7415 = sbr.rel (0) target = $region45
    $region44: #{tpu_custom_call.1} parent=1 // pred_region
      %7416 = dma.done [#allocation5], 512
    $region45: #{tpu_custom_call.1} parent=1 // pred_fallthru
      _
    %7417 = vsyncpa [#allocation4], 1
    %7418 = vsyncpa [#allocation5], 1

</llo_original>
